<compile_context>
chip_gen: v7x
topology: tpu7x:2x2x1
jax: 0.10.0
libtpu: 0.0.40
codegen_flags: <defaults>
</compile_context>

<pallas_src>
import functools

import jax
import jax.numpy as jnp
from jax.experimental import pallas as pl
from jax.experimental.pallas import tpu as pltpu


_ALIGN = 16  # sublane alignment used for bf16 blocks


def _round_up(x, m):
    return (x + m - 1) // m * m


def _cdiv(a, b):
    return (a + b - 1) // b


def _build_conv_kernel(*, offsets, tm, wp2, m_out, n_valid, use_bias,
                       use_norm, use_lrelu, eps=1e-5, slope=0.2):
    """Fused conv-as-shifted-matmuls (+bias) (+InstanceNorm) (+LeakyReLU)."""

    def kernel(*refs):
        if use_bias:
            xa_ref, xb_ref, w_ref, b_ref = refs[:4]
            o_ref = refs[4]
            scratch = refs[5:]
        else:
            xa_ref, xb_ref, w_ref = refs[:3]
            b_ref = None
            o_ref = refs[3]
            scratch = refs[4:]

        m = pl.program_id(1)

        # Current M tile plus the halo rows the taps reach into: (tm + h8, K).
        x = jnp.concatenate([xa_ref[0], xb_ref[0]], axis=0)

        acc = None
        for t, off in enumerate(offsets):
            xs = x[off:off + tm, :]                       # (tm, K) bf16
            part = jnp.dot(xs, w_ref[t],
                           preferred_element_type=jnp.float32)
            acc = part if acc is None else acc + part
        if use_bias:
            acc = acc + b_ref[...].astype(jnp.float32)    # (tm, C) f32

        if not use_norm:
            y = acc
            if use_lrelu:
                y = jnp.where(y > 0, y, slope * y)
            o_ref[0] = y.astype(o_ref.dtype)
            return

        sum_ref, ssq_ref, ybuf_ref = scratch

        @pl.when(m == 0)
        def _init():
            sum_ref[...] = jnp.zeros_like(sum_ref)
            ssq_ref[...] = jnp.zeros_like(ssq_ref)

        # Rows that are not real output pixels (row-wrap columns of the
        # flattened layout and the padded tail) are excluded so InstanceNorm
        # statistics cover exactly the OH*OW valid spatial positions.
        row = m * tm + jax.lax.broadcasted_iota(jnp.int32, (tm, 1), 0)
        valid = jnp.logical_and(row < m_out, (row % wp2) != (wp2 - 1))
        acc_v = jnp.where(valid, acc, 0.0)
        sum_ref[...] = sum_ref[...] + jnp.sum(acc_v, axis=0, keepdims=True)
        ssq_ref[...] = ssq_ref[...] + jnp.sum(acc_v * acc_v, axis=0,
                                              keepdims=True)
        # Stash the pre-norm f32 tile; the whole sample stays resident.
        ybuf_ref[pl.ds(pl.multiple_of(m * tm, 8), tm), :] = acc

        @pl.when(m == pl.num_programs(1) - 1)
        def _finalize():
            inv_n = 1.0 / float(n_valid)
            mean = sum_ref[...] * inv_n                   # (1, C) f32
            var = ssq_ref[...] * inv_n - mean * mean
            inv_std = jax.lax.rsqrt(jnp.maximum(var, 0.0) + eps)
            y = (ybuf_ref[...] - mean) * inv_std
            if use_lrelu:
                y = jnp.where(y > 0, y, slope * y)
            o_ref[0] = y.astype(o_ref.dtype)

    return kernel


def _conv_rows(x_rows, w_taps, bias, *, offsets, wp2, m_out, n_valid, cout,
               use_bias, use_norm, use_lrelu, out_dtype, tm_target=512):
    """Run one fused conv block on row-flattened activations.

    x_rows: (N, M_in, K) activation rows; w_taps: (T, K, C) per-tap weights;
    bias: (1, C) or None.  Returns (N, M_total, C) with M_total >= m_out.
    """
    n, m_in_real, k = x_rows.shape
    n_taps = len(offsets)

    max_off = max(offsets)
    h8 = _round_up(max(max_off, _ALIGN), _ALIGN)            # halo rows
    tm = _round_up(min(tm_target, max(m_out, _ALIGN)), h8)  # M tile (mult. h8)
    mt = _cdiv(m_out, tm)
    m_total = mt * tm
    m_in_pad = max(m_total + h8, m_in_real)

    x_rows = jnp.pad(x_rows, ((0, 0), (0, m_in_pad - m_in_real), (0, 0)))
    x_rows = x_rows.astype(jnp.bfloat16)
    w_taps = w_taps.astype(jnp.bfloat16)

    kernel = _build_conv_kernel(
        offsets=offsets, tm=tm, wp2=wp2, m_out=m_out, n_valid=n_valid,
        use_bias=use_bias, use_norm=use_norm, use_lrelu=use_lrelu)

    blocks_per_h8 = tm // h8
    in_specs = [
        # Main M tile of the flattened activation rows.
        pl.BlockSpec((1, tm, k), lambda ni, mi: (ni, mi, 0)),
        # Thin halo block right after the tile (same array, second operand).
        pl.BlockSpec((1, h8, k),
                     lambda ni, mi: (ni, (mi + 1) * blocks_per_h8, 0)),
        # Per-tap weights: constant block index, fetched once.
        pl.BlockSpec((n_taps, k, cout), lambda ni, mi: (0, 0, 0)),
    ]
    inputs = [x_rows, x_rows, w_taps]
    if use_bias:
        in_specs.append(pl.BlockSpec((1, cout), lambda ni, mi: (0, 0)))
        inputs.append(bias.astype(jnp.float32).reshape(1, cout))

    if use_norm:
        # Output stays resident across the M axis; it is written once on the
        # last M tile after the InstanceNorm statistics are complete.
        out_specs = pl.BlockSpec((1, m_total, cout), lambda ni, mi: (ni, 0, 0))
        scratch_shapes = [
            pltpu.VMEM((1, cout), jnp.float32),            # per-channel sum
            pltpu.VMEM((1, cout), jnp.float32),            # per-channel sum^2
            pltpu.VMEM((m_total, cout), jnp.float32),      # pre-norm buffer
        ]
        dim_sem = ("parallel", "arbitrary")
    else:
        out_specs = pl.BlockSpec((1, tm, cout), lambda ni, mi: (ni, mi, 0))
        scratch_shapes = []
        dim_sem = ("parallel", "parallel")

    out_bytes = jnp.dtype(out_dtype).itemsize
    cost = pl.CostEstimate(
        flops=2 * n * m_total * k * cout * n_taps,
        transcendentals=0,
        bytes_accessed=(n * (m_in_pad + mt * h8) * k * 2
                        + n * m_total * cout * out_bytes
                        + n_taps * k * cout * 2))

    return pl.pallas_call(
        kernel,
        out_shape=jax.ShapeDtypeStruct((n, m_total, cout), out_dtype),
        grid=(n, mt),
        in_specs=in_specs,
        out_specs=out_specs,
        scratch_shapes=scratch_shapes,
        compiler_params=pltpu.CompilerParams(
            dimension_semantics=dim_sem,
            vmem_limit_bytes=32 * 1024 * 1024),
        cost_estimate=cost,
    )(*inputs)


def _space_to_depth_rows(x, pad):
    """Pad NHWC x and space-to-depth by 2, flattened to rows.

    Returns (rows, hp2, wp2) with rows: (N, hp2*wp2, 4*C); the 4*C channel
    order is (dy, dx, c_in), matching the weight preparation below.
    """
    (pt, pb), (pwl, pwr) = pad
    xp = jnp.pad(x, ((0, 0), (pt, pb), (pwl, pwr), (0, 0)))
    n, hp, wp, c = xp.shape
    assert hp % 2 == 0 and wp % 2 == 0, "padded spatial dims must be even"
    hp2, wp2 = hp // 2, wp // 2
    xs = xp.reshape(n, hp2, 2, wp2, 2, c)
    xs = jnp.transpose(xs, (0, 1, 3, 2, 4, 5))             # (n,h2,w2,r,c,ci)
    return xs.reshape(n, hp2 * wp2, 4 * c), hp2, wp2


def _disc_block(x, w, b, *, use_norm, tm_target=512):
    """4x4 stride-2 conv (pad 1) + bias [+InstanceNorm] + LeakyReLU(0.2).

    x: (N, H, W, Cin) NHWC;  w: (4, 4, Cin, Cout);  b: (1, Cout).
    Returns (N, H/2, W/2, Cout) in bfloat16.
    """
    n = x.shape[0]
    cin, cout = w.shape[2], w.shape[3]
    rows, hp2, wp2 = _space_to_depth_rows(x, ((1, 1), (1, 1)))
    oh, ow = hp2 - 1, wp2 - 1
    # Stride-2 4x4 conv == 4-tap stride-1 2x2 conv over the s2d channels.
    w_taps = jnp.transpose(w.reshape(2, 2, 2, 2, cin, cout),
                           (0, 2, 1, 3, 4, 5)).reshape(4, 4 * cin, cout)
    offsets = (0, 1, wp2, wp2 + 1)
    y = _conv_rows(rows, w_taps, b,
                   offsets=offsets, wp2=wp2, m_out=oh * wp2,
                   n_valid=oh * ow, cout=cout, use_bias=True,
                   use_norm=use_norm, use_lrelu=True,
                   out_dtype=jnp.bfloat16, tm_target=tm_target)
    return y[:, :oh * wp2, :].reshape(n, oh, wp2, cout)[:, :, :ow, :]


def _final_conv(x, w, *, cout_pad=128, tm_target=512):
    """ZeroPad2d((1,0,1,0)) + 4x4 stride-1 conv (pad 1, no bias), C_out=1.

    x: (N, H, W, 256) NHWC;  w: (4, 4, 256, 1).  Returns (N, H, W, 1) f32.
    """
    n = x.shape[0]
    cin = w.shape[2]
    xp = jnp.pad(x, ((0, 0), (2, 1), (2, 1), (0, 0)))      # combined padding
    _, hp, wp, _ = xp.shape
    oh, ow = hp - 3, wp - 3
    rows = xp.reshape(n, hp * wp, cin)
    # Pad C_out 1 -> 128 so the MXU and the output stores stay lane-dense.
    w_taps = jnp.pad(w.reshape(16, cin, 1),
                     ((0, 0), (0, 0), (0, cout_pad - 1)))
    offsets = tuple(di * wp + dj for di in range(4) for dj in range(4))
    y = _conv_rows(rows, w_taps, None,
                   offsets=offsets, wp2=wp, m_out=oh * wp, n_valid=oh * ow,
                   cout=cout_pad, use_bias=False, use_norm=False,
                   use_lrelu=False, out_dtype=jnp.float32,
                   tm_target=tm_target)
    return y[:, :oh * wp, :].reshape(n, oh, wp, cout_pad)[:, :, :ow, :1]


def init_params(key, in_channels=3):
    """Deterministic synthetic parameters matching the module's layer shapes."""
    specs = [
        (in_channels + 1, 64),   # block 1 (no norm)
        (64, 128),               # block 2
        (128, 256),              # block 3
        (256, 1),                # final conv (bias=False)
    ]
    params = []
    for i, (cin, cout) in enumerate(specs):
        key, kw_, kb_ = jax.random.split(key, 3)
        w = jax.random.normal(kw_, (4, 4, cin, cout), jnp.float32) * 0.05
        if i < 3:
            b = jax.random.normal(kb_, (1, cout), jnp.float32) * 0.01
        else:
            b = jnp.zeros((1, cout), jnp.float32)
        params.append((w, b))
    return params


def discriminator_forward(params, img_A, img_B):
    """img_A: (N, Cin, H, W), img_B: (N, 1, H, W) -> (N, 1, H/8, W/8)."""
    x = jnp.concatenate([img_A, img_B], axis=1)            # torch.cat(dim=1)
    x = jnp.transpose(x, (0, 2, 3, 1))                     # NCHW -> NHWC

    (w1, b1), (w2, b2), (w3, b3), (w4, _) = params
    x = _disc_block(x, w1, b1, use_norm=False)             # (N, H/2,  W/2,  64)
    x = _disc_block(x, w2, b2, use_norm=True)              # (N, H/4,  W/4, 128)
    x = _disc_block(x, w3, b3, use_norm=True)              # (N, H/8,  W/8, 256)
    y = _final_conv(x, w4)                                 # (N, H/8,  W/8,   1)
    return jnp.transpose(y, (0, 3, 1, 2))                  # -> NCHW


if __name__ == "__main__":
    key = jax.random.PRNGKey(0)
    kA, kB, kp = jax.random.split(key, 3)
    # small shapes: batch=2, in_channels=3, spatial=16
    img_A = jax.random.normal(kA, (2, 3, 16, 16), jnp.float32)
    img_B = jax.random.normal(kB, (2, 1, 16, 16), jnp.float32)
    params = init_params(kp, in_channels=3)

    fwd = jax.jit(functools.partial(discriminator_forward, params))
    out = fwd(img_A, img_B)
    jax.block_until_ready(out)
    assert out.shape == (2, 1, 2, 2), out.shape
    assert out.dtype == jnp.float32
    print("KERNEL_OK")
</pallas_src>

<mosaic_0001>
module attributes {stable_mosaic.version = 11 : i64} {
  func.func @kernel(%arg0: i32, %arg1: i32, %arg2: memref<1x80x16xbf16, #tpu.memory_space<vmem>>, %arg3: memref<1x16x16xbf16, #tpu.memory_space<vmem>>, %arg4: memref<4x16x64xbf16, #tpu.memory_space<vmem>>, %arg5: memref<1x64xf32, #tpu.memory_space<vmem>>, %arg6: memref<1x80x64xbf16, #tpu.memory_space<vmem>>) attributes {dimension_semantics = [#tpu.dimension_semantics<parallel>, #tpu.dimension_semantics<parallel>], iteration_bounds = array<i64: 2, 1>, scalar_prefetch = 0 : i64, scratch_operands = 0 : i64, tpu.core_type = #tpu.core_type<tc>, window_params = [{transform_indices = @transform_0, window_bounds = array<i64: 1, 80, 16>}, {transform_indices = @transform_1, window_bounds = array<i64: 1, 16, 16>}, {pipeline_mode = #tpu.pipeline_mode<synchronous>, transform_indices = @transform_2, window_bounds = array<i64: 4, 16, 64>}, {pipeline_mode = #tpu.pipeline_mode<synchronous>, transform_indices = @transform_3, window_bounds = array<i64: 1, 64>}, {transform_indices = @transform_4, window_bounds = array<i64: 1, 80, 64>}]} {
    %c0 = arith.constant 0 : index
    %c0_0 = arith.constant 0 : index
    %c0_1 = arith.constant 0 : index
    %0 = vector.load %arg2[%c0, %c0_0, %c0_1] : memref<1x80x16xbf16, #tpu.memory_space<vmem>>, vector<1x80x16xbf16>
    %1 = vector.shape_cast %0 : vector<1x80x16xbf16> to vector<80x16xbf16>
    %c0_2 = arith.constant 0 : index
    %c0_3 = arith.constant 0 : index
    %c0_4 = arith.constant 0 : index
    %2 = vector.load %arg3[%c0_2, %c0_3, %c0_4] : memref<1x16x16xbf16, #tpu.memory_space<vmem>>, vector<1x16x16xbf16>
    %3 = vector.shape_cast %2 : vector<1x16x16xbf16> to vector<16x16xbf16>
    %4 = tpu.concatenate %1, %3 in 0 : vector<80x16xbf16>, vector<16x16xbf16> -> vector<96x16xbf16>
    %5 = vector.extract_strided_slice %4 {offsets = [0, 0], sizes = [80, 16], strides = [1, 1]} : vector<96x16xbf16> to vector<80x16xbf16>
    %c0_5 = arith.constant 0 : index
    %c0_6 = arith.constant 0 : index
    %c0_7 = arith.constant 0 : index
    %6 = vector.load %arg4[%c0_5, %c0_6, %c0_7] : memref<4x16x64xbf16, #tpu.memory_space<vmem>>, vector<1x16x64xbf16>
    %7 = vector.shape_cast %6 : vector<1x16x64xbf16> to vector<16x64xbf16>
    %cst = arith.constant dense<0.000000e+00> : vector<80x64xf32>
    %8 = tpu.matmul %5, %7, %cst {dimension_numbers = #tpu.dot_dimension_numbers<[1], [0], [0], [1], [0, 0, 1, 1], [], []>} : vector<80x16xbf16>, vector<16x64xbf16>, vector<80x64xf32> -> vector<80x64xf32>
    %9 = vector.extract_strided_slice %4 {offsets = [1, 0], sizes = [80, 16], strides = [1, 1]} : vector<96x16xbf16> to vector<80x16xbf16>
    %c1 = arith.constant 1 : index
    %c0_8 = arith.constant 0 : index
    %c0_9 = arith.constant 0 : index
    %10 = vector.load %arg4[%c1, %c0_8, %c0_9] : memref<4x16x64xbf16, #tpu.memory_space<vmem>>, vector<1x16x64xbf16>
    %11 = vector.shape_cast %10 : vector<1x16x64xbf16> to vector<16x64xbf16>
    %cst_10 = arith.constant dense<0.000000e+00> : vector<80x64xf32>
    %12 = tpu.matmul %9, %11, %cst_10 {dimension_numbers = #tpu.dot_dimension_numbers<[1], [0], [0], [1], [0, 0, 1, 1], [], []>} : vector<80x16xbf16>, vector<16x64xbf16>, vector<80x64xf32> -> vector<80x64xf32>
    %13 = arith.addf %8, %12 : vector<80x64xf32>
    %14 = vector.extract_strided_slice %4 {offsets = [9, 0], sizes = [80, 16], strides = [1, 1]} : vector<96x16xbf16> to vector<80x16xbf16>
    %c2 = arith.constant 2 : index
    %c0_11 = arith.constant 0 : index
    %c0_12 = arith.constant 0 : index
    %15 = vector.load %arg4[%c2, %c0_11, %c0_12] : memref<4x16x64xbf16, #tpu.memory_space<vmem>>, vector<1x16x64xbf16>
    %16 = vector.shape_cast %15 : vector<1x16x64xbf16> to vector<16x64xbf16>
    %cst_13 = arith.constant dense<0.000000e+00> : vector<80x64xf32>
    %17 = tpu.matmul %14, %16, %cst_13 {dimension_numbers = #tpu.dot_dimension_numbers<[1], [0], [0], [1], [0, 0, 1, 1], [], []>} : vector<80x16xbf16>, vector<16x64xbf16>, vector<80x64xf32> -> vector<80x64xf32>
    %18 = arith.addf %13, %17 : vector<80x64xf32>
    %19 = vector.extract_strided_slice %4 {offsets = [10, 0], sizes = [80, 16], strides = [1, 1]} : vector<96x16xbf16> to vector<80x16xbf16>
    %c3 = arith.constant 3 : index
    %c0_14 = arith.constant 0 : index
    %c0_15 = arith.constant 0 : index
    %20 = vector.load %arg4[%c3, %c0_14, %c0_15] : memref<4x16x64xbf16, #tpu.memory_space<vmem>>, vector<1x16x64xbf16>
    %21 = vector.shape_cast %20 : vector<1x16x64xbf16> to vector<16x64xbf16>
    %cst_16 = arith.constant dense<0.000000e+00> : vector<80x64xf32>
    %22 = tpu.matmul %19, %21, %cst_16 {dimension_numbers = #tpu.dot_dimension_numbers<[1], [0], [0], [1], [0, 0, 1, 1], [], []>} : vector<80x16xbf16>, vector<16x64xbf16>, vector<80x64xf32> -> vector<80x64xf32>
    %23 = arith.addf %18, %22 : vector<80x64xf32>
    %c0_17 = arith.constant 0 : index
    %c0_18 = arith.constant 0 : index
    %24 = vector.load %arg5[%c0_17, %c0_18] : memref<1x64xf32, #tpu.memory_space<vmem>>, vector<1x64xf32>
    %25 = vector.broadcast %24 : vector<1x64xf32> to vector<80x64xf32>
    %26 = arith.addf %23, %25 : vector<80x64xf32>
    %cst_19 = arith.constant 0.000000e+00 : f32
    %27 = vector.broadcast %cst_19 : f32 to vector<80x64xf32>
    %28 = arith.cmpf ogt, %26, %27 : vector<80x64xf32>
    %cst_20 = arith.constant 2.000000e-01 : f32
    %29 = vector.broadcast %cst_20 : f32 to vector<80x64xf32>
    %30 = arith.mulf %29, %26 : vector<80x64xf32>
    %31 = arith.select %28, %26, %30 : vector<80x64xi1>, vector<80x64xf32>
    %32 = arith.truncf %31 : vector<80x64xf32> to vector<80x64xbf16>
    %c0_21 = arith.constant 0 : index
    %c0_22 = arith.constant 0 : index
    %c0_23 = arith.constant 0 : index
    %33 = vector.load %arg6[%c0_21, %c0_22, %c0_23] : memref<1x80x64xbf16, #tpu.memory_space<vmem>>, vector<1x80x64xbf16>
    %34 = vector.shape_cast %33 : vector<1x80x64xbf16> to vector<80x64xbf16>
    %35 = vector.shape_cast %32 : vector<80x64xbf16> to vector<1x80x64xbf16>
    tpu.vector_store %arg6[%c0_21, %c0_22, %c0_23], %35 {strides = array<i32>} : memref<1x80x64xbf16, #tpu.memory_space<vmem>>, vector<1x80x64xbf16>,
    return
  }
  func.func @transform_0(%arg0: i32, %arg1: i32) -> (i32, i32, i32) {
    %c0_i32 = arith.constant 0 : i32
    %c0_i32_0 = arith.constant 0 : i32
    return %arg0, %arg1, %c0_i32 : i32, i32, i32
  }
  func.func @transform_1(%arg0: i32, %arg1: i32) -> (i32, i32, i32) {
    %c1_i32 = arith.constant 1 : i32
    %0 = arith.addi %arg1, %c1_i32 : i32
    %c5_i32 = arith.constant 5 : i32
    %1 = arith.muli %0, %c5_i32 : i32
    %c0_i32 = arith.constant 0 : i32
    %c0_i32_0 = arith.constant 0 : i32
    return %arg0, %1, %c0_i32 : i32, i32, i32
  }
  func.func @transform_2(%arg0: i32, %arg1: i32) -> (i32, i32, i32) {
    %c0_i32 = arith.constant 0 : i32
    %c0_i32_0 = arith.constant 0 : i32
    %c0_i32_1 = arith.constant 0 : i32
    %c0_i32_2 = arith.constant 0 : i32
    return %c0_i32, %c0_i32_0, %c0_i32_1 : i32, i32, i32
  }
  func.func @transform_3(%arg0: i32, %arg1: i32) -> (i32, i32) {
    %c0_i32 = arith.constant 0 : i32
    %c0_i32_0 = arith.constant 0 : i32
    %c0_i32_1 = arith.constant 0 : i32
    return %c0_i32, %c0_i32_0 : i32, i32
  }
  func.func @transform_4(%arg0: i32, %arg1: i32) -> (i32, i32, i32) {
    %c0_i32 = arith.constant 0 : i32
    %c0_i32_0 = arith.constant 0 : i32
    return %arg0, %arg1, %c0_i32 : i32, i32, i32
  }
}

module attributes {stable_mosaic.version = 11 : i64} {
  func.func @kernel(%arg0: i32, %arg1: i32, %arg2: memref<1x32x256xbf16, #tpu.memory_space<vmem>>, %arg3: memref<1x16x256xbf16, #tpu.memory_space<vmem>>, %arg4: memref<4x256x128xbf16, #tpu.memory_space<vmem>>, %arg5: memref<1x128xf32, #tpu.memory_space<vmem>>, %arg6: memref<1x32x128xbf16, #tpu.memory_space<vmem>>, %arg7: memref<1x128xf32, #tpu.memory_space<vmem>>, %arg8: memref<1x128xf32, #tpu.memory_space<vmem>>, %arg9: memref<32x128xf32, #tpu.memory_space<vmem>>) attributes {dimension_semantics = [#tpu.dimension_semantics<parallel>, #tpu.dimension_semantics<arbitrary>], iteration_bounds = array<i64: 2, 1>, scalar_prefetch = 0 : i64, scratch_operands = 3 : i64, tpu.core_type = #tpu.core_type<tc>, window_params = [{transform_indices = @transform_0, window_bounds = array<i64: 1, 32, 256>}, {transform_indices = @transform_1, window_bounds = array<i64: 1, 16, 256>}, {pipeline_mode = #tpu.pipeline_mode<synchronous>, transform_indices = @transform_2, window_bounds = array<i64: 4, 256, 128>}, {pipeline_mode = #tpu.pipeline_mode<synchronous>, transform_indices = @transform_3, window_bounds = array<i64: 1, 128>}, {transform_indices = @transform_4, window_bounds = array<i64: 1, 32, 128>}]} {
    %c0 = arith.constant 0 : index
    %c0_0 = arith.constant 0 : index
    %c0_1 = arith.constant 0 : index
    %0 = vector.load %arg2[%c0, %c0_0, %c0_1] : memref<1x32x256xbf16, #tpu.memory_space<vmem>>, vector<1x32x256xbf16>
    %1 = vector.shape_cast %0 : vector<1x32x256xbf16> to vector<32x256xbf16>
    %c0_2 = arith.constant 0 : index
    %c0_3 = arith.constant 0 : index
    %c0_4 = arith.constant 0 : index
    %2 = vector.load %arg3[%c0_2, %c0_3, %c0_4] : memref<1x16x256xbf16, #tpu.memory_space<vmem>>, vector<1x16x256xbf16>
    %3 = vector.shape_cast %2 : vector<1x16x256xbf16> to vector<16x256xbf16>
    %4 = tpu.concatenate %1, %3 in 0 : vector<32x256xbf16>, vector<16x256xbf16> -> vector<48x256xbf16>
    %5 = vector.extract_strided_slice %4 {offsets = [0, 0], sizes = [32, 256], strides = [1, 1]} : vector<48x256xbf16> to vector<32x256xbf16>
    %c0_5 = arith.constant 0 : index
    %c0_6 = arith.constant 0 : index
    %c0_7 = arith.constant 0 : index
    %6 = vector.load %arg4[%c0_5, %c0_6, %c0_7] : memref<4x256x128xbf16, #tpu.memory_space<vmem>>, vector<1x256x128xbf16>
    %7 = vector.shape_cast %6 : vector<1x256x128xbf16> to vector<256x128xbf16>
    %cst = arith.constant dense<0.000000e+00> : vector<32x128xf32>
    %8 = tpu.matmul %5, %7, %cst {dimension_numbers = #tpu.dot_dimension_numbers<[1], [0], [0], [1], [0, 0, 1, 1], [], []>} : vector<32x256xbf16>, vector<256x128xbf16>, vector<32x128xf32> -> vector<32x128xf32>
    %9 = vector.extract_strided_slice %4 {offsets = [1, 0], sizes = [32, 256], strides = [1, 1]} : vector<48x256xbf16> to vector<32x256xbf16>
    %c1 = arith.constant 1 : index
    %c0_8 = arith.constant 0 : index
    %c0_9 = arith.constant 0 : index
    %10 = vector.load %arg4[%c1, %c0_8, %c0_9] : memref<4x256x128xbf16, #tpu.memory_space<vmem>>, vector<1x256x128xbf16>
    %11 = vector.shape_cast %10 : vector<1x256x128xbf16> to vector<256x128xbf16>
    %cst_10 = arith.constant dense<0.000000e+00> : vector<32x128xf32>
    %12 = tpu.matmul %9, %11, %cst_10 {dimension_numbers = #tpu.dot_dimension_numbers<[1], [0], [0], [1], [0, 0, 1, 1], [], []>} : vector<32x256xbf16>, vector<256x128xbf16>, vector<32x128xf32> -> vector<32x128xf32>
    %13 = arith.addf %8, %12 : vector<32x128xf32>
    %14 = vector.extract_strided_slice %4 {offsets = [5, 0], sizes = [32, 256], strides = [1, 1]} : vector<48x256xbf16> to vector<32x256xbf16>
    %c2 = arith.constant 2 : index
    %c0_11 = arith.constant 0 : index
    %c0_12 = arith.constant 0 : index
    %15 = vector.load %arg4[%c2, %c0_11, %c0_12] : memref<4x256x128xbf16, #tpu.memory_space<vmem>>, vector<1x256x128xbf16>
    %16 = vector.shape_cast %15 : vector<1x256x128xbf16> to vector<256x128xbf16>
    %cst_13 = arith.constant dense<0.000000e+00> : vector<32x128xf32>
    %17 = tpu.matmul %14, %16, %cst_13 {dimension_numbers = #tpu.dot_dimension_numbers<[1], [0], [0], [1], [0, 0, 1, 1], [], []>} : vector<32x256xbf16>, vector<256x128xbf16>, vector<32x128xf32> -> vector<32x128xf32>
    %18 = arith.addf %13, %17 : vector<32x128xf32>
    %19 = vector.extract_strided_slice %4 {offsets = [6, 0], sizes = [32, 256], strides = [1, 1]} : vector<48x256xbf16> to vector<32x256xbf16>
    %c3 = arith.constant 3 : index
    %c0_14 = arith.constant 0 : index
    %c0_15 = arith.constant 0 : index
    %20 = vector.load %arg4[%c3, %c0_14, %c0_15] : memref<4x256x128xbf16, #tpu.memory_space<vmem>>, vector<1x256x128xbf16>
    %21 = vector.shape_cast %20 : vector<1x256x128xbf16> to vector<256x128xbf16>
    %cst_16 = arith.constant dense<0.000000e+00> : vector<32x128xf32>
    %22 = tpu.matmul %19, %21, %cst_16 {dimension_numbers = #tpu.dot_dimension_numbers<[1], [0], [0], [1], [0, 0, 1, 1], [], []>} : vector<32x256xbf16>, vector<256x128xbf16>, vector<32x128xf32> -> vector<32x128xf32>
    %23 = arith.addf %18, %22 : vector<32x128xf32>
    %c0_17 = arith.constant 0 : index
    %c0_18 = arith.constant 0 : index
    %24 = vector.load %arg5[%c0_17, %c0_18] : memref<1x128xf32, #tpu.memory_space<vmem>>, vector<1x128xf32>
    %25 = vector.broadcast %24 : vector<1x128xf32> to vector<32x128xf32>
    %26 = arith.addf %23, %25 : vector<32x128xf32>
    %c0_i32 = arith.constant 0 : i32
    %27 = arith.cmpi eq, %arg1, %c0_i32 : i32
    %28 = arith.extui %27 : i1 to i32
    %c0_i32_19 = arith.constant 0 : i32
    %29 = arith.cmpi ne, %28, %c0_i32_19 : i32
    scf.if %29 {
      %cst_39 = arith.constant 0.000000e+00 : f32
      %77 = vector.broadcast %cst_39 : f32 to vector<1x128xf32>
      %c0_40 = arith.constant 0 : index
      %c0_41 = arith.constant 0 : index
      %78 = vector.load %arg7[%c0_40, %c0_41] : memref<1x128xf32, #tpu.memory_space<vmem>>, vector<1x128xf32>
      tpu.vector_store %arg7[%c0_40, %c0_41], %77 {strides = array<i32>} : memref<1x128xf32, #tpu.memory_space<vmem>>, vector<1x128xf32>,
      %cst_42 = arith.constant 0.000000e+00 : f32
      %79 = vector.broadcast %cst_42 : f32 to vector<1x128xf32>
      %c0_43 = arith.constant 0 : index
      %c0_44 = arith.constant 0 : index
      %80 = vector.load %arg8[%c0_43, %c0_44] : memref<1x128xf32, #tpu.memory_space<vmem>>, vector<1x128xf32>
      tpu.vector_store %arg8[%c0_43, %c0_44], %79 {strides = array<i32>} : memref<1x128xf32, #tpu.memory_space<vmem>>, vector<1x128xf32>,
    } else {
    }
    %c32_i32 = arith.constant 32 : i32
    %30 = arith.muli %arg1, %c32_i32 : i32
    %31 = tpu.iota {dimensions = array<i32: 0>} : vector<32x1xi32>
    %32 = vector.broadcast %30 : i32 to vector<32x1xi32>
    %33 = arith.addi %32, %31 : vector<32x1xi32>
    %c20_i32 = arith.constant 20 : i32
    %34 = vector.broadcast %c20_i32 : i32 to vector<32x1xi32>
    %35 = arith.cmpi slt, %33, %34 : vector<32x1xi32>
    %c5_i32 = arith.constant 5 : i32
    %c0_i32_20 = arith.constant 0 : i32
    %36 = arith.cmpi eq, %c5_i32, %c0_i32_20 : i32
    %c1_i32 = arith.constant 1 : i32
    %37 = arith.select %36, %c1_i32, %c5_i32 : i32
    %38 = vector.broadcast %37 : i32 to vector<32x1xi32>
    %39 = arith.remsi %33, %38 : vector<32x1xi32>
    %c0_i32_21 = arith.constant 0 : i32
    %40 = vector.broadcast %c0_i32_21 : i32 to vector<32x1xi32>
    %41 = arith.cmpi ne, %39, %40 : vector<32x1xi32>
    %c0_i32_22 = arith.constant 0 : i32
    %42 = vector.broadcast %c0_i32_22 : i32 to vector<32x1xi32>
    %43 = arith.cmpi slt, %39, %42 : vector<32x1xi32>
    %c0_i32_23 = arith.constant 0 : i32
    %44 = arith.cmpi slt, %37, %c0_i32_23 : i32
    %45 = vector.broadcast %44 : i1 to vector<32x1xi1>
    %46 = vector.broadcast %45 : vector<32x1xi1> to vector<32x1xi1>
    %47 = arith.xori %43, %46 : vector<32x1xi1>
    %48 = arith.andi %47, %41 : vector<32x1xi1>
    %49 = vector.broadcast %37 : i32 to vector<32x1xi32>
    %50 = arith.addi %39, %49 : vector<32x1xi32>
    %51 = arith.select %48, %50, %39 : vector<32x1xi1>, vector<32x1xi32>
    %c4_i32 = arith.constant 4 : i32
    %52 = vector.broadcast %c4_i32 : i32 to vector<32x1xi32>
    %53 = arith.cmpi ne, %51, %52 : vector<32x1xi32>
    %54 = arith.andi %35, %53 : vector<32x1xi1>
    %cst_24 = arith.constant 0.000000e+00 : f32
    %55 = vector.shape_cast %54 : vector<32x1xi1> to vector<32x1xi1>
    %56 = vector.broadcast %55 : vector<32x1xi1> to vector<32x128xi1>
    %57 = vector.broadcast %cst_24 : f32 to vector<32x128xf32>
    %58 = arith.select %56, %26, %57 : vector<32x128xi1>, vector<32x128xf32>
    %c0_25 = arith.constant 0 : index
    %c0_26 = arith.constant 0 : index
    %59 = vector.load %arg7[%c0_25, %c0_26] : memref<1x128xf32, #tpu.memory_space<vmem>>, vector<1x128xf32>
    %cst_27 = arith.constant dense<0.000000e+00> : vector<128xf32>
    %60 = vector.multi_reduction <add>, %58, %cst_27 [0] : vector<32x128xf32> to vector<128xf32>
    %61 = vector.shape_cast %60 : vector<128xf32> to vector<1x128xf32>
    %62 = arith.addf %59, %61 : vector<1x128xf32>
    %c0_28 = arith.constant 0 : index
    %c0_29 = arith.constant 0 : index
    %63 = vector.load %arg7[%c0_28, %c0_29] : memref<1x128xf32, #tpu.memory_space<vmem>>, vector<1x128xf32>
    tpu.vector_store %arg7[%c0_28, %c0_29], %62 {strides = array<i32>} : memref<1x128xf32, #tpu.memory_space<vmem>>, vector<1x128xf32>,
    %c0_30 = arith.constant 0 : index
    %c0_31 = arith.constant 0 : index
    %64 = vector.load %arg8[%c0_30, %c0_31] : memref<1x128xf32, #tpu.memory_space<vmem>>, vector<1x128xf32>
    %65 = arith.mulf %58, %58 : vector<32x128xf32>
    %cst_32 = arith.constant dense<0.000000e+00> : vector<128xf32>
    %66 = vector.multi_reduction <add>, %65, %cst_32 [0] : vector<32x128xf32> to vector<128xf32>
    %67 = vector.shape_cast %66 : vector<128xf32> to vector<1x128xf32>
    %68 = arith.addf %64, %67 : vector<1x128xf32>
    %c0_33 = arith.constant 0 : index
    %c0_34 = arith.constant 0 : index
    %69 = vector.load %arg8[%c0_33, %c0_34] : memref<1x128xf32, #tpu.memory_space<vmem>>, vector<1x128xf32>
    tpu.vector_store %arg8[%c0_33, %c0_34], %68 {strides = array<i32>} : memref<1x128xf32, #tpu.memory_space<vmem>>, vector<1x128xf32>,
    %c32_i32_35 = arith.constant 32 : i32
    %70 = arith.muli %arg1, %c32_i32_35 : i32
    %71 = tpu.assume_multiple %70, 8 : i32
    %72 = arith.index_cast %71 : i32 to index
    %c0_36 = arith.constant 0 : index
    %73 = vector.load %arg9[%72, %c0_36] : memref<32x128xf32, #tpu.memory_space<vmem>>, vector<32x128xf32>
    tpu.vector_store %arg9[%72, %c0_36], %26 {strides = array<i32>} : memref<32x128xf32, #tpu.memory_space<vmem>>, vector<32x128xf32>,
    %c0_i32_37 = arith.constant 0 : i32
    %74 = arith.cmpi eq, %arg1, %c0_i32_37 : i32
    %75 = arith.extui %74 : i1 to i32
    %c0_i32_38 = arith.constant 0 : i32
    %76 = arith.cmpi ne, %75, %c0_i32_38 : i32
    scf.if %76 {
      %c0_39 = arith.constant 0 : index
      %c0_40 = arith.constant 0 : index
      %77 = vector.load %arg7[%c0_39, %c0_40] : memref<1x128xf32, #tpu.memory_space<vmem>>, vector<1x128xf32>
      %cst_41 = arith.constant 6.250000e-02 : f32
      %78 = vector.broadcast %cst_41 : f32 to vector<1x128xf32>
      %79 = arith.mulf %77, %78 : vector<1x128xf32>
      %c0_42 = arith.constant 0 : index
      %c0_43 = arith.constant 0 : index
      %80 = vector.load %arg8[%c0_42, %c0_43] : memref<1x128xf32, #tpu.memory_space<vmem>>, vector<1x128xf32>
      %cst_44 = arith.constant 6.250000e-02 : f32
      %81 = vector.broadcast %cst_44 : f32 to vector<1x128xf32>
      %82 = arith.mulf %80, %81 : vector<1x128xf32>
      %83 = arith.mulf %79, %79 : vector<1x128xf32>
      %84 = arith.subf %82, %83 : vector<1x128xf32>
      %cst_45 = arith.constant 0.000000e+00 : f32
      %85 = vector.broadcast %cst_45 : f32 to vector<1x128xf32>
      %86 = arith.maximumf %84, %85 : vector<1x128xf32>
      %cst_46 = arith.constant 9.99999974E-6 : f32
      %87 = vector.broadcast %cst_46 : f32 to vector<1x128xf32>
      %88 = arith.addf %86, %87 : vector<1x128xf32>
      %89 = math.rsqrt %88 : vector<1x128xf32>
      %c0_47 = arith.constant 0 : index
      %c0_48 = arith.constant 0 : index
      %90 = vector.load %arg9[%c0_47, %c0_48] : memref<32x128xf32, #tpu.memory_space<vmem>>, vector<32x128xf32>
      %91 = vector.broadcast %79 : vector<1x128xf32> to vector<32x128xf32>
      %92 = arith.subf %90, %91 : vector<32x128xf32>
      %93 = vector.broadcast %89 : vector<1x128xf32> to vector<32x128xf32>
      %94 = arith.mulf %92, %93 : vector<32x128xf32>
      %cst_49 = arith.constant 0.000000e+00 : f32
      %95 = vector.broadcast %cst_49 : f32 to vector<32x128xf32>
      %96 = arith.cmpf ogt, %94, %95 : vector<32x128xf32>
      %cst_50 = arith.constant 2.000000e-01 : f32
      %97 = vector.broadcast %cst_50 : f32 to vector<32x128xf32>
      %98 = arith.mulf %97, %94 : vector<32x128xf32>
      %99 = arith.select %96, %94, %98 : vector<32x128xi1>, vector<32x128xf32>
      %100 = arith.truncf %99 : vector<32x128xf32> to vector<32x128xbf16>
      %c0_51 = arith.constant 0 : index
      %c0_52 = arith.constant 0 : index
      %c0_53 = arith.constant 0 : index
      %101 = vector.load %arg6[%c0_51, %c0_52, %c0_53] : memref<1x32x128xbf16, #tpu.memory_space<vmem>>, vector<1x32x128xbf16>
      %102 = vector.shape_cast %101 : vector<1x32x128xbf16> to vector<32x128xbf16>
      %103 = vector.shape_cast %100 : vector<32x128xbf16> to vector<1x32x128xbf16>
      tpu.vector_store %arg6[%c0_51, %c0_52, %c0_53], %103 {strides = array<i32>} : memref<1x32x128xbf16, #tpu.memory_space<vmem>>, vector<1x32x128xbf16>,
    } else {
    }
    return
  }
  func.func @transform_0(%arg0: i32, %arg1: i32) -> (i32, i32, i32) {
    %c0_i32 = arith.constant 0 : i32
    %c0_i32_0 = arith.constant 0 : i32
    return %arg0, %arg1, %c0_i32 : i32, i32, i32
  }
  func.func @transform_1(%arg0: i32, %arg1: i32) -> (i32, i32, i32) {
    %c1_i32 = arith.constant 1 : i32
    %0 = arith.addi %arg1, %c1_i32 : i32
    %c2_i32 = arith.constant 2 : i32
    %1 = arith.muli %0, %c2_i32 : i32
    %c0_i32 = arith.constant 0 : i32
    %c0_i32_0 = arith.constant 0 : i32
    return %arg0, %1, %c0_i32 : i32, i32, i32
  }
  func.func @transform_2(%arg0: i32, %arg1: i32) -> (i32, i32, i32) {
    %c0_i32 = arith.constant 0 : i32
    %c0_i32_0 = arith.constant 0 : i32
    %c0_i32_1 = arith.constant 0 : i32
    %c0_i32_2 = arith.constant 0 : i32
    return %c0_i32, %c0_i32_0, %c0_i32_1 : i32, i32, i32
  }
  func.func @transform_3(%arg0: i32, %arg1: i32) -> (i32, i32) {
    %c0_i32 = arith.constant 0 : i32
    %c0_i32_0 = arith.constant 0 : i32
    %c0_i32_1 = arith.constant 0 : i32
    return %c0_i32, %c0_i32_0 : i32, i32
  }
  func.func @transform_4(%arg0: i32, %arg1: i32) -> (i32, i32, i32) {
    %c0_i32 = arith.constant 0 : i32
    %c0_i32_0 = arith.constant 0 : i32
    %c0_i32_1 = arith.constant 0 : i32
    return %arg0, %c0_i32, %c0_i32_0 : i32, i32, i32
  }
}

module attributes {stable_mosaic.version = 11 : i64} {
  func.func @kernel(%arg0: i32, %arg1: i32, %arg2: memref<1x16x512xbf16, #tpu.memory_space<vmem>>, %arg3: memref<1x16x512xbf16, #tpu.memory_space<vmem>>, %arg4: memref<4x512x256xbf16, #tpu.memory_space<vmem>>, %arg5: memref<1x256xf32, #tpu.memory_space<vmem>>, %arg6: memref<1x16x256xbf16, #tpu.memory_space<vmem>>, %arg7: memref<1x256xf32, #tpu.memory_space<vmem>>, %arg8: memref<1x256xf32, #tpu.memory_space<vmem>>, %arg9: memref<16x256xf32, #tpu.memory_space<vmem>>) attributes {dimension_semantics = [#tpu.dimension_semantics<parallel>, #tpu.dimension_semantics<arbitrary>], iteration_bounds = array<i64: 2, 1>, scalar_prefetch = 0 : i64, scratch_operands = 3 : i64, tpu.core_type = #tpu.core_type<tc>, window_params = [{transform_indices = @transform_0, window_bounds = array<i64: 1, 16, 512>}, {transform_indices = @transform_1, window_bounds = array<i64: 1, 16, 512>}, {pipeline_mode = #tpu.pipeline_mode<synchronous>, transform_indices = @transform_2, window_bounds = array<i64: 4, 512, 256>}, {pipeline_mode = #tpu.pipeline_mode<synchronous>, transform_indices = @transform_3, window_bounds = array<i64: 1, 256>}, {transform_indices = @transform_4, window_bounds = array<i64: 1, 16, 256>}]} {
    %c0 = arith.constant 0 : index
    %c0_0 = arith.constant 0 : index
    %c0_1 = arith.constant 0 : index
    %0 = vector.load %arg2[%c0, %c0_0, %c0_1] : memref<1x16x512xbf16, #tpu.memory_space<vmem>>, vector<1x16x512xbf16>
    %1 = vector.shape_cast %0 : vector<1x16x512xbf16> to vector<16x512xbf16>
    %c0_2 = arith.constant 0 : index
    %c0_3 = arith.constant 0 : index
    %c0_4 = arith.constant 0 : index
    %2 = vector.load %arg3[%c0_2, %c0_3, %c0_4] : memref<1x16x512xbf16, #tpu.memory_space<vmem>>, vector<1x16x512xbf16>
    %3 = vector.shape_cast %2 : vector<1x16x512xbf16> to vector<16x512xbf16>
    %4 = tpu.concatenate %1, %3 in 0 : vector<16x512xbf16>, vector<16x512xbf16> -> vector<32x512xbf16>
    %5 = vector.extract_strided_slice %4 {offsets = [0, 0], sizes = [16, 512], strides = [1, 1]} : vector<32x512xbf16> to vector<16x512xbf16>
    %c0_5 = arith.constant 0 : index
    %c0_6 = arith.constant 0 : index
    %c0_7 = arith.constant 0 : index
    %6 = vector.load %arg4[%c0_5, %c0_6, %c0_7] : memref<4x512x256xbf16, #tpu.memory_space<vmem>>, vector<1x512x256xbf16>
    %7 = vector.shape_cast %6 : vector<1x512x256xbf16> to vector<512x256xbf16>
    %cst = arith.constant dense<0.000000e+00> : vector<16x256xf32>
    %8 = tpu.matmul %5, %7, %cst {dimension_numbers = #tpu.dot_dimension_numbers<[1], [0], [0], [1], [0, 0, 1, 1], [], []>} : vector<16x512xbf16>, vector<512x256xbf16>, vector<16x256xf32> -> vector<16x256xf32>
    %9 = vector.extract_strided_slice %4 {offsets = [1, 0], sizes = [16, 512], strides = [1, 1]} : vector<32x512xbf16> to vector<16x512xbf16>
    %c1 = arith.constant 1 : index
    %c0_8 = arith.constant 0 : index
    %c0_9 = arith.constant 0 : index
    %10 = vector.load %arg4[%c1, %c0_8, %c0_9] : memref<4x512x256xbf16, #tpu.memory_space<vmem>>, vector<1x512x256xbf16>
    %11 = vector.shape_cast %10 : vector<1x512x256xbf16> to vector<512x256xbf16>
    %cst_10 = arith.constant dense<0.000000e+00> : vector<16x256xf32>
    %12 = tpu.matmul %9, %11, %cst_10 {dimension_numbers = #tpu.dot_dimension_numbers<[1], [0], [0], [1], [0, 0, 1, 1], [], []>} : vector<16x512xbf16>, vector<512x256xbf16>, vector<16x256xf32> -> vector<16x256xf32>
    %13 = arith.addf %8, %12 : vector<16x256xf32>
    %14 = vector.extract_strided_slice %4 {offsets = [3, 0], sizes = [16, 512], strides = [1, 1]} : vector<32x512xbf16> to vector<16x512xbf16>
    %c2 = arith.constant 2 : index
    %c0_11 = arith.constant 0 : index
    %c0_12 = arith.constant 0 : index
    %15 = vector.load %arg4[%c2, %c0_11, %c0_12] : memref<4x512x256xbf16, #tpu.memory_space<vmem>>, vector<1x512x256xbf16>
    %16 = vector.shape_cast %15 : vector<1x512x256xbf16> to vector<512x256xbf16>
    %cst_13 = arith.constant dense<0.000000e+00> : vector<16x256xf32>
    %17 = tpu.matmul %14, %16, %cst_13 {dimension_numbers = #tpu.dot_dimension_numbers<[1], [0], [0], [1], [0, 0, 1, 1], [], []>} : vector<16x512xbf16>, vector<512x256xbf16>, vector<16x256xf32> -> vector<16x256xf32>
    %18 = arith.addf %13, %17 : vector<16x256xf32>
    %19 = vector.extract_strided_slice %4 {offsets = [4, 0], sizes = [16, 512], strides = [1, 1]} : vector<32x512xbf16> to vector<16x512xbf16>
    %c3 = arith.constant 3 : index
    %c0_14 = arith.constant 0 : index
    %c0_15 = arith.constant 0 : index
    %20 = vector.load %arg4[%c3, %c0_14, %c0_15] : memref<4x512x256xbf16, #tpu.memory_space<vmem>>, vector<1x512x256xbf16>
    %21 = vector.shape_cast %20 : vector<1x512x256xbf16> to vector<512x256xbf16>
    %cst_16 = arith.constant dense<0.000000e+00> : vector<16x256xf32>
    %22 = tpu.matmul %19, %21, %cst_16 {dimension_numbers = #tpu.dot_dimension_numbers<[1], [0], [0], [1], [0, 0, 1, 1], [], []>} : vector<16x512xbf16>, vector<512x256xbf16>, vector<16x256xf32> -> vector<16x256xf32>
    %23 = arith.addf %18, %22 : vector<16x256xf32>
    %c0_17 = arith.constant 0 : index
    %c0_18 = arith.constant 0 : index
    %24 = vector.load %arg5[%c0_17, %c0_18] : memref<1x256xf32, #tpu.memory_space<vmem>>, vector<1x256xf32>
    %25 = vector.broadcast %24 : vector<1x256xf32> to vector<16x256xf32>
    %26 = arith.addf %23, %25 : vector<16x256xf32>
    %c0_i32 = arith.constant 0 : i32
    %27 = arith.cmpi eq, %arg1, %c0_i32 : i32
    %28 = arith.extui %27 : i1 to i32
    %c0_i32_19 = arith.constant 0 : i32
    %29 = arith.cmpi ne, %28, %c0_i32_19 : i32
    scf.if %29 {
      %cst_39 = arith.constant 0.000000e+00 : f32
      %77 = vector.broadcast %cst_39 : f32 to vector<1x256xf32>
      %c0_40 = arith.constant 0 : index
      %c0_41 = arith.constant 0 : index
      %78 = vector.load %arg7[%c0_40, %c0_41] : memref<1x256xf32, #tpu.memory_space<vmem>>, vector<1x256xf32>
      tpu.vector_store %arg7[%c0_40, %c0_41], %77 {strides = array<i32>} : memref<1x256xf32, #tpu.memory_space<vmem>>, vector<1x256xf32>,
      %cst_42 = arith.constant 0.000000e+00 : f32
      %79 = vector.broadcast %cst_42 : f32 to vector<1x256xf32>
      %c0_43 = arith.constant 0 : index
      %c0_44 = arith.constant 0 : index
      %80 = vector.load %arg8[%c0_43, %c0_44] : memref<1x256xf32, #tpu.memory_space<vmem>>, vector<1x256xf32>
      tpu.vector_store %arg8[%c0_43, %c0_44], %79 {strides = array<i32>} : memref<1x256xf32, #tpu.memory_space<vmem>>, vector<1x256xf32>,
    } else {
    }
    %c16_i32 = arith.constant 16 : i32
    %30 = arith.muli %arg1, %c16_i32 : i32
    %31 = tpu.iota {dimensions = array<i32: 0>} : vector<16x1xi32>
    %32 = vector.broadcast %30 : i32 to vector<16x1xi32>
    %33 = arith.addi %32, %31 : vector<16x1xi32>
    %c6_i32 = arith.constant 6 : i32
    %34 = vector.broadcast %c6_i32 : i32 to vector<16x1xi32>
    %35 = arith.cmpi slt, %33, %34 : vector<16x1xi32>
    %c3_i32 = arith.constant 3 : i32
    %c0_i32_20 = arith.constant 0 : i32
    %36 = arith.cmpi eq, %c3_i32, %c0_i32_20 : i32
    %c1_i32 = arith.constant 1 : i32
    %37 = arith.select %36, %c1_i32, %c3_i32 : i32
    %38 = vector.broadcast %37 : i32 to vector<16x1xi32>
    %39 = arith.remsi %33, %38 : vector<16x1xi32>
    %c0_i32_21 = arith.constant 0 : i32
    %40 = vector.broadcast %c0_i32_21 : i32 to vector<16x1xi32>
    %41 = arith.cmpi ne, %39, %40 : vector<16x1xi32>
    %c0_i32_22 = arith.constant 0 : i32
    %42 = vector.broadcast %c0_i32_22 : i32 to vector<16x1xi32>
    %43 = arith.cmpi slt, %39, %42 : vector<16x1xi32>
    %c0_i32_23 = arith.constant 0 : i32
    %44 = arith.cmpi slt, %37, %c0_i32_23 : i32
    %45 = vector.broadcast %44 : i1 to vector<16x1xi1>
    %46 = vector.broadcast %45 : vector<16x1xi1> to vector<16x1xi1>
    %47 = arith.xori %43, %46 : vector<16x1xi1>
    %48 = arith.andi %47, %41 : vector<16x1xi1>
    %49 = vector.broadcast %37 : i32 to vector<16x1xi32>
    %50 = arith.addi %39, %49 : vector<16x1xi32>
    %51 = arith.select %48, %50, %39 : vector<16x1xi1>, vector<16x1xi32>
    %c2_i32 = arith.constant 2 : i32
    %52 = vector.broadcast %c2_i32 : i32 to vector<16x1xi32>
    %53 = arith.cmpi ne, %51, %52 : vector<16x1xi32>
    %54 = arith.andi %35, %53 : vector<16x1xi1>
    %cst_24 = arith.constant 0.000000e+00 : f32
    %55 = vector.shape_cast %54 : vector<16x1xi1> to vector<16x1xi1>
    %56 = vector.broadcast %55 : vector<16x1xi1> to vector<16x256xi1>
    %57 = vector.broadcast %cst_24 : f32 to vector<16x256xf32>
    %58 = arith.select %56, %26, %57 : vector<16x256xi1>, vector<16x256xf32>
    %c0_25 = arith.constant 0 : index
    %c0_26 = arith.constant 0 : index
    %59 = vector.load %arg7[%c0_25, %c0_26] : memref<1x256xf32, #tpu.memory_space<vmem>>, vector<1x256xf32>
    %cst_27 = arith.constant dense<0.000000e+00> : vector<256xf32>
    %60 = vector.multi_reduction <add>, %58, %cst_27 [0] : vector<16x256xf32> to vector<256xf32>
    %61 = vector.shape_cast %60 : vector<256xf32> to vector<1x256xf32>
    %62 = arith.addf %59, %61 : vector<1x256xf32>
    %c0_28 = arith.constant 0 : index
    %c0_29 = arith.constant 0 : index
    %63 = vector.load %arg7[%c0_28, %c0_29] : memref<1x256xf32, #tpu.memory_space<vmem>>, vector<1x256xf32>
    tpu.vector_store %arg7[%c0_28, %c0_29], %62 {strides = array<i32>} : memref<1x256xf32, #tpu.memory_space<vmem>>, vector<1x256xf32>,
    %c0_30 = arith.constant 0 : index
    %c0_31 = arith.constant 0 : index
    %64 = vector.load %arg8[%c0_30, %c0_31] : memref<1x256xf32, #tpu.memory_space<vmem>>, vector<1x256xf32>
    %65 = arith.mulf %58, %58 : vector<16x256xf32>
    %cst_32 = arith.constant dense<0.000000e+00> : vector<256xf32>
    %66 = vector.multi_reduction <add>, %65, %cst_32 [0] : vector<16x256xf32> to vector<256xf32>
    %67 = vector.shape_cast %66 : vector<256xf32> to vector<1x256xf32>
    %68 = arith.addf %64, %67 : vector<1x256xf32>
    %c0_33 = arith.constant 0 : index
    %c0_34 = arith.constant 0 : index
    %69 = vector.load %arg8[%c0_33, %c0_34] : memref<1x256xf32, #tpu.memory_space<vmem>>, vector<1x256xf32>
    tpu.vector_store %arg8[%c0_33, %c0_34], %68 {strides = array<i32>} : memref<1x256xf32, #tpu.memory_space<vmem>>, vector<1x256xf32>,
    %c16_i32_35 = arith.constant 16 : i32
    %70 = arith.muli %arg1, %c16_i32_35 : i32
    %71 = tpu.assume_multiple %70, 8 : i32
    %72 = arith.index_cast %71 : i32 to index
    %c0_36 = arith.constant 0 : index
    %73 = vector.load %arg9[%72, %c0_36] : memref<16x256xf32, #tpu.memory_space<vmem>>, vector<16x256xf32>
    tpu.vector_store %arg9[%72, %c0_36], %26 {strides = array<i32>} : memref<16x256xf32, #tpu.memory_space<vmem>>, vector<16x256xf32>,
    %c0_i32_37 = arith.constant 0 : i32
    %74 = arith.cmpi eq, %arg1, %c0_i32_37 : i32
    %75 = arith.extui %74 : i1 to i32
    %c0_i32_38 = arith.constant 0 : i32
    %76 = arith.cmpi ne, %75, %c0_i32_38 : i32
    scf.if %76 {
      %c0_39 = arith.constant 0 : index
      %c0_40 = arith.constant 0 : index
      %77 = vector.load %arg7[%c0_39, %c0_40] : memref<1x256xf32, #tpu.memory_space<vmem>>, vector<1x256xf32>
      %cst_41 = arith.constant 2.500000e-01 : f32
      %78 = vector.broadcast %cst_41 : f32 to vector<1x256xf32>
      %79 = arith.mulf %77, %78 : vector<1x256xf32>
      %c0_42 = arith.constant 0 : index
      %c0_43 = arith.constant 0 : index
      %80 = vector.load %arg8[%c0_42, %c0_43] : memref<1x256xf32, #tpu.memory_space<vmem>>, vector<1x256xf32>
      %cst_44 = arith.constant 2.500000e-01 : f32
      %81 = vector.broadcast %cst_44 : f32 to vector<1x256xf32>
      %82 = arith.mulf %80, %81 : vector<1x256xf32>
      %83 = arith.mulf %79, %79 : vector<1x256xf32>
      %84 = arith.subf %82, %83 : vector<1x256xf32>
      %cst_45 = arith.constant 0.000000e+00 : f32
      %85 = vector.broadcast %cst_45 : f32 to vector<1x256xf32>
      %86 = arith.maximumf %84, %85 : vector<1x256xf32>
      %cst_46 = arith.constant 9.99999974E-6 : f32
      %87 = vector.broadcast %cst_46 : f32 to vector<1x256xf32>
      %88 = arith.addf %86, %87 : vector<1x256xf32>
      %89 = math.rsqrt %88 : vector<1x256xf32>
      %c0_47 = arith.constant 0 : index
      %c0_48 = arith.constant 0 : index
      %90 = vector.load %arg9[%c0_47, %c0_48] : memref<16x256xf32, #tpu.memory_space<vmem>>, vector<16x256xf32>
      %91 = vector.broadcast %79 : vector<1x256xf32> to vector<16x256xf32>
      %92 = arith.subf %90, %91 : vector<16x256xf32>
      %93 = vector.broadcast %89 : vector<1x256xf32> to vector<16x256xf32>
      %94 = arith.mulf %92, %93 : vector<16x256xf32>
      %cst_49 = arith.constant 0.000000e+00 : f32
      %95 = vector.broadcast %cst_49 : f32 to vector<16x256xf32>
      %96 = arith.cmpf ogt, %94, %95 : vector<16x256xf32>
      %cst_50 = arith.constant 2.000000e-01 : f32
      %97 = vector.broadcast %cst_50 : f32 to vector<16x256xf32>
      %98 = arith.mulf %97, %94 : vector<16x256xf32>
      %99 = arith.select %96, %94, %98 : vector<16x256xi1>, vector<16x256xf32>
      %100 = arith.truncf %99 : vector<16x256xf32> to vector<16x256xbf16>
      %c0_51 = arith.constant 0 : index
      %c0_52 = arith.constant 0 : index
      %c0_53 = arith.constant 0 : index
      %101 = vector.load %arg6[%c0_51, %c0_52, %c0_53] : memref<1x16x256xbf16, #tpu.memory_space<vmem>>, vector<1x16x256xbf16>
      %102 = vector.shape_cast %101 : vector<1x16x256xbf16> to vector<16x256xbf16>
      %103 = vector.shape_cast %100 : vector<16x256xbf16> to vector<1x16x256xbf16>
      tpu.vector_store %arg6[%c0_51, %c0_52, %c0_53], %103 {strides = array<i32>} : memref<1x16x256xbf16, #tpu.memory_space<vmem>>, vector<1x16x256xbf16>,
    } else {
    }
    return
  }
  func.func @transform_0(%arg0: i32, %arg1: i32) -> (i32, i32, i32) {
    %c0_i32 = arith.constant 0 : i32
    %c0_i32_0 = arith.constant 0 : i32
    return %arg0, %arg1, %c0_i32 : i32, i32, i32
  }
  func.func @transform_1(%arg0: i32, %arg1: i32) -> (i32, i32, i32) {
    %c1_i32 = arith.constant 1 : i32
    %0 = arith.addi %arg1, %c1_i32 : i32
    %c1_i32_0 = arith.constant 1 : i32
    %1 = arith.muli %0, %c1_i32_0 : i32
    %c0_i32 = arith.constant 0 : i32
    %c0_i32_1 = arith.constant 0 : i32
    return %arg0, %1, %c0_i32 : i32, i32, i32
  }
  func.func @transform_2(%arg0: i32, %arg1: i32) -> (i32, i32, i32) {
    %c0_i32 = arith.constant 0 : i32
    %c0_i32_0 = arith.constant 0 : i32
    %c0_i32_1 = arith.constant 0 : i32
    %c0_i32_2 = arith.constant 0 : i32
    return %c0_i32, %c0_i32_0, %c0_i32_1 : i32, i32, i32
  }
  func.func @transform_3(%arg0: i32, %arg1: i32) -> (i32, i32) {
    %c0_i32 = arith.constant 0 : i32
    %c0_i32_0 = arith.constant 0 : i32
    %c0_i32_1 = arith.constant 0 : i32
    return %c0_i32, %c0_i32_0 : i32, i32
  }
  func.func @transform_4(%arg0: i32, %arg1: i32) -> (i32, i32, i32) {
    %c0_i32 = arith.constant 0 : i32
    %c0_i32_0 = arith.constant 0 : i32
    %c0_i32_1 = arith.constant 0 : i32
    return %arg0, %c0_i32, %c0_i32_0 : i32, i32, i32
  }
}

module attributes {stable_mosaic.version = 11 : i64} {
  func.func @kernel(%arg0: i32, %arg1: i32, %arg2: memref<1x32x256xbf16, #tpu.memory_space<vmem>>, %arg3: memref<1x32x256xbf16, #tpu.memory_space<vmem>>, %arg4: memref<16x256x128xbf16, #tpu.memory_space<vmem>>, %arg5: memref<1x32x128xf32, #tpu.memory_space<vmem>>) attributes {dimension_semantics = [#tpu.dimension_semantics<parallel>, #tpu.dimension_semantics<parallel>], iteration_bounds = array<i64: 2, 1>, scalar_prefetch = 0 : i64, scratch_operands = 0 : i64, tpu.core_type = #tpu.core_type<tc>, window_params = [{transform_indices = @transform_0, window_bounds = array<i64: 1, 32, 256>}, {transform_indices = @transform_1, window_bounds = array<i64: 1, 32, 256>}, {pipeline_mode = #tpu.pipeline_mode<synchronous>, transform_indices = @transform_2, window_bounds = array<i64: 16, 256, 128>}, {transform_indices = @transform_3, window_bounds = array<i64: 1, 32, 128>}]} {
    %c0 = arith.constant 0 : index
    %c0_0 = arith.constant 0 : index
    %c0_1 = arith.constant 0 : index
    %0 = vector.load %arg2[%c0, %c0_0, %c0_1] : memref<1x32x256xbf16, #tpu.memory_space<vmem>>, vector<1x32x256xbf16>
    %1 = vector.shape_cast %0 : vector<1x32x256xbf16> to vector<32x256xbf16>
    %c0_2 = arith.constant 0 : index
    %c0_3 = arith.constant 0 : index
    %c0_4 = arith.constant 0 : index
    %2 = vector.load %arg3[%c0_2, %c0_3, %c0_4] : memref<1x32x256xbf16, #tpu.memory_space<vmem>>, vector<1x32x256xbf16>
    %3 = vector.shape_cast %2 : vector<1x32x256xbf16> to vector<32x256xbf16>
    %4 = tpu.concatenate %1, %3 in 0 : vector<32x256xbf16>, vector<32x256xbf16> -> vector<64x256xbf16>
    %5 = vector.extract_strided_slice %4 {offsets = [0, 0], sizes = [32, 256], strides = [1, 1]} : vector<64x256xbf16> to vector<32x256xbf16>
    %c0_5 = arith.constant 0 : index
    %c0_6 = arith.constant 0 : index
    %c0_7 = arith.constant 0 : index
    %6 = vector.load %arg4[%c0_5, %c0_6, %c0_7] : memref<16x256x128xbf16, #tpu.memory_space<vmem>>, vector<1x256x128xbf16>
    %7 = vector.shape_cast %6 : vector<1x256x128xbf16> to vector<256x128xbf16>
    %cst = arith.constant dense<0.000000e+00> : vector<32x128xf32>
    %8 = tpu.matmul %5, %7, %cst {dimension_numbers = #tpu.dot_dimension_numbers<[1], [0], [0], [1], [0, 0, 1, 1], [], []>} : vector<32x256xbf16>, vector<256x128xbf16>, vector<32x128xf32> -> vector<32x128xf32>
    %9 = vector.extract_strided_slice %4 {offsets = [1, 0], sizes = [32, 256], strides = [1, 1]} : vector<64x256xbf16> to vector<32x256xbf16>
    %c1 = arith.constant 1 : index
    %c0_8 = arith.constant 0 : index
    %c0_9 = arith.constant 0 : index
    %10 = vector.load %arg4[%c1, %c0_8, %c0_9] : memref<16x256x128xbf16, #tpu.memory_space<vmem>>, vector<1x256x128xbf16>
    %11 = vector.shape_cast %10 : vector<1x256x128xbf16> to vector<256x128xbf16>
    %cst_10 = arith.constant dense<0.000000e+00> : vector<32x128xf32>
    %12 = tpu.matmul %9, %11, %cst_10 {dimension_numbers = #tpu.dot_dimension_numbers<[1], [0], [0], [1], [0, 0, 1, 1], [], []>} : vector<32x256xbf16>, vector<256x128xbf16>, vector<32x128xf32> -> vector<32x128xf32>
    %13 = arith.addf %8, %12 : vector<32x128xf32>
    %14 = vector.extract_strided_slice %4 {offsets = [2, 0], sizes = [32, 256], strides = [1, 1]} : vector<64x256xbf16> to vector<32x256xbf16>
    %c2 = arith.constant 2 : index
    %c0_11 = arith.constant 0 : index
    %c0_12 = arith.constant 0 : index
    %15 = vector.load %arg4[%c2, %c0_11, %c0_12] : memref<16x256x128xbf16, #tpu.memory_space<vmem>>, vector<1x256x128xbf16>
    %16 = vector.shape_cast %15 : vector<1x256x128xbf16> to vector<256x128xbf16>
    %cst_13 = arith.constant dense<0.000000e+00> : vector<32x128xf32>
    %17 = tpu.matmul %14, %16, %cst_13 {dimension_numbers = #tpu.dot_dimension_numbers<[1], [0], [0], [1], [0, 0, 1, 1], [], []>} : vector<32x256xbf16>, vector<256x128xbf16>, vector<32x128xf32> -> vector<32x128xf32>
    %18 = arith.addf %13, %17 : vector<32x128xf32>
    %19 = vector.extract_strided_slice %4 {offsets = [3, 0], sizes = [32, 256], strides = [1, 1]} : vector<64x256xbf16> to vector<32x256xbf16>
    %c3 = arith.constant 3 : index
    %c0_14 = arith.constant 0 : index
    %c0_15 = arith.constant 0 : index
    %20 = vector.load %arg4[%c3, %c0_14, %c0_15] : memref<16x256x128xbf16, #tpu.memory_space<vmem>>, vector<1x256x128xbf16>
    %21 = vector.shape_cast %20 : vector<1x256x128xbf16> to vector<256x128xbf16>
    %cst_16 = arith.constant dense<0.000000e+00> : vector<32x128xf32>
    %22 = tpu.matmul %19, %21, %cst_16 {dimension_numbers = #tpu.dot_dimension_numbers<[1], [0], [0], [1], [0, 0, 1, 1], [], []>} : vector<32x256xbf16>, vector<256x128xbf16>, vector<32x128xf32> -> vector<32x128xf32>
    %23 = arith.addf %18, %22 : vector<32x128xf32>
    %24 = vector.extract_strided_slice %4 {offsets = [5, 0], sizes = [32, 256], strides = [1, 1]} : vector<64x256xbf16> to vector<32x256xbf16>
    %c4 = arith.constant 4 : index
    %c0_17 = arith.constant 0 : index
    %c0_18 = arith.constant 0 : index
    %25 = vector.load %arg4[%c4, %c0_17, %c0_18] : memref<16x256x128xbf16, #tpu.memory_space<vmem>>, vector<1x256x128xbf16>
    %26 = vector.shape_cast %25 : vector<1x256x128xbf16> to vector<256x128xbf16>
    %cst_19 = arith.constant dense<0.000000e+00> : vector<32x128xf32>
    %27 = tpu.matmul %24, %26, %cst_19 {dimension_numbers = #tpu.dot_dimension_numbers<[1], [0], [0], [1], [0, 0, 1, 1], [], []>} : vector<32x256xbf16>, vector<256x128xbf16>, vector<32x128xf32> -> vector<32x128xf32>
    %28 = arith.addf %23, %27 : vector<32x128xf32>
    %29 = vector.extract_strided_slice %4 {offsets = [6, 0], sizes = [32, 256], strides = [1, 1]} : vector<64x256xbf16> to vector<32x256xbf16>
    %c5 = arith.constant 5 : index
    %c0_20 = arith.constant 0 : index
    %c0_21 = arith.constant 0 : index
    %30 = vector.load %arg4[%c5, %c0_20, %c0_21] : memref<16x256x128xbf16, #tpu.memory_space<vmem>>, vector<1x256x128xbf16>
    %31 = vector.shape_cast %30 : vector<1x256x128xbf16> to vector<256x128xbf16>
    %cst_22 = arith.constant dense<0.000000e+00> : vector<32x128xf32>
    %32 = tpu.matmul %29, %31, %cst_22 {dimension_numbers = #tpu.dot_dimension_numbers<[1], [0], [0], [1], [0, 0, 1, 1], [], []>} : vector<32x256xbf16>, vector<256x128xbf16>, vector<32x128xf32> -> vector<32x128xf32>
    %33 = arith.addf %28, %32 : vector<32x128xf32>
    %34 = vector.extract_strided_slice %4 {offsets = [7, 0], sizes = [32, 256], strides = [1, 1]} : vector<64x256xbf16> to vector<32x256xbf16>
    %c6 = arith.constant 6 : index
    %c0_23 = arith.constant 0 : index
    %c0_24 = arith.constant 0 : index
    %35 = vector.load %arg4[%c6, %c0_23, %c0_24] : memref<16x256x128xbf16, #tpu.memory_space<vmem>>, vector<1x256x128xbf16>
    %36 = vector.shape_cast %35 : vector<1x256x128xbf16> to vector<256x128xbf16>
    %cst_25 = arith.constant dense<0.000000e+00> : vector<32x128xf32>
    %37 = tpu.matmul %34, %36, %cst_25 {dimension_numbers = #tpu.dot_dimension_numbers<[1], [0], [0], [1], [0, 0, 1, 1], [], []>} : vector<32x256xbf16>, vector<256x128xbf16>, vector<32x128xf32> -> vector<32x128xf32>
    %38 = arith.addf %33, %37 : vector<32x128xf32>
    %39 = vector.extract_strided_slice %4 {offsets = [8, 0], sizes = [32, 256], strides = [1, 1]} : vector<64x256xbf16> to vector<32x256xbf16>
    %c7 = arith.constant 7 : index
    %c0_26 = arith.constant 0 : index
    %c0_27 = arith.constant 0 : index
    %40 = vector.load %arg4[%c7, %c0_26, %c0_27] : memref<16x256x128xbf16, #tpu.memory_space<vmem>>, vector<1x256x128xbf16>
    %41 = vector.shape_cast %40 : vector<1x256x128xbf16> to vector<256x128xbf16>
    %cst_28 = arith.constant dense<0.000000e+00> : vector<32x128xf32>
    %42 = tpu.matmul %39, %41, %cst_28 {dimension_numbers = #tpu.dot_dimension_numbers<[1], [0], [0], [1], [0, 0, 1, 1], [], []>} : vector<32x256xbf16>, vector<256x128xbf16>, vector<32x128xf32> -> vector<32x128xf32>
    %43 = arith.addf %38, %42 : vector<32x128xf32>
    %44 = vector.extract_strided_slice %4 {offsets = [10, 0], sizes = [32, 256], strides = [1, 1]} : vector<64x256xbf16> to vector<32x256xbf16>
    %c8 = arith.constant 8 : index
    %c0_29 = arith.constant 0 : index
    %c0_30 = arith.constant 0 : index
    %45 = vector.load %arg4[%c8, %c0_29, %c0_30] : memref<16x256x128xbf16, #tpu.memory_space<vmem>>, vector<1x256x128xbf16>
    %46 = vector.shape_cast %45 : vector<1x256x128xbf16> to vector<256x128xbf16>
    %cst_31 = arith.constant dense<0.000000e+00> : vector<32x128xf32>
    %47 = tpu.matmul %44, %46, %cst_31 {dimension_numbers = #tpu.dot_dimension_numbers<[1], [0], [0], [1], [0, 0, 1, 1], [], []>} : vector<32x256xbf16>, vector<256x128xbf16>, vector<32x128xf32> -> vector<32x128xf32>
    %48 = arith.addf %43, %47 : vector<32x128xf32>
    %49 = vector.extract_strided_slice %4 {offsets = [11, 0], sizes = [32, 256], strides = [1, 1]} : vector<64x256xbf16> to vector<32x256xbf16>
    %c9 = arith.constant 9 : index
    %c0_32 = arith.constant 0 : index
    %c0_33 = arith.constant 0 : index
    %50 = vector.load %arg4[%c9, %c0_32, %c0_33] : memref<16x256x128xbf16, #tpu.memory_space<vmem>>, vector<1x256x128xbf16>
    %51 = vector.shape_cast %50 : vector<1x256x128xbf16> to vector<256x128xbf16>
    %cst_34 = arith.constant dense<0.000000e+00> : vector<32x128xf32>
    %52 = tpu.matmul %49, %51, %cst_34 {dimension_numbers = #tpu.dot_dimension_numbers<[1], [0], [0], [1], [0, 0, 1, 1], [], []>} : vector<32x256xbf16>, vector<256x128xbf16>, vector<32x128xf32> -> vector<32x128xf32>
    %53 = arith.addf %48, %52 : vector<32x128xf32>
    %54 = vector.extract_strided_slice %4 {offsets = [12, 0], sizes = [32, 256], strides = [1, 1]} : vector<64x256xbf16> to vector<32x256xbf16>
    %c10 = arith.constant 10 : index
    %c0_35 = arith.constant 0 : index
    %c0_36 = arith.constant 0 : index
    %55 = vector.load %arg4[%c10, %c0_35, %c0_36] : memref<16x256x128xbf16, #tpu.memory_space<vmem>>, vector<1x256x128xbf16>
    %56 = vector.shape_cast %55 : vector<1x256x128xbf16> to vector<256x128xbf16>
    %cst_37 = arith.constant dense<0.000000e+00> : vector<32x128xf32>
    %57 = tpu.matmul %54, %56, %cst_37 {dimension_numbers = #tpu.dot_dimension_numbers<[1], [0], [0], [1], [0, 0, 1, 1], [], []>} : vector<32x256xbf16>, vector<256x128xbf16>, vector<32x128xf32> -> vector<32x128xf32>
    %58 = arith.addf %53, %57 : vector<32x128xf32>
    %59 = vector.extract_strided_slice %4 {offsets = [13, 0], sizes = [32, 256], strides = [1, 1]} : vector<64x256xbf16> to vector<32x256xbf16>
    %c11 = arith.constant 11 : index
    %c0_38 = arith.constant 0 : index
    %c0_39 = arith.constant 0 : index
    %60 = vector.load %arg4[%c11, %c0_38, %c0_39] : memref<16x256x128xbf16, #tpu.memory_space<vmem>>, vector<1x256x128xbf16>
    %61 = vector.shape_cast %60 : vector<1x256x128xbf16> to vector<256x128xbf16>
    %cst_40 = arith.constant dense<0.000000e+00> : vector<32x128xf32>
    %62 = tpu.matmul %59, %61, %cst_40 {dimension_numbers = #tpu.dot_dimension_numbers<[1], [0], [0], [1], [0, 0, 1, 1], [], []>} : vector<32x256xbf16>, vector<256x128xbf16>, vector<32x128xf32> -> vector<32x128xf32>
    %63 = arith.addf %58, %62 : vector<32x128xf32>
    %64 = vector.extract_strided_slice %4 {offsets = [15, 0], sizes = [32, 256], strides = [1, 1]} : vector<64x256xbf16> to vector<32x256xbf16>
    %c12 = arith.constant 12 : index
    %c0_41 = arith.constant 0 : index
    %c0_42 = arith.constant 0 : index
    %65 = vector.load %arg4[%c12, %c0_41, %c0_42] : memref<16x256x128xbf16, #tpu.memory_space<vmem>>, vector<1x256x128xbf16>
    %66 = vector.shape_cast %65 : vector<1x256x128xbf16> to vector<256x128xbf16>
    %cst_43 = arith.constant dense<0.000000e+00> : vector<32x128xf32>
    %67 = tpu.matmul %64, %66, %cst_43 {dimension_numbers = #tpu.dot_dimension_numbers<[1], [0], [0], [1], [0, 0, 1, 1], [], []>} : vector<32x256xbf16>, vector<256x128xbf16>, vector<32x128xf32> -> vector<32x128xf32>
    %68 = arith.addf %63, %67 : vector<32x128xf32>
    %69 = vector.extract_strided_slice %4 {offsets = [16, 0], sizes = [32, 256], strides = [1, 1]} : vector<64x256xbf16> to vector<32x256xbf16>
    %c13 = arith.constant 13 : index
    %c0_44 = arith.constant 0 : index
    %c0_45 = arith.constant 0 : index
    %70 = vector.load %arg4[%c13, %c0_44, %c0_45] : memref<16x256x128xbf16, #tpu.memory_space<vmem>>, vector<1x256x128xbf16>
    %71 = vector.shape_cast %70 : vector<1x256x128xbf16> to vector<256x128xbf16>
    %cst_46 = arith.constant dense<0.000000e+00> : vector<32x128xf32>
    %72 = tpu.matmul %69, %71, %cst_46 {dimension_numbers = #tpu.dot_dimension_numbers<[1], [0], [0], [1], [0, 0, 1, 1], [], []>} : vector<32x256xbf16>, vector<256x128xbf16>, vector<32x128xf32> -> vector<32x128xf32>
    %73 = arith.addf %68, %72 : vector<32x128xf32>
    %74 = vector.extract_strided_slice %4 {offsets = [17, 0], sizes = [32, 256], strides = [1, 1]} : vector<64x256xbf16> to vector<32x256xbf16>
    %c14 = arith.constant 14 : index
    %c0_47 = arith.constant 0 : index
    %c0_48 = arith.constant 0 : index
    %75 = vector.load %arg4[%c14, %c0_47, %c0_48] : memref<16x256x128xbf16, #tpu.memory_space<vmem>>, vector<1x256x128xbf16>
    %76 = vector.shape_cast %75 : vector<1x256x128xbf16> to vector<256x128xbf16>
    %cst_49 = arith.constant dense<0.000000e+00> : vector<32x128xf32>
    %77 = tpu.matmul %74, %76, %cst_49 {dimension_numbers = #tpu.dot_dimension_numbers<[1], [0], [0], [1], [0, 0, 1, 1], [], []>} : vector<32x256xbf16>, vector<256x128xbf16>, vector<32x128xf32> -> vector<32x128xf32>
    %78 = arith.addf %73, %77 : vector<32x128xf32>
    %79 = vector.extract_strided_slice %4 {offsets = [18, 0], sizes = [32, 256], strides = [1, 1]} : vector<64x256xbf16> to vector<32x256xbf16>
    %c15 = arith.constant 15 : index
    %c0_50 = arith.constant 0 : index
    %c0_51 = arith.constant 0 : index
    %80 = vector.load %arg4[%c15, %c0_50, %c0_51] : memref<16x256x128xbf16, #tpu.memory_space<vmem>>, vector<1x256x128xbf16>
    %81 = vector.shape_cast %80 : vector<1x256x128xbf16> to vector<256x128xbf16>
    %cst_52 = arith.constant dense<0.000000e+00> : vector<32x128xf32>
    %82 = tpu.matmul %79, %81, %cst_52 {dimension_numbers = #tpu.dot_dimension_numbers<[1], [0], [0], [1], [0, 0, 1, 1], [], []>} : vector<32x256xbf16>, vector<256x128xbf16>, vector<32x128xf32> -> vector<32x128xf32>
    %83 = arith.addf %78, %82 : vector<32x128xf32>
    %c0_53 = arith.constant 0 : index
    %c0_54 = arith.constant 0 : index
    %c0_55 = arith.constant 0 : index
    %84 = vector.load %arg5[%c0_53, %c0_54, %c0_55] : memref<1x32x128xf32, #tpu.memory_space<vmem>>, vector<1x32x128xf32>
    %85 = vector.shape_cast %84 : vector<1x32x128xf32> to vector<32x128xf32>
    %86 = vector.shape_cast %83 : vector<32x128xf32> to vector<1x32x128xf32>
    tpu.vector_store %arg5[%c0_53, %c0_54, %c0_55], %86 {strides = array<i32>} : memref<1x32x128xf32, #tpu.memory_space<vmem>>, vector<1x32x128xf32>,
    return
  }
  func.func @transform_0(%arg0: i32, %arg1: i32) -> (i32, i32, i32) {
    %c0_i32 = arith.constant 0 : i32
    %c0_i32_0 = arith.constant 0 : i32
    return %arg0, %arg1, %c0_i32 : i32, i32, i32
  }
  func.func @transform_1(%arg0: i32, %arg1: i32) -> (i32, i32, i32) {
    %c1_i32 = arith.constant 1 : i32
    %0 = arith.addi %arg1, %c1_i32 : i32
    %c1_i32_0 = arith.constant 1 : i32
    %1 = arith.muli %0, %c1_i32_0 : i32
    %c0_i32 = arith.constant 0 : i32
    %c0_i32_1 = arith.constant 0 : i32
    return %arg0, %1, %c0_i32 : i32, i32, i32
  }
  func.func @transform_2(%arg0: i32, %arg1: i32) -> (i32, i32, i32) {
    %c0_i32 = arith.constant 0 : i32
    %c0_i32_0 = arith.constant 0 : i32
    %c0_i32_1 = arith.constant 0 : i32
    %c0_i32_2 = arith.constant 0 : i32
    return %c0_i32, %c0_i32_0, %c0_i32_1 : i32, i32, i32
  }
  func.func @transform_3(%arg0: i32, %arg1: i32) -> (i32, i32, i32) {
    %c0_i32 = arith.constant 0 : i32
    %c0_i32_0 = arith.constant 0 : i32
    return %arg0, %arg1, %c0_i32 : i32, i32, i32
  }
}

</mosaic_0001>

<llo_original>
// kernel: discriminator_forward.4
$region0: #{discriminator_forward.4}
  #allocation0 [shape = 'u32[]', space=smem, size = 0x4, offset = 0x4, fixed_abs, tag = 'smem constant byte address 0x4 - core index']
  #allocation1 [shape = 'u32[144,128]{1,0:T(1,128)}', space=vmem, size = 0x12000, scoped, tag = 'internal scratch']
  %s0 = inlined_call_operand.vmem [shape: bf16[2,96,16], index: 0, kind: input, shape index: {}, may-alias: {0,1}]
  %s1 = inlined_call_operand.vmem [shape: bf16[2,96,16], index: 1, kind: input, shape index: {}, may-alias: {0,1}]
  %s2 = inlined_call_operand.vmem [shape: bf16[4,16,64], index: 2, kind: input, shape index: {}]
  %s3 = inlined_call_operand.vmem [shape: f32[1,64], index: 3, kind: input, shape index: {}]
  %s4 = inlined_call_operand.vmem [shape: bf16[2,80,64], index: 4, kind: output, shape index: {}]
  %s5 = sld [smem:[#allocation0]]
  $region49: #{discriminator_forward.4} parent=0
    _
  %s7 = ssub.s32 1, %s5
  %s8 = scalar_select 0, %s7, %s5
  loop: start=0, step=1, limit=4
  $region2: #{discriminator_forward.4} parent=0 // loop_pre_header
    _
  $region3: #{discriminator_forward.4} parent=0 // loop_header
    %s10 = sphi 0, %s14
    %p11 = scmp.ge.s32.totalorder %s10, 4
    %s17 = sphi 0, %s29
    %s18 = sphi 0, %s25
    %s19 = sphi 0, %s17
    %s20 = sphi 0, %s18
    %s21 = sphi 0, %s19
    %s22 = sphi 0, %s20
    %s34 = sphi 0, %s36
    %s37 = sphi 0, %s34
    %s38 = sphi 0, %s37
    %s54 = sphi 0, %s38
    %s66 = sphi 0, %s68
    %s69 = sphi 0, %s66
    %s70 = sphi 0, %s69
    %s86 = sphi 0, %s70
    %s90 = sphi 0, %s90
    %s92 = sphi 0, %s90
    %s93 = sphi 0, %s92
    %s107 = sphi 0, %s93
    %s111 = sphi 0, %s111
    %s113 = sphi 0, %s111
    %s114 = sphi 0, %s113
    %s128 = sphi 0, %s114
    %s136 = sphi 0, %s138
    %s139 = sphi 0, %s136
    %s140 = sphi 0, %s139
    %s156 = sphi 0, %s140
  $region4: #{discriminator_forward.4} parent=0 // loop_header_branch
    %13 = sbr.rel (%p11) target = $region8
  $region5: #{discriminator_forward.4} parent=0 // loop_body
    %s15 = ssub.s32 %s10, 1
    %s16 = ssub.s32 %s10, 2
    %s23 = sadd.s32 1, %s18
    %p24 = scmp.ge.s32.totalorder %s23, 1
    %s25 = scalar_select %p24, 0, %s23
    %s26 = sadd.s32 1, %s17
    %s27 = scalar_select %p24, %s26, %s17
    %p28 = scmp.ge.s32.totalorder %s27, 2
    %s29 = scalar_select %p28, 0, %s27
    %s30 = ssub.s32 %s17, %s29
    %s31 = ssub.s32 %s18, %s25
    %s32 = sor.u32 %s30, %s31
    %p33 = scmp.eq.s32.totalorder %s32, 0
    %s35 = sadd.s32 %s34, 1
    %s36 = scalar_select %p33, %s34, %s35
    %p39 = pneg %p33
    %p40 = scmp.eq.s32.totalorder %s10, 1
    %p41 = por %p39, %p40
    %p42 = scmp.ne.s32.totalorder %s34, %s37
    %p43 = scmp.eq.s32.totalorder %s10, 0
    %p44 = por %p42, %p43
    %p45 = scmp.ne.s32.totalorder %s34, %s37
    %p46 = scmp.eq.s32.totalorder %s15, 1
    %p47 = por %p45, %p46
    %p48 = scmp.ne.s32.totalorder %s37, %s38
    %p49 = scmp.eq.s32.totalorder %s15, 0
    %p50 = por %p48, %p49
    %p51 = scmp.ne.s32.totalorder %s37, %s38
    %p52 = scmp.eq.s32.totalorder %s16, 1
    %p53 = por %p51, %p52
    %p55 = scmp.ne.s32.totalorder %s38, %s54
    %p56 = scmp.eq.s32.totalorder %s16, 0
    %p57 = por %p55, %p56
    %s58 = sadd.s32 %s18, 1
    %s59 = smul.u32 %s58, 5
    %s60 = sadd.s32 %s25, 1
    %s61 = smul.u32 %s60, 5
    %s62 = ssub.s32 %s17, %s29
    %s63 = ssub.s32 %s59, %s61
    %s64 = sor.u32 %s62, %s63
    %p65 = scmp.eq.s32.totalorder %s64, 0
    %s67 = sadd.s32 %s66, 1
    %s68 = scalar_select %p65, %s66, %s67
    %p71 = pneg %p65
    %p72 = scmp.eq.s32.totalorder %s10, 1
    %p73 = por %p71, %p72
    %p74 = scmp.ne.s32.totalorder %s66, %s69
    %p75 = scmp.eq.s32.totalorder %s10, 0
    %p76 = por %p74, %p75
    %p77 = scmp.ne.s32.totalorder %s66, %s69
    %p78 = scmp.eq.s32.totalorder %s15, 1
    %p79 = por %p77, %p78
    %p80 = scmp.ne.s32.totalorder %s69, %s70
    %p81 = scmp.eq.s32.totalorder %s15, 0
    %p82 = por %p80, %p81
    %p83 = scmp.ne.s32.totalorder %s69, %s70
    %p84 = scmp.eq.s32.totalorder %s16, 1
    %p85 = por %p83, %p84
    %p87 = scmp.ne.s32.totalorder %s70, %s86
    %p88 = scmp.eq.s32.totalorder %s16, 0
    %p89 = por %p87, %p88
    %s91 = sadd.s32 %s90, 1
    %p94 = scmp.eq.s32.totalorder %s10, 1
    %p95 = scmp.ne.s32.totalorder %s90, %s92
    %p96 = scmp.eq.s32.totalorder %s10, 0
    %p97 = por %p95, %p96
    %p98 = scmp.ne.s32.totalorder %s90, %s92
    %p99 = scmp.eq.s32.totalorder %s15, 1
    %p100 = por %p98, %p99
    %p101 = scmp.ne.s32.totalorder %s92, %s93
    %p102 = scmp.eq.s32.totalorder %s15, 0
    %p103 = por %p101, %p102
    %p104 = scmp.ne.s32.totalorder %s92, %s93
    %p105 = scmp.eq.s32.totalorder %s16, 1
    %p106 = por %p104, %p105
    %p108 = scmp.ne.s32.totalorder %s93, %s107
    %p109 = scmp.eq.s32.totalorder %s16, 0
    %p110 = por %p108, %p109
    %s112 = sadd.s32 %s111, 1
    %p115 = scmp.eq.s32.totalorder %s10, 1
    %p116 = scmp.ne.s32.totalorder %s111, %s113
    %p117 = scmp.eq.s32.totalorder %s10, 0
    %p118 = por %p116, %p117
    %p119 = scmp.ne.s32.totalorder %s111, %s113
    %p120 = scmp.eq.s32.totalorder %s15, 1
    %p121 = por %p119, %p120
    %p122 = scmp.ne.s32.totalorder %s113, %s114
    %p123 = scmp.eq.s32.totalorder %s15, 0
    %p124 = por %p122, %p123
    %p125 = scmp.ne.s32.totalorder %s113, %s114
    %p126 = scmp.eq.s32.totalorder %s16, 1
    %p127 = por %p125, %p126
    %p129 = scmp.ne.s32.totalorder %s114, %s128
    %p130 = scmp.eq.s32.totalorder %s16, 0
    %p131 = por %p129, %p130
    %s132 = ssub.s32 %s17, %s29
    %s133 = ssub.s32 %s18, %s25
    %s134 = sor.u32 %s132, %s133
    %p135 = scmp.eq.s32.totalorder %s134, 0
    %s137 = sadd.s32 %s136, 1
    %s138 = scalar_select %p135, %s136, %s137
    %p141 = pneg %p135
    %p142 = scmp.eq.s32.totalorder %s10, 1
    %p143 = por %p141, %p142
    %p144 = scmp.ne.s32.totalorder %s136, %s139
    %p145 = scmp.eq.s32.totalorder %s10, 0
    %p146 = por %p144, %p145
    %p147 = scmp.ne.s32.totalorder %s136, %s139
    %p148 = scmp.eq.s32.totalorder %s15, 1
    %p149 = por %p147, %p148
    %p150 = scmp.ne.s32.totalorder %s139, %s140
    %p151 = scmp.eq.s32.totalorder %s15, 0
    %p152 = por %p150, %p151
    %p153 = scmp.ne.s32.totalorder %s139, %s140
    %p154 = scmp.eq.s32.totalorder %s16, 1
    %p155 = por %p153, %p154
    %p157 = scmp.ne.s32.totalorder %s140, %s156
    %p158 = scmp.eq.s32.totalorder %s16, 0
    %p159 = por %p157, %p158
    %p160 = scmp.le.s32.totalorder 1, %s10
    %p161 = scmp.lt.s32.totalorder %s10, 3
    %p162 = pnand %p160, %p161
    %p163 = pneg %p162
    // Predicated region
    $region9: #{discriminator_forward.4} parent=5 // pred_check
      _
    $region10: #{discriminator_forward.4} parent=5 // pred_check_branch
      %165 = sbr.rel (%p162) target = $region12
    $region11: #{discriminator_forward.4} parent=5 // pred_region
      %s166 = ssub.s32 %s10, 1
      // Predicated region
      $region13: #{discriminator_forward.4} parent=11 // pred_check
        %p167 = pneg %p103
      $region14: #{discriminator_forward.4} parent=11 // pred_check_branch
        %169 = sbr.rel (%p167) target = $region16
      $region15: #{discriminator_forward.4} parent=11 // pred_region
        _
      $region16: #{discriminator_forward.4} parent=11 // pred_fallthru
        _
      // Predicated region
      $region17: #{discriminator_forward.4} parent=11 // pred_check
        %p170 = pneg %p124
      $region18: #{discriminator_forward.4} parent=11 // pred_check_branch
        %172 = sbr.rel (%p170) target = $region20
      $region19: #{discriminator_forward.4} parent=11 // pred_region
        _
      $region20: #{discriminator_forward.4} parent=11 // pred_fallthru
        _
    $region12: #{discriminator_forward.4} parent=5 // pred_fallthru
      _
    %p173 = scmp.lt.s32.totalorder %s10, 2
    // Predicated region
    $region21: #{discriminator_forward.4} parent=5 // pred_check
      %p174 = pneg %p173
    $region22: #{discriminator_forward.4} parent=5 // pred_check_branch
      %176 = sbr.rel (%p174) target = $region24
    $region23: #{discriminator_forward.4} parent=5 // pred_region
      // Predicated region
      $region25: #{discriminator_forward.4} parent=23 // pred_check
        %p177 = pneg %p44
      $region26: #{discriminator_forward.4} parent=23 // pred_check_branch
        %179 = sbr.rel (%p177) target = $region28
      $region27: #{discriminator_forward.4} parent=23 // pred_region
        %s180 = smul.u32 10, %s18
        %s181 = ssub.s32 12, %s180
        %p182 = scmp.lt.s32.totalorder %s181, 10
        %s183 = scalar_select %p182, %s181, 10
        %s184 = smul.u32 64, %s183
        %p185 = scmp.lt.s32.totalorder %s17, 1
        %s186 = scalar_select %p185, %s17, 1
        %p187 = scmp.lt.s32.totalorder %s180, 11
        %s188 = scalar_select %p187, %s180, 11
        %s189 = smul.addr %s186, 12
        %s190 = sadd.s32 %s188, %s189
        %s191 = smul.addr %s190, 4
        %s192 = scalar_lea.vmem %s0, %s191
        %s193 = smul.u32 10, %s18
        %s194 = ssub.s32 12, %s193
        %p195 = scmp.lt.s32.totalorder %s194, 10
        %s196 = scalar_select %p195, %s194, 10
        %s197 = smul.u32 64, %s196
      $region28: #{discriminator_forward.4} parent=23 // pred_fallthru
        _
      // Predicated region
      $region29: #{discriminator_forward.4} parent=23 // pred_check
        %p198 = pneg %p76
      $region30: #{discriminator_forward.4} parent=23 // pred_check_branch
        %200 = sbr.rel (%p198) target = $region32
      $region31: #{discriminator_forward.4} parent=23 // pred_region
        %s201 = sadd.s32 %s18, 1
        %s202 = smul.u32 %s201, 5
        %s203 = smul.u32 2, %s202
        %p204 = scmp.lt.s32.totalorder %s17, 1
        %s205 = scalar_select %p204, %s17, 1
        %p206 = scmp.lt.s32.totalorder %s203, 11
        %s207 = scalar_select %p206, %s203, 11
        %s208 = smul.addr %s205, 12
        %s209 = sadd.s32 %s207, %s208
        %s210 = smul.addr %s209, 4
        %s211 = scalar_lea.vmem %s1, %s210
        %s212 = sadd.s32 %s18, 1
        %s213 = smul.u32 %s212, 5
        %s214 = smul.u32 2, %s213
      $region32: #{discriminator_forward.4} parent=23 // pred_fallthru
        _
    $region24: #{discriminator_forward.4} parent=5 // pred_fallthru
      _
    %p215 = scmp.le.s32.totalorder 1, %s10
    %p216 = scmp.lt.s32.totalorder %s10, 3
    %p217 = pnand %p215, %p216
    %p218 = pneg %p217
    // Predicated region
    $region33: #{discriminator_forward.4} parent=5 // pred_check
      _
    $region34: #{discriminator_forward.4} parent=5 // pred_check_branch
      %220 = sbr.rel (%p217) target = $region36
    $region35: #{discriminator_forward.4} parent=5 // pred_region
      %s221 = ssub.s32 %s10, 1
      %s222 = smul.u32 10, %s20
      %s223 = ssub.s32 12, %s222
      %p224 = scmp.lt.s32.totalorder %s223, 10
      %s225 = scalar_select %p224, %s223, 10
      %s226 = smul.u32 64, %s225
      %p227 = scmp.lt.s32.totalorder %s19, 1
      %s228 = scalar_select %p227, %s19, 1
      %p229 = scmp.lt.s32.totalorder %s222, 11
      %s230 = scalar_select %p229, %s222, 11
      %s231 = smul.addr %s228, 12
      %s232 = sadd.s32 %s230, %s231
      %s233 = smul.addr %s232, 4
      %s234 = scalar_lea.vmem %s0, %s233
      %p235 = pneg %p50
      %p236 = pneg %p47
      %s237 = sadd.s32 %s20, 1
      %s238 = smul.u32 %s237, 5
      %s239 = smul.u32 2, %s238
      %p240 = scmp.lt.s32.totalorder %s19, 1
      %s241 = scalar_select %p240, %s19, 1
      %p242 = scmp.lt.s32.totalorder %s239, 11
      %s243 = scalar_select %p242, %s239, 11
      %s244 = smul.addr %s241, 12
      %s245 = sadd.s32 %s243, %s244
      %s246 = smul.addr %s245, 4
      %s247 = scalar_lea.vmem %s1, %s246
      %p248 = pneg %p82
      %p249 = pneg %p79
      %p250 = pneg %p103
      %p251 = pneg %p100
      %p252 = pneg %p124
      %p253 = pneg %p121
      %p254 = pneg %p152
      %p255 = pneg %p149
      %s256 = smul.u32 10, %s20
      %p257 = scmp.lt.s32.totalorder %s19, 1
      %s258 = scalar_select %p257, %s19, 1
      %p259 = scmp.lt.s32.totalorder %s256, 9
      %s260 = scalar_select %p259, %s256, 9
      %s261 = smul.addr %s258, 10
      %s262 = sadd.s32 %s260, %s261
      %s263 = smul.addr %s262, 4
      %s264 = scalar_lea.vmem %s4, %s263
      %s265 = smul.u32 10, %s20
      %s266 = ssub.s32 12, %s265
      %p267 = scmp.lt.s32.totalorder %s266, 10
      %s268 = scalar_select %p267, %s266, 10
      %s269 = smul.u32 64, %s268
      %p270 = scmp.lt.s32.totalorder %s19, 1
      %s271 = scalar_select %p270, %s19, 1
      %p272 = scmp.lt.s32.totalorder %s265, 11
      %s273 = scalar_select %p272, %s265, 11
      %s274 = smul.addr %s271, 12
      %s275 = sadd.s32 %s273, %s274
      %s276 = smul.addr %s275, 4
      %s277 = scalar_lea.vmem %s0, %s276
      %s278 = smul.u32 10, %s20
      %s279 = ssub.s32 12, %s278
      %p280 = scmp.lt.s32.totalorder %s279, 10
      %s281 = scalar_select %p280, %s279, 10
      %s282 = smul.u32 64, %s281
      %s283 = sadd.s32 %s20, 1
      %s284 = smul.u32 %s283, 5
      %s285 = smul.u32 2, %s284
      %p286 = scmp.lt.s32.totalorder %s19, 1
      %s287 = scalar_select %p286, %s19, 1
      %p288 = scmp.lt.s32.totalorder %s285, 11
      %s289 = scalar_select %p288, %s285, 11
      %s290 = smul.addr %s287, 12
      %s291 = sadd.s32 %s289, %s290
      %s292 = smul.addr %s291, 4
      %s293 = scalar_lea.vmem %s1, %s292
      %s294 = sadd.s32 %s20, 1
      %s295 = smul.u32 %s294, 5
      %s296 = smul.u32 2, %s295
      %s297 = smul.u32 10, %s20
      %p298 = scmp.lt.s32.totalorder %s19, 1
      %s299 = scalar_select %p298, %s19, 1
      %p300 = scmp.lt.s32.totalorder %s297, 9
      %s301 = scalar_select %p300, %s297, 9
      %s302 = smul.addr %s299, 10
      %s303 = sadd.s32 %s301, %s302
      %s304 = smul.addr %s303, 4
      %s305 = scalar_lea.vmem %s4, %s304
      %s306 = smul.u32 10, %s20
      %v308 = vld [vmem:[%s277] sm:$0xf]
      %v309 = vld [vmem:[%s277 + $0x4] sm:$0xf]
      %v310 = vld [vmem:[%s277 + $0x8] sm:$0xf]
      %v311 = vld [vmem:[%s277 + $0xc] sm:$0xf]
      %v312 = vld [vmem:[%s277 + $0x10] sm:$0xf]
      %v313 = vld [vmem:[%s277 + $0x14] sm:$0xf]
      %v314 = vld [vmem:[%s277 + $0x18] sm:$0xf]
      %v315 = vld [vmem:[%s277 + $0x1c] sm:$0xf]
      %v316 = vld [vmem:[%s277 + $0x20] sm:$0xf]
      %v317 = vld [vmem:[%s277 + $0x24] sm:$0xf]
      %v318 = vld [vmem:[%s293] sm:$0xf]
      %v319 = vld [vmem:[%s293 + $0x4] sm:$0xf]
      %v330 = vunpack.c.l.b16 %v308
      %v331 = vunpack.c.l.b16 %v309
      %v332 = vunpack.c.l.b16 %v310
      %v333 = vunpack.c.l.b16 %v311
      %v334 = vunpack.c.l.b16 %v312
      %v335 = vunpack.c.l.b16 %v313
      %v336 = vunpack.c.l.b16 %v314
      %v337 = vunpack.c.l.b16 %v315
      %v338 = vunpack.c.l.b16 %v316
      %v339 = vunpack.c.l.b16 %v317
      %v340 = vpack.c.b16 %v331, %v330
      %v341 = vpack.c.b16 %v333, %v332
      %v342 = vpack.c.b16 %v335, %v334
      %v343 = vpack.c.b16 %v337, %v336
      %v344 = vpack.c.b16 %v339, %v338
      %v347 = vunpack.c.l.b16 %v318
      %v348 = vunpack.c.l.b16 %v319
      %v349 = vpack.c.b16 %v348, %v347
      %v350 = vld [vmem:[%s2] sm:$0xf]
      %v351 = vld [vmem:[%s2 + $0x4] sm:$0xf]
      %s352 = scalar_lea.vmem %s2, 8
      %v353 = vld [vmem:[%s352] sm:$0xf]
      %v354 = vld [vmem:[%s352 + $0x4] sm:$0xf]
      %vm355 = vsmask.f32 7424
      %v357 = vshrl.u32 %v340, 16
      %v359 = vshll.u32 %v340, 16
      %v361 = vrot.slane %v359, 1
      %v362 = vor.u32 %v357, %v361
      %v364 = vshll.u32 %v341, 16
      %v366 = vrot.slane %v364, 1
      %v367 = vsel %vm355, %v362, %v366
      %v368 = vshrl.u32 %v341, 16
      %v370 = vor.u32 %v368, %v366
      %v372 = vshll.u32 %v342, 16
      %v374 = vrot.slane %v372, 1
      %v375 = vsel %vm355, %v370, %v374
      %v376 = vshrl.u32 %v342, 16
      %v378 = vor.u32 %v376, %v374
      %v380 = vshll.u32 %v343, 16
      %v382 = vrot.slane %v380, 1
      %v383 = vsel %vm355, %v378, %v382
      %v384 = vshrl.u32 %v343, 16
      %v386 = vor.u32 %v384, %v382
      %v388 = vshll.u32 %v344, 16
      %v390 = vrot.slane %v388, 1
      %v391 = vsel %vm355, %v386, %v390
      %v392 = vshrl.u32 %v344, 16
      %v394 = vor.u32 %v392, %v390
      %v396 = vshll.u32 %v349, 16
      %v398 = vrot.slane %v396, 1
      %v399 = vsel %vm355, %v394, %v398
      %v402 = vunpack.c.l.b16 %v353
      %v403 = vunpack.c.l.b16 %v354
      %v404 = vpack.c.b16 %v403, %v402
      %vm406 = vcmask 130048
      %v408 = vsel %vm406, %v367, 0
      %v411 = vsel %vm406, %v375, 0
      %v414 = vsel %vm406, %v383, 0
      %v417 = vsel %vm406, %v391, 0
      %v420 = vsel %vm406, %v399, 0
      %422 = vmatprep.subr.bf16.mxu0 0
      %423 = vmatpush1.bf16.msra.mxu0 %v404
      %424 = vmatprep.subr.bf16.mxu0 0
      %425 = vmatpush1.bf16.msra.mxu0 0
      %426 = vmatprep.subr.bf16.mxu0 0
      %427 = vmatpush1.bf16.msra.mxu0 0
      %428 = vmatprep.subr.bf16.mxu0 0
      %429 = vmatpush1.bf16.msra.mxu0 0
      %430 = vmatprep.subr.bf16.mxu0 0
      %431 = vmatpush1.bf16.msra.mxu0 0
      %432 = vmatprep.subr.bf16.mxu0 0
      %433 = vmatpush1.bf16.msra.mxu0 0
      %434 = vmatprep.subr.bf16.mxu0 0
      %435 = vmatpush1.bf16.msra.mxu0 0
      %436 = vmatprep.subr.bf16.mxu0 0
      %437 = vmatpush1.bf16.msra.mxu0 0
      %438 = vmatprep.subr.bf16.mxu0 0
      %439 = vmatpush1.bf16.msra.mxu0 0
      %440 = vmatprep.subr.bf16.mxu0 0
      %441 = vmatpush1.bf16.msra.mxu0 0
      %442 = vmatprep.subr.bf16.mxu0 0
      %443 = vmatpush1.bf16.msra.mxu0 0
      %444 = vmatprep.subr.bf16.mxu0 0
      %445 = vmatpush1.bf16.msra.mxu0 0
      %446 = vmatprep.subr.bf16.mxu0 0
      %447 = vmatpush1.bf16.msra.mxu0 0
      %448 = vmatprep.subr.bf16.mxu0 0
      %449 = vmatpush1.bf16.msra.mxu0 0
      %450 = vmatprep.subr.bf16.mxu0 0
      %451 = vmatpush1.bf16.msra.mxu0 0
      %452 = vmatprep.subr.bf16.mxu0 0
      %453 = vmatpush1.bf16.msra.mxu0 0
      %454 = vmatprep.mubr.bf16.mxu0 0
      %455 = vmatmul.mubr.bf16.gmra.mrb[0].mxu0 %v408
      %v456 = vpop.f32.mrb[0].mxu0
      %v457 = vadd.f32 0.0, %v456
      %v458 = vpop.f32.mrb[0].mxu0
      %v459 = vpop.f32.mrb[0].mxu0
      %v460 = vadd.f32 0.0, %v459
      %v461 = vpop.f32.mrb[0].mxu0
      %462 = vmatprep.mubr.bf16.mxu0 0
      %463 = vmatmul.mubr.bf16.gmra.mrb[0].mxu0 %v411
      %v464 = vpop.f32.mrb[0].mxu0
      %v465 = vadd.f32 0.0, %v464
      %v466 = vpop.f32.mrb[0].mxu0
      %v467 = vpop.f32.mrb[0].mxu0
      %v468 = vadd.f32 0.0, %v467
      %v469 = vpop.f32.mrb[0].mxu0
      %470 = vmatprep.mubr.bf16.mxu0 0
      %471 = vmatmul.mubr.bf16.gmra.mrb[0].mxu0 %v414
      %v472 = vpop.f32.mrb[0].mxu0
      %v473 = vadd.f32 0.0, %v472
      %v474 = vpop.f32.mrb[0].mxu0
      %v475 = vpop.f32.mrb[0].mxu0
      %v476 = vadd.f32 0.0, %v475
      %v477 = vpop.f32.mrb[0].mxu0
      %478 = vmatprep.mubr.bf16.mxu0 0
      %479 = vmatmul.mubr.bf16.gmra.mrb[0].mxu0 %v417
      %v480 = vpop.f32.mrb[0].mxu0
      %v481 = vadd.f32 0.0, %v480
      %v482 = vpop.f32.mrb[0].mxu0
      %v483 = vpop.f32.mrb[0].mxu0
      %v484 = vadd.f32 0.0, %v483
      %v485 = vpop.f32.mrb[0].mxu0
      %486 = vmatprep.mubr.bf16.mxu0 0
      %487 = vmatmul.mubr.bf16.gmra.mrb[0].mxu0 %v420
      %v488 = vpop.f32.mrb[0].mxu0
      %v489 = vadd.f32 0.0, %v488
      %v490 = vpop.f32.mrb[0].mxu0
      %v491 = vpop.f32.mrb[0].mxu0
      %v492 = vadd.f32 0.0, %v491
      %v493 = vpop.f32.mrb[0].mxu0
      %494 = vdwg.mxu0
      %v497 = vunpack.c.l.b16 %v350
      %v498 = vunpack.c.l.b16 %v351
      %v499 = vpack.c.b16 %v498, %v497
      %v501 = vsel %vm406, %v340, 0
      %v503 = vsel %vm406, %v341, 0
      %v505 = vsel %vm406, %v342, 0
      %v507 = vsel %vm406, %v343, 0
      %v509 = vsel %vm406, %v344, 0
      %511 = vmatprep.subr.bf16.mxu0 0
      %512 = vmatpush1.bf16.msra.mxu0 %v499
      %513 = vmatprep.subr.bf16.mxu0 0
      %514 = vmatpush1.bf16.msra.mxu0 0
      %515 = vmatprep.subr.bf16.mxu0 0
      %516 = vmatpush1.bf16.msra.mxu0 0
      %517 = vmatprep.subr.bf16.mxu0 0
      %518 = vmatpush1.bf16.msra.mxu0 0
      %519 = vmatprep.subr.bf16.mxu0 0
      %520 = vmatpush1.bf16.msra.mxu0 0
      %521 = vmatprep.subr.bf16.mxu0 0
      %522 = vmatpush1.bf16.msra.mxu0 0
      %523 = vmatprep.subr.bf16.mxu0 0
      %524 = vmatpush1.bf16.msra.mxu0 0
      %525 = vmatprep.subr.bf16.mxu0 0
      %526 = vmatpush1.bf16.msra.mxu0 0
      %527 = vmatprep.subr.bf16.mxu0 0
      %528 = vmatpush1.bf16.msra.mxu0 0
      %529 = vmatprep.subr.bf16.mxu0 0
      %530 = vmatpush1.bf16.msra.mxu0 0
      %531 = vmatprep.subr.bf16.mxu0 0
      %532 = vmatpush1.bf16.msra.mxu0 0
      %533 = vmatprep.subr.bf16.mxu0 0
      %534 = vmatpush1.bf16.msra.mxu0 0
      %535 = vmatprep.subr.bf16.mxu0 0
      %536 = vmatpush1.bf16.msra.mxu0 0
      %537 = vmatprep.subr.bf16.mxu0 0
      %538 = vmatpush1.bf16.msra.mxu0 0
      %539 = vmatprep.subr.bf16.mxu0 0
      %540 = vmatpush1.bf16.msra.mxu0 0
      %541 = vmatprep.subr.bf16.mxu0 0
      %542 = vmatpush1.bf16.msra.mxu0 0
      %543 = vmatprep.mubr.bf16.mxu0 0
      %544 = vmatmul.mubr.bf16.gmra.mrb[0].mxu0 %v501
      %v545 = vpop.f32.mrb[0].mxu0
      %v546 = vadd.f32 %v457, %v545
      %v547 = vpop.f32.mrb[0].mxu0
      %v548 = vpop.f32.mrb[0].mxu0
      %v549 = vadd.f32 %v460, %v548
      %v550 = vpop.f32.mrb[0].mxu0
      %551 = vmatprep.mubr.bf16.mxu0 0
      %552 = vmatmul.mubr.bf16.gmra.mrb[0].mxu0 %v503
      %v553 = vpop.f32.mrb[0].mxu0
      %v554 = vadd.f32 %v465, %v553
      %v555 = vpop.f32.mrb[0].mxu0
      %v556 = vpop.f32.mrb[0].mxu0
      %v557 = vadd.f32 %v468, %v556
      %v558 = vpop.f32.mrb[0].mxu0
      %559 = vmatprep.mubr.bf16.mxu0 0
      %560 = vmatmul.mubr.bf16.gmra.mrb[0].mxu0 %v505
      %v561 = vpop.f32.mrb[0].mxu0
      %v562 = vadd.f32 %v473, %v561
      %v563 = vpop.f32.mrb[0].mxu0
      %v564 = vpop.f32.mrb[0].mxu0
      %v565 = vadd.f32 %v476, %v564
      %v566 = vpop.f32.mrb[0].mxu0
      %567 = vmatprep.mubr.bf16.mxu0 0
      %568 = vmatmul.mubr.bf16.gmra.mrb[0].mxu0 %v507
      %v569 = vpop.f32.mrb[0].mxu0
      %v570 = vadd.f32 %v481, %v569
      %v571 = vpop.f32.mrb[0].mxu0
      %v572 = vpop.f32.mrb[0].mxu0
      %v573 = vadd.f32 %v484, %v572
      %v574 = vpop.f32.mrb[0].mxu0
      %575 = vmatprep.mubr.bf16.mxu0 0
      %576 = vmatmul.mubr.bf16.gmra.mrb[0].mxu0 %v509
      %v577 = vpop.f32.mrb[0].mxu0
      %v578 = vadd.f32 %v489, %v577
      %v579 = vpop.f32.mrb[0].mxu0
      %v580 = vpop.f32.mrb[0].mxu0
      %v581 = vadd.f32 %v492, %v580
      %v582 = vpop.f32.mrb[0].mxu0
      %583 = vdwg.mxu0
      %s584 = scalar_lea.vmem %s2, 16
      %v585 = vld [vmem:[%s584] sm:$0xf]
      %v586 = vld [vmem:[%s584 + $0x4] sm:$0xf]
      %vm587 = vsmask.f32 3328
      %v588 = vrot.slane %v357, 4
      %v589 = vrot.slane %v359, 5
      %v590 = vor.u32 %v588, %v589
      %v591 = vrot.slane %v368, 4
      %v592 = vrot.slane %v364, 5
      %v593 = vor.u32 %v591, %v592
      %v594 = vsel %vm587, %v590, %v593
      %v595 = vrot.slane %v376, 4
      %v596 = vrot.slane %v372, 5
      %v597 = vor.u32 %v595, %v596
      %v598 = vsel %vm587, %v593, %v597
      %v599 = vrot.slane %v384, 4
      %v600 = vrot.slane %v380, 5
      %v601 = vor.u32 %v599, %v600
      %v602 = vsel %vm587, %v597, %v601
      %v603 = vrot.slane %v392, 4
      %v604 = vrot.slane %v388, 5
      %v605 = vor.u32 %v603, %v604
      %v606 = vsel %vm587, %v601, %v605
      %v607 = vshrl.u32 %v349, 16
      %v609 = vrot.slane %v607, 4
      %v610 = vrot.slane %v396, 5
      %v611 = vor.u32 %v609, %v610
      %v612 = vsel %vm587, %v605, %v611
      %v615 = vunpack.c.l.b16 %v585
      %v616 = vunpack.c.l.b16 %v586
      %v617 = vpack.c.b16 %v616, %v615
      %v620 = vsel %vm406, %v594, 0
      %v623 = vsel %vm406, %v598, 0
      %v626 = vsel %vm406, %v602, 0
      %v629 = vsel %vm406, %v606, 0
      %v632 = vsel %vm406, %v612, 0
      %634 = vmatprep.subr.bf16.mxu0 0
      %635 = vmatpush1.bf16.msra.mxu0 %v617
      %636 = vmatprep.subr.bf16.mxu0 0
      %637 = vmatpush1.bf16.msra.mxu0 0
      %638 = vmatprep.subr.bf16.mxu0 0
      %639 = vmatpush1.bf16.msra.mxu0 0
      %640 = vmatprep.subr.bf16.mxu0 0
      %641 = vmatpush1.bf16.msra.mxu0 0
      %642 = vmatprep.subr.bf16.mxu0 0
      %643 = vmatpush1.bf16.msra.mxu0 0
      %644 = vmatprep.subr.bf16.mxu0 0
      %645 = vmatpush1.bf16.msra.mxu0 0
      %646 = vmatprep.subr.bf16.mxu0 0
      %647 = vmatpush1.bf16.msra.mxu0 0
      %648 = vmatprep.subr.bf16.mxu0 0
      %649 = vmatpush1.bf16.msra.mxu0 0
      %650 = vmatprep.subr.bf16.mxu0 0
      %651 = vmatpush1.bf16.msra.mxu0 0
      %652 = vmatprep.subr.bf16.mxu0 0
      %653 = vmatpush1.bf16.msra.mxu0 0
      %654 = vmatprep.subr.bf16.mxu0 0
      %655 = vmatpush1.bf16.msra.mxu0 0
      %656 = vmatprep.subr.bf16.mxu0 0
      %657 = vmatpush1.bf16.msra.mxu0 0
      %658 = vmatprep.subr.bf16.mxu0 0
      %659 = vmatpush1.bf16.msra.mxu0 0
      %660 = vmatprep.subr.bf16.mxu0 0
      %661 = vmatpush1.bf16.msra.mxu0 0
      %662 = vmatprep.subr.bf16.mxu0 0
      %663 = vmatpush1.bf16.msra.mxu0 0
      %664 = vmatprep.subr.bf16.mxu0 0
      %665 = vmatpush1.bf16.msra.mxu0 0
      %666 = vmatprep.mubr.bf16.mxu0 0
      %667 = vmatmul.mubr.bf16.gmra.mrb[0].mxu0 %v620
      %v668 = vpop.f32.mrb[0].mxu0
      %v669 = vadd.f32 0.0, %v668
      %v670 = vpop.f32.mrb[0].mxu0
      %v671 = vpop.f32.mrb[0].mxu0
      %v672 = vadd.f32 0.0, %v671
      %v673 = vpop.f32.mrb[0].mxu0
      %674 = vmatprep.mubr.bf16.mxu0 0
      %675 = vmatmul.mubr.bf16.gmra.mrb[0].mxu0 %v623
      %v676 = vpop.f32.mrb[0].mxu0
      %v677 = vadd.f32 0.0, %v676
      %v678 = vpop.f32.mrb[0].mxu0
      %v679 = vpop.f32.mrb[0].mxu0
      %v680 = vadd.f32 0.0, %v679
      %v681 = vpop.f32.mrb[0].mxu0
      %682 = vmatprep.mubr.bf16.mxu0 0
      %683 = vmatmul.mubr.bf16.gmra.mrb[0].mxu0 %v626
      %v684 = vpop.f32.mrb[0].mxu0
      %v685 = vadd.f32 0.0, %v684
      %v686 = vpop.f32.mrb[0].mxu0
      %v687 = vpop.f32.mrb[0].mxu0
      %v688 = vadd.f32 0.0, %v687
      %v689 = vpop.f32.mrb[0].mxu0
      %690 = vmatprep.mubr.bf16.mxu0 0
      %691 = vmatmul.mubr.bf16.gmra.mrb[0].mxu0 %v629
      %v692 = vpop.f32.mrb[0].mxu0
      %v693 = vadd.f32 0.0, %v692
      %v694 = vpop.f32.mrb[0].mxu0
      %v695 = vpop.f32.mrb[0].mxu0
      %v696 = vadd.f32 0.0, %v695
      %v697 = vpop.f32.mrb[0].mxu0
      %698 = vmatprep.mubr.bf16.mxu0 0
      %699 = vmatmul.mubr.bf16.gmra.mrb[0].mxu0 %v632
      %v700 = vpop.f32.mrb[0].mxu0
      %v701 = vadd.f32 0.0, %v700
      %v702 = vpop.f32.mrb[0].mxu0
      %v703 = vpop.f32.mrb[0].mxu0
      %v704 = vadd.f32 0.0, %v703
      %v705 = vpop.f32.mrb[0].mxu0
      %706 = vdwg.mxu0
      %v707 = vadd.f32 %v546, %v669
      %v708 = vadd.f32 %v549, %v672
      %v709 = vadd.f32 %v554, %v677
      %v710 = vadd.f32 %v557, %v680
      %v711 = vadd.f32 %v562, %v685
      %v712 = vadd.f32 %v565, %v688
      %v713 = vadd.f32 %v570, %v693
      %v714 = vadd.f32 %v573, %v696
      %v715 = vadd.f32 %v578, %v701
      %v716 = vadd.f32 %v581, %v704
      %s717 = scalar_lea.vmem %s2, 24
      %v718 = vld [vmem:[%s717] sm:$0xf]
      %v719 = vld [vmem:[%s717 + $0x4] sm:$0xf]
      %vm720 = vcmask 1042432
      %v721 = vrot.slane %v340, 5
      %v722 = vrot.slane %v341, 5
      %v723 = vsel %vm720, %v721, %v722
      %v724 = vrot.slane %v342, 5
      %v725 = vsel %vm720, %v722, %v724
      %v726 = vrot.slane %v343, 5
      %v727 = vsel %vm720, %v724, %v726
      %v728 = vrot.slane %v344, 5
      %v729 = vsel %vm720, %v726, %v728
      %v730 = vrot.slane %v349, 5
      %v731 = vsel %vm720, %v728, %v730
      %v734 = vunpack.c.l.b16 %v718
      %v735 = vunpack.c.l.b16 %v719
      %v736 = vpack.c.b16 %v735, %v734
      %v739 = vsel %vm406, %v723, 0
      %v742 = vsel %vm406, %v725, 0
      %v745 = vsel %vm406, %v727, 0
      %v748 = vsel %vm406, %v729, 0
      %v751 = vsel %vm406, %v731, 0
      %753 = vmatprep.subr.bf16.mxu0 0
      %754 = vmatpush1.bf16.msra.mxu0 %v736
      %755 = vmatprep.subr.bf16.mxu0 0
      %756 = vmatpush1.bf16.msra.mxu0 0
      %757 = vmatprep.subr.bf16.mxu0 0
      %758 = vmatpush1.bf16.msra.mxu0 0
      %759 = vmatprep.subr.bf16.mxu0 0
      %760 = vmatpush1.bf16.msra.mxu0 0
      %761 = vmatprep.subr.bf16.mxu0 0
      %762 = vmatpush1.bf16.msra.mxu0 0
      %763 = vmatprep.subr.bf16.mxu0 0
      %764 = vmatpush1.bf16.msra.mxu0 0
      %765 = vmatprep.subr.bf16.mxu0 0
      %766 = vmatpush1.bf16.msra.mxu0 0
      %767 = vmatprep.subr.bf16.mxu0 0
      %768 = vmatpush1.bf16.msra.mxu0 0
      %769 = vmatprep.subr.bf16.mxu0 0
      %770 = vmatpush1.bf16.msra.mxu0 0
      %771 = vmatprep.subr.bf16.mxu0 0
      %772 = vmatpush1.bf16.msra.mxu0 0
      %773 = vmatprep.subr.bf16.mxu0 0
      %774 = vmatpush1.bf16.msra.mxu0 0
      %775 = vmatprep.subr.bf16.mxu0 0
      %776 = vmatpush1.bf16.msra.mxu0 0
      %777 = vmatprep.subr.bf16.mxu0 0
      %778 = vmatpush1.bf16.msra.mxu0 0
      %779 = vmatprep.subr.bf16.mxu0 0
      %780 = vmatpush1.bf16.msra.mxu0 0
      %781 = vmatprep.subr.bf16.mxu0 0
      %782 = vmatpush1.bf16.msra.mxu0 0
      %783 = vmatprep.subr.bf16.mxu0 0
      %784 = vmatpush1.bf16.msra.mxu0 0
      %785 = vmatprep.mubr.bf16.mxu0 0
      %786 = vmatmul.mubr.bf16.gmra.mrb[0].mxu0 %v739
      %v787 = vpop.f32.mrb[0].mxu0
      %v788 = vadd.f32 0.0, %v787
      %v789 = vpop.f32.mrb[0].mxu0
      %v790 = vpop.f32.mrb[0].mxu0
      %v791 = vadd.f32 0.0, %v790
      %v792 = vpop.f32.mrb[0].mxu0
      %793 = vmatprep.mubr.bf16.mxu0 0
      %794 = vmatmul.mubr.bf16.gmra.mrb[0].mxu0 %v742
      %v795 = vpop.f32.mrb[0].mxu0
      %v796 = vadd.f32 0.0, %v795
      %v797 = vpop.f32.mrb[0].mxu0
      %v798 = vpop.f32.mrb[0].mxu0
      %v799 = vadd.f32 0.0, %v798
      %v800 = vpop.f32.mrb[0].mxu0
      %801 = vmatprep.mubr.bf16.mxu0 0
      %802 = vmatmul.mubr.bf16.gmra.mrb[0].mxu0 %v745
      %v803 = vpop.f32.mrb[0].mxu0
      %v804 = vadd.f32 0.0, %v803
      %v805 = vpop.f32.mrb[0].mxu0
      %v806 = vpop.f32.mrb[0].mxu0
      %v807 = vadd.f32 0.0, %v806
      %v808 = vpop.f32.mrb[0].mxu0
      %809 = vmatprep.mubr.bf16.mxu0 0
      %810 = vmatmul.mubr.bf16.gmra.mrb[0].mxu0 %v748
      %v811 = vpop.f32.mrb[0].mxu0
      %v812 = vadd.f32 0.0, %v811
      %v813 = vpop.f32.mrb[0].mxu0
      %v814 = vpop.f32.mrb[0].mxu0
      %v815 = vadd.f32 0.0, %v814
      %v816 = vpop.f32.mrb[0].mxu0
      %817 = vmatprep.mubr.bf16.mxu0 0
      %818 = vmatmul.mubr.bf16.gmra.mrb[0].mxu0 %v751
      %v819 = vpop.f32.mrb[0].mxu0
      %v820 = vadd.f32 0.0, %v819
      %v821 = vpop.f32.mrb[0].mxu0
      %v822 = vpop.f32.mrb[0].mxu0
      %v823 = vadd.f32 0.0, %v822
      %v824 = vpop.f32.mrb[0].mxu0
      %825 = vdwg.mxu0
      %v826 = vadd.f32 %v707, %v788
      %v827 = vadd.f32 %v708, %v791
      %v828 = vadd.f32 %v709, %v796
      %v829 = vadd.f32 %v710, %v799
      %v830 = vadd.f32 %v711, %v804
      %v831 = vadd.f32 %v712, %v807
      %v832 = vadd.f32 %v713, %v812
      %v833 = vadd.f32 %v714, %v815
      %v834 = vadd.f32 %v715, %v820
      %v835 = vadd.f32 %v716, %v823
      %v836 = vld [vmem:[%s3] sm:$0x1]
      %v838 = vlaneseq
      %v839 = vshrl.u32 %v838, 7
      %v840 = vsub.s32 0, %v839
      %v841 = vrot.slane %v836, %v840
      %v843 = vadd.f32 %v826, %v841
      %v844 = vadd.f32 %v827, %v841
      %v845 = vadd.f32 %v828, %v841
      %v846 = vadd.f32 %v829, %v841
      %v847 = vadd.f32 %v830, %v841
      %v848 = vadd.f32 %v831, %v841
      %v849 = vadd.f32 %v832, %v841
      %v850 = vadd.f32 %v833, %v841
      %v851 = vadd.f32 %v834, %v841
      %v852 = vadd.f32 %v835, %v841
      %vm853 = vcmp.gt.f32.partialorder %v843, 0.0
      %vm854 = vcmp.gt.f32.partialorder %v844, 0.0
      %vm855 = vcmp.gt.f32.partialorder %v845, 0.0
      %vm856 = vcmp.gt.f32.partialorder %v846, 0.0
      %vm857 = vcmp.gt.f32.partialorder %v847, 0.0
      %vm858 = vcmp.gt.f32.partialorder %v848, 0.0
      %vm859 = vcmp.gt.f32.partialorder %v849, 0.0
      %vm860 = vcmp.gt.f32.partialorder %v850, 0.0
      %vm861 = vcmp.gt.f32.partialorder %v851, 0.0
      %vm862 = vcmp.gt.f32.partialorder %v852, 0.0
      %v863 = vmul.f32 %v843, 0.2
      %v864 = vmul.f32 %v844, 0.2
      %v865 = vmul.f32 %v845, 0.2
      %v866 = vmul.f32 %v846, 0.2
      %v867 = vmul.f32 %v847, 0.2
      %v868 = vmul.f32 %v848, 0.2
      %v869 = vmul.f32 %v849, 0.2
      %v870 = vmul.f32 %v850, 0.2
      %v871 = vmul.f32 %v851, 0.2
      %v872 = vmul.f32 %v852, 0.2
      %v873 = vsel %vm853, %v843, %v863
      %v874 = vsel %vm854, %v844, %v864
      %v875 = vsel %vm855, %v845, %v865
      %v876 = vsel %vm856, %v846, %v866
      %v877 = vsel %vm857, %v847, %v867
      %v878 = vsel %vm858, %v848, %v868
      %v879 = vsel %vm859, %v849, %v869
      %v880 = vsel %vm860, %v850, %v870
      %v881 = vsel %vm861, %v851, %v871
      %v882 = vsel %vm862, %v852, %v872
      %v883 = vpack.c.bf16 %v874, %v873
      %v884 = vpack.c.bf16 %v876, %v875
      %v885 = vpack.c.bf16 %v878, %v877
      %v886 = vpack.c.bf16 %v880, %v879
      %v887 = vpack.c.bf16 %v882, %v881
      %v893 = vunpack.c.l.b16 %v883
      %v894 = vunpack.c.h.b16 %v883
      %v895 = vunpack.c.l.b16 %v884
      %v896 = vunpack.c.h.b16 %v884
      %v897 = vunpack.c.l.b16 %v885
      %v898 = vunpack.c.h.b16 %v885
      %v899 = vunpack.c.l.b16 %v886
      %v900 = vunpack.c.h.b16 %v886
      %v901 = vunpack.c.l.b16 %v887
      %v902 = vunpack.c.h.b16 %v887
      %v903 = vpack.c.b16 %v893, %v893
      %v904 = vpack.c.b16 %v894, %v894
      %v905 = vpack.c.b16 %v895, %v895
      %v906 = vpack.c.b16 %v896, %v896
      %v907 = vpack.c.b16 %v897, %v897
      %v908 = vpack.c.b16 %v898, %v898
      %v909 = vpack.c.b16 %v899, %v899
      %v910 = vpack.c.b16 %v900, %v900
      %v911 = vpack.c.b16 %v901, %v901
      %v912 = vpack.c.b16 %v902, %v902
      %vm923 = vcmask 519168
      %924 = vst.msk [vmem:[%s305] sm:$0xf] %vm923, %v903
      %925 = vst.msk [vmem:[%s305 + $0x4] sm:$0xf] %vm923, %v904
      %926 = vst.msk [vmem:[%s305 + $0x8] sm:$0xf] %vm923, %v905
      %927 = vst.msk [vmem:[%s305 + $0xc] sm:$0xf] %vm923, %v906
      %928 = vst.msk [vmem:[%s305 + $0x10] sm:$0xf] %vm923, %v907
      %929 = vst.msk [vmem:[%s305 + $0x14] sm:$0xf] %vm923, %v908
      %930 = vst.msk [vmem:[%s305 + $0x18] sm:$0xf] %vm923, %v909
      %931 = vst.msk [vmem:[%s305 + $0x1c] sm:$0xf] %vm923, %v910
      %932 = vst.msk [vmem:[%s305 + $0x20] sm:$0xf] %vm923, %v911
      %933 = vst.msk [vmem:[%s305 + $0x24] sm:$0xf] %vm923, %v912
      %s934 = smul.u32 10, %s20
      %p935 = scmp.lt.s32.totalorder %s19, 1
      %s936 = scalar_select %p935, %s19, 1
      %p937 = scmp.lt.s32.totalorder %s934, 9
      %s938 = scalar_select %p937, %s934, 9
      %s939 = smul.addr %s936, 10
      %s940 = sadd.s32 %s938, %s939
      %s941 = smul.addr %s940, 4
      %s942 = scalar_lea.vmem %s4, %s941
      // Predicated region
      $region37: #{discriminator_forward.4} parent=35 // pred_check
        %p943 = pneg %p149
      $region38: #{discriminator_forward.4} parent=35 // pred_check_branch
        %945 = sbr.rel (%p943) target = $region40
      $region39: #{discriminator_forward.4} parent=35 // pred_region
        %s946 = smul.u32 10, %s20
      $region40: #{discriminator_forward.4} parent=35 // pred_fallthru
        _
    $region36: #{discriminator_forward.4} parent=5 // pred_fallthru
      _
    %p947 = scmp.le.s32.totalorder 2, %s10
    // Predicated region
    $region41: #{discriminator_forward.4} parent=5 // pred_check
      %p948 = pneg %p947
    $region42: #{discriminator_forward.4} parent=5 // pred_check_branch
      %950 = sbr.rel (%p948) target = $region44
    $region43: #{discriminator_forward.4} parent=5 // pred_region
      %s951 = ssub.s32 %s10, 2
      // Predicated region
      $region45: #{discriminator_forward.4} parent=43 // pred_check
        %p952 = pneg %p155
      $region46: #{discriminator_forward.4} parent=43 // pred_check_branch
        %954 = sbr.rel (%p952) target = $region48
      $region47: #{discriminator_forward.4} parent=43 // pred_region
        %s955 = smul.u32 10, %s22
        %p956 = scmp.lt.s32.totalorder %s21, 1
        %s957 = scalar_select %p956, %s21, 1
        %p958 = scmp.lt.s32.totalorder %s955, 9
        %s959 = scalar_select %p958, %s955, 9
        %s960 = smul.addr %s957, 10
        %s961 = sadd.s32 %s959, %s960
        %s962 = smul.addr %s961, 4
        %s963 = scalar_lea.vmem %s4, %s962
      $region48: #{discriminator_forward.4} parent=43 // pred_fallthru
        _
    $region44: #{discriminator_forward.4} parent=5 // pred_fallthru
      _
  $region6: #{discriminator_forward.4} parent=0 // loop_footer
    %s14 = sadd.s32 1, %s10
  $region7: #{discriminator_forward.4} parent=0 // loop_footer_branch
    %9 = sbr.rel target = $region3
  $region8: #{discriminator_forward.4} parent=0 // loop_exit
    _

// kernel: discriminator_forward.5
$region0: #{discriminator_forward.5}
  #allocation0 [shape = 'u32[]', space=smem, size = 0x4, offset = 0x4, fixed_abs, tag = 'smem constant byte address 0x4 - core index']
  #allocation1 [shape = 'u32[144,128]{1,0:T(1,128)}', space=vmem, size = 0x12000, scoped, tag = 'internal scratch']
  #allocation2 [shape = 'f32[1,128]{1,0:T(1,128)}', space=vmem, size = 0x200, scoped, tag = 'scratch operand']
  #allocation3 [shape = 'f32[1,128]{1,0:T(1,128)}', space=vmem, size = 0x200, scoped, tag = 'scratch operand']
  #allocation4 [shape = 'f32[32,128]{1,0:T(8,128)}', space=vmem, size = 0x4000, scoped, tag = 'scratch operand']
  %s0 = inlined_call_operand.vmem [shape: bf16[2,48,256], index: 0, kind: input, shape index: {}, may-alias: {0,1}]
  %s1 = inlined_call_operand.vmem [shape: bf16[2,48,256], index: 1, kind: input, shape index: {}, may-alias: {0,1}]
  %s2 = inlined_call_operand.vmem [shape: bf16[4,256,128], index: 2, kind: input, shape index: {}]
  %s3 = inlined_call_operand.vmem [shape: f32[1,128], index: 3, kind: input, shape index: {}]
  %s4 = inlined_call_operand.vmem [shape: bf16[2,32,128], index: 4, kind: output, shape index: {}]
  %s5 = sld [smem:[#allocation0]]
  $region57: #{discriminator_forward.5} parent=0
    _
  %s7 = ssub.s32 1, %s5
  %s8 = scalar_select 0, %s7, %s5
  loop: start=0, step=1, limit=4
  $region2: #{discriminator_forward.5} parent=0 // loop_pre_header
    _
  $region3: #{discriminator_forward.5} parent=0 // loop_header
    %s10 = sphi 0, %s14
    %p11 = scmp.ge.s32.totalorder %s10, 4
    %s17 = sphi 0, %s29
    %s18 = sphi 0, %s25
    %s19 = sphi 0, %s17
    %s20 = sphi 0, %s18
    %s21 = sphi 0, %s19
    %s22 = sphi 0, %s20
    %s34 = sphi 0, %s36
    %s37 = sphi 0, %s34
    %s38 = sphi 0, %s37
    %s54 = sphi 0, %s38
    %s66 = sphi 0, %s68
    %s69 = sphi 0, %s66
    %s70 = sphi 0, %s69
    %s86 = sphi 0, %s70
    %s90 = sphi 0, %s90
    %s92 = sphi 0, %s90
    %s93 = sphi 0, %s92
    %s107 = sphi 0, %s93
    %s111 = sphi 0, %s111
    %s113 = sphi 0, %s111
    %s114 = sphi 0, %s113
    %s128 = sphi 0, %s114
    %s134 = sphi 0, %s136
    %s137 = sphi 0, %s134
    %s138 = sphi 0, %s137
    %s154 = sphi 0, %s138
  $region4: #{discriminator_forward.5} parent=0 // loop_header_branch
    %13 = sbr.rel (%p11) target = $region8
  $region5: #{discriminator_forward.5} parent=0 // loop_body
    %s15 = ssub.s32 %s10, 1
    %s16 = ssub.s32 %s10, 2
    %s23 = sadd.s32 1, %s18
    %p24 = scmp.ge.s32.totalorder %s23, 1
    %s25 = scalar_select %p24, 0, %s23
    %s26 = sadd.s32 1, %s17
    %s27 = scalar_select %p24, %s26, %s17
    %p28 = scmp.ge.s32.totalorder %s27, 2
    %s29 = scalar_select %p28, 0, %s27
    %s30 = ssub.s32 %s17, %s29
    %s31 = ssub.s32 %s18, %s25
    %s32 = sor.u32 %s30, %s31
    %p33 = scmp.eq.s32.totalorder %s32, 0
    %s35 = sadd.s32 %s34, 1
    %s36 = scalar_select %p33, %s34, %s35
    %p39 = pneg %p33
    %p40 = scmp.eq.s32.totalorder %s10, 1
    %p41 = por %p39, %p40
    %p42 = scmp.ne.s32.totalorder %s34, %s37
    %p43 = scmp.eq.s32.totalorder %s10, 0
    %p44 = por %p42, %p43
    %p45 = scmp.ne.s32.totalorder %s34, %s37
    %p46 = scmp.eq.s32.totalorder %s15, 1
    %p47 = por %p45, %p46
    %p48 = scmp.ne.s32.totalorder %s37, %s38
    %p49 = scmp.eq.s32.totalorder %s15, 0
    %p50 = por %p48, %p49
    %p51 = scmp.ne.s32.totalorder %s37, %s38
    %p52 = scmp.eq.s32.totalorder %s16, 1
    %p53 = por %p51, %p52
    %p55 = scmp.ne.s32.totalorder %s38, %s54
    %p56 = scmp.eq.s32.totalorder %s16, 0
    %p57 = por %p55, %p56
    %s58 = sadd.s32 %s18, 1
    %s59 = smul.u32 %s58, 2
    %s60 = sadd.s32 %s25, 1
    %s61 = smul.u32 %s60, 2
    %s62 = ssub.s32 %s17, %s29
    %s63 = ssub.s32 %s59, %s61
    %s64 = sor.u32 %s62, %s63
    %p65 = scmp.eq.s32.totalorder %s64, 0
    %s67 = sadd.s32 %s66, 1
    %s68 = scalar_select %p65, %s66, %s67
    %p71 = pneg %p65
    %p72 = scmp.eq.s32.totalorder %s10, 1
    %p73 = por %p71, %p72
    %p74 = scmp.ne.s32.totalorder %s66, %s69
    %p75 = scmp.eq.s32.totalorder %s10, 0
    %p76 = por %p74, %p75
    %p77 = scmp.ne.s32.totalorder %s66, %s69
    %p78 = scmp.eq.s32.totalorder %s15, 1
    %p79 = por %p77, %p78
    %p80 = scmp.ne.s32.totalorder %s69, %s70
    %p81 = scmp.eq.s32.totalorder %s15, 0
    %p82 = por %p80, %p81
    %p83 = scmp.ne.s32.totalorder %s69, %s70
    %p84 = scmp.eq.s32.totalorder %s16, 1
    %p85 = por %p83, %p84
    %p87 = scmp.ne.s32.totalorder %s70, %s86
    %p88 = scmp.eq.s32.totalorder %s16, 0
    %p89 = por %p87, %p88
    %s91 = sadd.s32 %s90, 1
    %p94 = scmp.eq.s32.totalorder %s10, 1
    %p95 = scmp.ne.s32.totalorder %s90, %s92
    %p96 = scmp.eq.s32.totalorder %s10, 0
    %p97 = por %p95, %p96
    %p98 = scmp.ne.s32.totalorder %s90, %s92
    %p99 = scmp.eq.s32.totalorder %s15, 1
    %p100 = por %p98, %p99
    %p101 = scmp.ne.s32.totalorder %s92, %s93
    %p102 = scmp.eq.s32.totalorder %s15, 0
    %p103 = por %p101, %p102
    %p104 = scmp.ne.s32.totalorder %s92, %s93
    %p105 = scmp.eq.s32.totalorder %s16, 1
    %p106 = por %p104, %p105
    %p108 = scmp.ne.s32.totalorder %s93, %s107
    %p109 = scmp.eq.s32.totalorder %s16, 0
    %p110 = por %p108, %p109
    %s112 = sadd.s32 %s111, 1
    %p115 = scmp.eq.s32.totalorder %s10, 1
    %p116 = scmp.ne.s32.totalorder %s111, %s113
    %p117 = scmp.eq.s32.totalorder %s10, 0
    %p118 = por %p116, %p117
    %p119 = scmp.ne.s32.totalorder %s111, %s113
    %p120 = scmp.eq.s32.totalorder %s15, 1
    %p121 = por %p119, %p120
    %p122 = scmp.ne.s32.totalorder %s113, %s114
    %p123 = scmp.eq.s32.totalorder %s15, 0
    %p124 = por %p122, %p123
    %p125 = scmp.ne.s32.totalorder %s113, %s114
    %p126 = scmp.eq.s32.totalorder %s16, 1
    %p127 = por %p125, %p126
    %p129 = scmp.ne.s32.totalorder %s114, %s128
    %p130 = scmp.eq.s32.totalorder %s16, 0
    %p131 = por %p129, %p130
    %s132 = ssub.s32 %s17, %s29
    %p133 = scmp.eq.s32.totalorder %s132, 0
    %s135 = sadd.s32 %s134, 1
    %s136 = scalar_select %p133, %s134, %s135
    %p139 = pneg %p133
    %p140 = scmp.eq.s32.totalorder %s10, 1
    %p141 = por %p139, %p140
    %p142 = scmp.ne.s32.totalorder %s134, %s137
    %p143 = scmp.eq.s32.totalorder %s10, 0
    %p144 = por %p142, %p143
    %p145 = scmp.ne.s32.totalorder %s134, %s137
    %p146 = scmp.eq.s32.totalorder %s15, 1
    %p147 = por %p145, %p146
    %p148 = scmp.ne.s32.totalorder %s137, %s138
    %p149 = scmp.eq.s32.totalorder %s15, 0
    %p150 = por %p148, %p149
    %p151 = scmp.ne.s32.totalorder %s137, %s138
    %p152 = scmp.eq.s32.totalorder %s16, 1
    %p153 = por %p151, %p152
    %p155 = scmp.ne.s32.totalorder %s138, %s154
    %p156 = scmp.eq.s32.totalorder %s16, 0
    %p157 = por %p155, %p156
    %p158 = scmp.le.s32.totalorder 1, %s10
    %p159 = scmp.lt.s32.totalorder %s10, 3
    %p160 = pnand %p158, %p159
    %p161 = pneg %p160
    // Predicated region
    $region9: #{discriminator_forward.5} parent=5 // pred_check
      _
    $region10: #{discriminator_forward.5} parent=5 // pred_check_branch
      %163 = sbr.rel (%p160) target = $region12
    $region11: #{discriminator_forward.5} parent=5 // pred_region
      %s164 = ssub.s32 %s10, 1
      // Predicated region
      $region13: #{discriminator_forward.5} parent=11 // pred_check
        %p165 = pneg %p103
      $region14: #{discriminator_forward.5} parent=11 // pred_check_branch
        %167 = sbr.rel (%p165) target = $region16
      $region15: #{discriminator_forward.5} parent=11 // pred_region
        _
      $region16: #{discriminator_forward.5} parent=11 // pred_fallthru
        _
      // Predicated region
      $region17: #{discriminator_forward.5} parent=11 // pred_check
        %p168 = pneg %p124
      $region18: #{discriminator_forward.5} parent=11 // pred_check_branch
        %170 = sbr.rel (%p168) target = $region20
      $region19: #{discriminator_forward.5} parent=11 // pred_region
        _
      $region20: #{discriminator_forward.5} parent=11 // pred_fallthru
        _
    $region12: #{discriminator_forward.5} parent=5 // pred_fallthru
      _
    %p171 = scmp.lt.s32.totalorder %s10, 2
    // Predicated region
    $region21: #{discriminator_forward.5} parent=5 // pred_check
      %p172 = pneg %p171
    $region22: #{discriminator_forward.5} parent=5 // pred_check_branch
      %174 = sbr.rel (%p172) target = $region24
    $region23: #{discriminator_forward.5} parent=5 // pred_region
      // Predicated region
      $region25: #{discriminator_forward.5} parent=23 // pred_check
        %p175 = pneg %p44
      $region26: #{discriminator_forward.5} parent=23 // pred_check_branch
        %177 = sbr.rel (%p175) target = $region28
      $region27: #{discriminator_forward.5} parent=23 // pred_region
        %s178 = smul.u32 4, %s18
        %s179 = ssub.s32 6, %s178
        %p180 = scmp.lt.s32.totalorder %s179, 4
        %s181 = scalar_select %p180, %s179, 4
        %s182 = smul.u32 64, %s181
        %s183 = smul.u32 %s182, 2
        %p184 = scmp.lt.s32.totalorder %s17, 1
        %s185 = scalar_select %p184, %s17, 1
        %p186 = scmp.lt.s32.totalorder %s178, 5
        %s187 = scalar_select %p186, %s178, 5
        %s188 = smul.addr %s187, 2
        %s189 = smul.addr %s185, 12
        %s190 = sadd.s32 %s188, %s189
        %s191 = smul.addr %s190, 4
        %s192 = scalar_lea.vmem %s0, %s191
        %s193 = smul.u32 4, %s18
        %s194 = ssub.s32 6, %s193
        %p195 = scmp.lt.s32.totalorder %s194, 4
        %s196 = scalar_select %p195, %s194, 4
        %s197 = smul.u32 64, %s196
        %s198 = smul.u32 %s197, 2
      $region28: #{discriminator_forward.5} parent=23 // pred_fallthru
        _
      // Predicated region
      $region29: #{discriminator_forward.5} parent=23 // pred_check
        %p199 = pneg %p76
      $region30: #{discriminator_forward.5} parent=23 // pred_check_branch
        %201 = sbr.rel (%p199) target = $region32
      $region31: #{discriminator_forward.5} parent=23 // pred_region
        %s202 = sadd.s32 %s18, 1
        %s203 = smul.u32 %s202, 2
        %s204 = smul.u32 2, %s203
        %p205 = scmp.lt.s32.totalorder %s17, 1
        %s206 = scalar_select %p205, %s17, 1
        %p207 = scmp.lt.s32.totalorder %s204, 5
        %s208 = scalar_select %p207, %s204, 5
        %s209 = smul.addr %s208, 2
        %s210 = smul.addr %s206, 12
        %s211 = sadd.s32 %s209, %s210
        %s212 = smul.addr %s211, 4
        %s213 = scalar_lea.vmem %s1, %s212
        %s214 = sadd.s32 %s18, 1
        %s215 = smul.u32 %s214, 2
        %s216 = smul.u32 2, %s215
      $region32: #{discriminator_forward.5} parent=23 // pred_fallthru
        _
    $region24: #{discriminator_forward.5} parent=5 // pred_fallthru
      _
    %p217 = scmp.le.s32.totalorder 1, %s10
    %p218 = scmp.lt.s32.totalorder %s10, 3
    %p219 = pnand %p217, %p218
    %p220 = pneg %p219
    // Predicated region
    $region33: #{discriminator_forward.5} parent=5 // pred_check
      _
    $region34: #{discriminator_forward.5} parent=5 // pred_check_branch
      %222 = sbr.rel (%p219) target = $region36
    $region35: #{discriminator_forward.5} parent=5 // pred_region
      %s223 = ssub.s32 %s10, 1
      %s224 = smul.u32 4, %s20
      %s225 = ssub.s32 6, %s224
      %p226 = scmp.lt.s32.totalorder %s225, 4
      %s227 = scalar_select %p226, %s225, 4
      %s228 = smul.u32 64, %s227
      %s229 = smul.u32 %s228, 2
      %p230 = scmp.lt.s32.totalorder %s19, 1
      %s231 = scalar_select %p230, %s19, 1
      %p232 = scmp.lt.s32.totalorder %s224, 5
      %s233 = scalar_select %p232, %s224, 5
      %s234 = smul.addr %s233, 2
      %s235 = smul.addr %s231, 12
      %s236 = sadd.s32 %s234, %s235
      %s237 = smul.addr %s236, 4
      %s238 = scalar_lea.vmem %s0, %s237
      %p239 = pneg %p50
      %p240 = pneg %p47
      %s241 = sadd.s32 %s20, 1
      %s242 = smul.u32 %s241, 2
      %s243 = smul.u32 2, %s242
      %p244 = scmp.lt.s32.totalorder %s19, 1
      %s245 = scalar_select %p244, %s19, 1
      %p246 = scmp.lt.s32.totalorder %s243, 5
      %s247 = scalar_select %p246, %s243, 5
      %s248 = smul.addr %s247, 2
      %s249 = smul.addr %s245, 12
      %s250 = sadd.s32 %s248, %s249
      %s251 = smul.addr %s250, 4
      %s252 = scalar_lea.vmem %s1, %s251
      %p253 = pneg %p82
      %p254 = pneg %p79
      %p255 = pneg %p103
      %p256 = pneg %p100
      %p257 = pneg %p124
      %p258 = pneg %p121
      %p259 = pneg %p150
      %p260 = pneg %p147
      %p261 = scmp.lt.s32.totalorder %s19, 1
      %s262 = scalar_select %p261, %s19, 1
      %s263 = smul.addr %s262, 4
      %s264 = smul.addr %s263, 4
      %s265 = scalar_lea.vmem %s4, %s264
      %s266 = smul.u32 4, %s20
      %s267 = ssub.s32 6, %s266
      %p268 = scmp.lt.s32.totalorder %s267, 4
      %s269 = scalar_select %p268, %s267, 4
      %s270 = smul.u32 64, %s269
      %s271 = smul.u32 %s270, 2
      %p272 = scmp.lt.s32.totalorder %s19, 1
      %s273 = scalar_select %p272, %s19, 1
      %p274 = scmp.lt.s32.totalorder %s266, 5
      %s275 = scalar_select %p274, %s266, 5
      %s276 = smul.addr %s275, 2
      %s277 = smul.addr %s273, 12
      %s278 = sadd.s32 %s276, %s277
      %s279 = smul.addr %s278, 4
      %s280 = scalar_lea.vmem %s0, %s279
      %s281 = smul.u32 4, %s20
      %s282 = ssub.s32 6, %s281
      %p283 = scmp.lt.s32.totalorder %s282, 4
      %s284 = scalar_select %p283, %s282, 4
      %s285 = smul.u32 64, %s284
      %s286 = smul.u32 %s285, 2
      %s287 = sadd.s32 %s20, 1
      %s288 = smul.u32 %s287, 2
      %s289 = smul.u32 2, %s288
      %p290 = scmp.lt.s32.totalorder %s19, 1
      %s291 = scalar_select %p290, %s19, 1
      %p292 = scmp.lt.s32.totalorder %s289, 5
      %s293 = scalar_select %p292, %s289, 5
      %s294 = smul.addr %s293, 2
      %s295 = smul.addr %s291, 12
      %s296 = sadd.s32 %s294, %s295
      %s297 = smul.addr %s296, 4
      %s298 = scalar_lea.vmem %s1, %s297
      %s299 = sadd.s32 %s20, 1
      %s300 = smul.u32 %s299, 2
      %s301 = smul.u32 2, %s300
      %p302 = scmp.lt.s32.totalorder %s19, 1
      %s303 = scalar_select %p302, %s19, 1
      %s304 = smul.addr %s303, 4
      %s305 = smul.addr %s304, 4
      %s306 = scalar_lea.vmem %s4, %s305
      %v308 = vld [vmem:[%s280] sm:$0xff]
      %v309 = vld [vmem:[%s280 + $0x8] sm:$0xff]
      %v310 = vld [vmem:[%s280 + $0x10] sm:$0xff]
      %v311 = vld [vmem:[%s280 + $0x18] sm:$0xff]
      %v312 = vld [vmem:[%s298] sm:$0xff]
      %v313 = vld [vmem:[%s298 + $0x8] sm:$0xff]
      %v318 = vunpack.c.l.b16 %v308
      %v319 = vunpack.c.h.b16 %v308
      %v320 = vunpack.c.l.b16 %v309
      %v321 = vunpack.c.h.b16 %v309
      %v322 = vunpack.c.l.b16 %v310
      %v323 = vunpack.c.h.b16 %v310
      %v324 = vunpack.c.l.b16 %v311
      %v325 = vunpack.c.h.b16 %v311
      %v326 = vpack.c.b16 %v320, %v318
      %v327 = vpack.c.b16 %v321, %v319
      %v328 = vpack.c.b16 %v324, %v322
      %v329 = vpack.c.b16 %v325, %v323
      %v336 = vunpack.c.l.b16 %v312
      %v337 = vunpack.c.h.b16 %v312
      %v338 = vunpack.c.l.b16 %v313
      %v339 = vunpack.c.h.b16 %v313
      %v340 = vpack.c.b16 %v338, %v336
      %v341 = vpack.c.b16 %v339, %v337
      %v342 = vld [vmem:[%s2] sm:$0xf]
      %v343 = vld [vmem:[%s2 + $0x4] sm:$0xf]
      %v344 = vld [vmem:[%s2 + $0x8] sm:$0xf]
      %v345 = vld [vmem:[%s2 + $0xc] sm:$0xf]
      %v346 = vld [vmem:[%s2 + $0x10] sm:$0xf]
      %v347 = vld [vmem:[%s2 + $0x14] sm:$0xf]
      %v348 = vld [vmem:[%s2 + $0x18] sm:$0xf]
      %v349 = vld [vmem:[%s2 + $0x1c] sm:$0xf]
      %v350 = vld [vmem:[%s2 + $0x20] sm:$0xf]
      %v351 = vld [vmem:[%s2 + $0x24] sm:$0xf]
      %v352 = vld [vmem:[%s2 + $0x28] sm:$0xf]
      %v353 = vld [vmem:[%s2 + $0x2c] sm:$0xf]
      %v354 = vld [vmem:[%s2 + $0x30] sm:$0xf]
      %v355 = vld [vmem:[%s2 + $0x34] sm:$0xf]
      %v356 = vld [vmem:[%s2 + $0x38] sm:$0xf]
      %v357 = vld [vmem:[%s2 + $0x3c] sm:$0xf]
      %v358 = vld [vmem:[%s2 + $0x40] sm:$0xf]
      %v359 = vld [vmem:[%s2 + $0x44] sm:$0xf]
      %v360 = vld [vmem:[%s2 + $0x48] sm:$0xf]
      %v361 = vld [vmem:[%s2 + $0x4c] sm:$0xf]
      %v362 = vld [vmem:[%s2 + $0x50] sm:$0xf]
      %v363 = vld [vmem:[%s2 + $0x54] sm:$0xf]
      %v364 = vld [vmem:[%s2 + $0x58] sm:$0xf]
      %v365 = vld [vmem:[%s2 + $0x5c] sm:$0xf]
      %v366 = vld [vmem:[%s2 + $0x60] sm:$0xf]
      %v367 = vld [vmem:[%s2 + $0x64] sm:$0xf]
      %v368 = vld [vmem:[%s2 + $0x68] sm:$0xf]
      %v369 = vld [vmem:[%s2 + $0x6c] sm:$0xf]
      %v370 = vld [vmem:[%s2 + $0x70] sm:$0xf]
      %v371 = vld [vmem:[%s2 + $0x74] sm:$0xf]
      %v372 = vld [vmem:[%s2 + $0x78] sm:$0xf]
      %v373 = vld [vmem:[%s2 + $0x7c] sm:$0xf]
      %s374 = scalar_lea.vmem %s2, 128
      %v375 = vld [vmem:[%s374] sm:$0xf]
      %v376 = vld [vmem:[%s374 + $0x4] sm:$0xf]
      %v377 = vld [vmem:[%s374 + $0x8] sm:$0xf]
      %v378 = vld [vmem:[%s374 + $0xc] sm:$0xf]
      %v379 = vld [vmem:[%s374 + $0x10] sm:$0xf]
      %v380 = vld [vmem:[%s374 + $0x14] sm:$0xf]
      %v381 = vld [vmem:[%s374 + $0x18] sm:$0xf]
      %v382 = vld [vmem:[%s374 + $0x1c] sm:$0xf]
      %v383 = vld [vmem:[%s374 + $0x20] sm:$0xf]
      %v384 = vld [vmem:[%s374 + $0x24] sm:$0xf]
      %v385 = vld [vmem:[%s374 + $0x28] sm:$0xf]
      %v386 = vld [vmem:[%s374 + $0x2c] sm:$0xf]
      %v387 = vld [vmem:[%s374 + $0x30] sm:$0xf]
      %v388 = vld [vmem:[%s374 + $0x34] sm:$0xf]
      %v389 = vld [vmem:[%s374 + $0x38] sm:$0xf]
      %v390 = vld [vmem:[%s374 + $0x3c] sm:$0xf]
      %v391 = vld [vmem:[%s374 + $0x40] sm:$0xf]
      %v392 = vld [vmem:[%s374 + $0x44] sm:$0xf]
      %v393 = vld [vmem:[%s374 + $0x48] sm:$0xf]
      %v394 = vld [vmem:[%s374 + $0x4c] sm:$0xf]
      %v395 = vld [vmem:[%s374 + $0x50] sm:$0xf]
      %v396 = vld [vmem:[%s374 + $0x54] sm:$0xf]
      %v397 = vld [vmem:[%s374 + $0x58] sm:$0xf]
      %v398 = vld [vmem:[%s374 + $0x5c] sm:$0xf]
      %v399 = vld [vmem:[%s374 + $0x60] sm:$0xf]
      %v400 = vld [vmem:[%s374 + $0x64] sm:$0xf]
      %v401 = vld [vmem:[%s374 + $0x68] sm:$0xf]
      %v402 = vld [vmem:[%s374 + $0x6c] sm:$0xf]
      %v403 = vld [vmem:[%s374 + $0x70] sm:$0xf]
      %v404 = vld [vmem:[%s374 + $0x74] sm:$0xf]
      %v405 = vld [vmem:[%s374 + $0x78] sm:$0xf]
      %v406 = vld [vmem:[%s374 + $0x7c] sm:$0xf]
      %vm407 = vsmask.f32 7424
      %v409 = vshrl.u32 %v326, 16
      %v411 = vshll.u32 %v326, 16
      %v413 = vrot.slane %v411, 1
      %v414 = vor.u32 %v409, %v413
      %v416 = vshll.u32 %v328, 16
      %v418 = vrot.slane %v416, 1
      %v419 = vsel %vm407, %v414, %v418
      %v421 = vshrl.u32 %v327, 16
      %v423 = vshll.u32 %v327, 16
      %v425 = vrot.slane %v423, 1
      %v426 = vor.u32 %v421, %v425
      %v428 = vshll.u32 %v329, 16
      %v430 = vrot.slane %v428, 1
      %v431 = vsel %vm407, %v426, %v430
      %v432 = vshrl.u32 %v328, 16
      %v434 = vor.u32 %v432, %v418
      %v436 = vshll.u32 %v340, 16
      %v438 = vrot.slane %v436, 1
      %v439 = vsel %vm407, %v434, %v438
      %v440 = vshrl.u32 %v329, 16
      %v442 = vor.u32 %v440, %v430
      %v444 = vshll.u32 %v341, 16
      %v446 = vrot.slane %v444, 1
      %v447 = vsel %vm407, %v442, %v446
      %v484 = vunpack.c.l.b16 %v375
      %v485 = vunpack.c.l.b16 %v376
      %v486 = vunpack.c.l.b16 %v377
      %v487 = vunpack.c.l.b16 %v378
      %v488 = vunpack.c.l.b16 %v379
      %v489 = vunpack.c.l.b16 %v380
      %v490 = vunpack.c.l.b16 %v381
      %v491 = vunpack.c.l.b16 %v382
      %v492 = vunpack.c.l.b16 %v383
      %v493 = vunpack.c.l.b16 %v384
      %v494 = vunpack.c.l.b16 %v385
      %v495 = vunpack.c.l.b16 %v386
      %v496 = vunpack.c.l.b16 %v387
      %v497 = vunpack.c.l.b16 %v388
      %v498 = vunpack.c.l.b16 %v389
      %v499 = vunpack.c.l.b16 %v390
      %v500 = vunpack.c.l.b16 %v391
      %v501 = vunpack.c.l.b16 %v392
      %v502 = vunpack.c.l.b16 %v393
      %v503 = vunpack.c.l.b16 %v394
      %v504 = vunpack.c.l.b16 %v395
      %v505 = vunpack.c.l.b16 %v396
      %v506 = vunpack.c.l.b16 %v397
      %v507 = vunpack.c.l.b16 %v398
      %v508 = vunpack.c.l.b16 %v399
      %v509 = vunpack.c.l.b16 %v400
      %v510 = vunpack.c.l.b16 %v401
      %v511 = vunpack.c.l.b16 %v402
      %v512 = vunpack.c.l.b16 %v403
      %v513 = vunpack.c.l.b16 %v404
      %v514 = vunpack.c.l.b16 %v405
      %v515 = vunpack.c.l.b16 %v406
      %v516 = vpack.c.b16 %v485, %v484
      %v517 = vpack.c.b16 %v487, %v486
      %v518 = vpack.c.b16 %v489, %v488
      %v519 = vpack.c.b16 %v491, %v490
      %v520 = vpack.c.b16 %v493, %v492
      %v521 = vpack.c.b16 %v495, %v494
      %v522 = vpack.c.b16 %v497, %v496
      %v523 = vpack.c.b16 %v499, %v498
      %v524 = vpack.c.b16 %v501, %v500
      %v525 = vpack.c.b16 %v503, %v502
      %v526 = vpack.c.b16 %v505, %v504
      %v527 = vpack.c.b16 %v507, %v506
      %v528 = vpack.c.b16 %v509, %v508
      %v529 = vpack.c.b16 %v511, %v510
      %v530 = vpack.c.b16 %v513, %v512
      %v531 = vpack.c.b16 %v515, %v514
      %548 = vmatprep.subr.bf16.mxu0 0
      %549 = vmatpush1.bf16.msra.mxu0 %v516
      %550 = vmatprep.subr.bf16.mxu0 0
      %551 = vmatpush1.bf16.msra.mxu0 %v517
      %552 = vmatprep.subr.bf16.mxu0 0
      %553 = vmatpush1.bf16.msra.mxu0 %v518
      %554 = vmatprep.subr.bf16.mxu0 0
      %555 = vmatpush1.bf16.msra.mxu0 %v519
      %556 = vmatprep.subr.bf16.mxu0 0
      %557 = vmatpush1.bf16.msra.mxu0 %v520
      %558 = vmatprep.subr.bf16.mxu0 0
      %559 = vmatpush1.bf16.msra.mxu0 %v521
      %560 = vmatprep.subr.bf16.mxu0 0
      %561 = vmatpush1.bf16.msra.mxu0 %v522
      %562 = vmatprep.subr.bf16.mxu0 0
      %563 = vmatpush1.bf16.msra.mxu0 %v523
      %564 = vmatprep.subr.bf16.mxu0 0
      %565 = vmatpush1.bf16.msra.mxu0 %v524
      %566 = vmatprep.subr.bf16.mxu0 0
      %567 = vmatpush1.bf16.msra.mxu0 %v525
      %568 = vmatprep.subr.bf16.mxu0 0
      %569 = vmatpush1.bf16.msra.mxu0 %v526
      %570 = vmatprep.subr.bf16.mxu0 0
      %571 = vmatpush1.bf16.msra.mxu0 %v527
      %572 = vmatprep.subr.bf16.mxu0 0
      %573 = vmatpush1.bf16.msra.mxu0 %v528
      %574 = vmatprep.subr.bf16.mxu0 0
      %575 = vmatpush1.bf16.msra.mxu0 %v529
      %576 = vmatprep.subr.bf16.mxu0 0
      %577 = vmatpush1.bf16.msra.mxu0 %v530
      %578 = vmatprep.subr.bf16.mxu0 0
      %579 = vmatpush1.bf16.msra.mxu0 %v531
      %580 = vmatprep.mubr.bf16.mxu0 %v431
      %581 = vmatmul.mubr.bf16.gmra.mrb[0].mxu0 %v419
      %v582 = vpop.f32.mrb[0].mxu0
      %v583 = vadd.f32 0.0, %v582
      %v584 = vpop.f32.mrb[0].mxu0
      %v585 = vpop.f32.mrb[0].mxu0
      %v586 = vadd.f32 0.0, %v585
      %v587 = vpop.f32.mrb[0].mxu0
      %588 = vmatprep.mubr.bf16.mxu0 %v447
      %589 = vmatmul.mubr.bf16.gmra.mrb[0].mxu0 %v439
      %v590 = vpop.f32.mrb[0].mxu0
      %v591 = vadd.f32 0.0, %v590
      %v592 = vpop.f32.mrb[0].mxu0
      %v593 = vpop.f32.mrb[0].mxu0
      %v594 = vadd.f32 0.0, %v593
      %v595 = vpop.f32.mrb[0].mxu0
      %596 = vdwg.mxu0
      %v629 = vunpack.c.l.b16 %v342
      %v630 = vunpack.c.l.b16 %v343
      %v631 = vunpack.c.l.b16 %v344
      %v632 = vunpack.c.l.b16 %v345
      %v633 = vunpack.c.l.b16 %v346
      %v634 = vunpack.c.l.b16 %v347
      %v635 = vunpack.c.l.b16 %v348
      %v636 = vunpack.c.l.b16 %v349
      %v637 = vunpack.c.l.b16 %v350
      %v638 = vunpack.c.l.b16 %v351
      %v639 = vunpack.c.l.b16 %v352
      %v640 = vunpack.c.l.b16 %v353
      %v641 = vunpack.c.l.b16 %v354
      %v642 = vunpack.c.l.b16 %v355
      %v643 = vunpack.c.l.b16 %v356
      %v644 = vunpack.c.l.b16 %v357
      %v645 = vunpack.c.l.b16 %v358
      %v646 = vunpack.c.l.b16 %v359
      %v647 = vunpack.c.l.b16 %v360
      %v648 = vunpack.c.l.b16 %v361
      %v649 = vunpack.c.l.b16 %v362
      %v650 = vunpack.c.l.b16 %v363
      %v651 = vunpack.c.l.b16 %v364
      %v652 = vunpack.c.l.b16 %v365
      %v653 = vunpack.c.l.b16 %v366
      %v654 = vunpack.c.l.b16 %v367
      %v655 = vunpack.c.l.b16 %v368
      %v656 = vunpack.c.l.b16 %v369
      %v657 = vunpack.c.l.b16 %v370
      %v658 = vunpack.c.l.b16 %v371
      %v659 = vunpack.c.l.b16 %v372
      %v660 = vunpack.c.l.b16 %v373
      %v661 = vpack.c.b16 %v630, %v629
      %v662 = vpack.c.b16 %v632, %v631
      %v663 = vpack.c.b16 %v634, %v633
      %v664 = vpack.c.b16 %v636, %v635
      %v665 = vpack.c.b16 %v638, %v637
      %v666 = vpack.c.b16 %v640, %v639
      %v667 = vpack.c.b16 %v642, %v641
      %v668 = vpack.c.b16 %v644, %v643
      %v669 = vpack.c.b16 %v646, %v645
      %v670 = vpack.c.b16 %v648, %v647
      %v671 = vpack.c.b16 %v650, %v649
      %v672 = vpack.c.b16 %v652, %v651
      %v673 = vpack.c.b16 %v654, %v653
      %v674 = vpack.c.b16 %v656, %v655
      %v675 = vpack.c.b16 %v658, %v657
      %v676 = vpack.c.b16 %v660, %v659
      %693 = vmatprep.subr.bf16.mxu0 0
      %694 = vmatpush1.bf16.msra.mxu0 %v661
      %695 = vmatprep.subr.bf16.mxu0 0
      %696 = vmatpush1.bf16.msra.mxu0 %v662
      %697 = vmatprep.subr.bf16.mxu0 0
      %698 = vmatpush1.bf16.msra.mxu0 %v663
      %699 = vmatprep.subr.bf16.mxu0 0
      %700 = vmatpush1.bf16.msra.mxu0 %v664
      %701 = vmatprep.subr.bf16.mxu0 0
      %702 = vmatpush1.bf16.msra.mxu0 %v665
      %703 = vmatprep.subr.bf16.mxu0 0
      %704 = vmatpush1.bf16.msra.mxu0 %v666
      %705 = vmatprep.subr.bf16.mxu0 0
      %706 = vmatpush1.bf16.msra.mxu0 %v667
      %707 = vmatprep.subr.bf16.mxu0 0
      %708 = vmatpush1.bf16.msra.mxu0 %v668
      %709 = vmatprep.subr.bf16.mxu0 0
      %710 = vmatpush1.bf16.msra.mxu0 %v669
      %711 = vmatprep.subr.bf16.mxu0 0
      %712 = vmatpush1.bf16.msra.mxu0 %v670
      %713 = vmatprep.subr.bf16.mxu0 0
      %714 = vmatpush1.bf16.msra.mxu0 %v671
      %715 = vmatprep.subr.bf16.mxu0 0
      %716 = vmatpush1.bf16.msra.mxu0 %v672
      %717 = vmatprep.subr.bf16.mxu0 0
      %718 = vmatpush1.bf16.msra.mxu0 %v673
      %719 = vmatprep.subr.bf16.mxu0 0
      %720 = vmatpush1.bf16.msra.mxu0 %v674
      %721 = vmatprep.subr.bf16.mxu0 0
      %722 = vmatpush1.bf16.msra.mxu0 %v675
      %723 = vmatprep.subr.bf16.mxu0 0
      %724 = vmatpush1.bf16.msra.mxu0 %v676
      %725 = vmatprep.mubr.bf16.mxu0 %v327
      %726 = vmatmul.mubr.bf16.gmra.mrb[0].mxu0 %v326
      %v727 = vpop.f32.mrb[0].mxu0
      %v728 = vadd.f32 %v583, %v727
      %v729 = vpop.f32.mrb[0].mxu0
      %v730 = vpop.f32.mrb[0].mxu0
      %v731 = vadd.f32 %v586, %v730
      %v732 = vpop.f32.mrb[0].mxu0
      %733 = vmatprep.mubr.bf16.mxu0 %v329
      %734 = vmatmul.mubr.bf16.gmra.mrb[0].mxu0 %v328
      %v735 = vpop.f32.mrb[0].mxu0
      %v736 = vadd.f32 %v591, %v735
      %v737 = vpop.f32.mrb[0].mxu0
      %v738 = vpop.f32.mrb[0].mxu0
      %v739 = vadd.f32 %v594, %v738
      %v740 = vpop.f32.mrb[0].mxu0
      %741 = vdwg.mxu0
      %s742 = scalar_lea.vmem %s2, 256
      %v743 = vld [vmem:[%s742] sm:$0xf]
      %v744 = vld [vmem:[%s742 + $0x4] sm:$0xf]
      %v745 = vld [vmem:[%s742 + $0x8] sm:$0xf]
      %v746 = vld [vmem:[%s742 + $0xc] sm:$0xf]
      %v747 = vld [vmem:[%s742 + $0x10] sm:$0xf]
      %v748 = vld [vmem:[%s742 + $0x14] sm:$0xf]
      %v749 = vld [vmem:[%s742 + $0x18] sm:$0xf]
      %v750 = vld [vmem:[%s742 + $0x1c] sm:$0xf]
      %v751 = vld [vmem:[%s742 + $0x20] sm:$0xf]
      %v752 = vld [vmem:[%s742 + $0x24] sm:$0xf]
      %v753 = vld [vmem:[%s742 + $0x28] sm:$0xf]
      %v754 = vld [vmem:[%s742 + $0x2c] sm:$0xf]
      %v755 = vld [vmem:[%s742 + $0x30] sm:$0xf]
      %v756 = vld [vmem:[%s742 + $0x34] sm:$0xf]
      %v757 = vld [vmem:[%s742 + $0x38] sm:$0xf]
      %v758 = vld [vmem:[%s742 + $0x3c] sm:$0xf]
      %v759 = vld [vmem:[%s742 + $0x40] sm:$0xf]
      %v760 = vld [vmem:[%s742 + $0x44] sm:$0xf]
      %v761 = vld [vmem:[%s742 + $0x48] sm:$0xf]
      %v762 = vld [vmem:[%s742 + $0x4c] sm:$0xf]
      %v763 = vld [vmem:[%s742 + $0x50] sm:$0xf]
      %v764 = vld [vmem:[%s742 + $0x54] sm:$0xf]
      %v765 = vld [vmem:[%s742 + $0x58] sm:$0xf]
      %v766 = vld [vmem:[%s742 + $0x5c] sm:$0xf]
      %v767 = vld [vmem:[%s742 + $0x60] sm:$0xf]
      %v768 = vld [vmem:[%s742 + $0x64] sm:$0xf]
      %v769 = vld [vmem:[%s742 + $0x68] sm:$0xf]
      %v770 = vld [vmem:[%s742 + $0x6c] sm:$0xf]
      %v771 = vld [vmem:[%s742 + $0x70] sm:$0xf]
      %v772 = vld [vmem:[%s742 + $0x74] sm:$0xf]
      %v773 = vld [vmem:[%s742 + $0x78] sm:$0xf]
      %v774 = vld [vmem:[%s742 + $0x7c] sm:$0xf]
      %vm775 = vsmask.f32 5376
      %v776 = vrot.slane %v409, 2
      %v777 = vrot.slane %v411, 3
      %v778 = vor.u32 %v776, %v777
      %v779 = vrot.slane %v432, 2
      %v780 = vrot.slane %v416, 3
      %v781 = vor.u32 %v779, %v780
      %v782 = vsel %vm775, %v778, %v781
      %v783 = vrot.slane %v421, 2
      %v784 = vrot.slane %v423, 3
      %v785 = vor.u32 %v783, %v784
      %v786 = vrot.slane %v440, 2
      %v787 = vrot.slane %v428, 3
      %v788 = vor.u32 %v786, %v787
      %v789 = vsel %vm775, %v785, %v788
      %v790 = vshrl.u32 %v340, 16
      %v792 = vrot.slane %v790, 2
      %v793 = vrot.slane %v436, 3
      %v794 = vor.u32 %v792, %v793
      %v795 = vsel %vm775, %v781, %v794
      %v796 = vshrl.u32 %v341, 16
      %v798 = vrot.slane %v796, 2
      %v799 = vrot.slane %v444, 3
      %v800 = vor.u32 %v798, %v799
      %v801 = vsel %vm775, %v788, %v800
      %v838 = vunpack.c.l.b16 %v743
      %v839 = vunpack.c.l.b16 %v744
      %v840 = vunpack.c.l.b16 %v745
      %v841 = vunpack.c.l.b16 %v746
      %v842 = vunpack.c.l.b16 %v747
      %v843 = vunpack.c.l.b16 %v748
      %v844 = vunpack.c.l.b16 %v749
      %v845 = vunpack.c.l.b16 %v750
      %v846 = vunpack.c.l.b16 %v751
      %v847 = vunpack.c.l.b16 %v752
      %v848 = vunpack.c.l.b16 %v753
      %v849 = vunpack.c.l.b16 %v754
      %v850 = vunpack.c.l.b16 %v755
      %v851 = vunpack.c.l.b16 %v756
      %v852 = vunpack.c.l.b16 %v757
      %v853 = vunpack.c.l.b16 %v758
      %v854 = vunpack.c.l.b16 %v759
      %v855 = vunpack.c.l.b16 %v760
      %v856 = vunpack.c.l.b16 %v761
      %v857 = vunpack.c.l.b16 %v762
      %v858 = vunpack.c.l.b16 %v763
      %v859 = vunpack.c.l.b16 %v764
      %v860 = vunpack.c.l.b16 %v765
      %v861 = vunpack.c.l.b16 %v766
      %v862 = vunpack.c.l.b16 %v767
      %v863 = vunpack.c.l.b16 %v768
      %v864 = vunpack.c.l.b16 %v769
      %v865 = vunpack.c.l.b16 %v770
      %v866 = vunpack.c.l.b16 %v771
      %v867 = vunpack.c.l.b16 %v772
      %v868 = vunpack.c.l.b16 %v773
      %v869 = vunpack.c.l.b16 %v774
      %v870 = vpack.c.b16 %v839, %v838
      %v871 = vpack.c.b16 %v841, %v840
      %v872 = vpack.c.b16 %v843, %v842
      %v873 = vpack.c.b16 %v845, %v844
      %v874 = vpack.c.b16 %v847, %v846
      %v875 = vpack.c.b16 %v849, %v848
      %v876 = vpack.c.b16 %v851, %v850
      %v877 = vpack.c.b16 %v853, %v852
      %v878 = vpack.c.b16 %v855, %v854
      %v879 = vpack.c.b16 %v857, %v856
      %v880 = vpack.c.b16 %v859, %v858
      %v881 = vpack.c.b16 %v861, %v860
      %v882 = vpack.c.b16 %v863, %v862
      %v883 = vpack.c.b16 %v865, %v864
      %v884 = vpack.c.b16 %v867, %v866
      %v885 = vpack.c.b16 %v869, %v868
      %902 = vmatprep.subr.bf16.mxu0 0
      %903 = vmatpush1.bf16.msra.mxu0 %v870
      %904 = vmatprep.subr.bf16.mxu0 0
      %905 = vmatpush1.bf16.msra.mxu0 %v871
      %906 = vmatprep.subr.bf16.mxu0 0
      %907 = vmatpush1.bf16.msra.mxu0 %v872
      %908 = vmatprep.subr.bf16.mxu0 0
      %909 = vmatpush1.bf16.msra.mxu0 %v873
      %910 = vmatprep.subr.bf16.mxu0 0
      %911 = vmatpush1.bf16.msra.mxu0 %v874
      %912 = vmatprep.subr.bf16.mxu0 0
      %913 = vmatpush1.bf16.msra.mxu0 %v875
      %914 = vmatprep.subr.bf16.mxu0 0
      %915 = vmatpush1.bf16.msra.mxu0 %v876
      %916 = vmatprep.subr.bf16.mxu0 0
      %917 = vmatpush1.bf16.msra.mxu0 %v877
      %918 = vmatprep.subr.bf16.mxu0 0
      %919 = vmatpush1.bf16.msra.mxu0 %v878
      %920 = vmatprep.subr.bf16.mxu0 0
      %921 = vmatpush1.bf16.msra.mxu0 %v879
      %922 = vmatprep.subr.bf16.mxu0 0
      %923 = vmatpush1.bf16.msra.mxu0 %v880
      %924 = vmatprep.subr.bf16.mxu0 0
      %925 = vmatpush1.bf16.msra.mxu0 %v881
      %926 = vmatprep.subr.bf16.mxu0 0
      %927 = vmatpush1.bf16.msra.mxu0 %v882
      %928 = vmatprep.subr.bf16.mxu0 0
      %929 = vmatpush1.bf16.msra.mxu0 %v883
      %930 = vmatprep.subr.bf16.mxu0 0
      %931 = vmatpush1.bf16.msra.mxu0 %v884
      %932 = vmatprep.subr.bf16.mxu0 0
      %933 = vmatpush1.bf16.msra.mxu0 %v885
      %934 = vmatprep.mubr.bf16.mxu0 %v789
      %935 = vmatmul.mubr.bf16.gmra.mrb[0].mxu0 %v782
      %v936 = vpop.f32.mrb[0].mxu0
      %v937 = vadd.f32 0.0, %v936
      %v938 = vpop.f32.mrb[0].mxu0
      %v939 = vpop.f32.mrb[0].mxu0
      %v940 = vadd.f32 0.0, %v939
      %v941 = vpop.f32.mrb[0].mxu0
      %942 = vmatprep.mubr.bf16.mxu0 %v801
      %943 = vmatmul.mubr.bf16.gmra.mrb[0].mxu0 %v795
      %v944 = vpop.f32.mrb[0].mxu0
      %v945 = vadd.f32 0.0, %v944
      %v946 = vpop.f32.mrb[0].mxu0
      %v947 = vpop.f32.mrb[0].mxu0
      %v948 = vadd.f32 0.0, %v947
      %v949 = vpop.f32.mrb[0].mxu0
      %950 = vdwg.mxu0
      %v951 = vadd.f32 %v728, %v937
      %v952 = vadd.f32 %v731, %v940
      %v953 = vadd.f32 %v736, %v945
      %v954 = vadd.f32 %v739, %v948
      %s955 = scalar_lea.vmem %s2, 384
      %v956 = vld [vmem:[%s955] sm:$0xf]
      %v957 = vld [vmem:[%s955 + $0x4] sm:$0xf]
      %v958 = vld [vmem:[%s955 + $0x8] sm:$0xf]
      %v959 = vld [vmem:[%s955 + $0xc] sm:$0xf]
      %v960 = vld [vmem:[%s955 + $0x10] sm:$0xf]
      %v961 = vld [vmem:[%s955 + $0x14] sm:$0xf]
      %v962 = vld [vmem:[%s955 + $0x18] sm:$0xf]
      %v963 = vld [vmem:[%s955 + $0x1c] sm:$0xf]
      %v964 = vld [vmem:[%s955 + $0x20] sm:$0xf]
      %v965 = vld [vmem:[%s955 + $0x24] sm:$0xf]
      %v966 = vld [vmem:[%s955 + $0x28] sm:$0xf]
      %v967 = vld [vmem:[%s955 + $0x2c] sm:$0xf]
      %v968 = vld [vmem:[%s955 + $0x30] sm:$0xf]
      %v969 = vld [vmem:[%s955 + $0x34] sm:$0xf]
      %v970 = vld [vmem:[%s955 + $0x38] sm:$0xf]
      %v971 = vld [vmem:[%s955 + $0x3c] sm:$0xf]
      %v972 = vld [vmem:[%s955 + $0x40] sm:$0xf]
      %v973 = vld [vmem:[%s955 + $0x44] sm:$0xf]
      %v974 = vld [vmem:[%s955 + $0x48] sm:$0xf]
      %v975 = vld [vmem:[%s955 + $0x4c] sm:$0xf]
      %v976 = vld [vmem:[%s955 + $0x50] sm:$0xf]
      %v977 = vld [vmem:[%s955 + $0x54] sm:$0xf]
      %v978 = vld [vmem:[%s955 + $0x58] sm:$0xf]
      %v979 = vld [vmem:[%s955 + $0x5c] sm:$0xf]
      %v980 = vld [vmem:[%s955 + $0x60] sm:$0xf]
      %v981 = vld [vmem:[%s955 + $0x64] sm:$0xf]
      %v982 = vld [vmem:[%s955 + $0x68] sm:$0xf]
      %v983 = vld [vmem:[%s955 + $0x6c] sm:$0xf]
      %v984 = vld [vmem:[%s955 + $0x70] sm:$0xf]
      %v985 = vld [vmem:[%s955 + $0x74] sm:$0xf]
      %v986 = vld [vmem:[%s955 + $0x78] sm:$0xf]
      %v987 = vld [vmem:[%s955 + $0x7c] sm:$0xf]
      %vm988 = vcmask 1044480
      %v989 = vrot.slane %v326, 3
      %v990 = vrot.slane %v328, 3
      %v991 = vsel %vm988, %v989, %v990
      %v992 = vrot.slane %v327, 3
      %v993 = vrot.slane %v329, 3
      %v994 = vsel %vm988, %v992, %v993
      %v995 = vrot.slane %v340, 3
      %v996 = vsel %vm988, %v990, %v995
      %v997 = vrot.slane %v341, 3
      %v998 = vsel %vm988, %v993, %v997
      %v1035 = vunpack.c.l.b16 %v956
      %v1036 = vunpack.c.l.b16 %v957
      %v1037 = vunpack.c.l.b16 %v958
      %v1038 = vunpack.c.l.b16 %v959
      %v1039 = vunpack.c.l.b16 %v960
      %v1040 = vunpack.c.l.b16 %v961
      %v1041 = vunpack.c.l.b16 %v962
      %v1042 = vunpack.c.l.b16 %v963
      %v1043 = vunpack.c.l.b16 %v964
      %v1044 = vunpack.c.l.b16 %v965
      %v1045 = vunpack.c.l.b16 %v966
      %v1046 = vunpack.c.l.b16 %v967
      %v1047 = vunpack.c.l.b16 %v968
      %v1048 = vunpack.c.l.b16 %v969
      %v1049 = vunpack.c.l.b16 %v970
      %v1050 = vunpack.c.l.b16 %v971
      %v1051 = vunpack.c.l.b16 %v972
      %v1052 = vunpack.c.l.b16 %v973
      %v1053 = vunpack.c.l.b16 %v974
      %v1054 = vunpack.c.l.b16 %v975
      %v1055 = vunpack.c.l.b16 %v976
      %v1056 = vunpack.c.l.b16 %v977
      %v1057 = vunpack.c.l.b16 %v978
      %v1058 = vunpack.c.l.b16 %v979
      %v1059 = vunpack.c.l.b16 %v980
      %v1060 = vunpack.c.l.b16 %v981
      %v1061 = vunpack.c.l.b16 %v982
      %v1062 = vunpack.c.l.b16 %v983
      %v1063 = vunpack.c.l.b16 %v984
      %v1064 = vunpack.c.l.b16 %v985
      %v1065 = vunpack.c.l.b16 %v986
      %v1066 = vunpack.c.l.b16 %v987
      %v1067 = vpack.c.b16 %v1036, %v1035
      %v1068 = vpack.c.b16 %v1038, %v1037
      %v1069 = vpack.c.b16 %v1040, %v1039
      %v1070 = vpack.c.b16 %v1042, %v1041
      %v1071 = vpack.c.b16 %v1044, %v1043
      %v1072 = vpack.c.b16 %v1046, %v1045
      %v1073 = vpack.c.b16 %v1048, %v1047
      %v1074 = vpack.c.b16 %v1050, %v1049
      %v1075 = vpack.c.b16 %v1052, %v1051
      %v1076 = vpack.c.b16 %v1054, %v1053
      %v1077 = vpack.c.b16 %v1056, %v1055
      %v1078 = vpack.c.b16 %v1058, %v1057
      %v1079 = vpack.c.b16 %v1060, %v1059
      %v1080 = vpack.c.b16 %v1062, %v1061
      %v1081 = vpack.c.b16 %v1064, %v1063
      %v1082 = vpack.c.b16 %v1066, %v1065
      %1099 = vmatprep.subr.bf16.mxu0 0
      %1100 = vmatpush1.bf16.msra.mxu0 %v1067
      %1101 = vmatprep.subr.bf16.mxu0 0
      %1102 = vmatpush1.bf16.msra.mxu0 %v1068
      %1103 = vmatprep.subr.bf16.mxu0 0
      %1104 = vmatpush1.bf16.msra.mxu0 %v1069
      %1105 = vmatprep.subr.bf16.mxu0 0
      %1106 = vmatpush1.bf16.msra.mxu0 %v1070
      %1107 = vmatprep.subr.bf16.mxu0 0
      %1108 = vmatpush1.bf16.msra.mxu0 %v1071
      %1109 = vmatprep.subr.bf16.mxu0 0
      %1110 = vmatpush1.bf16.msra.mxu0 %v1072
      %1111 = vmatprep.subr.bf16.mxu0 0
      %1112 = vmatpush1.bf16.msra.mxu0 %v1073
      %1113 = vmatprep.subr.bf16.mxu0 0
      %1114 = vmatpush1.bf16.msra.mxu0 %v1074
      %1115 = vmatprep.subr.bf16.mxu0 0
      %1116 = vmatpush1.bf16.msra.mxu0 %v1075
      %1117 = vmatprep.subr.bf16.mxu0 0
      %1118 = vmatpush1.bf16.msra.mxu0 %v1076
      %1119 = vmatprep.subr.bf16.mxu0 0
      %1120 = vmatpush1.bf16.msra.mxu0 %v1077
      %1121 = vmatprep.subr.bf16.mxu0 0
      %1122 = vmatpush1.bf16.msra.mxu0 %v1078
      %1123 = vmatprep.subr.bf16.mxu0 0
      %1124 = vmatpush1.bf16.msra.mxu0 %v1079
      %1125 = vmatprep.subr.bf16.mxu0 0
      %1126 = vmatpush1.bf16.msra.mxu0 %v1080
      %1127 = vmatprep.subr.bf16.mxu0 0
      %1128 = vmatpush1.bf16.msra.mxu0 %v1081
      %1129 = vmatprep.subr.bf16.mxu0 0
      %1130 = vmatpush1.bf16.msra.mxu0 %v1082
      %1131 = vmatprep.mubr.bf16.mxu0 %v994
      %1132 = vmatmul.mubr.bf16.gmra.mrb[0].mxu0 %v991
      %v1133 = vpop.f32.mrb[0].mxu0
      %v1134 = vadd.f32 0.0, %v1133
      %v1135 = vpop.f32.mrb[0].mxu0
      %v1136 = vpop.f32.mrb[0].mxu0
      %v1137 = vadd.f32 0.0, %v1136
      %v1138 = vpop.f32.mrb[0].mxu0
      %1139 = vmatprep.mubr.bf16.mxu0 %v998
      %1140 = vmatmul.mubr.bf16.gmra.mrb[0].mxu0 %v996
      %v1141 = vpop.f32.mrb[0].mxu0
      %v1142 = vadd.f32 0.0, %v1141
      %v1143 = vpop.f32.mrb[0].mxu0
      %v1144 = vpop.f32.mrb[0].mxu0
      %v1145 = vadd.f32 0.0, %v1144
      %v1146 = vpop.f32.mrb[0].mxu0
      %1147 = vdwg.mxu0
      %v1148 = vadd.f32 %v951, %v1134
      %v1149 = vadd.f32 %v952, %v1137
      %v1150 = vadd.f32 %v953, %v1142
      %v1151 = vadd.f32 %v954, %v1145
      %v1152 = vld [vmem:[%s3] sm:$0x1]
      %v1154 = vlaneseq
      %v1155 = vshrl.u32 %v1154, 7
      %v1156 = vsub.s32 0, %v1155
      %v1157 = vrot.slane %v1152, %v1156
      %v1159 = vadd.f32 %v1148, %v1157
      %v1160 = vadd.f32 %v1149, %v1157
      %v1161 = vadd.f32 %v1150, %v1157
      %v1162 = vadd.f32 %v1151, %v1157
      %p1163 = scmp.eq.s32.totalorder %s20, 0
      // Predicated region
      $region37: #{discriminator_forward.5} parent=35 // pred_check
        %p1164 = pneg %p1163
      $region38: #{discriminator_forward.5} parent=35 // pred_check_branch
        %1166 = sbr.rel (%p1164) target = $region40
      $region39: #{discriminator_forward.5} parent=35 // pred_region
        %1167 = vst [vmem:[#allocation2] sm:$0x1] 0.0
        %1168 = vst [vmem:[#allocation3] sm:$0x1] 0.0
      $region40: #{discriminator_forward.5} parent=35 // pred_fallthru
        _
      %s1169 = smul.u32 %s20, 32
      %v1170 = vlaneseq
      %v1171 = vshrl.u32 %v1170, 7
      %v1172 = vadd.s32 %v1171, 8
      %v1173 = vadd.s32 %v1171, 16
      %v1174 = vadd.s32 %v1171, 24
      %v1175 = vstv %s1169
      %v1176 = vadd.s32 %v1175, %v1171
      %v1177 = vadd.s32 %v1175, %v1172
      %v1178 = vadd.s32 %v1175, %v1173
      %v1179 = vadd.s32 %v1175, %v1174
      %vm1180 = vcmp.lt.s32.totalorder %v1176, 20
      %vm1181 = vcmp.lt.s32.totalorder %v1177, 20
      %vm1182 = vcmp.lt.s32.totalorder %v1178, 20
      %vm1183 = vcmp.lt.s32.totalorder %v1179, 20
      %vm1184 = vcmp.lt.s32.totalorder %v1176, 0
      %v1185 = vsub.s32 0, %v1176
      %v1186 = vsel %vm1184, %v1185, %v1176
      %v1187 = vmul.u32.u64.compose %v1186, 3435973837
      %v1188 = vextract.low.u32 %v1187
      %v1189 = vextract.high.u32 %v1187
      %v1190 = vshrl.u32 %v1189, 2
      %v1191 = vmul.u32 %v1190, 5
      %v1192 = vsub.s32 %v1186, %v1191
      %v1193 = vsub.s32 0, %v1192
      %v1194 = vsel %vm1184, %v1193, %v1192
      %vm1195 = vcmp.lt.s32.totalorder %v1177, 0
      %v1196 = vsub.s32 0, %v1177
      %v1197 = vsel %vm1195, %v1196, %v1177
      %v1198 = vmul.u32.u64.compose %v1197, 3435973837
      %v1199 = vextract.low.u32 %v1198
      %v1200 = vextract.high.u32 %v1198
      %v1201 = vshrl.u32 %v1200, 2
      %v1202 = vmul.u32 %v1201, 5
      %v1203 = vsub.s32 %v1197, %v1202
      %v1204 = vsub.s32 0, %v1203
      %v1205 = vsel %vm1195, %v1204, %v1203
      %vm1206 = vcmp.lt.s32.totalorder %v1178, 0
      %v1207 = vsub.s32 0, %v1178
      %v1208 = vsel %vm1206, %v1207, %v1178
      %v1209 = vmul.u32.u64.compose %v1208, 3435973837
      %v1210 = vextract.low.u32 %v1209
      %v1211 = vextract.high.u32 %v1209
      %v1212 = vshrl.u32 %v1211, 2
      %v1213 = vmul.u32 %v1212, 5
      %v1214 = vsub.s32 %v1208, %v1213
      %v1215 = vsub.s32 0, %v1214
      %v1216 = vsel %vm1206, %v1215, %v1214
      %vm1217 = vcmp.lt.s32.totalorder %v1179, 0
      %v1218 = vsub.s32 0, %v1179
      %v1219 = vsel %vm1217, %v1218, %v1179
      %v1220 = vmul.u32.u64.compose %v1219, 3435973837
      %v1221 = vextract.low.u32 %v1220
      %v1222 = vextract.high.u32 %v1220
      %v1223 = vshrl.u32 %v1222, 2
      %v1224 = vmul.u32 %v1223, 5
      %v1225 = vsub.s32 %v1219, %v1224
      %v1226 = vsub.s32 0, %v1225
      %v1227 = vsel %vm1217, %v1226, %v1225
      %vm1228 = vcmp.ne.s32.totalorder %v1194, 0
      %vm1229 = vcmp.ne.s32.totalorder %v1205, 0
      %vm1230 = vcmp.ne.s32.totalorder %v1216, 0
      %vm1231 = vcmp.ne.s32.totalorder %v1227, 0
      %vm1232 = vcmp.lt.s32.totalorder %v1194, 0
      %vm1233 = vcmp.lt.s32.totalorder %v1205, 0
      %vm1234 = vcmp.lt.s32.totalorder %v1216, 0
      %vm1235 = vcmp.lt.s32.totalorder %v1227, 0
      %vm1236 = vmand %vm1232, %vm1228
      %vm1237 = vmand %vm1233, %vm1229
      %vm1238 = vmand %vm1234, %vm1230
      %vm1239 = vmand %vm1235, %vm1231
      %v1240 = vadd.s32 %v1194, 5
      %v1241 = vadd.s32 %v1205, 5
      %v1242 = vadd.s32 %v1216, 5
      %v1243 = vadd.s32 %v1227, 5
      %v1244 = vsel %vm1236, %v1240, %v1194
      %v1245 = vsel %vm1237, %v1241, %v1205
      %v1246 = vsel %vm1238, %v1242, %v1216
      %v1247 = vsel %vm1239, %v1243, %v1227
      %vm1248 = vcmp.ne.s32.totalorder %v1244, 4
      %vm1249 = vcmp.ne.s32.totalorder %v1245, 4
      %vm1250 = vcmp.ne.s32.totalorder %v1246, 4
      %vm1251 = vcmp.ne.s32.totalorder %v1247, 4
      %vm1252 = vmand %vm1180, %vm1248
      %vm1253 = vmand %vm1181, %vm1249
      %vm1254 = vmand %vm1182, %vm1250
      %vm1255 = vmand %vm1183, %vm1251
      %v1256 = vsel %vm1252, 1, 0
      %v1257 = vsel %vm1253, 1, 0
      %v1258 = vsel %vm1254, 1, 0
      %v1259 = vsel %vm1255, 1, 0
      %vm1260 = vcmp.eq.s32.totalorder %v1256, 1
      %vm1261 = vcmp.eq.s32.totalorder %v1257, 1
      %vm1262 = vcmp.eq.s32.totalorder %v1258, 1
      %vm1263 = vcmp.eq.s32.totalorder %v1259, 1
      %v1264 = vsel %vm1260, %v1159, 0.0
      %v1265 = vsel %vm1261, %v1160, 0.0
      %v1266 = vsel %vm1262, %v1161, 0.0
      %v1267 = vsel %vm1263, %v1162, 0.0
      %v1268 = vld [vmem:[#allocation2] sm:$0x1]
      %v1269 = vadd.f32 %v1264, %v1265
      %v1270 = vadd.f32 %v1269, %v1266
      %v1271 = vadd.f32 %v1270, %v1267
      %v1272 = vrot.slane %v1271, 4
      %v1273 = vadd.f32 %v1271, %v1272
      %v1274 = vrot.slane %v1273, 2
      %v1275 = vadd.f32 %v1273, %v1274
      %v1276 = vrot.slane %v1275, 1
      %v1277 = vadd.f32 %v1275, %v1276
      %v1278 = vadd.f32 %v1268, %v1277
      %1279 = vst [vmem:[#allocation2] sm:$0x1] %v1278
      %v1280 = vld [vmem:[#allocation3] sm:$0x1]
      %v1281 = vmul.f32 %v1264, %v1264
      %v1282 = vmul.f32 %v1265, %v1265
      %v1283 = vmul.f32 %v1266, %v1266
      %v1284 = vmul.f32 %v1267, %v1267
      %v1285 = vadd.f32 %v1281, %v1282
      %v1286 = vadd.f32 %v1285, %v1283
      %v1287 = vadd.f32 %v1286, %v1284
      %v1288 = vrot.slane %v1287, 4
      %v1289 = vadd.f32 %v1287, %v1288
      %v1290 = vrot.slane %v1289, 2
      %v1291 = vadd.f32 %v1289, %v1290
      %v1292 = vrot.slane %v1291, 1
      %v1293 = vadd.f32 %v1291, %v1292
      %v1294 = vadd.f32 %v1280, %v1293
      %1295 = vst [vmem:[#allocation3] sm:$0x1] %v1294
      %s1296 = scalar_lea.vmem [#allocation4], %s1169
      %1297 = vst [vmem:[%s1296] sm:$0xff] %v1159
      %1298 = vst [vmem:[%s1296 + $0x8] sm:$0xff] %v1160
      %1299 = vst [vmem:[%s1296 + $0x10] sm:$0xff] %v1161
      %1300 = vst [vmem:[%s1296 + $0x18] sm:$0xff] %v1162
      // Predicated region
      $region41: #{discriminator_forward.5} parent=35 // pred_check
        %p1301 = pneg %p1163
      $region42: #{discriminator_forward.5} parent=35 // pred_check_branch
        %1303 = sbr.rel (%p1301) target = $region44
      $region43: #{discriminator_forward.5} parent=35 // pred_region
        %v1304 = vld [vmem:[#allocation2] sm:$0x1]
        %v1305 = vmul.f32 %v1304, 0.0625
        %v1306 = vld [vmem:[#allocation3] sm:$0x1]
        %v1307 = vmul.f32 %v1306, 0.0625
        %v1308 = vmul.f32 %v1305, %v1305
        %v1309 = vsub.f32 %v1307, %v1308
        %v1310 = vmax.f32 %v1309, 0.0
        %v1311 = vadd.f32 %v1310, 1e-05
        %v1312 = vrsqrt.pop %v1311
        %v1313 = vld [vmem:[#allocation4] sm:$0xff]
        %v1314 = vld [vmem:[#allocation4 + $0x8] sm:$0xff]
        %v1315 = vld [vmem:[#allocation4 + $0x10] sm:$0xff]
        %v1316 = vld [vmem:[#allocation4 + $0x18] sm:$0xff]
        %v1318 = vlaneseq
        %v1319 = vshrl.u32 %v1318, 7
        %v1320 = vsub.s32 0, %v1319
        %v1321 = vrot.slane %v1305, %v1320
        %v1323 = vsub.f32 %v1313, %v1321
        %v1324 = vsub.f32 %v1314, %v1321
        %v1325 = vsub.f32 %v1315, %v1321
        %v1326 = vsub.f32 %v1316, %v1321
        %v1328 = vlaneseq
        %v1329 = vshrl.u32 %v1328, 7
        %v1330 = vsub.s32 0, %v1329
        %v1331 = vrot.slane %v1312, %v1330
        %v1333 = vmul.f32 %v1323, %v1331
        %v1334 = vmul.f32 %v1324, %v1331
        %v1335 = vmul.f32 %v1325, %v1331
        %v1336 = vmul.f32 %v1326, %v1331
        %vm1337 = vcmp.gt.f32.partialorder %v1333, 0.0
        %vm1338 = vcmp.gt.f32.partialorder %v1334, 0.0
        %vm1339 = vcmp.gt.f32.partialorder %v1335, 0.0
        %vm1340 = vcmp.gt.f32.partialorder %v1336, 0.0
        %v1341 = vmul.f32 %v1333, 0.2
        %v1342 = vmul.f32 %v1334, 0.2
        %v1343 = vmul.f32 %v1335, 0.2
        %v1344 = vmul.f32 %v1336, 0.2
        %v1345 = vsel %vm1337, %v1333, %v1341
        %v1346 = vsel %vm1338, %v1334, %v1342
        %v1347 = vsel %vm1339, %v1335, %v1343
        %v1348 = vsel %vm1340, %v1336, %v1344
        %v1349 = vpack.c.bf16 %v1346, %v1345
        %v1350 = vpack.c.bf16 %v1348, %v1347
        %v1353 = vunpack.c.l.b16 %v1349
        %v1354 = vunpack.c.h.b16 %v1349
        %v1355 = vunpack.c.l.b16 %v1350
        %v1356 = vunpack.c.h.b16 %v1350
        %v1357 = vpack.c.b16 %v1353, %v1353
        %v1358 = vpack.c.b16 %v1354, %v1354
        %v1359 = vpack.c.b16 %v1355, %v1355
        %v1360 = vpack.c.b16 %v1356, %v1356
        %1365 = vst [vmem:[%s306] sm:$0xf] %v1357
        %1366 = vst [vmem:[%s306 + $0x4] sm:$0xf] %v1358
        %1367 = vst [vmem:[%s306 + $0x8] sm:$0xf] %v1359
        %1368 = vst [vmem:[%s306 + $0xc] sm:$0xf] %v1360
      $region44: #{discriminator_forward.5} parent=35 // pred_fallthru
        _
      %p1369 = scmp.lt.s32.totalorder %s19, 1
      %s1370 = scalar_select %p1369, %s19, 1
      %s1371 = smul.addr %s1370, 4
      %s1372 = smul.addr %s1371, 4
      %s1373 = scalar_lea.vmem %s4, %s1372
      // Predicated region
      $region45: #{discriminator_forward.5} parent=35 // pred_check
        %p1374 = pneg %p147
      $region46: #{discriminator_forward.5} parent=35 // pred_check_branch
        %1376 = sbr.rel (%p1374) target = $region48
      $region47: #{discriminator_forward.5} parent=35 // pred_region
        _
      $region48: #{discriminator_forward.5} parent=35 // pred_fallthru
        _
    $region36: #{discriminator_forward.5} parent=5 // pred_fallthru
      _
    %p1377 = scmp.le.s32.totalorder 2, %s10
    // Predicated region
    $region49: #{discriminator_forward.5} parent=5 // pred_check
      %p1378 = pneg %p1377
    $region50: #{discriminator_forward.5} parent=5 // pred_check_branch
      %1380 = sbr.rel (%p1378) target = $region52
    $region51: #{discriminator_forward.5} parent=5 // pred_region
      %s1381 = ssub.s32 %s10, 2
      // Predicated region
      $region53: #{discriminator_forward.5} parent=51 // pred_check
        %p1382 = pneg %p153
      $region54: #{discriminator_forward.5} parent=51 // pred_check_branch
        %1384 = sbr.rel (%p1382) target = $region56
      $region55: #{discriminator_forward.5} parent=51 // pred_region
        %p1385 = scmp.lt.s32.totalorder %s21, 1
        %s1386 = scalar_select %p1385, %s21, 1
        %s1387 = smul.addr %s1386, 4
        %s1388 = smul.addr %s1387, 4
        %s1389 = scalar_lea.vmem %s4, %s1388
      $region56: #{discriminator_forward.5} parent=51 // pred_fallthru
        _
    $region52: #{discriminator_forward.5} parent=5 // pred_fallthru
      _
  $region6: #{discriminator_forward.5} parent=0 // loop_footer
    %s14 = sadd.s32 1, %s10
  $region7: #{discriminator_forward.5} parent=0 // loop_footer_branch
    %9 = sbr.rel target = $region3
  $region8: #{discriminator_forward.5} parent=0 // loop_exit
    _

// kernel: discriminator_forward.6
$region0: #{discriminator_forward.6}
  #allocation0 [shape = 'u32[]', space=smem, size = 0x4, offset = 0x4, fixed_abs, tag = 'smem constant byte address 0x4 - core index']
  #allocation1 [shape = 'u32[144,128]{1,0:T(1,128)}', space=vmem, size = 0x12000, scoped, tag = 'internal scratch']
  #allocation2 [shape = 'f32[1,256]{1,0:T(1,128)}', space=vmem, size = 0x400, scoped, tag = 'scratch operand']
  #allocation3 [shape = 'f32[1,256]{1,0:T(1,128)}', space=vmem, size = 0x400, scoped, tag = 'scratch operand']
  #allocation4 [shape = 'f32[16,256]{1,0:T(8,128)}', space=vmem, size = 0x4000, scoped, tag = 'scratch operand']
  %s0 = inlined_call_operand.vmem [shape: bf16[2,32,512], index: 0, kind: input, shape index: {}, may-alias: {0,1}]
  %s1 = inlined_call_operand.vmem [shape: bf16[2,32,512], index: 1, kind: input, shape index: {}, may-alias: {0,1}]
  %s2 = inlined_call_operand.vmem [shape: bf16[4,512,256], index: 2, kind: input, shape index: {}]
  %s3 = inlined_call_operand.vmem [shape: f32[1,256], index: 3, kind: input, shape index: {}]
  %s4 = inlined_call_operand.vmem [shape: bf16[2,16,256], index: 4, kind: output, shape index: {}]
  %s5 = sld [smem:[#allocation0]]
  $region57: #{discriminator_forward.6} parent=0
    _
  %s7 = ssub.s32 1, %s5
  %s8 = scalar_select 0, %s7, %s5
  loop: start=0, step=1, limit=4
  $region2: #{discriminator_forward.6} parent=0 // loop_pre_header
    _
  $region3: #{discriminator_forward.6} parent=0 // loop_header
    %s10 = sphi 0, %s14
    %p11 = scmp.ge.s32.totalorder %s10, 4
    %s17 = sphi 0, %s29
    %s18 = sphi 0, %s25
    %s19 = sphi 0, %s17
    %s20 = sphi 0, %s18
    %s21 = sphi 0, %s19
    %s22 = sphi 0, %s20
    %s34 = sphi 0, %s36
    %s37 = sphi 0, %s34
    %s38 = sphi 0, %s37
    %s54 = sphi 0, %s38
    %s64 = sphi 0, %s66
    %s67 = sphi 0, %s64
    %s68 = sphi 0, %s67
    %s84 = sphi 0, %s68
    %s88 = sphi 0, %s88
    %s90 = sphi 0, %s88
    %s91 = sphi 0, %s90
    %s105 = sphi 0, %s91
    %s109 = sphi 0, %s109
    %s111 = sphi 0, %s109
    %s112 = sphi 0, %s111
    %s126 = sphi 0, %s112
    %s132 = sphi 0, %s134
    %s135 = sphi 0, %s132
    %s136 = sphi 0, %s135
    %s152 = sphi 0, %s136
  $region4: #{discriminator_forward.6} parent=0 // loop_header_branch
    %13 = sbr.rel (%p11) target = $region8
  $region5: #{discriminator_forward.6} parent=0 // loop_body
    %s15 = ssub.s32 %s10, 1
    %s16 = ssub.s32 %s10, 2
    %s23 = sadd.s32 1, %s18
    %p24 = scmp.ge.s32.totalorder %s23, 1
    %s25 = scalar_select %p24, 0, %s23
    %s26 = sadd.s32 1, %s17
    %s27 = scalar_select %p24, %s26, %s17
    %p28 = scmp.ge.s32.totalorder %s27, 2
    %s29 = scalar_select %p28, 0, %s27
    %s30 = ssub.s32 %s17, %s29
    %s31 = ssub.s32 %s18, %s25
    %s32 = sor.u32 %s30, %s31
    %p33 = scmp.eq.s32.totalorder %s32, 0
    %s35 = sadd.s32 %s34, 1
    %s36 = scalar_select %p33, %s34, %s35
    %p39 = pneg %p33
    %p40 = scmp.eq.s32.totalorder %s10, 1
    %p41 = por %p39, %p40
    %p42 = scmp.ne.s32.totalorder %s34, %s37
    %p43 = scmp.eq.s32.totalorder %s10, 0
    %p44 = por %p42, %p43
    %p45 = scmp.ne.s32.totalorder %s34, %s37
    %p46 = scmp.eq.s32.totalorder %s15, 1
    %p47 = por %p45, %p46
    %p48 = scmp.ne.s32.totalorder %s37, %s38
    %p49 = scmp.eq.s32.totalorder %s15, 0
    %p50 = por %p48, %p49
    %p51 = scmp.ne.s32.totalorder %s37, %s38
    %p52 = scmp.eq.s32.totalorder %s16, 1
    %p53 = por %p51, %p52
    %p55 = scmp.ne.s32.totalorder %s38, %s54
    %p56 = scmp.eq.s32.totalorder %s16, 0
    %p57 = por %p55, %p56
    %s58 = sadd.s32 %s18, 1
    %s59 = sadd.s32 %s25, 1
    %s60 = ssub.s32 %s17, %s29
    %s61 = ssub.s32 %s58, %s59
    %s62 = sor.u32 %s60, %s61
    %p63 = scmp.eq.s32.totalorder %s62, 0
    %s65 = sadd.s32 %s64, 1
    %s66 = scalar_select %p63, %s64, %s65
    %p69 = pneg %p63
    %p70 = scmp.eq.s32.totalorder %s10, 1
    %p71 = por %p69, %p70
    %p72 = scmp.ne.s32.totalorder %s64, %s67
    %p73 = scmp.eq.s32.totalorder %s10, 0
    %p74 = por %p72, %p73
    %p75 = scmp.ne.s32.totalorder %s64, %s67
    %p76 = scmp.eq.s32.totalorder %s15, 1
    %p77 = por %p75, %p76
    %p78 = scmp.ne.s32.totalorder %s67, %s68
    %p79 = scmp.eq.s32.totalorder %s15, 0
    %p80 = por %p78, %p79
    %p81 = scmp.ne.s32.totalorder %s67, %s68
    %p82 = scmp.eq.s32.totalorder %s16, 1
    %p83 = por %p81, %p82
    %p85 = scmp.ne.s32.totalorder %s68, %s84
    %p86 = scmp.eq.s32.totalorder %s16, 0
    %p87 = por %p85, %p86
    %s89 = sadd.s32 %s88, 1
    %p92 = scmp.eq.s32.totalorder %s10, 1
    %p93 = scmp.ne.s32.totalorder %s88, %s90
    %p94 = scmp.eq.s32.totalorder %s10, 0
    %p95 = por %p93, %p94
    %p96 = scmp.ne.s32.totalorder %s88, %s90
    %p97 = scmp.eq.s32.totalorder %s15, 1
    %p98 = por %p96, %p97
    %p99 = scmp.ne.s32.totalorder %s90, %s91
    %p100 = scmp.eq.s32.totalorder %s15, 0
    %p101 = por %p99, %p100
    %p102 = scmp.ne.s32.totalorder %s90, %s91
    %p103 = scmp.eq.s32.totalorder %s16, 1
    %p104 = por %p102, %p103
    %p106 = scmp.ne.s32.totalorder %s91, %s105
    %p107 = scmp.eq.s32.totalorder %s16, 0
    %p108 = por %p106, %p107
    %s110 = sadd.s32 %s109, 1
    %p113 = scmp.eq.s32.totalorder %s10, 1
    %p114 = scmp.ne.s32.totalorder %s109, %s111
    %p115 = scmp.eq.s32.totalorder %s10, 0
    %p116 = por %p114, %p115
    %p117 = scmp.ne.s32.totalorder %s109, %s111
    %p118 = scmp.eq.s32.totalorder %s15, 1
    %p119 = por %p117, %p118
    %p120 = scmp.ne.s32.totalorder %s111, %s112
    %p121 = scmp.eq.s32.totalorder %s15, 0
    %p122 = por %p120, %p121
    %p123 = scmp.ne.s32.totalorder %s111, %s112
    %p124 = scmp.eq.s32.totalorder %s16, 1
    %p125 = por %p123, %p124
    %p127 = scmp.ne.s32.totalorder %s112, %s126
    %p128 = scmp.eq.s32.totalorder %s16, 0
    %p129 = por %p127, %p128
    %s130 = ssub.s32 %s17, %s29
    %p131 = scmp.eq.s32.totalorder %s130, 0
    %s133 = sadd.s32 %s132, 1
    %s134 = scalar_select %p131, %s132, %s133
    %p137 = pneg %p131
    %p138 = scmp.eq.s32.totalorder %s10, 1
    %p139 = por %p137, %p138
    %p140 = scmp.ne.s32.totalorder %s132, %s135
    %p141 = scmp.eq.s32.totalorder %s10, 0
    %p142 = por %p140, %p141
    %p143 = scmp.ne.s32.totalorder %s132, %s135
    %p144 = scmp.eq.s32.totalorder %s15, 1
    %p145 = por %p143, %p144
    %p146 = scmp.ne.s32.totalorder %s135, %s136
    %p147 = scmp.eq.s32.totalorder %s15, 0
    %p148 = por %p146, %p147
    %p149 = scmp.ne.s32.totalorder %s135, %s136
    %p150 = scmp.eq.s32.totalorder %s16, 1
    %p151 = por %p149, %p150
    %p153 = scmp.ne.s32.totalorder %s136, %s152
    %p154 = scmp.eq.s32.totalorder %s16, 0
    %p155 = por %p153, %p154
    %p156 = scmp.le.s32.totalorder 1, %s10
    %p157 = scmp.lt.s32.totalorder %s10, 3
    %p158 = pnand %p156, %p157
    %p159 = pneg %p158
    // Predicated region
    $region9: #{discriminator_forward.6} parent=5 // pred_check
      _
    $region10: #{discriminator_forward.6} parent=5 // pred_check_branch
      %161 = sbr.rel (%p158) target = $region12
    $region11: #{discriminator_forward.6} parent=5 // pred_region
      %s162 = ssub.s32 %s10, 1
      // Predicated region
      $region13: #{discriminator_forward.6} parent=11 // pred_check
        %p163 = pneg %p101
      $region14: #{discriminator_forward.6} parent=11 // pred_check_branch
        %165 = sbr.rel (%p163) target = $region16
      $region15: #{discriminator_forward.6} parent=11 // pred_region
        _
      $region16: #{discriminator_forward.6} parent=11 // pred_fallthru
        _
      // Predicated region
      $region17: #{discriminator_forward.6} parent=11 // pred_check
        %p166 = pneg %p122
      $region18: #{discriminator_forward.6} parent=11 // pred_check_branch
        %168 = sbr.rel (%p166) target = $region20
      $region19: #{discriminator_forward.6} parent=11 // pred_region
        _
      $region20: #{discriminator_forward.6} parent=11 // pred_fallthru
        _
    $region12: #{discriminator_forward.6} parent=5 // pred_fallthru
      _
    %p169 = scmp.lt.s32.totalorder %s10, 2
    // Predicated region
    $region21: #{discriminator_forward.6} parent=5 // pred_check
      %p170 = pneg %p169
    $region22: #{discriminator_forward.6} parent=5 // pred_check_branch
      %172 = sbr.rel (%p170) target = $region24
    $region23: #{discriminator_forward.6} parent=5 // pred_region
      // Predicated region
      $region25: #{discriminator_forward.6} parent=23 // pred_check
        %p173 = pneg %p44
      $region26: #{discriminator_forward.6} parent=23 // pred_check_branch
        %175 = sbr.rel (%p173) target = $region28
      $region27: #{discriminator_forward.6} parent=23 // pred_region
        %s176 = smul.u32 2, %s18
        %p177 = scmp.lt.s32.totalorder %s17, 1
        %s178 = scalar_select %p177, %s17, 1
        %p179 = scmp.lt.s32.totalorder %s176, 3
        %s180 = scalar_select %p179, %s176, 3
        %s181 = smul.addr %s180, 4
        %s182 = smul.addr %s178, 16
        %s183 = sadd.s32 %s181, %s182
        %s184 = smul.addr %s183, 4
        %s185 = scalar_lea.vmem %s0, %s184
        %s186 = smul.u32 2, %s18
      $region28: #{discriminator_forward.6} parent=23 // pred_fallthru
        _
      // Predicated region
      $region29: #{discriminator_forward.6} parent=23 // pred_check
        %p187 = pneg %p74
      $region30: #{discriminator_forward.6} parent=23 // pred_check_branch
        %189 = sbr.rel (%p187) target = $region32
      $region31: #{discriminator_forward.6} parent=23 // pred_region
        %s190 = sadd.s32 %s18, 1
        %s191 = smul.u32 2, %s190
        %p192 = scmp.lt.s32.totalorder %s17, 1
        %s193 = scalar_select %p192, %s17, 1
        %p194 = scmp.lt.s32.totalorder %s191, 3
        %s195 = scalar_select %p194, %s191, 3
        %s196 = smul.addr %s195, 4
        %s197 = smul.addr %s193, 16
        %s198 = sadd.s32 %s196, %s197
        %s199 = smul.addr %s198, 4
        %s200 = scalar_lea.vmem %s1, %s199
        %s201 = sadd.s32 %s18, 1
        %s202 = smul.u32 2, %s201
      $region32: #{discriminator_forward.6} parent=23 // pred_fallthru
        _
    $region24: #{discriminator_forward.6} parent=5 // pred_fallthru
      _
    %p203 = scmp.le.s32.totalorder 1, %s10
    %p204 = scmp.lt.s32.totalorder %s10, 3
    %p205 = pnand %p203, %p204
    %p206 = pneg %p205
    // Predicated region
    $region33: #{discriminator_forward.6} parent=5 // pred_check
      _
    $region34: #{discriminator_forward.6} parent=5 // pred_check_branch
      %208 = sbr.rel (%p205) target = $region36
    $region35: #{discriminator_forward.6} parent=5 // pred_region
      %s209 = ssub.s32 %s10, 1
      %s210 = smul.u32 2, %s20
      %p211 = scmp.lt.s32.totalorder %s19, 1
      %s212 = scalar_select %p211, %s19, 1
      %p213 = scmp.lt.s32.totalorder %s210, 3
      %s214 = scalar_select %p213, %s210, 3
      %s215 = smul.addr %s214, 4
      %s216 = smul.addr %s212, 16
      %s217 = sadd.s32 %s215, %s216
      %s218 = smul.addr %s217, 4
      %s219 = scalar_lea.vmem %s0, %s218
      %p220 = pneg %p50
      %p221 = pneg %p47
      %s222 = sadd.s32 %s20, 1
      %s223 = smul.u32 2, %s222
      %p224 = scmp.lt.s32.totalorder %s19, 1
      %s225 = scalar_select %p224, %s19, 1
      %p226 = scmp.lt.s32.totalorder %s223, 3
      %s227 = scalar_select %p226, %s223, 3
      %s228 = smul.addr %s227, 4
      %s229 = smul.addr %s225, 16
      %s230 = sadd.s32 %s228, %s229
      %s231 = smul.addr %s230, 4
      %s232 = scalar_lea.vmem %s1, %s231
      %p233 = pneg %p80
      %p234 = pneg %p77
      %p235 = pneg %p101
      %p236 = pneg %p98
      %p237 = pneg %p122
      %p238 = pneg %p119
      %p239 = pneg %p148
      %p240 = pneg %p145
      %p241 = scmp.lt.s32.totalorder %s19, 1
      %s242 = scalar_select %p241, %s19, 1
      %s243 = smul.addr %s242, 4
      %s244 = smul.addr %s243, 4
      %s245 = scalar_lea.vmem %s4, %s244
      %s246 = smul.u32 2, %s20
      %p247 = scmp.lt.s32.totalorder %s19, 1
      %s248 = scalar_select %p247, %s19, 1
      %p249 = scmp.lt.s32.totalorder %s246, 3
      %s250 = scalar_select %p249, %s246, 3
      %s251 = smul.addr %s250, 4
      %s252 = smul.addr %s248, 16
      %s253 = sadd.s32 %s251, %s252
      %s254 = smul.addr %s253, 4
      %s255 = scalar_lea.vmem %s0, %s254
      %s256 = smul.u32 2, %s20
      %s257 = sadd.s32 %s20, 1
      %s258 = smul.u32 2, %s257
      %p259 = scmp.lt.s32.totalorder %s19, 1
      %s260 = scalar_select %p259, %s19, 1
      %p261 = scmp.lt.s32.totalorder %s258, 3
      %s262 = scalar_select %p261, %s258, 3
      %s263 = smul.addr %s262, 4
      %s264 = smul.addr %s260, 16
      %s265 = sadd.s32 %s263, %s264
      %s266 = smul.addr %s265, 4
      %s267 = scalar_lea.vmem %s1, %s266
      %s268 = sadd.s32 %s20, 1
      %s269 = smul.u32 2, %s268
      %p270 = scmp.lt.s32.totalorder %s19, 1
      %s271 = scalar_select %p270, %s19, 1
      %s272 = smul.addr %s271, 4
      %s273 = smul.addr %s272, 4
      %s274 = scalar_lea.vmem %s4, %s273
      %v275 = vld [vmem:[%s255] sm:$0xff]
      %v276 = vld [vmem:[%s255 + $0x8] sm:$0xff]
      %v277 = vld [vmem:[%s255 + $0x10] sm:$0xff]
      %v278 = vld [vmem:[%s255 + $0x18] sm:$0xff]
      %v279 = vld [vmem:[%s267] sm:$0xff]
      %v280 = vld [vmem:[%s267 + $0x8] sm:$0xff]
      %v281 = vld [vmem:[%s267 + $0x10] sm:$0xff]
      %v282 = vld [vmem:[%s267 + $0x18] sm:$0xff]
      %v287 = vunpack.c.l.b16 %v275
      %v288 = vunpack.c.h.b16 %v275
      %v289 = vunpack.c.l.b16 %v276
      %v290 = vunpack.c.h.b16 %v276
      %v291 = vunpack.c.l.b16 %v277
      %v292 = vunpack.c.h.b16 %v277
      %v293 = vunpack.c.l.b16 %v278
      %v294 = vunpack.c.h.b16 %v278
      %v295 = vpack.c.b16 %v291, %v287
      %v296 = vpack.c.b16 %v292, %v288
      %v297 = vpack.c.b16 %v293, %v289
      %v298 = vpack.c.b16 %v294, %v290
      %v307 = vunpack.c.l.b16 %v279
      %v308 = vunpack.c.h.b16 %v279
      %v309 = vunpack.c.l.b16 %v280
      %v310 = vunpack.c.h.b16 %v280
      %v311 = vunpack.c.l.b16 %v281
      %v312 = vunpack.c.h.b16 %v281
      %v313 = vunpack.c.l.b16 %v282
      %v314 = vunpack.c.h.b16 %v282
      %v315 = vpack.c.b16 %v311, %v307
      %v316 = vpack.c.b16 %v312, %v308
      %v317 = vpack.c.b16 %v313, %v309
      %v318 = vpack.c.b16 %v314, %v310
      %v319 = vld [vmem:[%s2] sm:$0xff]
      %v320 = vld [vmem:[%s2 + $0x8] sm:$0xff]
      %v321 = vld [vmem:[%s2 + $0x10] sm:$0xff]
      %v322 = vld [vmem:[%s2 + $0x18] sm:$0xff]
      %v323 = vld [vmem:[%s2 + $0x20] sm:$0xff]
      %v324 = vld [vmem:[%s2 + $0x28] sm:$0xff]
      %v325 = vld [vmem:[%s2 + $0x30] sm:$0xff]
      %v326 = vld [vmem:[%s2 + $0x38] sm:$0xff]
      %v327 = vld [vmem:[%s2 + $0x40] sm:$0xff]
      %v328 = vld [vmem:[%s2 + $0x48] sm:$0xff]
      %v329 = vld [vmem:[%s2 + $0x50] sm:$0xff]
      %v330 = vld [vmem:[%s2 + $0x58] sm:$0xff]
      %v331 = vld [vmem:[%s2 + $0x60] sm:$0xff]
      %v332 = vld [vmem:[%s2 + $0x68] sm:$0xff]
      %v333 = vld [vmem:[%s2 + $0x70] sm:$0xff]
      %v334 = vld [vmem:[%s2 + $0x78] sm:$0xff]
      %v335 = vld [vmem:[%s2 + $0x80] sm:$0xff]
      %v336 = vld [vmem:[%s2 + $0x88] sm:$0xff]
      %v337 = vld [vmem:[%s2 + $0x90] sm:$0xff]
      %v338 = vld [vmem:[%s2 + $0x98] sm:$0xff]
      %v339 = vld [vmem:[%s2 + $0xa0] sm:$0xff]
      %v340 = vld [vmem:[%s2 + $0xa8] sm:$0xff]
      %v341 = vld [vmem:[%s2 + $0xb0] sm:$0xff]
      %v342 = vld [vmem:[%s2 + $0xb8] sm:$0xff]
      %v343 = vld [vmem:[%s2 + $0xc0] sm:$0xff]
      %v344 = vld [vmem:[%s2 + $0xc8] sm:$0xff]
      %v345 = vld [vmem:[%s2 + $0xd0] sm:$0xff]
      %v346 = vld [vmem:[%s2 + $0xd8] sm:$0xff]
      %v347 = vld [vmem:[%s2 + $0xe0] sm:$0xff]
      %v348 = vld [vmem:[%s2 + $0xe8] sm:$0xff]
      %v349 = vld [vmem:[%s2 + $0xf0] sm:$0xff]
      %v350 = vld [vmem:[%s2 + $0xf8] sm:$0xff]
      %v351 = vld [vmem:[%s2 + $0x100] sm:$0xff]
      %v352 = vld [vmem:[%s2 + $0x108] sm:$0xff]
      %v353 = vld [vmem:[%s2 + $0x110] sm:$0xff]
      %v354 = vld [vmem:[%s2 + $0x118] sm:$0xff]
      %v355 = vld [vmem:[%s2 + $0x120] sm:$0xff]
      %v356 = vld [vmem:[%s2 + $0x128] sm:$0xff]
      %v357 = vld [vmem:[%s2 + $0x130] sm:$0xff]
      %v358 = vld [vmem:[%s2 + $0x138] sm:$0xff]
      %v359 = vld [vmem:[%s2 + $0x140] sm:$0xff]
      %v360 = vld [vmem:[%s2 + $0x148] sm:$0xff]
      %v361 = vld [vmem:[%s2 + $0x150] sm:$0xff]
      %v362 = vld [vmem:[%s2 + $0x158] sm:$0xff]
      %v363 = vld [vmem:[%s2 + $0x160] sm:$0xff]
      %v364 = vld [vmem:[%s2 + $0x168] sm:$0xff]
      %v365 = vld [vmem:[%s2 + $0x170] sm:$0xff]
      %v366 = vld [vmem:[%s2 + $0x178] sm:$0xff]
      %v367 = vld [vmem:[%s2 + $0x180] sm:$0xff]
      %v368 = vld [vmem:[%s2 + $0x188] sm:$0xff]
      %v369 = vld [vmem:[%s2 + $0x190] sm:$0xff]
      %v370 = vld [vmem:[%s2 + $0x198] sm:$0xff]
      %v371 = vld [vmem:[%s2 + $0x1a0] sm:$0xff]
      %v372 = vld [vmem:[%s2 + $0x1a8] sm:$0xff]
      %v373 = vld [vmem:[%s2 + $0x1b0] sm:$0xff]
      %v374 = vld [vmem:[%s2 + $0x1b8] sm:$0xff]
      %v375 = vld [vmem:[%s2 + $0x1c0] sm:$0xff]
      %v376 = vld [vmem:[%s2 + $0x1c8] sm:$0xff]
      %v377 = vld [vmem:[%s2 + $0x1d0] sm:$0xff]
      %v378 = vld [vmem:[%s2 + $0x1d8] sm:$0xff]
      %v379 = vld [vmem:[%s2 + $0x1e0] sm:$0xff]
      %v380 = vld [vmem:[%s2 + $0x1e8] sm:$0xff]
      %v381 = vld [vmem:[%s2 + $0x1f0] sm:$0xff]
      %v382 = vld [vmem:[%s2 + $0x1f8] sm:$0xff]
      %s383 = scalar_lea.vmem %s2, 512
      %v384 = vld [vmem:[%s383] sm:$0xff]
      %v385 = vld [vmem:[%s383 + $0x8] sm:$0xff]
      %v386 = vld [vmem:[%s383 + $0x10] sm:$0xff]
      %v387 = vld [vmem:[%s383 + $0x18] sm:$0xff]
      %v388 = vld [vmem:[%s383 + $0x20] sm:$0xff]
      %v389 = vld [vmem:[%s383 + $0x28] sm:$0xff]
      %v390 = vld [vmem:[%s383 + $0x30] sm:$0xff]
      %v391 = vld [vmem:[%s383 + $0x38] sm:$0xff]
      %v392 = vld [vmem:[%s383 + $0x40] sm:$0xff]
      %v393 = vld [vmem:[%s383 + $0x48] sm:$0xff]
      %v394 = vld [vmem:[%s383 + $0x50] sm:$0xff]
      %v395 = vld [vmem:[%s383 + $0x58] sm:$0xff]
      %v396 = vld [vmem:[%s383 + $0x60] sm:$0xff]
      %v397 = vld [vmem:[%s383 + $0x68] sm:$0xff]
      %v398 = vld [vmem:[%s383 + $0x70] sm:$0xff]
      %v399 = vld [vmem:[%s383 + $0x78] sm:$0xff]
      %v400 = vld [vmem:[%s383 + $0x80] sm:$0xff]
      %v401 = vld [vmem:[%s383 + $0x88] sm:$0xff]
      %v402 = vld [vmem:[%s383 + $0x90] sm:$0xff]
      %v403 = vld [vmem:[%s383 + $0x98] sm:$0xff]
      %v404 = vld [vmem:[%s383 + $0xa0] sm:$0xff]
      %v405 = vld [vmem:[%s383 + $0xa8] sm:$0xff]
      %v406 = vld [vmem:[%s383 + $0xb0] sm:$0xff]
      %v407 = vld [vmem:[%s383 + $0xb8] sm:$0xff]
      %v408 = vld [vmem:[%s383 + $0xc0] sm:$0xff]
      %v409 = vld [vmem:[%s383 + $0xc8] sm:$0xff]
      %v410 = vld [vmem:[%s383 + $0xd0] sm:$0xff]
      %v411 = vld [vmem:[%s383 + $0xd8] sm:$0xff]
      %v412 = vld [vmem:[%s383 + $0xe0] sm:$0xff]
      %v413 = vld [vmem:[%s383 + $0xe8] sm:$0xff]
      %v414 = vld [vmem:[%s383 + $0xf0] sm:$0xff]
      %v415 = vld [vmem:[%s383 + $0xf8] sm:$0xff]
      %v416 = vld [vmem:[%s383 + $0x100] sm:$0xff]
      %v417 = vld [vmem:[%s383 + $0x108] sm:$0xff]
      %v418 = vld [vmem:[%s383 + $0x110] sm:$0xff]
      %v419 = vld [vmem:[%s383 + $0x118] sm:$0xff]
      %v420 = vld [vmem:[%s383 + $0x120] sm:$0xff]
      %v421 = vld [vmem:[%s383 + $0x128] sm:$0xff]
      %v422 = vld [vmem:[%s383 + $0x130] sm:$0xff]
      %v423 = vld [vmem:[%s383 + $0x138] sm:$0xff]
      %v424 = vld [vmem:[%s383 + $0x140] sm:$0xff]
      %v425 = vld [vmem:[%s383 + $0x148] sm:$0xff]
      %v426 = vld [vmem:[%s383 + $0x150] sm:$0xff]
      %v427 = vld [vmem:[%s383 + $0x158] sm:$0xff]
      %v428 = vld [vmem:[%s383 + $0x160] sm:$0xff]
      %v429 = vld [vmem:[%s383 + $0x168] sm:$0xff]
      %v430 = vld [vmem:[%s383 + $0x170] sm:$0xff]
      %v431 = vld [vmem:[%s383 + $0x178] sm:$0xff]
      %v432 = vld [vmem:[%s383 + $0x180] sm:$0xff]
      %v433 = vld [vmem:[%s383 + $0x188] sm:$0xff]
      %v434 = vld [vmem:[%s383 + $0x190] sm:$0xff]
      %v435 = vld [vmem:[%s383 + $0x198] sm:$0xff]
      %v436 = vld [vmem:[%s383 + $0x1a0] sm:$0xff]
      %v437 = vld [vmem:[%s383 + $0x1a8] sm:$0xff]
      %v438 = vld [vmem:[%s383 + $0x1b0] sm:$0xff]
      %v439 = vld [vmem:[%s383 + $0x1b8] sm:$0xff]
      %v440 = vld [vmem:[%s383 + $0x1c0] sm:$0xff]
      %v441 = vld [vmem:[%s383 + $0x1c8] sm:$0xff]
      %v442 = vld [vmem:[%s383 + $0x1d0] sm:$0xff]
      %v443 = vld [vmem:[%s383 + $0x1d8] sm:$0xff]
      %v444 = vld [vmem:[%s383 + $0x1e0] sm:$0xff]
      %v445 = vld [vmem:[%s383 + $0x1e8] sm:$0xff]
      %v446 = vld [vmem:[%s383 + $0x1f0] sm:$0xff]
      %v447 = vld [vmem:[%s383 + $0x1f8] sm:$0xff]
      %vm448 = vsmask.f32 7424
      %v450 = vshrl.u32 %v295, 16
      %v452 = vshll.u32 %v295, 16
      %v454 = vrot.slane %v452, 1
      %v455 = vor.u32 %v450, %v454
      %v457 = vshll.u32 %v315, 16
      %v459 = vrot.slane %v457, 1
      %v460 = vsel %vm448, %v455, %v459
      %v462 = vshrl.u32 %v296, 16
      %v464 = vshll.u32 %v296, 16
      %v466 = vrot.slane %v464, 1
      %v467 = vor.u32 %v462, %v466
      %v469 = vshll.u32 %v316, 16
      %v471 = vrot.slane %v469, 1
      %v472 = vsel %vm448, %v467, %v471
      %v474 = vshrl.u32 %v297, 16
      %v476 = vshll.u32 %v297, 16
      %v478 = vrot.slane %v476, 1
      %v479 = vor.u32 %v474, %v478
      %v481 = vshll.u32 %v317, 16
      %v483 = vrot.slane %v481, 1
      %v484 = vsel %vm448, %v479, %v483
      %v486 = vshrl.u32 %v298, 16
      %v488 = vshll.u32 %v298, 16
      %v490 = vrot.slane %v488, 1
      %v491 = vor.u32 %v486, %v490
      %v493 = vshll.u32 %v318, 16
      %v495 = vrot.slane %v493, 1
      %v496 = vsel %vm448, %v491, %v495
      %v565 = vunpack.c.l.b16 %v384
      %v566 = vunpack.c.h.b16 %v384
      %v567 = vunpack.c.l.b16 %v385
      %v568 = vunpack.c.h.b16 %v385
      %v569 = vunpack.c.l.b16 %v386
      %v570 = vunpack.c.h.b16 %v386
      %v571 = vunpack.c.l.b16 %v387
      %v572 = vunpack.c.h.b16 %v387
      %v573 = vunpack.c.l.b16 %v388
      %v574 = vunpack.c.h.b16 %v388
      %v575 = vunpack.c.l.b16 %v389
      %v576 = vunpack.c.h.b16 %v389
      %v577 = vunpack.c.l.b16 %v390
      %v578 = vunpack.c.h.b16 %v390
      %v579 = vunpack.c.l.b16 %v391
      %v580 = vunpack.c.h.b16 %v391
      %v581 = vunpack.c.l.b16 %v392
      %v582 = vunpack.c.h.b16 %v392
      %v583 = vunpack.c.l.b16 %v393
      %v584 = vunpack.c.h.b16 %v393
      %v585 = vunpack.c.l.b16 %v394
      %v586 = vunpack.c.h.b16 %v394
      %v587 = vunpack.c.l.b16 %v395
      %v588 = vunpack.c.h.b16 %v395
      %v589 = vunpack.c.l.b16 %v396
      %v590 = vunpack.c.h.b16 %v396
      %v591 = vunpack.c.l.b16 %v397
      %v592 = vunpack.c.h.b16 %v397
      %v593 = vunpack.c.l.b16 %v398
      %v594 = vunpack.c.h.b16 %v398
      %v595 = vunpack.c.l.b16 %v399
      %v596 = vunpack.c.h.b16 %v399
      %v597 = vunpack.c.l.b16 %v400
      %v598 = vunpack.c.h.b16 %v400
      %v599 = vunpack.c.l.b16 %v401
      %v600 = vunpack.c.h.b16 %v401
      %v601 = vunpack.c.l.b16 %v402
      %v602 = vunpack.c.h.b16 %v402
      %v603 = vunpack.c.l.b16 %v403
      %v604 = vunpack.c.h.b16 %v403
      %v605 = vunpack.c.l.b16 %v404
      %v606 = vunpack.c.h.b16 %v404
      %v607 = vunpack.c.l.b16 %v405
      %v608 = vunpack.c.h.b16 %v405
      %v609 = vunpack.c.l.b16 %v406
      %v610 = vunpack.c.h.b16 %v406
      %v611 = vunpack.c.l.b16 %v407
      %v612 = vunpack.c.h.b16 %v407
      %v613 = vunpack.c.l.b16 %v408
      %v614 = vunpack.c.h.b16 %v408
      %v615 = vunpack.c.l.b16 %v409
      %v616 = vunpack.c.h.b16 %v409
      %v617 = vunpack.c.l.b16 %v410
      %v618 = vunpack.c.h.b16 %v410
      %v619 = vunpack.c.l.b16 %v411
      %v620 = vunpack.c.h.b16 %v411
      %v621 = vunpack.c.l.b16 %v412
      %v622 = vunpack.c.h.b16 %v412
      %v623 = vunpack.c.l.b16 %v413
      %v624 = vunpack.c.h.b16 %v413
      %v625 = vunpack.c.l.b16 %v414
      %v626 = vunpack.c.h.b16 %v414
      %v627 = vunpack.c.l.b16 %v415
      %v628 = vunpack.c.h.b16 %v415
      %v629 = vunpack.c.l.b16 %v416
      %v630 = vunpack.c.h.b16 %v416
      %v631 = vunpack.c.l.b16 %v417
      %v632 = vunpack.c.h.b16 %v417
      %v633 = vunpack.c.l.b16 %v418
      %v634 = vunpack.c.h.b16 %v418
      %v635 = vunpack.c.l.b16 %v419
      %v636 = vunpack.c.h.b16 %v419
      %v637 = vunpack.c.l.b16 %v420
      %v638 = vunpack.c.h.b16 %v420
      %v639 = vunpack.c.l.b16 %v421
      %v640 = vunpack.c.h.b16 %v421
      %v641 = vunpack.c.l.b16 %v422
      %v642 = vunpack.c.h.b16 %v422
      %v643 = vunpack.c.l.b16 %v423
      %v644 = vunpack.c.h.b16 %v423
      %v645 = vunpack.c.l.b16 %v424
      %v646 = vunpack.c.h.b16 %v424
      %v647 = vunpack.c.l.b16 %v425
      %v648 = vunpack.c.h.b16 %v425
      %v649 = vunpack.c.l.b16 %v426
      %v650 = vunpack.c.h.b16 %v426
      %v651 = vunpack.c.l.b16 %v427
      %v652 = vunpack.c.h.b16 %v427
      %v653 = vunpack.c.l.b16 %v428
      %v654 = vunpack.c.h.b16 %v428
      %v655 = vunpack.c.l.b16 %v429
      %v656 = vunpack.c.h.b16 %v429
      %v657 = vunpack.c.l.b16 %v430
      %v658 = vunpack.c.h.b16 %v430
      %v659 = vunpack.c.l.b16 %v431
      %v660 = vunpack.c.h.b16 %v431
      %v661 = vunpack.c.l.b16 %v432
      %v662 = vunpack.c.h.b16 %v432
      %v663 = vunpack.c.l.b16 %v433
      %v664 = vunpack.c.h.b16 %v433
      %v665 = vunpack.c.l.b16 %v434
      %v666 = vunpack.c.h.b16 %v434
      %v667 = vunpack.c.l.b16 %v435
      %v668 = vunpack.c.h.b16 %v435
      %v669 = vunpack.c.l.b16 %v436
      %v670 = vunpack.c.h.b16 %v436
      %v671 = vunpack.c.l.b16 %v437
      %v672 = vunpack.c.h.b16 %v437
      %v673 = vunpack.c.l.b16 %v438
      %v674 = vunpack.c.h.b16 %v438
      %v675 = vunpack.c.l.b16 %v439
      %v676 = vunpack.c.h.b16 %v439
      %v677 = vunpack.c.l.b16 %v440
      %v678 = vunpack.c.h.b16 %v440
      %v679 = vunpack.c.l.b16 %v441
      %v680 = vunpack.c.h.b16 %v441
      %v681 = vunpack.c.l.b16 %v442
      %v682 = vunpack.c.h.b16 %v442
      %v683 = vunpack.c.l.b16 %v443
      %v684 = vunpack.c.h.b16 %v443
      %v685 = vunpack.c.l.b16 %v444
      %v686 = vunpack.c.h.b16 %v444
      %v687 = vunpack.c.l.b16 %v445
      %v688 = vunpack.c.h.b16 %v445
      %v689 = vunpack.c.l.b16 %v446
      %v690 = vunpack.c.h.b16 %v446
      %v691 = vunpack.c.l.b16 %v447
      %v692 = vunpack.c.h.b16 %v447
      %v693 = vpack.c.b16 %v567, %v565
      %v694 = vpack.c.b16 %v568, %v566
      %v695 = vpack.c.b16 %v571, %v569
      %v696 = vpack.c.b16 %v572, %v570
      %v697 = vpack.c.b16 %v575, %v573
      %v698 = vpack.c.b16 %v576, %v574
      %v699 = vpack.c.b16 %v579, %v577
      %v700 = vpack.c.b16 %v580, %v578
      %v701 = vpack.c.b16 %v583, %v581
      %v702 = vpack.c.b16 %v584, %v582
      %v703 = vpack.c.b16 %v587, %v585
      %v704 = vpack.c.b16 %v588, %v586
      %v705 = vpack.c.b16 %v591, %v589
      %v706 = vpack.c.b16 %v592, %v590
      %v707 = vpack.c.b16 %v595, %v593
      %v708 = vpack.c.b16 %v596, %v594
      %v709 = vpack.c.b16 %v599, %v597
      %v710 = vpack.c.b16 %v600, %v598
      %v711 = vpack.c.b16 %v603, %v601
      %v712 = vpack.c.b16 %v604, %v602
      %v713 = vpack.c.b16 %v607, %v605
      %v714 = vpack.c.b16 %v608, %v606
      %v715 = vpack.c.b16 %v611, %v609
      %v716 = vpack.c.b16 %v612, %v610
      %v717 = vpack.c.b16 %v615, %v613
      %v718 = vpack.c.b16 %v616, %v614
      %v719 = vpack.c.b16 %v619, %v617
      %v720 = vpack.c.b16 %v620, %v618
      %v721 = vpack.c.b16 %v623, %v621
      %v722 = vpack.c.b16 %v624, %v622
      %v723 = vpack.c.b16 %v627, %v625
      %v724 = vpack.c.b16 %v628, %v626
      %v725 = vpack.c.b16 %v631, %v629
      %v726 = vpack.c.b16 %v632, %v630
      %v727 = vpack.c.b16 %v635, %v633
      %v728 = vpack.c.b16 %v636, %v634
      %v729 = vpack.c.b16 %v639, %v637
      %v730 = vpack.c.b16 %v640, %v638
      %v731 = vpack.c.b16 %v643, %v641
      %v732 = vpack.c.b16 %v644, %v642
      %v733 = vpack.c.b16 %v647, %v645
      %v734 = vpack.c.b16 %v648, %v646
      %v735 = vpack.c.b16 %v651, %v649
      %v736 = vpack.c.b16 %v652, %v650
      %v737 = vpack.c.b16 %v655, %v653
      %v738 = vpack.c.b16 %v656, %v654
      %v739 = vpack.c.b16 %v659, %v657
      %v740 = vpack.c.b16 %v660, %v658
      %v741 = vpack.c.b16 %v663, %v661
      %v742 = vpack.c.b16 %v664, %v662
      %v743 = vpack.c.b16 %v667, %v665
      %v744 = vpack.c.b16 %v668, %v666
      %v745 = vpack.c.b16 %v671, %v669
      %v746 = vpack.c.b16 %v672, %v670
      %v747 = vpack.c.b16 %v675, %v673
      %v748 = vpack.c.b16 %v676, %v674
      %v749 = vpack.c.b16 %v679, %v677
      %v750 = vpack.c.b16 %v680, %v678
      %v751 = vpack.c.b16 %v683, %v681
      %v752 = vpack.c.b16 %v684, %v682
      %v753 = vpack.c.b16 %v687, %v685
      %v754 = vpack.c.b16 %v688, %v686
      %v755 = vpack.c.b16 %v691, %v689
      %v756 = vpack.c.b16 %v692, %v690
      %821 = vmatprep.subr.bf16.mxu0 %v694
      %822 = vmatpush1.bf16.msra.mxu0 %v693
      %823 = vmatprep.subr.bf16.mxu0 %v696
      %824 = vmatpush1.bf16.msra.mxu0 %v695
      %825 = vmatprep.subr.bf16.mxu0 %v698
      %826 = vmatpush1.bf16.msra.mxu0 %v697
      %827 = vmatprep.subr.bf16.mxu0 %v700
      %828 = vmatpush1.bf16.msra.mxu0 %v699
      %829 = vmatprep.subr.bf16.mxu0 %v702
      %830 = vmatpush1.bf16.msra.mxu0 %v701
      %831 = vmatprep.subr.bf16.mxu0 %v704
      %832 = vmatpush1.bf16.msra.mxu0 %v703
      %833 = vmatprep.subr.bf16.mxu0 %v706
      %834 = vmatpush1.bf16.msra.mxu0 %v705
      %835 = vmatprep.subr.bf16.mxu0 %v708
      %836 = vmatpush1.bf16.msra.mxu0 %v707
      %837 = vmatprep.subr.bf16.mxu0 %v710
      %838 = vmatpush1.bf16.msra.mxu0 %v709
      %839 = vmatprep.subr.bf16.mxu0 %v712
      %840 = vmatpush1.bf16.msra.mxu0 %v711
      %841 = vmatprep.subr.bf16.mxu0 %v714
      %842 = vmatpush1.bf16.msra.mxu0 %v713
      %843 = vmatprep.subr.bf16.mxu0 %v716
      %844 = vmatpush1.bf16.msra.mxu0 %v715
      %845 = vmatprep.subr.bf16.mxu0 %v718
      %846 = vmatpush1.bf16.msra.mxu0 %v717
      %847 = vmatprep.subr.bf16.mxu0 %v720
      %848 = vmatpush1.bf16.msra.mxu0 %v719
      %849 = vmatprep.subr.bf16.mxu0 %v722
      %850 = vmatpush1.bf16.msra.mxu0 %v721
      %851 = vmatprep.subr.bf16.mxu0 %v724
      %852 = vmatpush1.bf16.msra.mxu0 %v723
      %853 = vmatprep.mubr.bf16.mxu0 %v472
      %854 = vmatmul.mubr.bf16.gmra.mrb[0].mxu0 %v460
      %v855 = vpop.f32.mrb[0].mxu0
      %v856 = vadd.f32 0.0, %v855
      %v857 = vpop.f32.mrb[0].mxu0
      %v858 = vadd.f32 0.0, %v857
      %v859 = vpop.f32.mrb[0].mxu0
      %v860 = vadd.f32 0.0, %v859
      %v861 = vpop.f32.mrb[0].mxu0
      %v862 = vadd.f32 0.0, %v861
      %863 = vdwg.mxu0
      %864 = vmatprep.subr.bf16.mxu0 %v726
      %865 = vmatpush1.bf16.msra.mxu0 %v725
      %866 = vmatprep.subr.bf16.mxu0 %v728
      %867 = vmatpush1.bf16.msra.mxu0 %v727
      %868 = vmatprep.subr.bf16.mxu0 %v730
      %869 = vmatpush1.bf16.msra.mxu0 %v729
      %870 = vmatprep.subr.bf16.mxu0 %v732
      %871 = vmatpush1.bf16.msra.mxu0 %v731
      %872 = vmatprep.subr.bf16.mxu0 %v734
      %873 = vmatpush1.bf16.msra.mxu0 %v733
      %874 = vmatprep.subr.bf16.mxu0 %v736
      %875 = vmatpush1.bf16.msra.mxu0 %v735
      %876 = vmatprep.subr.bf16.mxu0 %v738
      %877 = vmatpush1.bf16.msra.mxu0 %v737
      %878 = vmatprep.subr.bf16.mxu0 %v740
      %879 = vmatpush1.bf16.msra.mxu0 %v739
      %880 = vmatprep.subr.bf16.mxu0 %v742
      %881 = vmatpush1.bf16.msra.mxu0 %v741
      %882 = vmatprep.subr.bf16.mxu0 %v744
      %883 = vmatpush1.bf16.msra.mxu0 %v743
      %884 = vmatprep.subr.bf16.mxu0 %v746
      %885 = vmatpush1.bf16.msra.mxu0 %v745
      %886 = vmatprep.subr.bf16.mxu0 %v748
      %887 = vmatpush1.bf16.msra.mxu0 %v747
      %888 = vmatprep.subr.bf16.mxu0 %v750
      %889 = vmatpush1.bf16.msra.mxu0 %v749
      %890 = vmatprep.subr.bf16.mxu0 %v752
      %891 = vmatpush1.bf16.msra.mxu0 %v751
      %892 = vmatprep.subr.bf16.mxu0 %v754
      %893 = vmatpush1.bf16.msra.mxu0 %v753
      %894 = vmatprep.subr.bf16.mxu0 %v756
      %895 = vmatpush1.bf16.msra.mxu0 %v755
      %896 = vmatprep.mubr.bf16.mxu0 %v496
      %897 = vmatmul.mubr.bf16.gmra.mrb[0].mxu0 %v484
      %v898 = vpop.f32.mrb[0].mxu0
      %v899 = vadd.f32 %v856, %v898
      %v900 = vpop.f32.mrb[0].mxu0
      %v901 = vadd.f32 %v858, %v900
      %v902 = vpop.f32.mrb[0].mxu0
      %v903 = vadd.f32 %v860, %v902
      %v904 = vpop.f32.mrb[0].mxu0
      %v905 = vadd.f32 %v862, %v904
      %906 = vdwg.mxu0
      %v971 = vunpack.c.l.b16 %v319
      %v972 = vunpack.c.h.b16 %v319
      %v973 = vunpack.c.l.b16 %v320
      %v974 = vunpack.c.h.b16 %v320
      %v975 = vunpack.c.l.b16 %v321
      %v976 = vunpack.c.h.b16 %v321
      %v977 = vunpack.c.l.b16 %v322
      %v978 = vunpack.c.h.b16 %v322
      %v979 = vunpack.c.l.b16 %v323
      %v980 = vunpack.c.h.b16 %v323
      %v981 = vunpack.c.l.b16 %v324
      %v982 = vunpack.c.h.b16 %v324
      %v983 = vunpack.c.l.b16 %v325
      %v984 = vunpack.c.h.b16 %v325
      %v985 = vunpack.c.l.b16 %v326
      %v986 = vunpack.c.h.b16 %v326
      %v987 = vunpack.c.l.b16 %v327
      %v988 = vunpack.c.h.b16 %v327
      %v989 = vunpack.c.l.b16 %v328
      %v990 = vunpack.c.h.b16 %v328
      %v991 = vunpack.c.l.b16 %v329
      %v992 = vunpack.c.h.b16 %v329
      %v993 = vunpack.c.l.b16 %v330
      %v994 = vunpack.c.h.b16 %v330
      %v995 = vunpack.c.l.b16 %v331
      %v996 = vunpack.c.h.b16 %v331
      %v997 = vunpack.c.l.b16 %v332
      %v998 = vunpack.c.h.b16 %v332
      %v999 = vunpack.c.l.b16 %v333
      %v1000 = vunpack.c.h.b16 %v333
      %v1001 = vunpack.c.l.b16 %v334
      %v1002 = vunpack.c.h.b16 %v334
      %v1003 = vunpack.c.l.b16 %v335
      %v1004 = vunpack.c.h.b16 %v335
      %v1005 = vunpack.c.l.b16 %v336
      %v1006 = vunpack.c.h.b16 %v336
      %v1007 = vunpack.c.l.b16 %v337
      %v1008 = vunpack.c.h.b16 %v337
      %v1009 = vunpack.c.l.b16 %v338
      %v1010 = vunpack.c.h.b16 %v338
      %v1011 = vunpack.c.l.b16 %v339
      %v1012 = vunpack.c.h.b16 %v339
      %v1013 = vunpack.c.l.b16 %v340
      %v1014 = vunpack.c.h.b16 %v340
      %v1015 = vunpack.c.l.b16 %v341
      %v1016 = vunpack.c.h.b16 %v341
      %v1017 = vunpack.c.l.b16 %v342
      %v1018 = vunpack.c.h.b16 %v342
      %v1019 = vunpack.c.l.b16 %v343
      %v1020 = vunpack.c.h.b16 %v343
      %v1021 = vunpack.c.l.b16 %v344
      %v1022 = vunpack.c.h.b16 %v344
      %v1023 = vunpack.c.l.b16 %v345
      %v1024 = vunpack.c.h.b16 %v345
      %v1025 = vunpack.c.l.b16 %v346
      %v1026 = vunpack.c.h.b16 %v346
      %v1027 = vunpack.c.l.b16 %v347
      %v1028 = vunpack.c.h.b16 %v347
      %v1029 = vunpack.c.l.b16 %v348
      %v1030 = vunpack.c.h.b16 %v348
      %v1031 = vunpack.c.l.b16 %v349
      %v1032 = vunpack.c.h.b16 %v349
      %v1033 = vunpack.c.l.b16 %v350
      %v1034 = vunpack.c.h.b16 %v350
      %v1035 = vunpack.c.l.b16 %v351
      %v1036 = vunpack.c.h.b16 %v351
      %v1037 = vunpack.c.l.b16 %v352
      %v1038 = vunpack.c.h.b16 %v352
      %v1039 = vunpack.c.l.b16 %v353
      %v1040 = vunpack.c.h.b16 %v353
      %v1041 = vunpack.c.l.b16 %v354
      %v1042 = vunpack.c.h.b16 %v354
      %v1043 = vunpack.c.l.b16 %v355
      %v1044 = vunpack.c.h.b16 %v355
      %v1045 = vunpack.c.l.b16 %v356
      %v1046 = vunpack.c.h.b16 %v356
      %v1047 = vunpack.c.l.b16 %v357
      %v1048 = vunpack.c.h.b16 %v357
      %v1049 = vunpack.c.l.b16 %v358
      %v1050 = vunpack.c.h.b16 %v358
      %v1051 = vunpack.c.l.b16 %v359
      %v1052 = vunpack.c.h.b16 %v359
      %v1053 = vunpack.c.l.b16 %v360
      %v1054 = vunpack.c.h.b16 %v360
      %v1055 = vunpack.c.l.b16 %v361
      %v1056 = vunpack.c.h.b16 %v361
      %v1057 = vunpack.c.l.b16 %v362
      %v1058 = vunpack.c.h.b16 %v362
      %v1059 = vunpack.c.l.b16 %v363
      %v1060 = vunpack.c.h.b16 %v363
      %v1061 = vunpack.c.l.b16 %v364
      %v1062 = vunpack.c.h.b16 %v364
      %v1063 = vunpack.c.l.b16 %v365
      %v1064 = vunpack.c.h.b16 %v365
      %v1065 = vunpack.c.l.b16 %v366
      %v1066 = vunpack.c.h.b16 %v366
      %v1067 = vunpack.c.l.b16 %v367
      %v1068 = vunpack.c.h.b16 %v367
      %v1069 = vunpack.c.l.b16 %v368
      %v1070 = vunpack.c.h.b16 %v368
      %v1071 = vunpack.c.l.b16 %v369
      %v1072 = vunpack.c.h.b16 %v369
      %v1073 = vunpack.c.l.b16 %v370
      %v1074 = vunpack.c.h.b16 %v370
      %v1075 = vunpack.c.l.b16 %v371
      %v1076 = vunpack.c.h.b16 %v371
      %v1077 = vunpack.c.l.b16 %v372
      %v1078 = vunpack.c.h.b16 %v372
      %v1079 = vunpack.c.l.b16 %v373
      %v1080 = vunpack.c.h.b16 %v373
      %v1081 = vunpack.c.l.b16 %v374
      %v1082 = vunpack.c.h.b16 %v374
      %v1083 = vunpack.c.l.b16 %v375
      %v1084 = vunpack.c.h.b16 %v375
      %v1085 = vunpack.c.l.b16 %v376
      %v1086 = vunpack.c.h.b16 %v376
      %v1087 = vunpack.c.l.b16 %v377
      %v1088 = vunpack.c.h.b16 %v377
      %v1089 = vunpack.c.l.b16 %v378
      %v1090 = vunpack.c.h.b16 %v378
      %v1091 = vunpack.c.l.b16 %v379
      %v1092 = vunpack.c.h.b16 %v379
      %v1093 = vunpack.c.l.b16 %v380
      %v1094 = vunpack.c.h.b16 %v380
      %v1095 = vunpack.c.l.b16 %v381
      %v1096 = vunpack.c.h.b16 %v381
      %v1097 = vunpack.c.l.b16 %v382
      %v1098 = vunpack.c.h.b16 %v382
      %v1099 = vpack.c.b16 %v973, %v971
      %v1100 = vpack.c.b16 %v974, %v972
      %v1101 = vpack.c.b16 %v977, %v975
      %v1102 = vpack.c.b16 %v978, %v976
      %v1103 = vpack.c.b16 %v981, %v979
      %v1104 = vpack.c.b16 %v982, %v980
      %v1105 = vpack.c.b16 %v985, %v983
      %v1106 = vpack.c.b16 %v986, %v984
      %v1107 = vpack.c.b16 %v989, %v987
      %v1108 = vpack.c.b16 %v990, %v988
      %v1109 = vpack.c.b16 %v993, %v991
      %v1110 = vpack.c.b16 %v994, %v992
      %v1111 = vpack.c.b16 %v997, %v995
      %v1112 = vpack.c.b16 %v998, %v996
      %v1113 = vpack.c.b16 %v1001, %v999
      %v1114 = vpack.c.b16 %v1002, %v1000
      %v1115 = vpack.c.b16 %v1005, %v1003
      %v1116 = vpack.c.b16 %v1006, %v1004
      %v1117 = vpack.c.b16 %v1009, %v1007
      %v1118 = vpack.c.b16 %v1010, %v1008
      %v1119 = vpack.c.b16 %v1013, %v1011
      %v1120 = vpack.c.b16 %v1014, %v1012
      %v1121 = vpack.c.b16 %v1017, %v1015
      %v1122 = vpack.c.b16 %v1018, %v1016
      %v1123 = vpack.c.b16 %v1021, %v1019
      %v1124 = vpack.c.b16 %v1022, %v1020
      %v1125 = vpack.c.b16 %v1025, %v1023
      %v1126 = vpack.c.b16 %v1026, %v1024
      %v1127 = vpack.c.b16 %v1029, %v1027
      %v1128 = vpack.c.b16 %v1030, %v1028
      %v1129 = vpack.c.b16 %v1033, %v1031
      %v1130 = vpack.c.b16 %v1034, %v1032
      %v1131 = vpack.c.b16 %v1037, %v1035
      %v1132 = vpack.c.b16 %v1038, %v1036
      %v1133 = vpack.c.b16 %v1041, %v1039
      %v1134 = vpack.c.b16 %v1042, %v1040
      %v1135 = vpack.c.b16 %v1045, %v1043
      %v1136 = vpack.c.b16 %v1046, %v1044
      %v1137 = vpack.c.b16 %v1049, %v1047
      %v1138 = vpack.c.b16 %v1050, %v1048
      %v1139 = vpack.c.b16 %v1053, %v1051
      %v1140 = vpack.c.b16 %v1054, %v1052
      %v1141 = vpack.c.b16 %v1057, %v1055
      %v1142 = vpack.c.b16 %v1058, %v1056
      %v1143 = vpack.c.b16 %v1061, %v1059
      %v1144 = vpack.c.b16 %v1062, %v1060
      %v1145 = vpack.c.b16 %v1065, %v1063
      %v1146 = vpack.c.b16 %v1066, %v1064
      %v1147 = vpack.c.b16 %v1069, %v1067
      %v1148 = vpack.c.b16 %v1070, %v1068
      %v1149 = vpack.c.b16 %v1073, %v1071
      %v1150 = vpack.c.b16 %v1074, %v1072
      %v1151 = vpack.c.b16 %v1077, %v1075
      %v1152 = vpack.c.b16 %v1078, %v1076
      %v1153 = vpack.c.b16 %v1081, %v1079
      %v1154 = vpack.c.b16 %v1082, %v1080
      %v1155 = vpack.c.b16 %v1085, %v1083
      %v1156 = vpack.c.b16 %v1086, %v1084
      %v1157 = vpack.c.b16 %v1089, %v1087
      %v1158 = vpack.c.b16 %v1090, %v1088
      %v1159 = vpack.c.b16 %v1093, %v1091
      %v1160 = vpack.c.b16 %v1094, %v1092
      %v1161 = vpack.c.b16 %v1097, %v1095
      %v1162 = vpack.c.b16 %v1098, %v1096
      %1227 = vmatprep.subr.bf16.mxu0 %v1100
      %1228 = vmatpush1.bf16.msra.mxu0 %v1099
      %1229 = vmatprep.subr.bf16.mxu0 %v1102
      %1230 = vmatpush1.bf16.msra.mxu0 %v1101
      %1231 = vmatprep.subr.bf16.mxu0 %v1104
      %1232 = vmatpush1.bf16.msra.mxu0 %v1103
      %1233 = vmatprep.subr.bf16.mxu0 %v1106
      %1234 = vmatpush1.bf16.msra.mxu0 %v1105
      %1235 = vmatprep.subr.bf16.mxu0 %v1108
      %1236 = vmatpush1.bf16.msra.mxu0 %v1107
      %1237 = vmatprep.subr.bf16.mxu0 %v1110
      %1238 = vmatpush1.bf16.msra.mxu0 %v1109
      %1239 = vmatprep.subr.bf16.mxu0 %v1112
      %1240 = vmatpush1.bf16.msra.mxu0 %v1111
      %1241 = vmatprep.subr.bf16.mxu0 %v1114
      %1242 = vmatpush1.bf16.msra.mxu0 %v1113
      %1243 = vmatprep.subr.bf16.mxu0 %v1116
      %1244 = vmatpush1.bf16.msra.mxu0 %v1115
      %1245 = vmatprep.subr.bf16.mxu0 %v1118
      %1246 = vmatpush1.bf16.msra.mxu0 %v1117
      %1247 = vmatprep.subr.bf16.mxu0 %v1120
      %1248 = vmatpush1.bf16.msra.mxu0 %v1119
      %1249 = vmatprep.subr.bf16.mxu0 %v1122
      %1250 = vmatpush1.bf16.msra.mxu0 %v1121
      %1251 = vmatprep.subr.bf16.mxu0 %v1124
      %1252 = vmatpush1.bf16.msra.mxu0 %v1123
      %1253 = vmatprep.subr.bf16.mxu0 %v1126
      %1254 = vmatpush1.bf16.msra.mxu0 %v1125
      %1255 = vmatprep.subr.bf16.mxu0 %v1128
      %1256 = vmatpush1.bf16.msra.mxu0 %v1127
      %1257 = vmatprep.subr.bf16.mxu0 %v1130
      %1258 = vmatpush1.bf16.msra.mxu0 %v1129
      %1259 = vmatprep.mubr.bf16.mxu0 %v296
      %1260 = vmatmul.mubr.bf16.gmra.mrb[0].mxu0 %v295
      %v1261 = vpop.f32.mrb[0].mxu0
      %v1262 = vadd.f32 %v899, %v1261
      %v1263 = vpop.f32.mrb[0].mxu0
      %v1264 = vadd.f32 %v901, %v1263
      %v1265 = vpop.f32.mrb[0].mxu0
      %v1266 = vadd.f32 %v903, %v1265
      %v1267 = vpop.f32.mrb[0].mxu0
      %v1268 = vadd.f32 %v905, %v1267
      %1269 = vdwg.mxu0
      %1270 = vmatprep.subr.bf16.mxu0 %v1132
      %1271 = vmatpush1.bf16.msra.mxu0 %v1131
      %1272 = vmatprep.subr.bf16.mxu0 %v1134
      %1273 = vmatpush1.bf16.msra.mxu0 %v1133
      %1274 = vmatprep.subr.bf16.mxu0 %v1136
      %1275 = vmatpush1.bf16.msra.mxu0 %v1135
      %1276 = vmatprep.subr.bf16.mxu0 %v1138
      %1277 = vmatpush1.bf16.msra.mxu0 %v1137
      %1278 = vmatprep.subr.bf16.mxu0 %v1140
      %1279 = vmatpush1.bf16.msra.mxu0 %v1139
      %1280 = vmatprep.subr.bf16.mxu0 %v1142
      %1281 = vmatpush1.bf16.msra.mxu0 %v1141
      %1282 = vmatprep.subr.bf16.mxu0 %v1144
      %1283 = vmatpush1.bf16.msra.mxu0 %v1143
      %1284 = vmatprep.subr.bf16.mxu0 %v1146
      %1285 = vmatpush1.bf16.msra.mxu0 %v1145
      %1286 = vmatprep.subr.bf16.mxu0 %v1148
      %1287 = vmatpush1.bf16.msra.mxu0 %v1147
      %1288 = vmatprep.subr.bf16.mxu0 %v1150
      %1289 = vmatpush1.bf16.msra.mxu0 %v1149
      %1290 = vmatprep.subr.bf16.mxu0 %v1152
      %1291 = vmatpush1.bf16.msra.mxu0 %v1151
      %1292 = vmatprep.subr.bf16.mxu0 %v1154
      %1293 = vmatpush1.bf16.msra.mxu0 %v1153
      %1294 = vmatprep.subr.bf16.mxu0 %v1156
      %1295 = vmatpush1.bf16.msra.mxu0 %v1155
      %1296 = vmatprep.subr.bf16.mxu0 %v1158
      %1297 = vmatpush1.bf16.msra.mxu0 %v1157
      %1298 = vmatprep.subr.bf16.mxu0 %v1160
      %1299 = vmatpush1.bf16.msra.mxu0 %v1159
      %1300 = vmatprep.subr.bf16.mxu0 %v1162
      %1301 = vmatpush1.bf16.msra.mxu0 %v1161
      %1302 = vmatprep.mubr.bf16.mxu0 %v298
      %1303 = vmatmul.mubr.bf16.gmra.mrb[0].mxu0 %v297
      %v1304 = vpop.f32.mrb[0].mxu0
      %v1305 = vadd.f32 %v1262, %v1304
      %v1306 = vpop.f32.mrb[0].mxu0
      %v1307 = vadd.f32 %v1264, %v1306
      %v1308 = vpop.f32.mrb[0].mxu0
      %v1309 = vadd.f32 %v1266, %v1308
      %v1310 = vpop.f32.mrb[0].mxu0
      %v1311 = vadd.f32 %v1268, %v1310
      %1312 = vdwg.mxu0
      %s1313 = scalar_lea.vmem %s2, 1024
      %v1314 = vld [vmem:[%s1313] sm:$0xff]
      %v1315 = vld [vmem:[%s1313 + $0x8] sm:$0xff]
      %v1316 = vld [vmem:[%s1313 + $0x10] sm:$0xff]
      %v1317 = vld [vmem:[%s1313 + $0x18] sm:$0xff]
      %v1318 = vld [vmem:[%s1313 + $0x20] sm:$0xff]
      %v1319 = vld [vmem:[%s1313 + $0x28] sm:$0xff]
      %v1320 = vld [vmem:[%s1313 + $0x30] sm:$0xff]
      %v1321 = vld [vmem:[%s1313 + $0x38] sm:$0xff]
      %v1322 = vld [vmem:[%s1313 + $0x40] sm:$0xff]
      %v1323 = vld [vmem:[%s1313 + $0x48] sm:$0xff]
      %v1324 = vld [vmem:[%s1313 + $0x50] sm:$0xff]
      %v1325 = vld [vmem:[%s1313 + $0x58] sm:$0xff]
      %v1326 = vld [vmem:[%s1313 + $0x60] sm:$0xff]
      %v1327 = vld [vmem:[%s1313 + $0x68] sm:$0xff]
      %v1328 = vld [vmem:[%s1313 + $0x70] sm:$0xff]
      %v1329 = vld [vmem:[%s1313 + $0x78] sm:$0xff]
      %v1330 = vld [vmem:[%s1313 + $0x80] sm:$0xff]
      %v1331 = vld [vmem:[%s1313 + $0x88] sm:$0xff]
      %v1332 = vld [vmem:[%s1313 + $0x90] sm:$0xff]
      %v1333 = vld [vmem:[%s1313 + $0x98] sm:$0xff]
      %v1334 = vld [vmem:[%s1313 + $0xa0] sm:$0xff]
      %v1335 = vld [vmem:[%s1313 + $0xa8] sm:$0xff]
      %v1336 = vld [vmem:[%s1313 + $0xb0] sm:$0xff]
      %v1337 = vld [vmem:[%s1313 + $0xb8] sm:$0xff]
      %v1338 = vld [vmem:[%s1313 + $0xc0] sm:$0xff]
      %v1339 = vld [vmem:[%s1313 + $0xc8] sm:$0xff]
      %v1340 = vld [vmem:[%s1313 + $0xd0] sm:$0xff]
      %v1341 = vld [vmem:[%s1313 + $0xd8] sm:$0xff]
      %v1342 = vld [vmem:[%s1313 + $0xe0] sm:$0xff]
      %v1343 = vld [vmem:[%s1313 + $0xe8] sm:$0xff]
      %v1344 = vld [vmem:[%s1313 + $0xf0] sm:$0xff]
      %v1345 = vld [vmem:[%s1313 + $0xf8] sm:$0xff]
      %v1346 = vld [vmem:[%s1313 + $0x100] sm:$0xff]
      %v1347 = vld [vmem:[%s1313 + $0x108] sm:$0xff]
      %v1348 = vld [vmem:[%s1313 + $0x110] sm:$0xff]
      %v1349 = vld [vmem:[%s1313 + $0x118] sm:$0xff]
      %v1350 = vld [vmem:[%s1313 + $0x120] sm:$0xff]
      %v1351 = vld [vmem:[%s1313 + $0x128] sm:$0xff]
      %v1352 = vld [vmem:[%s1313 + $0x130] sm:$0xff]
      %v1353 = vld [vmem:[%s1313 + $0x138] sm:$0xff]
      %v1354 = vld [vmem:[%s1313 + $0x140] sm:$0xff]
      %v1355 = vld [vmem:[%s1313 + $0x148] sm:$0xff]
      %v1356 = vld [vmem:[%s1313 + $0x150] sm:$0xff]
      %v1357 = vld [vmem:[%s1313 + $0x158] sm:$0xff]
      %v1358 = vld [vmem:[%s1313 + $0x160] sm:$0xff]
      %v1359 = vld [vmem:[%s1313 + $0x168] sm:$0xff]
      %v1360 = vld [vmem:[%s1313 + $0x170] sm:$0xff]
      %v1361 = vld [vmem:[%s1313 + $0x178] sm:$0xff]
      %v1362 = vld [vmem:[%s1313 + $0x180] sm:$0xff]
      %v1363 = vld [vmem:[%s1313 + $0x188] sm:$0xff]
      %v1364 = vld [vmem:[%s1313 + $0x190] sm:$0xff]
      %v1365 = vld [vmem:[%s1313 + $0x198] sm:$0xff]
      %v1366 = vld [vmem:[%s1313 + $0x1a0] sm:$0xff]
      %v1367 = vld [vmem:[%s1313 + $0x1a8] sm:$0xff]
      %v1368 = vld [vmem:[%s1313 + $0x1b0] sm:$0xff]
      %v1369 = vld [vmem:[%s1313 + $0x1b8] sm:$0xff]
      %v1370 = vld [vmem:[%s1313 + $0x1c0] sm:$0xff]
      %v1371 = vld [vmem:[%s1313 + $0x1c8] sm:$0xff]
      %v1372 = vld [vmem:[%s1313 + $0x1d0] sm:$0xff]
      %v1373 = vld [vmem:[%s1313 + $0x1d8] sm:$0xff]
      %v1374 = vld [vmem:[%s1313 + $0x1e0] sm:$0xff]
      %v1375 = vld [vmem:[%s1313 + $0x1e8] sm:$0xff]
      %v1376 = vld [vmem:[%s1313 + $0x1f0] sm:$0xff]
      %v1377 = vld [vmem:[%s1313 + $0x1f8] sm:$0xff]
      %vm1378 = vsmask.f32 6400
      %v1379 = vrot.slane %v450, 1
      %v1380 = vrot.slane %v452, 2
      %v1381 = vor.u32 %v1379, %v1380
      %v1382 = vshrl.u32 %v315, 16
      %v1384 = vrot.slane %v1382, 1
      %v1385 = vrot.slane %v457, 2
      %v1386 = vor.u32 %v1384, %v1385
      %v1387 = vsel %vm1378, %v1381, %v1386
      %v1388 = vrot.slane %v462, 1
      %v1389 = vrot.slane %v464, 2
      %v1390 = vor.u32 %v1388, %v1389
      %v1391 = vshrl.u32 %v316, 16
      %v1393 = vrot.slane %v1391, 1
      %v1394 = vrot.slane %v469, 2
      %v1395 = vor.u32 %v1393, %v1394
      %v1396 = vsel %vm1378, %v1390, %v1395
      %v1397 = vrot.slane %v474, 1
      %v1398 = vrot.slane %v476, 2
      %v1399 = vor.u32 %v1397, %v1398
      %v1400 = vshrl.u32 %v317, 16
      %v1402 = vrot.slane %v1400, 1
      %v1403 = vrot.slane %v481, 2
      %v1404 = vor.u32 %v1402, %v1403
      %v1405 = vsel %vm1378, %v1399, %v1404
      %v1406 = vrot.slane %v486, 1
      %v1407 = vrot.slane %v488, 2
      %v1408 = vor.u32 %v1406, %v1407
      %v1409 = vshrl.u32 %v318, 16
      %v1411 = vrot.slane %v1409, 1
      %v1412 = vrot.slane %v493, 2
      %v1413 = vor.u32 %v1411, %v1412
      %v1414 = vsel %vm1378, %v1408, %v1413
      %v1483 = vunpack.c.l.b16 %v1314
      %v1484 = vunpack.c.h.b16 %v1314
      %v1485 = vunpack.c.l.b16 %v1315
      %v1486 = vunpack.c.h.b16 %v1315
      %v1487 = vunpack.c.l.b16 %v1316
      %v1488 = vunpack.c.h.b16 %v1316
      %v1489 = vunpack.c.l.b16 %v1317
      %v1490 = vunpack.c.h.b16 %v1317
      %v1491 = vunpack.c.l.b16 %v1318
      %v1492 = vunpack.c.h.b16 %v1318
      %v1493 = vunpack.c.l.b16 %v1319
      %v1494 = vunpack.c.h.b16 %v1319
      %v1495 = vunpack.c.l.b16 %v1320
      %v1496 = vunpack.c.h.b16 %v1320
      %v1497 = vunpack.c.l.b16 %v1321
      %v1498 = vunpack.c.h.b16 %v1321
      %v1499 = vunpack.c.l.b16 %v1322
      %v1500 = vunpack.c.h.b16 %v1322
      %v1501 = vunpack.c.l.b16 %v1323
      %v1502 = vunpack.c.h.b16 %v1323
      %v1503 = vunpack.c.l.b16 %v1324
      %v1504 = vunpack.c.h.b16 %v1324
      %v1505 = vunpack.c.l.b16 %v1325
      %v1506 = vunpack.c.h.b16 %v1325
      %v1507 = vunpack.c.l.b16 %v1326
      %v1508 = vunpack.c.h.b16 %v1326
      %v1509 = vunpack.c.l.b16 %v1327
      %v1510 = vunpack.c.h.b16 %v1327
      %v1511 = vunpack.c.l.b16 %v1328
      %v1512 = vunpack.c.h.b16 %v1328
      %v1513 = vunpack.c.l.b16 %v1329
      %v1514 = vunpack.c.h.b16 %v1329
      %v1515 = vunpack.c.l.b16 %v1330
      %v1516 = vunpack.c.h.b16 %v1330
      %v1517 = vunpack.c.l.b16 %v1331
      %v1518 = vunpack.c.h.b16 %v1331
      %v1519 = vunpack.c.l.b16 %v1332
      %v1520 = vunpack.c.h.b16 %v1332
      %v1521 = vunpack.c.l.b16 %v1333
      %v1522 = vunpack.c.h.b16 %v1333
      %v1523 = vunpack.c.l.b16 %v1334
      %v1524 = vunpack.c.h.b16 %v1334
      %v1525 = vunpack.c.l.b16 %v1335
      %v1526 = vunpack.c.h.b16 %v1335
      %v1527 = vunpack.c.l.b16 %v1336
      %v1528 = vunpack.c.h.b16 %v1336
      %v1529 = vunpack.c.l.b16 %v1337
      %v1530 = vunpack.c.h.b16 %v1337
      %v1531 = vunpack.c.l.b16 %v1338
      %v1532 = vunpack.c.h.b16 %v1338
      %v1533 = vunpack.c.l.b16 %v1339
      %v1534 = vunpack.c.h.b16 %v1339
      %v1535 = vunpack.c.l.b16 %v1340
      %v1536 = vunpack.c.h.b16 %v1340
      %v1537 = vunpack.c.l.b16 %v1341
      %v1538 = vunpack.c.h.b16 %v1341
      %v1539 = vunpack.c.l.b16 %v1342
      %v1540 = vunpack.c.h.b16 %v1342
      %v1541 = vunpack.c.l.b16 %v1343
      %v1542 = vunpack.c.h.b16 %v1343
      %v1543 = vunpack.c.l.b16 %v1344
      %v1544 = vunpack.c.h.b16 %v1344
      %v1545 = vunpack.c.l.b16 %v1345
      %v1546 = vunpack.c.h.b16 %v1345
      %v1547 = vunpack.c.l.b16 %v1346
      %v1548 = vunpack.c.h.b16 %v1346
      %v1549 = vunpack.c.l.b16 %v1347
      %v1550 = vunpack.c.h.b16 %v1347
      %v1551 = vunpack.c.l.b16 %v1348
      %v1552 = vunpack.c.h.b16 %v1348
      %v1553 = vunpack.c.l.b16 %v1349
      %v1554 = vunpack.c.h.b16 %v1349
      %v1555 = vunpack.c.l.b16 %v1350
      %v1556 = vunpack.c.h.b16 %v1350
      %v1557 = vunpack.c.l.b16 %v1351
      %v1558 = vunpack.c.h.b16 %v1351
      %v1559 = vunpack.c.l.b16 %v1352
      %v1560 = vunpack.c.h.b16 %v1352
      %v1561 = vunpack.c.l.b16 %v1353
      %v1562 = vunpack.c.h.b16 %v1353
      %v1563 = vunpack.c.l.b16 %v1354
      %v1564 = vunpack.c.h.b16 %v1354
      %v1565 = vunpack.c.l.b16 %v1355
      %v1566 = vunpack.c.h.b16 %v1355
      %v1567 = vunpack.c.l.b16 %v1356
      %v1568 = vunpack.c.h.b16 %v1356
      %v1569 = vunpack.c.l.b16 %v1357
      %v1570 = vunpack.c.h.b16 %v1357
      %v1571 = vunpack.c.l.b16 %v1358
      %v1572 = vunpack.c.h.b16 %v1358
      %v1573 = vunpack.c.l.b16 %v1359
      %v1574 = vunpack.c.h.b16 %v1359
      %v1575 = vunpack.c.l.b16 %v1360
      %v1576 = vunpack.c.h.b16 %v1360
      %v1577 = vunpack.c.l.b16 %v1361
      %v1578 = vunpack.c.h.b16 %v1361
      %v1579 = vunpack.c.l.b16 %v1362
      %v1580 = vunpack.c.h.b16 %v1362
      %v1581 = vunpack.c.l.b16 %v1363
      %v1582 = vunpack.c.h.b16 %v1363
      %v1583 = vunpack.c.l.b16 %v1364
      %v1584 = vunpack.c.h.b16 %v1364
      %v1585 = vunpack.c.l.b16 %v1365
      %v1586 = vunpack.c.h.b16 %v1365
      %v1587 = vunpack.c.l.b16 %v1366
      %v1588 = vunpack.c.h.b16 %v1366
      %v1589 = vunpack.c.l.b16 %v1367
      %v1590 = vunpack.c.h.b16 %v1367
      %v1591 = vunpack.c.l.b16 %v1368
      %v1592 = vunpack.c.h.b16 %v1368
      %v1593 = vunpack.c.l.b16 %v1369
      %v1594 = vunpack.c.h.b16 %v1369
      %v1595 = vunpack.c.l.b16 %v1370
      %v1596 = vunpack.c.h.b16 %v1370
      %v1597 = vunpack.c.l.b16 %v1371
      %v1598 = vunpack.c.h.b16 %v1371
      %v1599 = vunpack.c.l.b16 %v1372
      %v1600 = vunpack.c.h.b16 %v1372
      %v1601 = vunpack.c.l.b16 %v1373
      %v1602 = vunpack.c.h.b16 %v1373
      %v1603 = vunpack.c.l.b16 %v1374
      %v1604 = vunpack.c.h.b16 %v1374
      %v1605 = vunpack.c.l.b16 %v1375
      %v1606 = vunpack.c.h.b16 %v1375
      %v1607 = vunpack.c.l.b16 %v1376
      %v1608 = vunpack.c.h.b16 %v1376
      %v1609 = vunpack.c.l.b16 %v1377
      %v1610 = vunpack.c.h.b16 %v1377
      %v1611 = vpack.c.b16 %v1485, %v1483
      %v1612 = vpack.c.b16 %v1486, %v1484
      %v1613 = vpack.c.b16 %v1489, %v1487
      %v1614 = vpack.c.b16 %v1490, %v1488
      %v1615 = vpack.c.b16 %v1493, %v1491
      %v1616 = vpack.c.b16 %v1494, %v1492
      %v1617 = vpack.c.b16 %v1497, %v1495
      %v1618 = vpack.c.b16 %v1498, %v1496
      %v1619 = vpack.c.b16 %v1501, %v1499
      %v1620 = vpack.c.b16 %v1502, %v1500
      %v1621 = vpack.c.b16 %v1505, %v1503
      %v1622 = vpack.c.b16 %v1506, %v1504
      %v1623 = vpack.c.b16 %v1509, %v1507
      %v1624 = vpack.c.b16 %v1510, %v1508
      %v1625 = vpack.c.b16 %v1513, %v1511
      %v1626 = vpack.c.b16 %v1514, %v1512
      %v1627 = vpack.c.b16 %v1517, %v1515
      %v1628 = vpack.c.b16 %v1518, %v1516
      %v1629 = vpack.c.b16 %v1521, %v1519
      %v1630 = vpack.c.b16 %v1522, %v1520
      %v1631 = vpack.c.b16 %v1525, %v1523
      %v1632 = vpack.c.b16 %v1526, %v1524
      %v1633 = vpack.c.b16 %v1529, %v1527
      %v1634 = vpack.c.b16 %v1530, %v1528
      %v1635 = vpack.c.b16 %v1533, %v1531
      %v1636 = vpack.c.b16 %v1534, %v1532
      %v1637 = vpack.c.b16 %v1537, %v1535
      %v1638 = vpack.c.b16 %v1538, %v1536
      %v1639 = vpack.c.b16 %v1541, %v1539
      %v1640 = vpack.c.b16 %v1542, %v1540
      %v1641 = vpack.c.b16 %v1545, %v1543
      %v1642 = vpack.c.b16 %v1546, %v1544
      %v1643 = vpack.c.b16 %v1549, %v1547
      %v1644 = vpack.c.b16 %v1550, %v1548
      %v1645 = vpack.c.b16 %v1553, %v1551
      %v1646 = vpack.c.b16 %v1554, %v1552
      %v1647 = vpack.c.b16 %v1557, %v1555
      %v1648 = vpack.c.b16 %v1558, %v1556
      %v1649 = vpack.c.b16 %v1561, %v1559
      %v1650 = vpack.c.b16 %v1562, %v1560
      %v1651 = vpack.c.b16 %v1565, %v1563
      %v1652 = vpack.c.b16 %v1566, %v1564
      %v1653 = vpack.c.b16 %v1569, %v1567
      %v1654 = vpack.c.b16 %v1570, %v1568
      %v1655 = vpack.c.b16 %v1573, %v1571
      %v1656 = vpack.c.b16 %v1574, %v1572
      %v1657 = vpack.c.b16 %v1577, %v1575
      %v1658 = vpack.c.b16 %v1578, %v1576
      %v1659 = vpack.c.b16 %v1581, %v1579
      %v1660 = vpack.c.b16 %v1582, %v1580
      %v1661 = vpack.c.b16 %v1585, %v1583
      %v1662 = vpack.c.b16 %v1586, %v1584
      %v1663 = vpack.c.b16 %v1589, %v1587
      %v1664 = vpack.c.b16 %v1590, %v1588
      %v1665 = vpack.c.b16 %v1593, %v1591
      %v1666 = vpack.c.b16 %v1594, %v1592
      %v1667 = vpack.c.b16 %v1597, %v1595
      %v1668 = vpack.c.b16 %v1598, %v1596
      %v1669 = vpack.c.b16 %v1601, %v1599
      %v1670 = vpack.c.b16 %v1602, %v1600
      %v1671 = vpack.c.b16 %v1605, %v1603
      %v1672 = vpack.c.b16 %v1606, %v1604
      %v1673 = vpack.c.b16 %v1609, %v1607
      %v1674 = vpack.c.b16 %v1610, %v1608
      %1739 = vmatprep.subr.bf16.mxu0 %v1612
      %1740 = vmatpush1.bf16.msra.mxu0 %v1611
      %1741 = vmatprep.subr.bf16.mxu0 %v1614
      %1742 = vmatpush1.bf16.msra.mxu0 %v1613
      %1743 = vmatprep.subr.bf16.mxu0 %v1616
      %1744 = vmatpush1.bf16.msra.mxu0 %v1615
      %1745 = vmatprep.subr.bf16.mxu0 %v1618
      %1746 = vmatpush1.bf16.msra.mxu0 %v1617
      %1747 = vmatprep.subr.bf16.mxu0 %v1620
      %1748 = vmatpush1.bf16.msra.mxu0 %v1619
      %1749 = vmatprep.subr.bf16.mxu0 %v1622
      %1750 = vmatpush1.bf16.msra.mxu0 %v1621
      %1751 = vmatprep.subr.bf16.mxu0 %v1624
      %1752 = vmatpush1.bf16.msra.mxu0 %v1623
      %1753 = vmatprep.subr.bf16.mxu0 %v1626
      %1754 = vmatpush1.bf16.msra.mxu0 %v1625
      %1755 = vmatprep.subr.bf16.mxu0 %v1628
      %1756 = vmatpush1.bf16.msra.mxu0 %v1627
      %1757 = vmatprep.subr.bf16.mxu0 %v1630
      %1758 = vmatpush1.bf16.msra.mxu0 %v1629
      %1759 = vmatprep.subr.bf16.mxu0 %v1632
      %1760 = vmatpush1.bf16.msra.mxu0 %v1631
      %1761 = vmatprep.subr.bf16.mxu0 %v1634
      %1762 = vmatpush1.bf16.msra.mxu0 %v1633
      %1763 = vmatprep.subr.bf16.mxu0 %v1636
      %1764 = vmatpush1.bf16.msra.mxu0 %v1635
      %1765 = vmatprep.subr.bf16.mxu0 %v1638
      %1766 = vmatpush1.bf16.msra.mxu0 %v1637
      %1767 = vmatprep.subr.bf16.mxu0 %v1640
      %1768 = vmatpush1.bf16.msra.mxu0 %v1639
      %1769 = vmatprep.subr.bf16.mxu0 %v1642
      %1770 = vmatpush1.bf16.msra.mxu0 %v1641
      %1771 = vmatprep.mubr.bf16.mxu0 %v1396
      %1772 = vmatmul.mubr.bf16.gmra.mrb[0].mxu0 %v1387
      %v1773 = vpop.f32.mrb[0].mxu0
      %v1774 = vadd.f32 0.0, %v1773
      %v1775 = vpop.f32.mrb[0].mxu0
      %v1776 = vadd.f32 0.0, %v1775
      %v1777 = vpop.f32.mrb[0].mxu0
      %v1778 = vadd.f32 0.0, %v1777
      %v1779 = vpop.f32.mrb[0].mxu0
      %v1780 = vadd.f32 0.0, %v1779
      %1781 = vdwg.mxu0
      %1782 = vmatprep.subr.bf16.mxu0 %v1644
      %1783 = vmatpush1.bf16.msra.mxu0 %v1643
      %1784 = vmatprep.subr.bf16.mxu0 %v1646
      %1785 = vmatpush1.bf16.msra.mxu0 %v1645
      %1786 = vmatprep.subr.bf16.mxu0 %v1648
      %1787 = vmatpush1.bf16.msra.mxu0 %v1647
      %1788 = vmatprep.subr.bf16.mxu0 %v1650
      %1789 = vmatpush1.bf16.msra.mxu0 %v1649
      %1790 = vmatprep.subr.bf16.mxu0 %v1652
      %1791 = vmatpush1.bf16.msra.mxu0 %v1651
      %1792 = vmatprep.subr.bf16.mxu0 %v1654
      %1793 = vmatpush1.bf16.msra.mxu0 %v1653
      %1794 = vmatprep.subr.bf16.mxu0 %v1656
      %1795 = vmatpush1.bf16.msra.mxu0 %v1655
      %1796 = vmatprep.subr.bf16.mxu0 %v1658
      %1797 = vmatpush1.bf16.msra.mxu0 %v1657
      %1798 = vmatprep.subr.bf16.mxu0 %v1660
      %1799 = vmatpush1.bf16.msra.mxu0 %v1659
      %1800 = vmatprep.subr.bf16.mxu0 %v1662
      %1801 = vmatpush1.bf16.msra.mxu0 %v1661
      %1802 = vmatprep.subr.bf16.mxu0 %v1664
      %1803 = vmatpush1.bf16.msra.mxu0 %v1663
      %1804 = vmatprep.subr.bf16.mxu0 %v1666
      %1805 = vmatpush1.bf16.msra.mxu0 %v1665
      %1806 = vmatprep.subr.bf16.mxu0 %v1668
      %1807 = vmatpush1.bf16.msra.mxu0 %v1667
      %1808 = vmatprep.subr.bf16.mxu0 %v1670
      %1809 = vmatpush1.bf16.msra.mxu0 %v1669
      %1810 = vmatprep.subr.bf16.mxu0 %v1672
      %1811 = vmatpush1.bf16.msra.mxu0 %v1671
      %1812 = vmatprep.subr.bf16.mxu0 %v1674
      %1813 = vmatpush1.bf16.msra.mxu0 %v1673
      %1814 = vmatprep.mubr.bf16.mxu0 %v1414
      %1815 = vmatmul.mubr.bf16.gmra.mrb[0].mxu0 %v1405
      %v1816 = vpop.f32.mrb[0].mxu0
      %v1817 = vadd.f32 %v1774, %v1816
      %v1818 = vpop.f32.mrb[0].mxu0
      %v1819 = vadd.f32 %v1776, %v1818
      %v1820 = vpop.f32.mrb[0].mxu0
      %v1821 = vadd.f32 %v1778, %v1820
      %v1822 = vpop.f32.mrb[0].mxu0
      %v1823 = vadd.f32 %v1780, %v1822
      %1824 = vdwg.mxu0
      %v1825 = vadd.f32 %v1305, %v1817
      %v1826 = vadd.f32 %v1307, %v1819
      %v1827 = vadd.f32 %v1309, %v1821
      %v1828 = vadd.f32 %v1311, %v1823
      %s1829 = scalar_lea.vmem %s2, 1536
      %v1830 = vld [vmem:[%s1829] sm:$0xff]
      %v1831 = vld [vmem:[%s1829 + $0x8] sm:$0xff]
      %v1832 = vld [vmem:[%s1829 + $0x10] sm:$0xff]
      %v1833 = vld [vmem:[%s1829 + $0x18] sm:$0xff]
      %v1834 = vld [vmem:[%s1829 + $0x20] sm:$0xff]
      %v1835 = vld [vmem:[%s1829 + $0x28] sm:$0xff]
      %v1836 = vld [vmem:[%s1829 + $0x30] sm:$0xff]
      %v1837 = vld [vmem:[%s1829 + $0x38] sm:$0xff]
      %v1838 = vld [vmem:[%s1829 + $0x40] sm:$0xff]
      %v1839 = vld [vmem:[%s1829 + $0x48] sm:$0xff]
      %v1840 = vld [vmem:[%s1829 + $0x50] sm:$0xff]
      %v1841 = vld [vmem:[%s1829 + $0x58] sm:$0xff]
      %v1842 = vld [vmem:[%s1829 + $0x60] sm:$0xff]
      %v1843 = vld [vmem:[%s1829 + $0x68] sm:$0xff]
      %v1844 = vld [vmem:[%s1829 + $0x70] sm:$0xff]
      %v1845 = vld [vmem:[%s1829 + $0x78] sm:$0xff]
      %v1846 = vld [vmem:[%s1829 + $0x80] sm:$0xff]
      %v1847 = vld [vmem:[%s1829 + $0x88] sm:$0xff]
      %v1848 = vld [vmem:[%s1829 + $0x90] sm:$0xff]
      %v1849 = vld [vmem:[%s1829 + $0x98] sm:$0xff]
      %v1850 = vld [vmem:[%s1829 + $0xa0] sm:$0xff]
      %v1851 = vld [vmem:[%s1829 + $0xa8] sm:$0xff]
      %v1852 = vld [vmem:[%s1829 + $0xb0] sm:$0xff]
      %v1853 = vld [vmem:[%s1829 + $0xb8] sm:$0xff]
      %v1854 = vld [vmem:[%s1829 + $0xc0] sm:$0xff]
      %v1855 = vld [vmem:[%s1829 + $0xc8] sm:$0xff]
      %v1856 = vld [vmem:[%s1829 + $0xd0] sm:$0xff]
      %v1857 = vld [vmem:[%s1829 + $0xd8] sm:$0xff]
      %v1858 = vld [vmem:[%s1829 + $0xe0] sm:$0xff]
      %v1859 = vld [vmem:[%s1829 + $0xe8] sm:$0xff]
      %v1860 = vld [vmem:[%s1829 + $0xf0] sm:$0xff]
      %v1861 = vld [vmem:[%s1829 + $0xf8] sm:$0xff]
      %v1862 = vld [vmem:[%s1829 + $0x100] sm:$0xff]
      %v1863 = vld [vmem:[%s1829 + $0x108] sm:$0xff]
      %v1864 = vld [vmem:[%s1829 + $0x110] sm:$0xff]
      %v1865 = vld [vmem:[%s1829 + $0x118] sm:$0xff]
      %v1866 = vld [vmem:[%s1829 + $0x120] sm:$0xff]
      %v1867 = vld [vmem:[%s1829 + $0x128] sm:$0xff]
      %v1868 = vld [vmem:[%s1829 + $0x130] sm:$0xff]
      %v1869 = vld [vmem:[%s1829 + $0x138] sm:$0xff]
      %v1870 = vld [vmem:[%s1829 + $0x140] sm:$0xff]
      %v1871 = vld [vmem:[%s1829 + $0x148] sm:$0xff]
      %v1872 = vld [vmem:[%s1829 + $0x150] sm:$0xff]
      %v1873 = vld [vmem:[%s1829 + $0x158] sm:$0xff]
      %v1874 = vld [vmem:[%s1829 + $0x160] sm:$0xff]
      %v1875 = vld [vmem:[%s1829 + $0x168] sm:$0xff]
      %v1876 = vld [vmem:[%s1829 + $0x170] sm:$0xff]
      %v1877 = vld [vmem:[%s1829 + $0x178] sm:$0xff]
      %v1878 = vld [vmem:[%s1829 + $0x180] sm:$0xff]
      %v1879 = vld [vmem:[%s1829 + $0x188] sm:$0xff]
      %v1880 = vld [vmem:[%s1829 + $0x190] sm:$0xff]
      %v1881 = vld [vmem:[%s1829 + $0x198] sm:$0xff]
      %v1882 = vld [vmem:[%s1829 + $0x1a0] sm:$0xff]
      %v1883 = vld [vmem:[%s1829 + $0x1a8] sm:$0xff]
      %v1884 = vld [vmem:[%s1829 + $0x1b0] sm:$0xff]
      %v1885 = vld [vmem:[%s1829 + $0x1b8] sm:$0xff]
      %v1886 = vld [vmem:[%s1829 + $0x1c0] sm:$0xff]
      %v1887 = vld [vmem:[%s1829 + $0x1c8] sm:$0xff]
      %v1888 = vld [vmem:[%s1829 + $0x1d0] sm:$0xff]
      %v1889 = vld [vmem:[%s1829 + $0x1d8] sm:$0xff]
      %v1890 = vld [vmem:[%s1829 + $0x1e0] sm:$0xff]
      %v1891 = vld [vmem:[%s1829 + $0x1e8] sm:$0xff]
      %v1892 = vld [vmem:[%s1829 + $0x1f0] sm:$0xff]
      %v1893 = vld [vmem:[%s1829 + $0x1f8] sm:$0xff]
      %vm1894 = vcmask 1045504
      %v1895 = vrot.slane %v295, 2
      %v1896 = vrot.slane %v315, 2
      %v1897 = vsel %vm1894, %v1895, %v1896
      %v1898 = vrot.slane %v296, 2
      %v1899 = vrot.slane %v316, 2
      %v1900 = vsel %vm1894, %v1898, %v1899
      %v1901 = vrot.slane %v297, 2
      %v1902 = vrot.slane %v317, 2
      %v1903 = vsel %vm1894, %v1901, %v1902
      %v1904 = vrot.slane %v298, 2
      %v1905 = vrot.slane %v318, 2
      %v1906 = vsel %vm1894, %v1904, %v1905
      %v1975 = vunpack.c.l.b16 %v1830
      %v1976 = vunpack.c.h.b16 %v1830
      %v1977 = vunpack.c.l.b16 %v1831
      %v1978 = vunpack.c.h.b16 %v1831
      %v1979 = vunpack.c.l.b16 %v1832
      %v1980 = vunpack.c.h.b16 %v1832
      %v1981 = vunpack.c.l.b16 %v1833
      %v1982 = vunpack.c.h.b16 %v1833
      %v1983 = vunpack.c.l.b16 %v1834
      %v1984 = vunpack.c.h.b16 %v1834
      %v1985 = vunpack.c.l.b16 %v1835
      %v1986 = vunpack.c.h.b16 %v1835
      %v1987 = vunpack.c.l.b16 %v1836
      %v1988 = vunpack.c.h.b16 %v1836
      %v1989 = vunpack.c.l.b16 %v1837
      %v1990 = vunpack.c.h.b16 %v1837
      %v1991 = vunpack.c.l.b16 %v1838
      %v1992 = vunpack.c.h.b16 %v1838
      %v1993 = vunpack.c.l.b16 %v1839
      %v1994 = vunpack.c.h.b16 %v1839
      %v1995 = vunpack.c.l.b16 %v1840
      %v1996 = vunpack.c.h.b16 %v1840
      %v1997 = vunpack.c.l.b16 %v1841
      %v1998 = vunpack.c.h.b16 %v1841
      %v1999 = vunpack.c.l.b16 %v1842
      %v2000 = vunpack.c.h.b16 %v1842
      %v2001 = vunpack.c.l.b16 %v1843
      %v2002 = vunpack.c.h.b16 %v1843
      %v2003 = vunpack.c.l.b16 %v1844
      %v2004 = vunpack.c.h.b16 %v1844
      %v2005 = vunpack.c.l.b16 %v1845
      %v2006 = vunpack.c.h.b16 %v1845
      %v2007 = vunpack.c.l.b16 %v1846
      %v2008 = vunpack.c.h.b16 %v1846
      %v2009 = vunpack.c.l.b16 %v1847
      %v2010 = vunpack.c.h.b16 %v1847
      %v2011 = vunpack.c.l.b16 %v1848
      %v2012 = vunpack.c.h.b16 %v1848
      %v2013 = vunpack.c.l.b16 %v1849
      %v2014 = vunpack.c.h.b16 %v1849
      %v2015 = vunpack.c.l.b16 %v1850
      %v2016 = vunpack.c.h.b16 %v1850
      %v2017 = vunpack.c.l.b16 %v1851
      %v2018 = vunpack.c.h.b16 %v1851
      %v2019 = vunpack.c.l.b16 %v1852
      %v2020 = vunpack.c.h.b16 %v1852
      %v2021 = vunpack.c.l.b16 %v1853
      %v2022 = vunpack.c.h.b16 %v1853
      %v2023 = vunpack.c.l.b16 %v1854
      %v2024 = vunpack.c.h.b16 %v1854
      %v2025 = vunpack.c.l.b16 %v1855
      %v2026 = vunpack.c.h.b16 %v1855
      %v2027 = vunpack.c.l.b16 %v1856
      %v2028 = vunpack.c.h.b16 %v1856
      %v2029 = vunpack.c.l.b16 %v1857
      %v2030 = vunpack.c.h.b16 %v1857
      %v2031 = vunpack.c.l.b16 %v1858
      %v2032 = vunpack.c.h.b16 %v1858
      %v2033 = vunpack.c.l.b16 %v1859
      %v2034 = vunpack.c.h.b16 %v1859
      %v2035 = vunpack.c.l.b16 %v1860
      %v2036 = vunpack.c.h.b16 %v1860
      %v2037 = vunpack.c.l.b16 %v1861
      %v2038 = vunpack.c.h.b16 %v1861
      %v2039 = vunpack.c.l.b16 %v1862
      %v2040 = vunpack.c.h.b16 %v1862
      %v2041 = vunpack.c.l.b16 %v1863
      %v2042 = vunpack.c.h.b16 %v1863
      %v2043 = vunpack.c.l.b16 %v1864
      %v2044 = vunpack.c.h.b16 %v1864
      %v2045 = vunpack.c.l.b16 %v1865
      %v2046 = vunpack.c.h.b16 %v1865
      %v2047 = vunpack.c.l.b16 %v1866
      %v2048 = vunpack.c.h.b16 %v1866
      %v2049 = vunpack.c.l.b16 %v1867
      %v2050 = vunpack.c.h.b16 %v1867
      %v2051 = vunpack.c.l.b16 %v1868
      %v2052 = vunpack.c.h.b16 %v1868
      %v2053 = vunpack.c.l.b16 %v1869
      %v2054 = vunpack.c.h.b16 %v1869
      %v2055 = vunpack.c.l.b16 %v1870
      %v2056 = vunpack.c.h.b16 %v1870
      %v2057 = vunpack.c.l.b16 %v1871
      %v2058 = vunpack.c.h.b16 %v1871
      %v2059 = vunpack.c.l.b16 %v1872
      %v2060 = vunpack.c.h.b16 %v1872
      %v2061 = vunpack.c.l.b16 %v1873
      %v2062 = vunpack.c.h.b16 %v1873
      %v2063 = vunpack.c.l.b16 %v1874
      %v2064 = vunpack.c.h.b16 %v1874
      %v2065 = vunpack.c.l.b16 %v1875
      %v2066 = vunpack.c.h.b16 %v1875
      %v2067 = vunpack.c.l.b16 %v1876
      %v2068 = vunpack.c.h.b16 %v1876
      %v2069 = vunpack.c.l.b16 %v1877
      %v2070 = vunpack.c.h.b16 %v1877
      %v2071 = vunpack.c.l.b16 %v1878
      %v2072 = vunpack.c.h.b16 %v1878
      %v2073 = vunpack.c.l.b16 %v1879
      %v2074 = vunpack.c.h.b16 %v1879
      %v2075 = vunpack.c.l.b16 %v1880
      %v2076 = vunpack.c.h.b16 %v1880
      %v2077 = vunpack.c.l.b16 %v1881
      %v2078 = vunpack.c.h.b16 %v1881
      %v2079 = vunpack.c.l.b16 %v1882
      %v2080 = vunpack.c.h.b16 %v1882
      %v2081 = vunpack.c.l.b16 %v1883
      %v2082 = vunpack.c.h.b16 %v1883
      %v2083 = vunpack.c.l.b16 %v1884
      %v2084 = vunpack.c.h.b16 %v1884
      %v2085 = vunpack.c.l.b16 %v1885
      %v2086 = vunpack.c.h.b16 %v1885
      %v2087 = vunpack.c.l.b16 %v1886
      %v2088 = vunpack.c.h.b16 %v1886
      %v2089 = vunpack.c.l.b16 %v1887
      %v2090 = vunpack.c.h.b16 %v1887
      %v2091 = vunpack.c.l.b16 %v1888
      %v2092 = vunpack.c.h.b16 %v1888
      %v2093 = vunpack.c.l.b16 %v1889
      %v2094 = vunpack.c.h.b16 %v1889
      %v2095 = vunpack.c.l.b16 %v1890
      %v2096 = vunpack.c.h.b16 %v1890
      %v2097 = vunpack.c.l.b16 %v1891
      %v2098 = vunpack.c.h.b16 %v1891
      %v2099 = vunpack.c.l.b16 %v1892
      %v2100 = vunpack.c.h.b16 %v1892
      %v2101 = vunpack.c.l.b16 %v1893
      %v2102 = vunpack.c.h.b16 %v1893
      %v2103 = vpack.c.b16 %v1977, %v1975
      %v2104 = vpack.c.b16 %v1978, %v1976
      %v2105 = vpack.c.b16 %v1981, %v1979
      %v2106 = vpack.c.b16 %v1982, %v1980
      %v2107 = vpack.c.b16 %v1985, %v1983
      %v2108 = vpack.c.b16 %v1986, %v1984
      %v2109 = vpack.c.b16 %v1989, %v1987
      %v2110 = vpack.c.b16 %v1990, %v1988
      %v2111 = vpack.c.b16 %v1993, %v1991
      %v2112 = vpack.c.b16 %v1994, %v1992
      %v2113 = vpack.c.b16 %v1997, %v1995
      %v2114 = vpack.c.b16 %v1998, %v1996
      %v2115 = vpack.c.b16 %v2001, %v1999
      %v2116 = vpack.c.b16 %v2002, %v2000
      %v2117 = vpack.c.b16 %v2005, %v2003
      %v2118 = vpack.c.b16 %v2006, %v2004
      %v2119 = vpack.c.b16 %v2009, %v2007
      %v2120 = vpack.c.b16 %v2010, %v2008
      %v2121 = vpack.c.b16 %v2013, %v2011
      %v2122 = vpack.c.b16 %v2014, %v2012
      %v2123 = vpack.c.b16 %v2017, %v2015
      %v2124 = vpack.c.b16 %v2018, %v2016
      %v2125 = vpack.c.b16 %v2021, %v2019
      %v2126 = vpack.c.b16 %v2022, %v2020
      %v2127 = vpack.c.b16 %v2025, %v2023
      %v2128 = vpack.c.b16 %v2026, %v2024
      %v2129 = vpack.c.b16 %v2029, %v2027
      %v2130 = vpack.c.b16 %v2030, %v2028
      %v2131 = vpack.c.b16 %v2033, %v2031
      %v2132 = vpack.c.b16 %v2034, %v2032
      %v2133 = vpack.c.b16 %v2037, %v2035
      %v2134 = vpack.c.b16 %v2038, %v2036
      %v2135 = vpack.c.b16 %v2041, %v2039
      %v2136 = vpack.c.b16 %v2042, %v2040
      %v2137 = vpack.c.b16 %v2045, %v2043
      %v2138 = vpack.c.b16 %v2046, %v2044
      %v2139 = vpack.c.b16 %v2049, %v2047
      %v2140 = vpack.c.b16 %v2050, %v2048
      %v2141 = vpack.c.b16 %v2053, %v2051
      %v2142 = vpack.c.b16 %v2054, %v2052
      %v2143 = vpack.c.b16 %v2057, %v2055
      %v2144 = vpack.c.b16 %v2058, %v2056
      %v2145 = vpack.c.b16 %v2061, %v2059
      %v2146 = vpack.c.b16 %v2062, %v2060
      %v2147 = vpack.c.b16 %v2065, %v2063
      %v2148 = vpack.c.b16 %v2066, %v2064
      %v2149 = vpack.c.b16 %v2069, %v2067
      %v2150 = vpack.c.b16 %v2070, %v2068
      %v2151 = vpack.c.b16 %v2073, %v2071
      %v2152 = vpack.c.b16 %v2074, %v2072
      %v2153 = vpack.c.b16 %v2077, %v2075
      %v2154 = vpack.c.b16 %v2078, %v2076
      %v2155 = vpack.c.b16 %v2081, %v2079
      %v2156 = vpack.c.b16 %v2082, %v2080
      %v2157 = vpack.c.b16 %v2085, %v2083
      %v2158 = vpack.c.b16 %v2086, %v2084
      %v2159 = vpack.c.b16 %v2089, %v2087
      %v2160 = vpack.c.b16 %v2090, %v2088
      %v2161 = vpack.c.b16 %v2093, %v2091
      %v2162 = vpack.c.b16 %v2094, %v2092
      %v2163 = vpack.c.b16 %v2097, %v2095
      %v2164 = vpack.c.b16 %v2098, %v2096
      %v2165 = vpack.c.b16 %v2101, %v2099
      %v2166 = vpack.c.b16 %v2102, %v2100
      %2231 = vmatprep.subr.bf16.mxu0 %v2104
      %2232 = vmatpush1.bf16.msra.mxu0 %v2103
      %2233 = vmatprep.subr.bf16.mxu0 %v2106
      %2234 = vmatpush1.bf16.msra.mxu0 %v2105
      %2235 = vmatprep.subr.bf16.mxu0 %v2108
      %2236 = vmatpush1.bf16.msra.mxu0 %v2107
      %2237 = vmatprep.subr.bf16.mxu0 %v2110
      %2238 = vmatpush1.bf16.msra.mxu0 %v2109
      %2239 = vmatprep.subr.bf16.mxu0 %v2112
      %2240 = vmatpush1.bf16.msra.mxu0 %v2111
      %2241 = vmatprep.subr.bf16.mxu0 %v2114
      %2242 = vmatpush1.bf16.msra.mxu0 %v2113
      %2243 = vmatprep.subr.bf16.mxu0 %v2116
      %2244 = vmatpush1.bf16.msra.mxu0 %v2115
      %2245 = vmatprep.subr.bf16.mxu0 %v2118
      %2246 = vmatpush1.bf16.msra.mxu0 %v2117
      %2247 = vmatprep.subr.bf16.mxu0 %v2120
      %2248 = vmatpush1.bf16.msra.mxu0 %v2119
      %2249 = vmatprep.subr.bf16.mxu0 %v2122
      %2250 = vmatpush1.bf16.msra.mxu0 %v2121
      %2251 = vmatprep.subr.bf16.mxu0 %v2124
      %2252 = vmatpush1.bf16.msra.mxu0 %v2123
      %2253 = vmatprep.subr.bf16.mxu0 %v2126
      %2254 = vmatpush1.bf16.msra.mxu0 %v2125
      %2255 = vmatprep.subr.bf16.mxu0 %v2128
      %2256 = vmatpush1.bf16.msra.mxu0 %v2127
      %2257 = vmatprep.subr.bf16.mxu0 %v2130
      %2258 = vmatpush1.bf16.msra.mxu0 %v2129
      %2259 = vmatprep.subr.bf16.mxu0 %v2132
      %2260 = vmatpush1.bf16.msra.mxu0 %v2131
      %2261 = vmatprep.subr.bf16.mxu0 %v2134
      %2262 = vmatpush1.bf16.msra.mxu0 %v2133
      %2263 = vmatprep.mubr.bf16.mxu0 %v1900
      %2264 = vmatmul.mubr.bf16.gmra.mrb[0].mxu0 %v1897
      %v2265 = vpop.f32.mrb[0].mxu0
      %v2266 = vadd.f32 0.0, %v2265
      %v2267 = vpop.f32.mrb[0].mxu0
      %v2268 = vadd.f32 0.0, %v2267
      %v2269 = vpop.f32.mrb[0].mxu0
      %v2270 = vadd.f32 0.0, %v2269
      %v2271 = vpop.f32.mrb[0].mxu0
      %v2272 = vadd.f32 0.0, %v2271
      %2273 = vdwg.mxu0
      %2274 = vmatprep.subr.bf16.mxu0 %v2136
      %2275 = vmatpush1.bf16.msra.mxu0 %v2135
      %2276 = vmatprep.subr.bf16.mxu0 %v2138
      %2277 = vmatpush1.bf16.msra.mxu0 %v2137
      %2278 = vmatprep.subr.bf16.mxu0 %v2140
      %2279 = vmatpush1.bf16.msra.mxu0 %v2139
      %2280 = vmatprep.subr.bf16.mxu0 %v2142
      %2281 = vmatpush1.bf16.msra.mxu0 %v2141
      %2282 = vmatprep.subr.bf16.mxu0 %v2144
      %2283 = vmatpush1.bf16.msra.mxu0 %v2143
      %2284 = vmatprep.subr.bf16.mxu0 %v2146
      %2285 = vmatpush1.bf16.msra.mxu0 %v2145
      %2286 = vmatprep.subr.bf16.mxu0 %v2148
      %2287 = vmatpush1.bf16.msra.mxu0 %v2147
      %2288 = vmatprep.subr.bf16.mxu0 %v2150
      %2289 = vmatpush1.bf16.msra.mxu0 %v2149
      %2290 = vmatprep.subr.bf16.mxu0 %v2152
      %2291 = vmatpush1.bf16.msra.mxu0 %v2151
      %2292 = vmatprep.subr.bf16.mxu0 %v2154
      %2293 = vmatpush1.bf16.msra.mxu0 %v2153
      %2294 = vmatprep.subr.bf16.mxu0 %v2156
      %2295 = vmatpush1.bf16.msra.mxu0 %v2155
      %2296 = vmatprep.subr.bf16.mxu0 %v2158
      %2297 = vmatpush1.bf16.msra.mxu0 %v2157
      %2298 = vmatprep.subr.bf16.mxu0 %v2160
      %2299 = vmatpush1.bf16.msra.mxu0 %v2159
      %2300 = vmatprep.subr.bf16.mxu0 %v2162
      %2301 = vmatpush1.bf16.msra.mxu0 %v2161
      %2302 = vmatprep.subr.bf16.mxu0 %v2164
      %2303 = vmatpush1.bf16.msra.mxu0 %v2163
      %2304 = vmatprep.subr.bf16.mxu0 %v2166
      %2305 = vmatpush1.bf16.msra.mxu0 %v2165
      %2306 = vmatprep.mubr.bf16.mxu0 %v1906
      %2307 = vmatmul.mubr.bf16.gmra.mrb[0].mxu0 %v1903
      %v2308 = vpop.f32.mrb[0].mxu0
      %v2309 = vadd.f32 %v2266, %v2308
      %v2310 = vpop.f32.mrb[0].mxu0
      %v2311 = vadd.f32 %v2268, %v2310
      %v2312 = vpop.f32.mrb[0].mxu0
      %v2313 = vadd.f32 %v2270, %v2312
      %v2314 = vpop.f32.mrb[0].mxu0
      %v2315 = vadd.f32 %v2272, %v2314
      %2316 = vdwg.mxu0
      %v2317 = vadd.f32 %v1825, %v2309
      %v2318 = vadd.f32 %v1826, %v2311
      %v2319 = vadd.f32 %v1827, %v2313
      %v2320 = vadd.f32 %v1828, %v2315
      %v2321 = vld [vmem:[%s3] sm:$0x3]
      %v2323 = vlaneseq
      %v2324 = vshrl.u32 %v2323, 7
      %v2325 = vsub.s32 0, %v2324
      %v2326 = vrot.slane %v2321, %v2325
      %v2327 = vlaneseq
      %v2328 = vshrl.u32 %v2327, 7
      %v2329 = vsub.s32 1, %v2328
      %v2330 = vrot.slane %v2321, %v2329
      %v2333 = vadd.f32 %v2317, %v2326
      %v2334 = vadd.f32 %v2318, %v2330
      %v2335 = vadd.f32 %v2319, %v2326
      %v2336 = vadd.f32 %v2320, %v2330
      %p2337 = scmp.eq.s32.totalorder %s20, 0
      // Predicated region
      $region37: #{discriminator_forward.6} parent=35 // pred_check
        %p2338 = pneg %p2337
      $region38: #{discriminator_forward.6} parent=35 // pred_check_branch
        %2340 = sbr.rel (%p2338) target = $region40
      $region39: #{discriminator_forward.6} parent=35 // pred_region
        %v2341 = vlaneseq
        %vm2342 = vcmp.ge.s32.totalorder %v2341, 0
        %vm2343 = vcmp.lt.s32.totalorder %v2341, 256
        %vm2344 = vmand %vm2342, %vm2343
        %2345 = vst.msk [vmem:[#allocation2] sm:$0x3] %vm2344, 0.0
        %2346 = vst.msk [vmem:[#allocation3] sm:$0x3] %vm2344, 0.0
      $region40: #{discriminator_forward.6} parent=35 // pred_fallthru
        _
      %s2347 = smul.u32 %s20, 16
      %v2348 = vlaneseq
      %v2349 = vshrl.u32 %v2348, 7
      %v2350 = vadd.s32 %v2349, 8
      %v2351 = vstv %s2347
      %v2352 = vadd.s32 %v2351, %v2349
      %v2353 = vadd.s32 %v2351, %v2350
      %vm2354 = vcmp.lt.s32.totalorder %v2352, 6
      %vm2355 = vcmp.lt.s32.totalorder %v2353, 6
      %vm2356 = vcmp.lt.s32.totalorder %v2352, 0
      %v2357 = vsub.s32 0, %v2352
      %v2358 = vsel %vm2356, %v2357, %v2352
      %v2359 = vmul.u32.u64.compose %v2358, 2863311531
      %v2360 = vextract.low.u32 %v2359
      %v2361 = vextract.high.u32 %v2359
      %v2362 = vshrl.u32 %v2361, 1
      %v2363 = vmul.u32 %v2362, 3
      %v2364 = vsub.s32 %v2358, %v2363
      %v2365 = vsub.s32 0, %v2364
      %v2366 = vsel %vm2356, %v2365, %v2364
      %vm2367 = vcmp.lt.s32.totalorder %v2353, 0
      %v2368 = vsub.s32 0, %v2353
      %v2369 = vsel %vm2367, %v2368, %v2353
      %v2370 = vmul.u32.u64.compose %v2369, 2863311531
      %v2371 = vextract.low.u32 %v2370
      %v2372 = vextract.high.u32 %v2370
      %v2373 = vshrl.u32 %v2372, 1
      %v2374 = vmul.u32 %v2373, 3
      %v2375 = vsub.s32 %v2369, %v2374
      %v2376 = vsub.s32 0, %v2375
      %v2377 = vsel %vm2367, %v2376, %v2375
      %vm2378 = vcmp.ne.s32.totalorder %v2366, 0
      %vm2379 = vcmp.ne.s32.totalorder %v2377, 0
      %vm2380 = vcmp.lt.s32.totalorder %v2366, 0
      %vm2381 = vcmp.lt.s32.totalorder %v2377, 0
      %vm2382 = vmand %vm2380, %vm2378
      %vm2383 = vmand %vm2381, %vm2379
      %v2384 = vadd.s32 %v2366, 3
      %v2385 = vadd.s32 %v2377, 3
      %v2386 = vsel %vm2382, %v2384, %v2366
      %v2387 = vsel %vm2383, %v2385, %v2377
      %vm2388 = vcmp.ne.s32.totalorder %v2386, 2
      %vm2389 = vcmp.ne.s32.totalorder %v2387, 2
      %vm2390 = vmand %vm2354, %vm2388
      %vm2391 = vmand %vm2355, %vm2389
      %v2392 = vsel %vm2390, 1, 0
      %v2393 = vsel %vm2391, 1, 0
      %vm2394 = vcmp.eq.s32.totalorder %v2392, 1
      %vm2395 = vcmp.eq.s32.totalorder %v2393, 1
      %v2396 = vsel %vm2394, %v2333, 0.0
      %v2397 = vsel %vm2394, %v2334, 0.0
      %v2398 = vsel %vm2395, %v2335, 0.0
      %v2399 = vsel %vm2395, %v2336, 0.0
      %v2400 = vld [vmem:[#allocation2] sm:$0x3]
      %v2401 = vadd.f32 %v2396, %v2398
      %v2402 = vrot.slane %v2401, 4
      %v2403 = vadd.f32 %v2401, %v2402
      %v2404 = vrot.slane %v2403, 2
      %v2405 = vadd.f32 %v2403, %v2404
      %v2406 = vrot.slane %v2405, 1
      %v2407 = vadd.f32 %v2405, %v2406
      %v2408 = vadd.f32 %v2397, %v2399
      %v2409 = vrot.slane %v2408, 4
      %v2410 = vadd.f32 %v2408, %v2409
      %v2411 = vrot.slane %v2410, 2
      %v2412 = vadd.f32 %v2410, %v2411
      %v2413 = vrot.slane %v2412, 1
      %v2414 = vadd.f32 %v2412, %v2413
      %v2417 = vcombine.low %v2407, %v2414
      %v2419 = vunpack.c.l.s4 1966171168
      %v2420 = vunpack.c.0.s8 %v2419
      %v2421 = vlaneseq
      %v2422 = vshrl.u32 %v2421, 7
      %v2423 = vsub.s32 %v2420, %v2422
      %v2424 = vrot.slane %v2417, %v2423
      %v2426 = vunpack.c.l.s4 1966171168
      %v2427 = vunpack.c.0.s8 %v2426
      %v2428 = vlaneseq
      %v2429 = vshrl.u32 %v2428, 7
      %v2430 = vsub.s32 %v2427, %v2429
      %v2431 = vrot.slane %v2424, %v2430
      %v2433 = vadd.f32 %v2400, %v2431
      %v2434 = vlaneseq
      %vm2435 = vcmp.ge.s32.totalorder %v2434, 0
      %vm2436 = vcmp.lt.s32.totalorder %v2434, 256
      %vm2437 = vmand %vm2435, %vm2436
      %2438 = vst.msk [vmem:[#allocation2] sm:$0x3] %vm2437, %v2433
      %v2439 = vld [vmem:[#allocation3] sm:$0x3]
      %v2440 = vmul.f32 %v2396, %v2396
      %v2441 = vmul.f32 %v2397, %v2397
      %v2442 = vmul.f32 %v2398, %v2398
      %v2443 = vmul.f32 %v2399, %v2399
      %v2444 = vadd.f32 %v2440, %v2442
      %v2445 = vrot.slane %v2444, 4
      %v2446 = vadd.f32 %v2444, %v2445
      %v2447 = vrot.slane %v2446, 2
      %v2448 = vadd.f32 %v2446, %v2447
      %v2449 = vrot.slane %v2448, 1
      %v2450 = vadd.f32 %v2448, %v2449
      %v2451 = vadd.f32 %v2441, %v2443
      %v2452 = vrot.slane %v2451, 4
      %v2453 = vadd.f32 %v2451, %v2452
      %v2454 = vrot.slane %v2453, 2
      %v2455 = vadd.f32 %v2453, %v2454
      %v2456 = vrot.slane %v2455, 1
      %v2457 = vadd.f32 %v2455, %v2456
      %v2460 = vcombine.low %v2450, %v2457
      %v2462 = vunpack.c.l.s4 1966171168
      %v2463 = vunpack.c.0.s8 %v2462
      %v2464 = vlaneseq
      %v2465 = vshrl.u32 %v2464, 7
      %v2466 = vsub.s32 %v2463, %v2465
      %v2467 = vrot.slane %v2460, %v2466
      %v2469 = vunpack.c.l.s4 1966171168
      %v2470 = vunpack.c.0.s8 %v2469
      %v2471 = vlaneseq
      %v2472 = vshrl.u32 %v2471, 7
      %v2473 = vsub.s32 %v2470, %v2472
      %v2474 = vrot.slane %v2467, %v2473
      %v2476 = vadd.f32 %v2439, %v2474
      %2477 = vst.msk [vmem:[#allocation3] sm:$0x3] %vm2437, %v2476
      %s2478 = sshra.s32 %s2347, 3
      %s2479 = sand.u32 %s2347, 7
      %s2480 = smul.u32 %s2478, 2
      %s2481 = smul.addr %s2480, 8
      %s2482 = scalar_lea.vmem [#allocation4], %s2481
      %2483 = vst [vmem:[%s2482] sm:$0xff] %v2333
      %2484 = vst [vmem:[%s2482 + $0x8] sm:$0xff] %v2334
      %2485 = vst [vmem:[%s2482 + $0x10] sm:$0xff] %v2335
      %2486 = vst [vmem:[%s2482 + $0x18] sm:$0xff] %v2336
      // Predicated region
      $region41: #{discriminator_forward.6} parent=35 // pred_check
        %p2487 = pneg %p2337
      $region42: #{discriminator_forward.6} parent=35 // pred_check_branch
        %2489 = sbr.rel (%p2487) target = $region44
      $region43: #{discriminator_forward.6} parent=35 // pred_region
        %v2490 = vld [vmem:[#allocation2] sm:$0x3]
        %v2491 = vmul.f32 %v2490, 0.25
        %v2492 = vld [vmem:[#allocation3] sm:$0x3]
        %v2493 = vmul.f32 %v2492, 0.25
        %v2494 = vmul.f32 %v2491, %v2491
        %v2495 = vsub.f32 %v2493, %v2494
        %v2496 = vmax.f32 %v2495, 0.0
        %v2497 = vadd.f32 %v2496, 1e-05
        %v2498 = vrsqrt.pop %v2497
        %v2499 = vld [vmem:[#allocation4] sm:$0xff]
        %v2500 = vld [vmem:[#allocation4 + $0x8] sm:$0xff]
        %v2501 = vld [vmem:[#allocation4 + $0x10] sm:$0xff]
        %v2502 = vld [vmem:[#allocation4 + $0x18] sm:$0xff]
        %v2504 = vlaneseq
        %v2505 = vshrl.u32 %v2504, 7
        %v2506 = vsub.s32 0, %v2505
        %v2507 = vrot.slane %v2491, %v2506
        %v2508 = vlaneseq
        %v2509 = vshrl.u32 %v2508, 7
        %v2510 = vsub.s32 1, %v2509
        %v2511 = vrot.slane %v2491, %v2510
        %v2514 = vsub.f32 %v2499, %v2507
        %v2515 = vsub.f32 %v2500, %v2511
        %v2516 = vsub.f32 %v2501, %v2507
        %v2517 = vsub.f32 %v2502, %v2511
        %v2519 = vlaneseq
        %v2520 = vshrl.u32 %v2519, 7
        %v2521 = vsub.s32 0, %v2520
        %v2522 = vrot.slane %v2498, %v2521
        %v2523 = vlaneseq
        %v2524 = vshrl.u32 %v2523, 7
        %v2525 = vsub.s32 1, %v2524
        %v2526 = vrot.slane %v2498, %v2525
        %v2529 = vmul.f32 %v2514, %v2522
        %v2530 = vmul.f32 %v2515, %v2526
        %v2531 = vmul.f32 %v2516, %v2522
        %v2532 = vmul.f32 %v2517, %v2526
        %vm2533 = vcmp.gt.f32.partialorder %v2529, 0.0
        %vm2534 = vcmp.gt.f32.partialorder %v2530, 0.0
        %vm2535 = vcmp.gt.f32.partialorder %v2531, 0.0
        %vm2536 = vcmp.gt.f32.partialorder %v2532, 0.0
        %v2537 = vmul.f32 %v2529, 0.2
        %v2538 = vmul.f32 %v2530, 0.2
        %v2539 = vmul.f32 %v2531, 0.2
        %v2540 = vmul.f32 %v2532, 0.2
        %v2541 = vsel %vm2533, %v2529, %v2537
        %v2542 = vsel %vm2534, %v2530, %v2538
        %v2543 = vsel %vm2535, %v2531, %v2539
        %v2544 = vsel %vm2536, %v2532, %v2540
        %v2545 = vpack.c.bf16 %v2543, %v2541
        %v2546 = vpack.c.bf16 %v2544, %v2542
        %v2549 = vunpack.c.l.b16 %v2545
        %v2550 = vunpack.c.l.b16 %v2546
        %v2551 = vunpack.c.h.b16 %v2545
        %v2552 = vunpack.c.h.b16 %v2546
        %v2553 = vpack.c.b16 %v2550, %v2549
        %v2554 = vpack.c.b16 %v2552, %v2551
        %2557 = vst [vmem:[%s274] sm:$0xff] %v2553
        %2558 = vst [vmem:[%s274 + $0x8] sm:$0xff] %v2554
      $region44: #{discriminator_forward.6} parent=35 // pred_fallthru
        _
      %p2559 = scmp.lt.s32.totalorder %s19, 1
      %s2560 = scalar_select %p2559, %s19, 1
      %s2561 = smul.addr %s2560, 4
      %s2562 = smul.addr %s2561, 4
      %s2563 = scalar_lea.vmem %s4, %s2562
      // Predicated region
      $region45: #{discriminator_forward.6} parent=35 // pred_check
        %p2564 = pneg %p145
      $region46: #{discriminator_forward.6} parent=35 // pred_check_branch
        %2566 = sbr.rel (%p2564) target = $region48
      $region47: #{discriminator_forward.6} parent=35 // pred_region
        _
      $region48: #{discriminator_forward.6} parent=35 // pred_fallthru
        _
    $region36: #{discriminator_forward.6} parent=5 // pred_fallthru
      _
    %p2567 = scmp.le.s32.totalorder 2, %s10
    // Predicated region
    $region49: #{discriminator_forward.6} parent=5 // pred_check
      %p2568 = pneg %p2567
    $region50: #{discriminator_forward.6} parent=5 // pred_check_branch
      %2570 = sbr.rel (%p2568) target = $region52
    $region51: #{discriminator_forward.6} parent=5 // pred_region
      %s2571 = ssub.s32 %s10, 2
      // Predicated region
      $region53: #{discriminator_forward.6} parent=51 // pred_check
        %p2572 = pneg %p151
      $region54: #{discriminator_forward.6} parent=51 // pred_check_branch
        %2574 = sbr.rel (%p2572) target = $region56
      $region55: #{discriminator_forward.6} parent=51 // pred_region
        %p2575 = scmp.lt.s32.totalorder %s21, 1
        %s2576 = scalar_select %p2575, %s21, 1
        %s2577 = smul.addr %s2576, 4
        %s2578 = smul.addr %s2577, 4
        %s2579 = scalar_lea.vmem %s4, %s2578
      $region56: #{discriminator_forward.6} parent=51 // pred_fallthru
        _
    $region52: #{discriminator_forward.6} parent=5 // pred_fallthru
      _
  $region6: #{discriminator_forward.6} parent=0 // loop_footer
    %s14 = sadd.s32 1, %s10
  $region7: #{discriminator_forward.6} parent=0 // loop_footer_branch
    %9 = sbr.rel target = $region3
  $region8: #{discriminator_forward.6} parent=0 // loop_exit
    _

// kernel: discriminator_forward.7
$region0: #{discriminator_forward.7}
  #allocation0 [shape = 'u32[]', space=smem, size = 0x4, offset = 0x4, fixed_abs, tag = 'smem constant byte address 0x4 - core index']
  #allocation1 [shape = 'u32[144,128]{1,0:T(1,128)}', space=vmem, size = 0x12000, scoped, tag = 'internal scratch']
  %s0 = inlined_call_operand.vmem [shape: bf16[2,64,256], index: 0, kind: input, shape index: {}, may-alias: {0,1}]
  %s1 = inlined_call_operand.vmem [shape: bf16[2,64,256], index: 1, kind: input, shape index: {}, may-alias: {0,1}]
  %s2 = inlined_call_operand.vmem [shape: bf16[16,256,128], index: 2, kind: input, shape index: {}]
  %s3 = inlined_call_operand.vmem [shape: f32[2,32,128], index: 3, kind: output, shape index: {}]
  %s4 = sld [smem:[#allocation0]]
  $region45: #{discriminator_forward.7} parent=0
    _
  %s6 = ssub.s32 1, %s4
  %s7 = scalar_select 0, %s6, %s4
  loop: start=0, step=1, limit=4
  $region2: #{discriminator_forward.7} parent=0 // loop_pre_header
    _
  $region3: #{discriminator_forward.7} parent=0 // loop_header
    %s9 = sphi 0, %s13
    %p10 = scmp.ge.s32.totalorder %s9, 4
    %s16 = sphi 0, %s28
    %s17 = sphi 0, %s24
    %s18 = sphi 0, %s16
    %s19 = sphi 0, %s17
    %s20 = sphi 0, %s18
    %s21 = sphi 0, %s19
    %s33 = sphi 0, %s35
    %s36 = sphi 0, %s33
    %s37 = sphi 0, %s36
    %s53 = sphi 0, %s37
    %s63 = sphi 0, %s65
    %s66 = sphi 0, %s63
    %s67 = sphi 0, %s66
    %s83 = sphi 0, %s67
    %s87 = sphi 0, %s87
    %s89 = sphi 0, %s87
    %s90 = sphi 0, %s89
    %s104 = sphi 0, %s90
    %s112 = sphi 0, %s114
    %s115 = sphi 0, %s112
    %s116 = sphi 0, %s115
    %s132 = sphi 0, %s116
  $region4: #{discriminator_forward.7} parent=0 // loop_header_branch
    %12 = sbr.rel (%p10) target = $region8
  $region5: #{discriminator_forward.7} parent=0 // loop_body
    %s14 = ssub.s32 %s9, 1
    %s15 = ssub.s32 %s9, 2
    %s22 = sadd.s32 1, %s17
    %p23 = scmp.ge.s32.totalorder %s22, 1
    %s24 = scalar_select %p23, 0, %s22
    %s25 = sadd.s32 1, %s16
    %s26 = scalar_select %p23, %s25, %s16
    %p27 = scmp.ge.s32.totalorder %s26, 2
    %s28 = scalar_select %p27, 0, %s26
    %s29 = ssub.s32 %s16, %s28
    %s30 = ssub.s32 %s17, %s24
    %s31 = sor.u32 %s29, %s30
    %p32 = scmp.eq.s32.totalorder %s31, 0
    %s34 = sadd.s32 %s33, 1
    %s35 = scalar_select %p32, %s33, %s34
    %p38 = pneg %p32
    %p39 = scmp.eq.s32.totalorder %s9, 1
    %p40 = por %p38, %p39
    %p41 = scmp.ne.s32.totalorder %s33, %s36
    %p42 = scmp.eq.s32.totalorder %s9, 0
    %p43 = por %p41, %p42
    %p44 = scmp.ne.s32.totalorder %s33, %s36
    %p45 = scmp.eq.s32.totalorder %s14, 1
    %p46 = por %p44, %p45
    %p47 = scmp.ne.s32.totalorder %s36, %s37
    %p48 = scmp.eq.s32.totalorder %s14, 0
    %p49 = por %p47, %p48
    %p50 = scmp.ne.s32.totalorder %s36, %s37
    %p51 = scmp.eq.s32.totalorder %s15, 1
    %p52 = por %p50, %p51
    %p54 = scmp.ne.s32.totalorder %s37, %s53
    %p55 = scmp.eq.s32.totalorder %s15, 0
    %p56 = por %p54, %p55
    %s57 = sadd.s32 %s17, 1
    %s58 = sadd.s32 %s24, 1
    %s59 = ssub.s32 %s16, %s28
    %s60 = ssub.s32 %s57, %s58
    %s61 = sor.u32 %s59, %s60
    %p62 = scmp.eq.s32.totalorder %s61, 0
    %s64 = sadd.s32 %s63, 1
    %s65 = scalar_select %p62, %s63, %s64
    %p68 = pneg %p62
    %p69 = scmp.eq.s32.totalorder %s9, 1
    %p70 = por %p68, %p69
    %p71 = scmp.ne.s32.totalorder %s63, %s66
    %p72 = scmp.eq.s32.totalorder %s9, 0
    %p73 = por %p71, %p72
    %p74 = scmp.ne.s32.totalorder %s63, %s66
    %p75 = scmp.eq.s32.totalorder %s14, 1
    %p76 = por %p74, %p75
    %p77 = scmp.ne.s32.totalorder %s66, %s67
    %p78 = scmp.eq.s32.totalorder %s14, 0
    %p79 = por %p77, %p78
    %p80 = scmp.ne.s32.totalorder %s66, %s67
    %p81 = scmp.eq.s32.totalorder %s15, 1
    %p82 = por %p80, %p81
    %p84 = scmp.ne.s32.totalorder %s67, %s83
    %p85 = scmp.eq.s32.totalorder %s15, 0
    %p86 = por %p84, %p85
    %s88 = sadd.s32 %s87, 1
    %p91 = scmp.eq.s32.totalorder %s9, 1
    %p92 = scmp.ne.s32.totalorder %s87, %s89
    %p93 = scmp.eq.s32.totalorder %s9, 0
    %p94 = por %p92, %p93
    %p95 = scmp.ne.s32.totalorder %s87, %s89
    %p96 = scmp.eq.s32.totalorder %s14, 1
    %p97 = por %p95, %p96
    %p98 = scmp.ne.s32.totalorder %s89, %s90
    %p99 = scmp.eq.s32.totalorder %s14, 0
    %p100 = por %p98, %p99
    %p101 = scmp.ne.s32.totalorder %s89, %s90
    %p102 = scmp.eq.s32.totalorder %s15, 1
    %p103 = por %p101, %p102
    %p105 = scmp.ne.s32.totalorder %s90, %s104
    %p106 = scmp.eq.s32.totalorder %s15, 0
    %p107 = por %p105, %p106
    %s108 = ssub.s32 %s16, %s28
    %s109 = ssub.s32 %s17, %s24
    %s110 = sor.u32 %s108, %s109
    %p111 = scmp.eq.s32.totalorder %s110, 0
    %s113 = sadd.s32 %s112, 1
    %s114 = scalar_select %p111, %s112, %s113
    %p117 = pneg %p111
    %p118 = scmp.eq.s32.totalorder %s9, 1
    %p119 = por %p117, %p118
    %p120 = scmp.ne.s32.totalorder %s112, %s115
    %p121 = scmp.eq.s32.totalorder %s9, 0
    %p122 = por %p120, %p121
    %p123 = scmp.ne.s32.totalorder %s112, %s115
    %p124 = scmp.eq.s32.totalorder %s14, 1
    %p125 = por %p123, %p124
    %p126 = scmp.ne.s32.totalorder %s115, %s116
    %p127 = scmp.eq.s32.totalorder %s14, 0
    %p128 = por %p126, %p127
    %p129 = scmp.ne.s32.totalorder %s115, %s116
    %p130 = scmp.eq.s32.totalorder %s15, 1
    %p131 = por %p129, %p130
    %p133 = scmp.ne.s32.totalorder %s116, %s132
    %p134 = scmp.eq.s32.totalorder %s15, 0
    %p135 = por %p133, %p134
    %p136 = scmp.le.s32.totalorder 1, %s9
    %p137 = scmp.lt.s32.totalorder %s9, 3
    %p138 = pnand %p136, %p137
    %p139 = pneg %p138
    // Predicated region
    $region9: #{discriminator_forward.7} parent=5 // pred_check
      _
    $region10: #{discriminator_forward.7} parent=5 // pred_check_branch
      %141 = sbr.rel (%p138) target = $region12
    $region11: #{discriminator_forward.7} parent=5 // pred_region
      %s142 = ssub.s32 %s9, 1
      // Predicated region
      $region13: #{discriminator_forward.7} parent=11 // pred_check
        %p143 = pneg %p100
      $region14: #{discriminator_forward.7} parent=11 // pred_check_branch
        %145 = sbr.rel (%p143) target = $region16
      $region15: #{discriminator_forward.7} parent=11 // pred_region
        _
      $region16: #{discriminator_forward.7} parent=11 // pred_fallthru
        _
    $region12: #{discriminator_forward.7} parent=5 // pred_fallthru
      _
    %p146 = scmp.lt.s32.totalorder %s9, 2
    // Predicated region
    $region17: #{discriminator_forward.7} parent=5 // pred_check
      %p147 = pneg %p146
    $region18: #{discriminator_forward.7} parent=5 // pred_check_branch
      %149 = sbr.rel (%p147) target = $region20
    $region19: #{discriminator_forward.7} parent=5 // pred_region
      // Predicated region
      $region21: #{discriminator_forward.7} parent=19 // pred_check
        %p150 = pneg %p43
      $region22: #{discriminator_forward.7} parent=19 // pred_check_branch
        %152 = sbr.rel (%p150) target = $region24
      $region23: #{discriminator_forward.7} parent=19 // pred_region
        %s153 = smul.u32 4, %s17
        %p154 = scmp.lt.s32.totalorder %s16, 1
        %s155 = scalar_select %p154, %s16, 1
        %p156 = scmp.lt.s32.totalorder %s153, 7
        %s157 = scalar_select %p156, %s153, 7
        %s158 = smul.addr %s157, 2
        %s159 = smul.addr %s155, 16
        %s160 = sadd.s32 %s158, %s159
        %s161 = smul.addr %s160, 4
        %s162 = scalar_lea.vmem %s0, %s161
        %s163 = smul.u32 4, %s17
      $region24: #{discriminator_forward.7} parent=19 // pred_fallthru
        _
      // Predicated region
      $region25: #{discriminator_forward.7} parent=19 // pred_check
        %p164 = pneg %p73
      $region26: #{discriminator_forward.7} parent=19 // pred_check_branch
        %166 = sbr.rel (%p164) target = $region28
      $region27: #{discriminator_forward.7} parent=19 // pred_region
        %s167 = sadd.s32 %s17, 1
        %s168 = smul.u32 4, %s167
        %p169 = scmp.lt.s32.totalorder %s16, 1
        %s170 = scalar_select %p169, %s16, 1
        %p171 = scmp.lt.s32.totalorder %s168, 7
        %s172 = scalar_select %p171, %s168, 7
        %s173 = smul.addr %s172, 2
        %s174 = smul.addr %s170, 16
        %s175 = sadd.s32 %s173, %s174
        %s176 = smul.addr %s175, 4
        %s177 = scalar_lea.vmem %s1, %s176
        %s178 = sadd.s32 %s17, 1
        %s179 = smul.u32 4, %s178
      $region28: #{discriminator_forward.7} parent=19 // pred_fallthru
        _
    $region20: #{discriminator_forward.7} parent=5 // pred_fallthru
      _
    %p180 = scmp.le.s32.totalorder 1, %s9
    %p181 = scmp.lt.s32.totalorder %s9, 3
    %p182 = pnand %p180, %p181
    %p183 = pneg %p182
    // Predicated region
    $region29: #{discriminator_forward.7} parent=5 // pred_check
      _
    $region30: #{discriminator_forward.7} parent=5 // pred_check_branch
      %185 = sbr.rel (%p182) target = $region32
    $region31: #{discriminator_forward.7} parent=5 // pred_region
      %s186 = ssub.s32 %s9, 1
      %s187 = smul.u32 4, %s19
      %p188 = scmp.lt.s32.totalorder %s18, 1
      %s189 = scalar_select %p188, %s18, 1
      %p190 = scmp.lt.s32.totalorder %s187, 7
      %s191 = scalar_select %p190, %s187, 7
      %s192 = smul.addr %s191, 2
      %s193 = smul.addr %s189, 16
      %s194 = sadd.s32 %s192, %s193
      %s195 = smul.addr %s194, 4
      %s196 = scalar_lea.vmem %s0, %s195
      %p197 = pneg %p49
      %p198 = pneg %p46
      %s199 = sadd.s32 %s19, 1
      %s200 = smul.u32 4, %s199
      %p201 = scmp.lt.s32.totalorder %s18, 1
      %s202 = scalar_select %p201, %s18, 1
      %p203 = scmp.lt.s32.totalorder %s200, 7
      %s204 = scalar_select %p203, %s200, 7
      %s205 = smul.addr %s204, 2
      %s206 = smul.addr %s202, 16
      %s207 = sadd.s32 %s205, %s206
      %s208 = smul.addr %s207, 4
      %s209 = scalar_lea.vmem %s1, %s208
      %p210 = pneg %p79
      %p211 = pneg %p76
      %p212 = pneg %p100
      %p213 = pneg %p97
      %p214 = pneg %p128
      %p215 = pneg %p125
      %s216 = smul.u32 4, %s19
      %p217 = scmp.lt.s32.totalorder %s18, 1
      %s218 = scalar_select %p217, %s18, 1
      %p219 = scmp.lt.s32.totalorder %s216, 3
      %s220 = scalar_select %p219, %s216, 3
      %s221 = smul.addr %s218, 4
      %s222 = sadd.s32 %s220, %s221
      %s223 = smul.addr %s222, 8
      %s224 = scalar_lea.vmem %s3, %s223
      %s225 = smul.u32 4, %s19
      %p226 = scmp.lt.s32.totalorder %s18, 1
      %s227 = scalar_select %p226, %s18, 1
      %p228 = scmp.lt.s32.totalorder %s225, 7
      %s229 = scalar_select %p228, %s225, 7
      %s230 = smul.addr %s229, 2
      %s231 = smul.addr %s227, 16
      %s232 = sadd.s32 %s230, %s231
      %s233 = smul.addr %s232, 4
      %s234 = scalar_lea.vmem %s0, %s233
      %s235 = smul.u32 4, %s19
      %s236 = sadd.s32 %s19, 1
      %s237 = smul.u32 4, %s236
      %p238 = scmp.lt.s32.totalorder %s18, 1
      %s239 = scalar_select %p238, %s18, 1
      %p240 = scmp.lt.s32.totalorder %s237, 7
      %s241 = scalar_select %p240, %s237, 7
      %s242 = smul.addr %s241, 2
      %s243 = smul.addr %s239, 16
      %s244 = sadd.s32 %s242, %s243
      %s245 = smul.addr %s244, 4
      %s246 = scalar_lea.vmem %s1, %s245
      %s247 = sadd.s32 %s19, 1
      %s248 = smul.u32 4, %s247
      %s249 = smul.u32 4, %s19
      %p250 = scmp.lt.s32.totalorder %s18, 1
      %s251 = scalar_select %p250, %s18, 1
      %p252 = scmp.lt.s32.totalorder %s249, 3
      %s253 = scalar_select %p252, %s249, 3
      %s254 = smul.addr %s251, 4
      %s255 = sadd.s32 %s253, %s254
      %s256 = smul.addr %s255, 8
      %s257 = scalar_lea.vmem %s3, %s256
      %s258 = smul.u32 4, %s19
      %v260 = vld [vmem:[%s234] sm:$0xff]
      %v261 = vld [vmem:[%s234 + $0x8] sm:$0xff]
      %v262 = vld [vmem:[%s234 + $0x10] sm:$0xff]
      %v263 = vld [vmem:[%s234 + $0x18] sm:$0xff]
      %v264 = vld [vmem:[%s246] sm:$0xff]
      %v265 = vld [vmem:[%s246 + $0x8] sm:$0xff]
      %v266 = vld [vmem:[%s246 + $0x10] sm:$0xff]
      %v267 = vld [vmem:[%s246 + $0x18] sm:$0xff]
      %v272 = vunpack.c.l.b16 %v260
      %v273 = vunpack.c.h.b16 %v260
      %v274 = vunpack.c.l.b16 %v261
      %v275 = vunpack.c.h.b16 %v261
      %v276 = vunpack.c.l.b16 %v262
      %v277 = vunpack.c.h.b16 %v262
      %v278 = vunpack.c.l.b16 %v263
      %v279 = vunpack.c.h.b16 %v263
      %v280 = vpack.c.b16 %v274, %v272
      %v281 = vpack.c.b16 %v275, %v273
      %v282 = vpack.c.b16 %v278, %v276
      %v283 = vpack.c.b16 %v279, %v277
      %v292 = vunpack.c.l.b16 %v264
      %v293 = vunpack.c.h.b16 %v264
      %v294 = vunpack.c.l.b16 %v265
      %v295 = vunpack.c.h.b16 %v265
      %v296 = vunpack.c.l.b16 %v266
      %v297 = vunpack.c.h.b16 %v266
      %v298 = vunpack.c.l.b16 %v267
      %v299 = vunpack.c.h.b16 %v267
      %v300 = vpack.c.b16 %v294, %v292
      %v301 = vpack.c.b16 %v295, %v293
      %v302 = vpack.c.b16 %v298, %v296
      %v303 = vpack.c.b16 %v299, %v297
      %v306 = vld [vmem:[%s2] sm:$0xf]
      %v307 = vld [vmem:[%s2 + $0x4] sm:$0xf]
      %v308 = vld [vmem:[%s2 + $0x8] sm:$0xf]
      %v309 = vld [vmem:[%s2 + $0xc] sm:$0xf]
      %v310 = vld [vmem:[%s2 + $0x10] sm:$0xf]
      %v311 = vld [vmem:[%s2 + $0x14] sm:$0xf]
      %v312 = vld [vmem:[%s2 + $0x18] sm:$0xf]
      %v313 = vld [vmem:[%s2 + $0x1c] sm:$0xf]
      %v314 = vld [vmem:[%s2 + $0x20] sm:$0xf]
      %v315 = vld [vmem:[%s2 + $0x24] sm:$0xf]
      %v316 = vld [vmem:[%s2 + $0x28] sm:$0xf]
      %v317 = vld [vmem:[%s2 + $0x2c] sm:$0xf]
      %v318 = vld [vmem:[%s2 + $0x30] sm:$0xf]
      %v319 = vld [vmem:[%s2 + $0x34] sm:$0xf]
      %v320 = vld [vmem:[%s2 + $0x38] sm:$0xf]
      %v321 = vld [vmem:[%s2 + $0x3c] sm:$0xf]
      %v322 = vld [vmem:[%s2 + $0x40] sm:$0xf]
      %v323 = vld [vmem:[%s2 + $0x44] sm:$0xf]
      %v324 = vld [vmem:[%s2 + $0x48] sm:$0xf]
      %v325 = vld [vmem:[%s2 + $0x4c] sm:$0xf]
      %v326 = vld [vmem:[%s2 + $0x50] sm:$0xf]
      %v327 = vld [vmem:[%s2 + $0x54] sm:$0xf]
      %v328 = vld [vmem:[%s2 + $0x58] sm:$0xf]
      %v329 = vld [vmem:[%s2 + $0x5c] sm:$0xf]
      %v330 = vld [vmem:[%s2 + $0x60] sm:$0xf]
      %v331 = vld [vmem:[%s2 + $0x64] sm:$0xf]
      %v332 = vld [vmem:[%s2 + $0x68] sm:$0xf]
      %v333 = vld [vmem:[%s2 + $0x6c] sm:$0xf]
      %v334 = vld [vmem:[%s2 + $0x70] sm:$0xf]
      %v335 = vld [vmem:[%s2 + $0x74] sm:$0xf]
      %v336 = vld [vmem:[%s2 + $0x78] sm:$0xf]
      %v337 = vld [vmem:[%s2 + $0x7c] sm:$0xf]
      %s338 = scalar_lea.vmem %s2, 128
      %v339 = vld [vmem:[%s338] sm:$0xf]
      %v340 = vld [vmem:[%s338 + $0x4] sm:$0xf]
      %v341 = vld [vmem:[%s338 + $0x8] sm:$0xf]
      %v342 = vld [vmem:[%s338 + $0xc] sm:$0xf]
      %v343 = vld [vmem:[%s338 + $0x10] sm:$0xf]
      %v344 = vld [vmem:[%s338 + $0x14] sm:$0xf]
      %v345 = vld [vmem:[%s338 + $0x18] sm:$0xf]
      %v346 = vld [vmem:[%s338 + $0x1c] sm:$0xf]
      %v347 = vld [vmem:[%s338 + $0x20] sm:$0xf]
      %v348 = vld [vmem:[%s338 + $0x24] sm:$0xf]
      %v349 = vld [vmem:[%s338 + $0x28] sm:$0xf]
      %v350 = vld [vmem:[%s338 + $0x2c] sm:$0xf]
      %v351 = vld [vmem:[%s338 + $0x30] sm:$0xf]
      %v352 = vld [vmem:[%s338 + $0x34] sm:$0xf]
      %v353 = vld [vmem:[%s338 + $0x38] sm:$0xf]
      %v354 = vld [vmem:[%s338 + $0x3c] sm:$0xf]
      %v355 = vld [vmem:[%s338 + $0x40] sm:$0xf]
      %v356 = vld [vmem:[%s338 + $0x44] sm:$0xf]
      %v357 = vld [vmem:[%s338 + $0x48] sm:$0xf]
      %v358 = vld [vmem:[%s338 + $0x4c] sm:$0xf]
      %v359 = vld [vmem:[%s338 + $0x50] sm:$0xf]
      %v360 = vld [vmem:[%s338 + $0x54] sm:$0xf]
      %v361 = vld [vmem:[%s338 + $0x58] sm:$0xf]
      %v362 = vld [vmem:[%s338 + $0x5c] sm:$0xf]
      %v363 = vld [vmem:[%s338 + $0x60] sm:$0xf]
      %v364 = vld [vmem:[%s338 + $0x64] sm:$0xf]
      %v365 = vld [vmem:[%s338 + $0x68] sm:$0xf]
      %v366 = vld [vmem:[%s338 + $0x6c] sm:$0xf]
      %v367 = vld [vmem:[%s338 + $0x70] sm:$0xf]
      %v368 = vld [vmem:[%s338 + $0x74] sm:$0xf]
      %v369 = vld [vmem:[%s338 + $0x78] sm:$0xf]
      %v370 = vld [vmem:[%s338 + $0x7c] sm:$0xf]
      %vm371 = vsmask.f32 7424
      %v373 = vshrl.u32 %v280, 16
      %v375 = vshll.u32 %v280, 16
      %v377 = vrot.slane %v375, 1
      %v378 = vor.u32 %v373, %v377
      %v380 = vshll.u32 %v282, 16
      %v382 = vrot.slane %v380, 1
      %v383 = vsel %vm371, %v378, %v382
      %v385 = vshrl.u32 %v281, 16
      %v387 = vshll.u32 %v281, 16
      %v389 = vrot.slane %v387, 1
      %v390 = vor.u32 %v385, %v389
      %v392 = vshll.u32 %v283, 16
      %v394 = vrot.slane %v392, 1
      %v395 = vsel %vm371, %v390, %v394
      %v396 = vshrl.u32 %v282, 16
      %v398 = vor.u32 %v396, %v382
      %v400 = vshll.u32 %v300, 16
      %v402 = vrot.slane %v400, 1
      %v403 = vsel %vm371, %v398, %v402
      %v404 = vshrl.u32 %v283, 16
      %v406 = vor.u32 %v404, %v394
      %v408 = vshll.u32 %v301, 16
      %v410 = vrot.slane %v408, 1
      %v411 = vsel %vm371, %v406, %v410
      %v448 = vunpack.c.l.b16 %v339
      %v449 = vunpack.c.l.b16 %v340
      %v450 = vunpack.c.l.b16 %v341
      %v451 = vunpack.c.l.b16 %v342
      %v452 = vunpack.c.l.b16 %v343
      %v453 = vunpack.c.l.b16 %v344
      %v454 = vunpack.c.l.b16 %v345
      %v455 = vunpack.c.l.b16 %v346
      %v456 = vunpack.c.l.b16 %v347
      %v457 = vunpack.c.l.b16 %v348
      %v458 = vunpack.c.l.b16 %v349
      %v459 = vunpack.c.l.b16 %v350
      %v460 = vunpack.c.l.b16 %v351
      %v461 = vunpack.c.l.b16 %v352
      %v462 = vunpack.c.l.b16 %v353
      %v463 = vunpack.c.l.b16 %v354
      %v464 = vunpack.c.l.b16 %v355
      %v465 = vunpack.c.l.b16 %v356
      %v466 = vunpack.c.l.b16 %v357
      %v467 = vunpack.c.l.b16 %v358
      %v468 = vunpack.c.l.b16 %v359
      %v469 = vunpack.c.l.b16 %v360
      %v470 = vunpack.c.l.b16 %v361
      %v471 = vunpack.c.l.b16 %v362
      %v472 = vunpack.c.l.b16 %v363
      %v473 = vunpack.c.l.b16 %v364
      %v474 = vunpack.c.l.b16 %v365
      %v475 = vunpack.c.l.b16 %v366
      %v476 = vunpack.c.l.b16 %v367
      %v477 = vunpack.c.l.b16 %v368
      %v478 = vunpack.c.l.b16 %v369
      %v479 = vunpack.c.l.b16 %v370
      %v480 = vpack.c.b16 %v449, %v448
      %v481 = vpack.c.b16 %v451, %v450
      %v482 = vpack.c.b16 %v453, %v452
      %v483 = vpack.c.b16 %v455, %v454
      %v484 = vpack.c.b16 %v457, %v456
      %v485 = vpack.c.b16 %v459, %v458
      %v486 = vpack.c.b16 %v461, %v460
      %v487 = vpack.c.b16 %v463, %v462
      %v488 = vpack.c.b16 %v465, %v464
      %v489 = vpack.c.b16 %v467, %v466
      %v490 = vpack.c.b16 %v469, %v468
      %v491 = vpack.c.b16 %v471, %v470
      %v492 = vpack.c.b16 %v473, %v472
      %v493 = vpack.c.b16 %v475, %v474
      %v494 = vpack.c.b16 %v477, %v476
      %v495 = vpack.c.b16 %v479, %v478
      %512 = vmatprep.subr.bf16.mxu0 0
      %513 = vmatpush1.bf16.msra.mxu0 %v480
      %514 = vmatprep.subr.bf16.mxu0 0
      %515 = vmatpush1.bf16.msra.mxu0 %v481
      %516 = vmatprep.subr.bf16.mxu0 0
      %517 = vmatpush1.bf16.msra.mxu0 %v482
      %518 = vmatprep.subr.bf16.mxu0 0
      %519 = vmatpush1.bf16.msra.mxu0 %v483
      %520 = vmatprep.subr.bf16.mxu0 0
      %521 = vmatpush1.bf16.msra.mxu0 %v484
      %522 = vmatprep.subr.bf16.mxu0 0
      %523 = vmatpush1.bf16.msra.mxu0 %v485
      %524 = vmatprep.subr.bf16.mxu0 0
      %525 = vmatpush1.bf16.msra.mxu0 %v486
      %526 = vmatprep.subr.bf16.mxu0 0
      %527 = vmatpush1.bf16.msra.mxu0 %v487
      %528 = vmatprep.subr.bf16.mxu0 0
      %529 = vmatpush1.bf16.msra.mxu0 %v488
      %530 = vmatprep.subr.bf16.mxu0 0
      %531 = vmatpush1.bf16.msra.mxu0 %v489
      %532 = vmatprep.subr.bf16.mxu0 0
      %533 = vmatpush1.bf16.msra.mxu0 %v490
      %534 = vmatprep.subr.bf16.mxu0 0
      %535 = vmatpush1.bf16.msra.mxu0 %v491
      %536 = vmatprep.subr.bf16.mxu0 0
      %537 = vmatpush1.bf16.msra.mxu0 %v492
      %538 = vmatprep.subr.bf16.mxu0 0
      %539 = vmatpush1.bf16.msra.mxu0 %v493
      %540 = vmatprep.subr.bf16.mxu0 0
      %541 = vmatpush1.bf16.msra.mxu0 %v494
      %542 = vmatprep.subr.bf16.mxu0 0
      %543 = vmatpush1.bf16.msra.mxu0 %v495
      %544 = vmatprep.mubr.bf16.mxu0 %v395
      %545 = vmatmul.mubr.bf16.gmra.mrb[0].mxu0 %v383
      %v546 = vpop.f32.mrb[0].mxu0
      %v547 = vadd.f32 0.0, %v546
      %v548 = vpop.f32.mrb[0].mxu0
      %v549 = vpop.f32.mrb[0].mxu0
      %v550 = vadd.f32 0.0, %v549
      %v551 = vpop.f32.mrb[0].mxu0
      %552 = vmatprep.mubr.bf16.mxu0 %v411
      %553 = vmatmul.mubr.bf16.gmra.mrb[0].mxu0 %v403
      %v554 = vpop.f32.mrb[0].mxu0
      %v555 = vadd.f32 0.0, %v554
      %v556 = vpop.f32.mrb[0].mxu0
      %v557 = vpop.f32.mrb[0].mxu0
      %v558 = vadd.f32 0.0, %v557
      %v559 = vpop.f32.mrb[0].mxu0
      %560 = vdwg.mxu0
      %v593 = vunpack.c.l.b16 %v306
      %v594 = vunpack.c.l.b16 %v307
      %v595 = vunpack.c.l.b16 %v308
      %v596 = vunpack.c.l.b16 %v309
      %v597 = vunpack.c.l.b16 %v310
      %v598 = vunpack.c.l.b16 %v311
      %v599 = vunpack.c.l.b16 %v312
      %v600 = vunpack.c.l.b16 %v313
      %v601 = vunpack.c.l.b16 %v314
      %v602 = vunpack.c.l.b16 %v315
      %v603 = vunpack.c.l.b16 %v316
      %v604 = vunpack.c.l.b16 %v317
      %v605 = vunpack.c.l.b16 %v318
      %v606 = vunpack.c.l.b16 %v319
      %v607 = vunpack.c.l.b16 %v320
      %v608 = vunpack.c.l.b16 %v321
      %v609 = vunpack.c.l.b16 %v322
      %v610 = vunpack.c.l.b16 %v323
      %v611 = vunpack.c.l.b16 %v324
      %v612 = vunpack.c.l.b16 %v325
      %v613 = vunpack.c.l.b16 %v326
      %v614 = vunpack.c.l.b16 %v327
      %v615 = vunpack.c.l.b16 %v328
      %v616 = vunpack.c.l.b16 %v329
      %v617 = vunpack.c.l.b16 %v330
      %v618 = vunpack.c.l.b16 %v331
      %v619 = vunpack.c.l.b16 %v332
      %v620 = vunpack.c.l.b16 %v333
      %v621 = vunpack.c.l.b16 %v334
      %v622 = vunpack.c.l.b16 %v335
      %v623 = vunpack.c.l.b16 %v336
      %v624 = vunpack.c.l.b16 %v337
      %v625 = vpack.c.b16 %v594, %v593
      %v626 = vpack.c.b16 %v596, %v595
      %v627 = vpack.c.b16 %v598, %v597
      %v628 = vpack.c.b16 %v600, %v599
      %v629 = vpack.c.b16 %v602, %v601
      %v630 = vpack.c.b16 %v604, %v603
      %v631 = vpack.c.b16 %v606, %v605
      %v632 = vpack.c.b16 %v608, %v607
      %v633 = vpack.c.b16 %v610, %v609
      %v634 = vpack.c.b16 %v612, %v611
      %v635 = vpack.c.b16 %v614, %v613
      %v636 = vpack.c.b16 %v616, %v615
      %v637 = vpack.c.b16 %v618, %v617
      %v638 = vpack.c.b16 %v620, %v619
      %v639 = vpack.c.b16 %v622, %v621
      %v640 = vpack.c.b16 %v624, %v623
      %657 = vmatprep.subr.bf16.mxu0 0
      %658 = vmatpush1.bf16.msra.mxu0 %v625
      %659 = vmatprep.subr.bf16.mxu0 0
      %660 = vmatpush1.bf16.msra.mxu0 %v626
      %661 = vmatprep.subr.bf16.mxu0 0
      %662 = vmatpush1.bf16.msra.mxu0 %v627
      %663 = vmatprep.subr.bf16.mxu0 0
      %664 = vmatpush1.bf16.msra.mxu0 %v628
      %665 = vmatprep.subr.bf16.mxu0 0
      %666 = vmatpush1.bf16.msra.mxu0 %v629
      %667 = vmatprep.subr.bf16.mxu0 0
      %668 = vmatpush1.bf16.msra.mxu0 %v630
      %669 = vmatprep.subr.bf16.mxu0 0
      %670 = vmatpush1.bf16.msra.mxu0 %v631
      %671 = vmatprep.subr.bf16.mxu0 0
      %672 = vmatpush1.bf16.msra.mxu0 %v632
      %673 = vmatprep.subr.bf16.mxu0 0
      %674 = vmatpush1.bf16.msra.mxu0 %v633
      %675 = vmatprep.subr.bf16.mxu0 0
      %676 = vmatpush1.bf16.msra.mxu0 %v634
      %677 = vmatprep.subr.bf16.mxu0 0
      %678 = vmatpush1.bf16.msra.mxu0 %v635
      %679 = vmatprep.subr.bf16.mxu0 0
      %680 = vmatpush1.bf16.msra.mxu0 %v636
      %681 = vmatprep.subr.bf16.mxu0 0
      %682 = vmatpush1.bf16.msra.mxu0 %v637
      %683 = vmatprep.subr.bf16.mxu0 0
      %684 = vmatpush1.bf16.msra.mxu0 %v638
      %685 = vmatprep.subr.bf16.mxu0 0
      %686 = vmatpush1.bf16.msra.mxu0 %v639
      %687 = vmatprep.subr.bf16.mxu0 0
      %688 = vmatpush1.bf16.msra.mxu0 %v640
      %689 = vmatprep.mubr.bf16.mxu0 %v281
      %690 = vmatmul.mubr.bf16.gmra.mrb[0].mxu0 %v280
      %v691 = vpop.f32.mrb[0].mxu0
      %v692 = vadd.f32 %v547, %v691
      %v693 = vpop.f32.mrb[0].mxu0
      %v694 = vpop.f32.mrb[0].mxu0
      %v695 = vadd.f32 %v550, %v694
      %v696 = vpop.f32.mrb[0].mxu0
      %697 = vmatprep.mubr.bf16.mxu0 %v283
      %698 = vmatmul.mubr.bf16.gmra.mrb[0].mxu0 %v282
      %v699 = vpop.f32.mrb[0].mxu0
      %v700 = vadd.f32 %v555, %v699
      %v701 = vpop.f32.mrb[0].mxu0
      %v702 = vpop.f32.mrb[0].mxu0
      %v703 = vadd.f32 %v558, %v702
      %v704 = vpop.f32.mrb[0].mxu0
      %705 = vdwg.mxu0
      %s706 = scalar_lea.vmem %s2, 256
      %v707 = vld [vmem:[%s706] sm:$0xf]
      %v708 = vld [vmem:[%s706 + $0x4] sm:$0xf]
      %v709 = vld [vmem:[%s706 + $0x8] sm:$0xf]
      %v710 = vld [vmem:[%s706 + $0xc] sm:$0xf]
      %v711 = vld [vmem:[%s706 + $0x10] sm:$0xf]
      %v712 = vld [vmem:[%s706 + $0x14] sm:$0xf]
      %v713 = vld [vmem:[%s706 + $0x18] sm:$0xf]
      %v714 = vld [vmem:[%s706 + $0x1c] sm:$0xf]
      %v715 = vld [vmem:[%s706 + $0x20] sm:$0xf]
      %v716 = vld [vmem:[%s706 + $0x24] sm:$0xf]
      %v717 = vld [vmem:[%s706 + $0x28] sm:$0xf]
      %v718 = vld [vmem:[%s706 + $0x2c] sm:$0xf]
      %v719 = vld [vmem:[%s706 + $0x30] sm:$0xf]
      %v720 = vld [vmem:[%s706 + $0x34] sm:$0xf]
      %v721 = vld [vmem:[%s706 + $0x38] sm:$0xf]
      %v722 = vld [vmem:[%s706 + $0x3c] sm:$0xf]
      %v723 = vld [vmem:[%s706 + $0x40] sm:$0xf]
      %v724 = vld [vmem:[%s706 + $0x44] sm:$0xf]
      %v725 = vld [vmem:[%s706 + $0x48] sm:$0xf]
      %v726 = vld [vmem:[%s706 + $0x4c] sm:$0xf]
      %v727 = vld [vmem:[%s706 + $0x50] sm:$0xf]
      %v728 = vld [vmem:[%s706 + $0x54] sm:$0xf]
      %v729 = vld [vmem:[%s706 + $0x58] sm:$0xf]
      %v730 = vld [vmem:[%s706 + $0x5c] sm:$0xf]
      %v731 = vld [vmem:[%s706 + $0x60] sm:$0xf]
      %v732 = vld [vmem:[%s706 + $0x64] sm:$0xf]
      %v733 = vld [vmem:[%s706 + $0x68] sm:$0xf]
      %v734 = vld [vmem:[%s706 + $0x6c] sm:$0xf]
      %v735 = vld [vmem:[%s706 + $0x70] sm:$0xf]
      %v736 = vld [vmem:[%s706 + $0x74] sm:$0xf]
      %v737 = vld [vmem:[%s706 + $0x78] sm:$0xf]
      %v738 = vld [vmem:[%s706 + $0x7c] sm:$0xf]
      %vm739 = vcmask 1046528
      %v740 = vrot.slane %v280, 1
      %v741 = vrot.slane %v282, 1
      %v742 = vsel %vm739, %v740, %v741
      %v743 = vrot.slane %v281, 1
      %v744 = vrot.slane %v283, 1
      %v745 = vsel %vm739, %v743, %v744
      %v746 = vrot.slane %v300, 1
      %v747 = vsel %vm739, %v741, %v746
      %v748 = vrot.slane %v301, 1
      %v749 = vsel %vm739, %v744, %v748
      %v786 = vunpack.c.l.b16 %v707
      %v787 = vunpack.c.l.b16 %v708
      %v788 = vunpack.c.l.b16 %v709
      %v789 = vunpack.c.l.b16 %v710
      %v790 = vunpack.c.l.b16 %v711
      %v791 = vunpack.c.l.b16 %v712
      %v792 = vunpack.c.l.b16 %v713
      %v793 = vunpack.c.l.b16 %v714
      %v794 = vunpack.c.l.b16 %v715
      %v795 = vunpack.c.l.b16 %v716
      %v796 = vunpack.c.l.b16 %v717
      %v797 = vunpack.c.l.b16 %v718
      %v798 = vunpack.c.l.b16 %v719
      %v799 = vunpack.c.l.b16 %v720
      %v800 = vunpack.c.l.b16 %v721
      %v801 = vunpack.c.l.b16 %v722
      %v802 = vunpack.c.l.b16 %v723
      %v803 = vunpack.c.l.b16 %v724
      %v804 = vunpack.c.l.b16 %v725
      %v805 = vunpack.c.l.b16 %v726
      %v806 = vunpack.c.l.b16 %v727
      %v807 = vunpack.c.l.b16 %v728
      %v808 = vunpack.c.l.b16 %v729
      %v809 = vunpack.c.l.b16 %v730
      %v810 = vunpack.c.l.b16 %v731
      %v811 = vunpack.c.l.b16 %v732
      %v812 = vunpack.c.l.b16 %v733
      %v813 = vunpack.c.l.b16 %v734
      %v814 = vunpack.c.l.b16 %v735
      %v815 = vunpack.c.l.b16 %v736
      %v816 = vunpack.c.l.b16 %v737
      %v817 = vunpack.c.l.b16 %v738
      %v818 = vpack.c.b16 %v787, %v786
      %v819 = vpack.c.b16 %v789, %v788
      %v820 = vpack.c.b16 %v791, %v790
      %v821 = vpack.c.b16 %v793, %v792
      %v822 = vpack.c.b16 %v795, %v794
      %v823 = vpack.c.b16 %v797, %v796
      %v824 = vpack.c.b16 %v799, %v798
      %v825 = vpack.c.b16 %v801, %v800
      %v826 = vpack.c.b16 %v803, %v802
      %v827 = vpack.c.b16 %v805, %v804
      %v828 = vpack.c.b16 %v807, %v806
      %v829 = vpack.c.b16 %v809, %v808
      %v830 = vpack.c.b16 %v811, %v810
      %v831 = vpack.c.b16 %v813, %v812
      %v832 = vpack.c.b16 %v815, %v814
      %v833 = vpack.c.b16 %v817, %v816
      %850 = vmatprep.subr.bf16.mxu0 0
      %851 = vmatpush1.bf16.msra.mxu0 %v818
      %852 = vmatprep.subr.bf16.mxu0 0
      %853 = vmatpush1.bf16.msra.mxu0 %v819
      %854 = vmatprep.subr.bf16.mxu0 0
      %855 = vmatpush1.bf16.msra.mxu0 %v820
      %856 = vmatprep.subr.bf16.mxu0 0
      %857 = vmatpush1.bf16.msra.mxu0 %v821
      %858 = vmatprep.subr.bf16.mxu0 0
      %859 = vmatpush1.bf16.msra.mxu0 %v822
      %860 = vmatprep.subr.bf16.mxu0 0
      %861 = vmatpush1.bf16.msra.mxu0 %v823
      %862 = vmatprep.subr.bf16.mxu0 0
      %863 = vmatpush1.bf16.msra.mxu0 %v824
      %864 = vmatprep.subr.bf16.mxu0 0
      %865 = vmatpush1.bf16.msra.mxu0 %v825
      %866 = vmatprep.subr.bf16.mxu0 0
      %867 = vmatpush1.bf16.msra.mxu0 %v826
      %868 = vmatprep.subr.bf16.mxu0 0
      %869 = vmatpush1.bf16.msra.mxu0 %v827
      %870 = vmatprep.subr.bf16.mxu0 0
      %871 = vmatpush1.bf16.msra.mxu0 %v828
      %872 = vmatprep.subr.bf16.mxu0 0
      %873 = vmatpush1.bf16.msra.mxu0 %v829
      %874 = vmatprep.subr.bf16.mxu0 0
      %875 = vmatpush1.bf16.msra.mxu0 %v830
      %876 = vmatprep.subr.bf16.mxu0 0
      %877 = vmatpush1.bf16.msra.mxu0 %v831
      %878 = vmatprep.subr.bf16.mxu0 0
      %879 = vmatpush1.bf16.msra.mxu0 %v832
      %880 = vmatprep.subr.bf16.mxu0 0
      %881 = vmatpush1.bf16.msra.mxu0 %v833
      %882 = vmatprep.mubr.bf16.mxu0 %v745
      %883 = vmatmul.mubr.bf16.gmra.mrb[0].mxu0 %v742
      %v884 = vpop.f32.mrb[0].mxu0
      %v885 = vadd.f32 0.0, %v884
      %v886 = vpop.f32.mrb[0].mxu0
      %v887 = vpop.f32.mrb[0].mxu0
      %v888 = vadd.f32 0.0, %v887
      %v889 = vpop.f32.mrb[0].mxu0
      %890 = vmatprep.mubr.bf16.mxu0 %v749
      %891 = vmatmul.mubr.bf16.gmra.mrb[0].mxu0 %v747
      %v892 = vpop.f32.mrb[0].mxu0
      %v893 = vadd.f32 0.0, %v892
      %v894 = vpop.f32.mrb[0].mxu0
      %v895 = vpop.f32.mrb[0].mxu0
      %v896 = vadd.f32 0.0, %v895
      %v897 = vpop.f32.mrb[0].mxu0
      %898 = vdwg.mxu0
      %v899 = vadd.f32 %v692, %v885
      %v900 = vadd.f32 %v695, %v888
      %v901 = vadd.f32 %v700, %v893
      %v902 = vadd.f32 %v703, %v896
      %s903 = scalar_lea.vmem %s2, 384
      %v904 = vld [vmem:[%s903] sm:$0xf]
      %v905 = vld [vmem:[%s903 + $0x4] sm:$0xf]
      %v906 = vld [vmem:[%s903 + $0x8] sm:$0xf]
      %v907 = vld [vmem:[%s903 + $0xc] sm:$0xf]
      %v908 = vld [vmem:[%s903 + $0x10] sm:$0xf]
      %v909 = vld [vmem:[%s903 + $0x14] sm:$0xf]
      %v910 = vld [vmem:[%s903 + $0x18] sm:$0xf]
      %v911 = vld [vmem:[%s903 + $0x1c] sm:$0xf]
      %v912 = vld [vmem:[%s903 + $0x20] sm:$0xf]
      %v913 = vld [vmem:[%s903 + $0x24] sm:$0xf]
      %v914 = vld [vmem:[%s903 + $0x28] sm:$0xf]
      %v915 = vld [vmem:[%s903 + $0x2c] sm:$0xf]
      %v916 = vld [vmem:[%s903 + $0x30] sm:$0xf]
      %v917 = vld [vmem:[%s903 + $0x34] sm:$0xf]
      %v918 = vld [vmem:[%s903 + $0x38] sm:$0xf]
      %v919 = vld [vmem:[%s903 + $0x3c] sm:$0xf]
      %v920 = vld [vmem:[%s903 + $0x40] sm:$0xf]
      %v921 = vld [vmem:[%s903 + $0x44] sm:$0xf]
      %v922 = vld [vmem:[%s903 + $0x48] sm:$0xf]
      %v923 = vld [vmem:[%s903 + $0x4c] sm:$0xf]
      %v924 = vld [vmem:[%s903 + $0x50] sm:$0xf]
      %v925 = vld [vmem:[%s903 + $0x54] sm:$0xf]
      %v926 = vld [vmem:[%s903 + $0x58] sm:$0xf]
      %v927 = vld [vmem:[%s903 + $0x5c] sm:$0xf]
      %v928 = vld [vmem:[%s903 + $0x60] sm:$0xf]
      %v929 = vld [vmem:[%s903 + $0x64] sm:$0xf]
      %v930 = vld [vmem:[%s903 + $0x68] sm:$0xf]
      %v931 = vld [vmem:[%s903 + $0x6c] sm:$0xf]
      %v932 = vld [vmem:[%s903 + $0x70] sm:$0xf]
      %v933 = vld [vmem:[%s903 + $0x74] sm:$0xf]
      %v934 = vld [vmem:[%s903 + $0x78] sm:$0xf]
      %v935 = vld [vmem:[%s903 + $0x7c] sm:$0xf]
      %vm936 = vsmask.f32 6400
      %v937 = vrot.slane %v373, 1
      %v938 = vrot.slane %v375, 2
      %v939 = vor.u32 %v937, %v938
      %v940 = vrot.slane %v396, 1
      %v941 = vrot.slane %v380, 2
      %v942 = vor.u32 %v940, %v941
      %v943 = vsel %vm936, %v939, %v942
      %v944 = vrot.slane %v385, 1
      %v945 = vrot.slane %v387, 2
      %v946 = vor.u32 %v944, %v945
      %v947 = vrot.slane %v404, 1
      %v948 = vrot.slane %v392, 2
      %v949 = vor.u32 %v947, %v948
      %v950 = vsel %vm936, %v946, %v949
      %v951 = vshrl.u32 %v300, 16
      %v953 = vrot.slane %v951, 1
      %v954 = vrot.slane %v400, 2
      %v955 = vor.u32 %v953, %v954
      %v956 = vsel %vm936, %v942, %v955
      %v957 = vshrl.u32 %v301, 16
      %v959 = vrot.slane %v957, 1
      %v960 = vrot.slane %v408, 2
      %v961 = vor.u32 %v959, %v960
      %v962 = vsel %vm936, %v949, %v961
      %v999 = vunpack.c.l.b16 %v904
      %v1000 = vunpack.c.l.b16 %v905
      %v1001 = vunpack.c.l.b16 %v906
      %v1002 = vunpack.c.l.b16 %v907
      %v1003 = vunpack.c.l.b16 %v908
      %v1004 = vunpack.c.l.b16 %v909
      %v1005 = vunpack.c.l.b16 %v910
      %v1006 = vunpack.c.l.b16 %v911
      %v1007 = vunpack.c.l.b16 %v912
      %v1008 = vunpack.c.l.b16 %v913
      %v1009 = vunpack.c.l.b16 %v914
      %v1010 = vunpack.c.l.b16 %v915
      %v1011 = vunpack.c.l.b16 %v916
      %v1012 = vunpack.c.l.b16 %v917
      %v1013 = vunpack.c.l.b16 %v918
      %v1014 = vunpack.c.l.b16 %v919
      %v1015 = vunpack.c.l.b16 %v920
      %v1016 = vunpack.c.l.b16 %v921
      %v1017 = vunpack.c.l.b16 %v922
      %v1018 = vunpack.c.l.b16 %v923
      %v1019 = vunpack.c.l.b16 %v924
      %v1020 = vunpack.c.l.b16 %v925
      %v1021 = vunpack.c.l.b16 %v926
      %v1022 = vunpack.c.l.b16 %v927
      %v1023 = vunpack.c.l.b16 %v928
      %v1024 = vunpack.c.l.b16 %v929
      %v1025 = vunpack.c.l.b16 %v930
      %v1026 = vunpack.c.l.b16 %v931
      %v1027 = vunpack.c.l.b16 %v932
      %v1028 = vunpack.c.l.b16 %v933
      %v1029 = vunpack.c.l.b16 %v934
      %v1030 = vunpack.c.l.b16 %v935
      %v1031 = vpack.c.b16 %v1000, %v999
      %v1032 = vpack.c.b16 %v1002, %v1001
      %v1033 = vpack.c.b16 %v1004, %v1003
      %v1034 = vpack.c.b16 %v1006, %v1005
      %v1035 = vpack.c.b16 %v1008, %v1007
      %v1036 = vpack.c.b16 %v1010, %v1009
      %v1037 = vpack.c.b16 %v1012, %v1011
      %v1038 = vpack.c.b16 %v1014, %v1013
      %v1039 = vpack.c.b16 %v1016, %v1015
      %v1040 = vpack.c.b16 %v1018, %v1017
      %v1041 = vpack.c.b16 %v1020, %v1019
      %v1042 = vpack.c.b16 %v1022, %v1021
      %v1043 = vpack.c.b16 %v1024, %v1023
      %v1044 = vpack.c.b16 %v1026, %v1025
      %v1045 = vpack.c.b16 %v1028, %v1027
      %v1046 = vpack.c.b16 %v1030, %v1029
      %1063 = vmatprep.subr.bf16.mxu0 0
      %1064 = vmatpush1.bf16.msra.mxu0 %v1031
      %1065 = vmatprep.subr.bf16.mxu0 0
      %1066 = vmatpush1.bf16.msra.mxu0 %v1032
      %1067 = vmatprep.subr.bf16.mxu0 0
      %1068 = vmatpush1.bf16.msra.mxu0 %v1033
      %1069 = vmatprep.subr.bf16.mxu0 0
      %1070 = vmatpush1.bf16.msra.mxu0 %v1034
      %1071 = vmatprep.subr.bf16.mxu0 0
      %1072 = vmatpush1.bf16.msra.mxu0 %v1035
      %1073 = vmatprep.subr.bf16.mxu0 0
      %1074 = vmatpush1.bf16.msra.mxu0 %v1036
      %1075 = vmatprep.subr.bf16.mxu0 0
      %1076 = vmatpush1.bf16.msra.mxu0 %v1037
      %1077 = vmatprep.subr.bf16.mxu0 0
      %1078 = vmatpush1.bf16.msra.mxu0 %v1038
      %1079 = vmatprep.subr.bf16.mxu0 0
      %1080 = vmatpush1.bf16.msra.mxu0 %v1039
      %1081 = vmatprep.subr.bf16.mxu0 0
      %1082 = vmatpush1.bf16.msra.mxu0 %v1040
      %1083 = vmatprep.subr.bf16.mxu0 0
      %1084 = vmatpush1.bf16.msra.mxu0 %v1041
      %1085 = vmatprep.subr.bf16.mxu0 0
      %1086 = vmatpush1.bf16.msra.mxu0 %v1042
      %1087 = vmatprep.subr.bf16.mxu0 0
      %1088 = vmatpush1.bf16.msra.mxu0 %v1043
      %1089 = vmatprep.subr.bf16.mxu0 0
      %1090 = vmatpush1.bf16.msra.mxu0 %v1044
      %1091 = vmatprep.subr.bf16.mxu0 0
      %1092 = vmatpush1.bf16.msra.mxu0 %v1045
      %1093 = vmatprep.subr.bf16.mxu0 0
      %1094 = vmatpush1.bf16.msra.mxu0 %v1046
      %1095 = vmatprep.mubr.bf16.mxu0 %v950
      %1096 = vmatmul.mubr.bf16.gmra.mrb[0].mxu0 %v943
      %v1097 = vpop.f32.mrb[0].mxu0
      %v1098 = vadd.f32 0.0, %v1097
      %v1099 = vpop.f32.mrb[0].mxu0
      %v1100 = vpop.f32.mrb[0].mxu0
      %v1101 = vadd.f32 0.0, %v1100
      %v1102 = vpop.f32.mrb[0].mxu0
      %1103 = vmatprep.mubr.bf16.mxu0 %v962
      %1104 = vmatmul.mubr.bf16.gmra.mrb[0].mxu0 %v956
      %v1105 = vpop.f32.mrb[0].mxu0
      %v1106 = vadd.f32 0.0, %v1105
      %v1107 = vpop.f32.mrb[0].mxu0
      %v1108 = vpop.f32.mrb[0].mxu0
      %v1109 = vadd.f32 0.0, %v1108
      %v1110 = vpop.f32.mrb[0].mxu0
      %1111 = vdwg.mxu0
      %v1112 = vadd.f32 %v899, %v1098
      %v1113 = vadd.f32 %v900, %v1101
      %v1114 = vadd.f32 %v901, %v1106
      %v1115 = vadd.f32 %v902, %v1109
      %s1116 = scalar_lea.vmem %s2, 512
      %v1117 = vld [vmem:[%s1116] sm:$0xf]
      %v1118 = vld [vmem:[%s1116 + $0x4] sm:$0xf]
      %v1119 = vld [vmem:[%s1116 + $0x8] sm:$0xf]
      %v1120 = vld [vmem:[%s1116 + $0xc] sm:$0xf]
      %v1121 = vld [vmem:[%s1116 + $0x10] sm:$0xf]
      %v1122 = vld [vmem:[%s1116 + $0x14] sm:$0xf]
      %v1123 = vld [vmem:[%s1116 + $0x18] sm:$0xf]
      %v1124 = vld [vmem:[%s1116 + $0x1c] sm:$0xf]
      %v1125 = vld [vmem:[%s1116 + $0x20] sm:$0xf]
      %v1126 = vld [vmem:[%s1116 + $0x24] sm:$0xf]
      %v1127 = vld [vmem:[%s1116 + $0x28] sm:$0xf]
      %v1128 = vld [vmem:[%s1116 + $0x2c] sm:$0xf]
      %v1129 = vld [vmem:[%s1116 + $0x30] sm:$0xf]
      %v1130 = vld [vmem:[%s1116 + $0x34] sm:$0xf]
      %v1131 = vld [vmem:[%s1116 + $0x38] sm:$0xf]
      %v1132 = vld [vmem:[%s1116 + $0x3c] sm:$0xf]
      %v1133 = vld [vmem:[%s1116 + $0x40] sm:$0xf]
      %v1134 = vld [vmem:[%s1116 + $0x44] sm:$0xf]
      %v1135 = vld [vmem:[%s1116 + $0x48] sm:$0xf]
      %v1136 = vld [vmem:[%s1116 + $0x4c] sm:$0xf]
      %v1137 = vld [vmem:[%s1116 + $0x50] sm:$0xf]
      %v1138 = vld [vmem:[%s1116 + $0x54] sm:$0xf]
      %v1139 = vld [vmem:[%s1116 + $0x58] sm:$0xf]
      %v1140 = vld [vmem:[%s1116 + $0x5c] sm:$0xf]
      %v1141 = vld [vmem:[%s1116 + $0x60] sm:$0xf]
      %v1142 = vld [vmem:[%s1116 + $0x64] sm:$0xf]
      %v1143 = vld [vmem:[%s1116 + $0x68] sm:$0xf]
      %v1144 = vld [vmem:[%s1116 + $0x6c] sm:$0xf]
      %v1145 = vld [vmem:[%s1116 + $0x70] sm:$0xf]
      %v1146 = vld [vmem:[%s1116 + $0x74] sm:$0xf]
      %v1147 = vld [vmem:[%s1116 + $0x78] sm:$0xf]
      %v1148 = vld [vmem:[%s1116 + $0x7c] sm:$0xf]
      %vm1149 = vsmask.f32 5376
      %v1150 = vrot.slane %v373, 2
      %v1151 = vrot.slane %v375, 3
      %v1152 = vor.u32 %v1150, %v1151
      %v1153 = vrot.slane %v396, 2
      %v1154 = vrot.slane %v380, 3
      %v1155 = vor.u32 %v1153, %v1154
      %v1156 = vsel %vm1149, %v1152, %v1155
      %v1157 = vrot.slane %v385, 2
      %v1158 = vrot.slane %v387, 3
      %v1159 = vor.u32 %v1157, %v1158
      %v1160 = vrot.slane %v404, 2
      %v1161 = vrot.slane %v392, 3
      %v1162 = vor.u32 %v1160, %v1161
      %v1163 = vsel %vm1149, %v1159, %v1162
      %v1164 = vrot.slane %v951, 2
      %v1165 = vrot.slane %v400, 3
      %v1166 = vor.u32 %v1164, %v1165
      %v1167 = vsel %vm1149, %v1155, %v1166
      %v1168 = vrot.slane %v957, 2
      %v1169 = vrot.slane %v408, 3
      %v1170 = vor.u32 %v1168, %v1169
      %v1171 = vsel %vm1149, %v1162, %v1170
      %v1208 = vunpack.c.l.b16 %v1117
      %v1209 = vunpack.c.l.b16 %v1118
      %v1210 = vunpack.c.l.b16 %v1119
      %v1211 = vunpack.c.l.b16 %v1120
      %v1212 = vunpack.c.l.b16 %v1121
      %v1213 = vunpack.c.l.b16 %v1122
      %v1214 = vunpack.c.l.b16 %v1123
      %v1215 = vunpack.c.l.b16 %v1124
      %v1216 = vunpack.c.l.b16 %v1125
      %v1217 = vunpack.c.l.b16 %v1126
      %v1218 = vunpack.c.l.b16 %v1127
      %v1219 = vunpack.c.l.b16 %v1128
      %v1220 = vunpack.c.l.b16 %v1129
      %v1221 = vunpack.c.l.b16 %v1130
      %v1222 = vunpack.c.l.b16 %v1131
      %v1223 = vunpack.c.l.b16 %v1132
      %v1224 = vunpack.c.l.b16 %v1133
      %v1225 = vunpack.c.l.b16 %v1134
      %v1226 = vunpack.c.l.b16 %v1135
      %v1227 = vunpack.c.l.b16 %v1136
      %v1228 = vunpack.c.l.b16 %v1137
      %v1229 = vunpack.c.l.b16 %v1138
      %v1230 = vunpack.c.l.b16 %v1139
      %v1231 = vunpack.c.l.b16 %v1140
      %v1232 = vunpack.c.l.b16 %v1141
      %v1233 = vunpack.c.l.b16 %v1142
      %v1234 = vunpack.c.l.b16 %v1143
      %v1235 = vunpack.c.l.b16 %v1144
      %v1236 = vunpack.c.l.b16 %v1145
      %v1237 = vunpack.c.l.b16 %v1146
      %v1238 = vunpack.c.l.b16 %v1147
      %v1239 = vunpack.c.l.b16 %v1148
      %v1240 = vpack.c.b16 %v1209, %v1208
      %v1241 = vpack.c.b16 %v1211, %v1210
      %v1242 = vpack.c.b16 %v1213, %v1212
      %v1243 = vpack.c.b16 %v1215, %v1214
      %v1244 = vpack.c.b16 %v1217, %v1216
      %v1245 = vpack.c.b16 %v1219, %v1218
      %v1246 = vpack.c.b16 %v1221, %v1220
      %v1247 = vpack.c.b16 %v1223, %v1222
      %v1248 = vpack.c.b16 %v1225, %v1224
      %v1249 = vpack.c.b16 %v1227, %v1226
      %v1250 = vpack.c.b16 %v1229, %v1228
      %v1251 = vpack.c.b16 %v1231, %v1230
      %v1252 = vpack.c.b16 %v1233, %v1232
      %v1253 = vpack.c.b16 %v1235, %v1234
      %v1254 = vpack.c.b16 %v1237, %v1236
      %v1255 = vpack.c.b16 %v1239, %v1238
      %1272 = vmatprep.subr.bf16.mxu0 0
      %1273 = vmatpush1.bf16.msra.mxu0 %v1240
      %1274 = vmatprep.subr.bf16.mxu0 0
      %1275 = vmatpush1.bf16.msra.mxu0 %v1241
      %1276 = vmatprep.subr.bf16.mxu0 0
      %1277 = vmatpush1.bf16.msra.mxu0 %v1242
      %1278 = vmatprep.subr.bf16.mxu0 0
      %1279 = vmatpush1.bf16.msra.mxu0 %v1243
      %1280 = vmatprep.subr.bf16.mxu0 0
      %1281 = vmatpush1.bf16.msra.mxu0 %v1244
      %1282 = vmatprep.subr.bf16.mxu0 0
      %1283 = vmatpush1.bf16.msra.mxu0 %v1245
      %1284 = vmatprep.subr.bf16.mxu0 0
      %1285 = vmatpush1.bf16.msra.mxu0 %v1246
      %1286 = vmatprep.subr.bf16.mxu0 0
      %1287 = vmatpush1.bf16.msra.mxu0 %v1247
      %1288 = vmatprep.subr.bf16.mxu0 0
      %1289 = vmatpush1.bf16.msra.mxu0 %v1248
      %1290 = vmatprep.subr.bf16.mxu0 0
      %1291 = vmatpush1.bf16.msra.mxu0 %v1249
      %1292 = vmatprep.subr.bf16.mxu0 0
      %1293 = vmatpush1.bf16.msra.mxu0 %v1250
      %1294 = vmatprep.subr.bf16.mxu0 0
      %1295 = vmatpush1.bf16.msra.mxu0 %v1251
      %1296 = vmatprep.subr.bf16.mxu0 0
      %1297 = vmatpush1.bf16.msra.mxu0 %v1252
      %1298 = vmatprep.subr.bf16.mxu0 0
      %1299 = vmatpush1.bf16.msra.mxu0 %v1253
      %1300 = vmatprep.subr.bf16.mxu0 0
      %1301 = vmatpush1.bf16.msra.mxu0 %v1254
      %1302 = vmatprep.subr.bf16.mxu0 0
      %1303 = vmatpush1.bf16.msra.mxu0 %v1255
      %1304 = vmatprep.mubr.bf16.mxu0 %v1163
      %1305 = vmatmul.mubr.bf16.gmra.mrb[0].mxu0 %v1156
      %v1306 = vpop.f32.mrb[0].mxu0
      %v1307 = vadd.f32 0.0, %v1306
      %v1308 = vpop.f32.mrb[0].mxu0
      %v1309 = vpop.f32.mrb[0].mxu0
      %v1310 = vadd.f32 0.0, %v1309
      %v1311 = vpop.f32.mrb[0].mxu0
      %1312 = vmatprep.mubr.bf16.mxu0 %v1171
      %1313 = vmatmul.mubr.bf16.gmra.mrb[0].mxu0 %v1167
      %v1314 = vpop.f32.mrb[0].mxu0
      %v1315 = vadd.f32 0.0, %v1314
      %v1316 = vpop.f32.mrb[0].mxu0
      %v1317 = vpop.f32.mrb[0].mxu0
      %v1318 = vadd.f32 0.0, %v1317
      %v1319 = vpop.f32.mrb[0].mxu0
      %1320 = vdwg.mxu0
      %v1321 = vadd.f32 %v1112, %v1307
      %v1322 = vadd.f32 %v1113, %v1310
      %v1323 = vadd.f32 %v1114, %v1315
      %v1324 = vadd.f32 %v1115, %v1318
      %s1325 = scalar_lea.vmem %s2, 640
      %v1326 = vld [vmem:[%s1325] sm:$0xf]
      %v1327 = vld [vmem:[%s1325 + $0x4] sm:$0xf]
      %v1328 = vld [vmem:[%s1325 + $0x8] sm:$0xf]
      %v1329 = vld [vmem:[%s1325 + $0xc] sm:$0xf]
      %v1330 = vld [vmem:[%s1325 + $0x10] sm:$0xf]
      %v1331 = vld [vmem:[%s1325 + $0x14] sm:$0xf]
      %v1332 = vld [vmem:[%s1325 + $0x18] sm:$0xf]
      %v1333 = vld [vmem:[%s1325 + $0x1c] sm:$0xf]
      %v1334 = vld [vmem:[%s1325 + $0x20] sm:$0xf]
      %v1335 = vld [vmem:[%s1325 + $0x24] sm:$0xf]
      %v1336 = vld [vmem:[%s1325 + $0x28] sm:$0xf]
      %v1337 = vld [vmem:[%s1325 + $0x2c] sm:$0xf]
      %v1338 = vld [vmem:[%s1325 + $0x30] sm:$0xf]
      %v1339 = vld [vmem:[%s1325 + $0x34] sm:$0xf]
      %v1340 = vld [vmem:[%s1325 + $0x38] sm:$0xf]
      %v1341 = vld [vmem:[%s1325 + $0x3c] sm:$0xf]
      %v1342 = vld [vmem:[%s1325 + $0x40] sm:$0xf]
      %v1343 = vld [vmem:[%s1325 + $0x44] sm:$0xf]
      %v1344 = vld [vmem:[%s1325 + $0x48] sm:$0xf]
      %v1345 = vld [vmem:[%s1325 + $0x4c] sm:$0xf]
      %v1346 = vld [vmem:[%s1325 + $0x50] sm:$0xf]
      %v1347 = vld [vmem:[%s1325 + $0x54] sm:$0xf]
      %v1348 = vld [vmem:[%s1325 + $0x58] sm:$0xf]
      %v1349 = vld [vmem:[%s1325 + $0x5c] sm:$0xf]
      %v1350 = vld [vmem:[%s1325 + $0x60] sm:$0xf]
      %v1351 = vld [vmem:[%s1325 + $0x64] sm:$0xf]
      %v1352 = vld [vmem:[%s1325 + $0x68] sm:$0xf]
      %v1353 = vld [vmem:[%s1325 + $0x6c] sm:$0xf]
      %v1354 = vld [vmem:[%s1325 + $0x70] sm:$0xf]
      %v1355 = vld [vmem:[%s1325 + $0x74] sm:$0xf]
      %v1356 = vld [vmem:[%s1325 + $0x78] sm:$0xf]
      %v1357 = vld [vmem:[%s1325 + $0x7c] sm:$0xf]
      %vm1358 = vcmask 1044480
      %v1359 = vrot.slane %v280, 3
      %v1360 = vrot.slane %v282, 3
      %v1361 = vsel %vm1358, %v1359, %v1360
      %v1362 = vrot.slane %v281, 3
      %v1363 = vrot.slane %v283, 3
      %v1364 = vsel %vm1358, %v1362, %v1363
      %v1365 = vrot.slane %v300, 3
      %v1366 = vsel %vm1358, %v1360, %v1365
      %v1367 = vrot.slane %v301, 3
      %v1368 = vsel %vm1358, %v1363, %v1367
      %v1405 = vunpack.c.l.b16 %v1326
      %v1406 = vunpack.c.l.b16 %v1327
      %v1407 = vunpack.c.l.b16 %v1328
      %v1408 = vunpack.c.l.b16 %v1329
      %v1409 = vunpack.c.l.b16 %v1330
      %v1410 = vunpack.c.l.b16 %v1331
      %v1411 = vunpack.c.l.b16 %v1332
      %v1412 = vunpack.c.l.b16 %v1333
      %v1413 = vunpack.c.l.b16 %v1334
      %v1414 = vunpack.c.l.b16 %v1335
      %v1415 = vunpack.c.l.b16 %v1336
      %v1416 = vunpack.c.l.b16 %v1337
      %v1417 = vunpack.c.l.b16 %v1338
      %v1418 = vunpack.c.l.b16 %v1339
      %v1419 = vunpack.c.l.b16 %v1340
      %v1420 = vunpack.c.l.b16 %v1341
      %v1421 = vunpack.c.l.b16 %v1342
      %v1422 = vunpack.c.l.b16 %v1343
      %v1423 = vunpack.c.l.b16 %v1344
      %v1424 = vunpack.c.l.b16 %v1345
      %v1425 = vunpack.c.l.b16 %v1346
      %v1426 = vunpack.c.l.b16 %v1347
      %v1427 = vunpack.c.l.b16 %v1348
      %v1428 = vunpack.c.l.b16 %v1349
      %v1429 = vunpack.c.l.b16 %v1350
      %v1430 = vunpack.c.l.b16 %v1351
      %v1431 = vunpack.c.l.b16 %v1352
      %v1432 = vunpack.c.l.b16 %v1353
      %v1433 = vunpack.c.l.b16 %v1354
      %v1434 = vunpack.c.l.b16 %v1355
      %v1435 = vunpack.c.l.b16 %v1356
      %v1436 = vunpack.c.l.b16 %v1357
      %v1437 = vpack.c.b16 %v1406, %v1405
      %v1438 = vpack.c.b16 %v1408, %v1407
      %v1439 = vpack.c.b16 %v1410, %v1409
      %v1440 = vpack.c.b16 %v1412, %v1411
      %v1441 = vpack.c.b16 %v1414, %v1413
      %v1442 = vpack.c.b16 %v1416, %v1415
      %v1443 = vpack.c.b16 %v1418, %v1417
      %v1444 = vpack.c.b16 %v1420, %v1419
      %v1445 = vpack.c.b16 %v1422, %v1421
      %v1446 = vpack.c.b16 %v1424, %v1423
      %v1447 = vpack.c.b16 %v1426, %v1425
      %v1448 = vpack.c.b16 %v1428, %v1427
      %v1449 = vpack.c.b16 %v1430, %v1429
      %v1450 = vpack.c.b16 %v1432, %v1431
      %v1451 = vpack.c.b16 %v1434, %v1433
      %v1452 = vpack.c.b16 %v1436, %v1435
      %1469 = vmatprep.subr.bf16.mxu0 0
      %1470 = vmatpush1.bf16.msra.mxu0 %v1437
      %1471 = vmatprep.subr.bf16.mxu0 0
      %1472 = vmatpush1.bf16.msra.mxu0 %v1438
      %1473 = vmatprep.subr.bf16.mxu0 0
      %1474 = vmatpush1.bf16.msra.mxu0 %v1439
      %1475 = vmatprep.subr.bf16.mxu0 0
      %1476 = vmatpush1.bf16.msra.mxu0 %v1440
      %1477 = vmatprep.subr.bf16.mxu0 0
      %1478 = vmatpush1.bf16.msra.mxu0 %v1441
      %1479 = vmatprep.subr.bf16.mxu0 0
      %1480 = vmatpush1.bf16.msra.mxu0 %v1442
      %1481 = vmatprep.subr.bf16.mxu0 0
      %1482 = vmatpush1.bf16.msra.mxu0 %v1443
      %1483 = vmatprep.subr.bf16.mxu0 0
      %1484 = vmatpush1.bf16.msra.mxu0 %v1444
      %1485 = vmatprep.subr.bf16.mxu0 0
      %1486 = vmatpush1.bf16.msra.mxu0 %v1445
      %1487 = vmatprep.subr.bf16.mxu0 0
      %1488 = vmatpush1.bf16.msra.mxu0 %v1446
      %1489 = vmatprep.subr.bf16.mxu0 0
      %1490 = vmatpush1.bf16.msra.mxu0 %v1447
      %1491 = vmatprep.subr.bf16.mxu0 0
      %1492 = vmatpush1.bf16.msra.mxu0 %v1448
      %1493 = vmatprep.subr.bf16.mxu0 0
      %1494 = vmatpush1.bf16.msra.mxu0 %v1449
      %1495 = vmatprep.subr.bf16.mxu0 0
      %1496 = vmatpush1.bf16.msra.mxu0 %v1450
      %1497 = vmatprep.subr.bf16.mxu0 0
      %1498 = vmatpush1.bf16.msra.mxu0 %v1451
      %1499 = vmatprep.subr.bf16.mxu0 0
      %1500 = vmatpush1.bf16.msra.mxu0 %v1452
      %1501 = vmatprep.mubr.bf16.mxu0 %v1364
      %1502 = vmatmul.mubr.bf16.gmra.mrb[0].mxu0 %v1361
      %v1503 = vpop.f32.mrb[0].mxu0
      %v1504 = vadd.f32 0.0, %v1503
      %v1505 = vpop.f32.mrb[0].mxu0
      %v1506 = vpop.f32.mrb[0].mxu0
      %v1507 = vadd.f32 0.0, %v1506
      %v1508 = vpop.f32.mrb[0].mxu0
      %1509 = vmatprep.mubr.bf16.mxu0 %v1368
      %1510 = vmatmul.mubr.bf16.gmra.mrb[0].mxu0 %v1366
      %v1511 = vpop.f32.mrb[0].mxu0
      %v1512 = vadd.f32 0.0, %v1511
      %v1513 = vpop.f32.mrb[0].mxu0
      %v1514 = vpop.f32.mrb[0].mxu0
      %v1515 = vadd.f32 0.0, %v1514
      %v1516 = vpop.f32.mrb[0].mxu0
      %1517 = vdwg.mxu0
      %v1518 = vadd.f32 %v1321, %v1504
      %v1519 = vadd.f32 %v1322, %v1507
      %v1520 = vadd.f32 %v1323, %v1512
      %v1521 = vadd.f32 %v1324, %v1515
      %s1522 = scalar_lea.vmem %s2, 768
      %v1523 = vld [vmem:[%s1522] sm:$0xf]
      %v1524 = vld [vmem:[%s1522 + $0x4] sm:$0xf]
      %v1525 = vld [vmem:[%s1522 + $0x8] sm:$0xf]
      %v1526 = vld [vmem:[%s1522 + $0xc] sm:$0xf]
      %v1527 = vld [vmem:[%s1522 + $0x10] sm:$0xf]
      %v1528 = vld [vmem:[%s1522 + $0x14] sm:$0xf]
      %v1529 = vld [vmem:[%s1522 + $0x18] sm:$0xf]
      %v1530 = vld [vmem:[%s1522 + $0x1c] sm:$0xf]
      %v1531 = vld [vmem:[%s1522 + $0x20] sm:$0xf]
      %v1532 = vld [vmem:[%s1522 + $0x24] sm:$0xf]
      %v1533 = vld [vmem:[%s1522 + $0x28] sm:$0xf]
      %v1534 = vld [vmem:[%s1522 + $0x2c] sm:$0xf]
      %v1535 = vld [vmem:[%s1522 + $0x30] sm:$0xf]
      %v1536 = vld [vmem:[%s1522 + $0x34] sm:$0xf]
      %v1537 = vld [vmem:[%s1522 + $0x38] sm:$0xf]
      %v1538 = vld [vmem:[%s1522 + $0x3c] sm:$0xf]
      %v1539 = vld [vmem:[%s1522 + $0x40] sm:$0xf]
      %v1540 = vld [vmem:[%s1522 + $0x44] sm:$0xf]
      %v1541 = vld [vmem:[%s1522 + $0x48] sm:$0xf]
      %v1542 = vld [vmem:[%s1522 + $0x4c] sm:$0xf]
      %v1543 = vld [vmem:[%s1522 + $0x50] sm:$0xf]
      %v1544 = vld [vmem:[%s1522 + $0x54] sm:$0xf]
      %v1545 = vld [vmem:[%s1522 + $0x58] sm:$0xf]
      %v1546 = vld [vmem:[%s1522 + $0x5c] sm:$0xf]
      %v1547 = vld [vmem:[%s1522 + $0x60] sm:$0xf]
      %v1548 = vld [vmem:[%s1522 + $0x64] sm:$0xf]
      %v1549 = vld [vmem:[%s1522 + $0x68] sm:$0xf]
      %v1550 = vld [vmem:[%s1522 + $0x6c] sm:$0xf]
      %v1551 = vld [vmem:[%s1522 + $0x70] sm:$0xf]
      %v1552 = vld [vmem:[%s1522 + $0x74] sm:$0xf]
      %v1553 = vld [vmem:[%s1522 + $0x78] sm:$0xf]
      %v1554 = vld [vmem:[%s1522 + $0x7c] sm:$0xf]
      %vm1555 = vsmask.f32 4352
      %v1556 = vrot.slane %v373, 3
      %v1557 = vrot.slane %v375, 4
      %v1558 = vor.u32 %v1556, %v1557
      %v1559 = vrot.slane %v396, 3
      %v1560 = vrot.slane %v380, 4
      %v1561 = vor.u32 %v1559, %v1560
      %v1562 = vsel %vm1555, %v1558, %v1561
      %v1563 = vrot.slane %v385, 3
      %v1564 = vrot.slane %v387, 4
      %v1565 = vor.u32 %v1563, %v1564
      %v1566 = vrot.slane %v404, 3
      %v1567 = vrot.slane %v392, 4
      %v1568 = vor.u32 %v1566, %v1567
      %v1569 = vsel %vm1555, %v1565, %v1568
      %v1570 = vrot.slane %v951, 3
      %v1571 = vrot.slane %v400, 4
      %v1572 = vor.u32 %v1570, %v1571
      %v1573 = vsel %vm1555, %v1561, %v1572
      %v1574 = vrot.slane %v957, 3
      %v1575 = vrot.slane %v408, 4
      %v1576 = vor.u32 %v1574, %v1575
      %v1577 = vsel %vm1555, %v1568, %v1576
      %v1614 = vunpack.c.l.b16 %v1523
      %v1615 = vunpack.c.l.b16 %v1524
      %v1616 = vunpack.c.l.b16 %v1525
      %v1617 = vunpack.c.l.b16 %v1526
      %v1618 = vunpack.c.l.b16 %v1527
      %v1619 = vunpack.c.l.b16 %v1528
      %v1620 = vunpack.c.l.b16 %v1529
      %v1621 = vunpack.c.l.b16 %v1530
      %v1622 = vunpack.c.l.b16 %v1531
      %v1623 = vunpack.c.l.b16 %v1532
      %v1624 = vunpack.c.l.b16 %v1533
      %v1625 = vunpack.c.l.b16 %v1534
      %v1626 = vunpack.c.l.b16 %v1535
      %v1627 = vunpack.c.l.b16 %v1536
      %v1628 = vunpack.c.l.b16 %v1537
      %v1629 = vunpack.c.l.b16 %v1538
      %v1630 = vunpack.c.l.b16 %v1539
      %v1631 = vunpack.c.l.b16 %v1540
      %v1632 = vunpack.c.l.b16 %v1541
      %v1633 = vunpack.c.l.b16 %v1542
      %v1634 = vunpack.c.l.b16 %v1543
      %v1635 = vunpack.c.l.b16 %v1544
      %v1636 = vunpack.c.l.b16 %v1545
      %v1637 = vunpack.c.l.b16 %v1546
      %v1638 = vunpack.c.l.b16 %v1547
      %v1639 = vunpack.c.l.b16 %v1548
      %v1640 = vunpack.c.l.b16 %v1549
      %v1641 = vunpack.c.l.b16 %v1550
      %v1642 = vunpack.c.l.b16 %v1551
      %v1643 = vunpack.c.l.b16 %v1552
      %v1644 = vunpack.c.l.b16 %v1553
      %v1645 = vunpack.c.l.b16 %v1554
      %v1646 = vpack.c.b16 %v1615, %v1614
      %v1647 = vpack.c.b16 %v1617, %v1616
      %v1648 = vpack.c.b16 %v1619, %v1618
      %v1649 = vpack.c.b16 %v1621, %v1620
      %v1650 = vpack.c.b16 %v1623, %v1622
      %v1651 = vpack.c.b16 %v1625, %v1624
      %v1652 = vpack.c.b16 %v1627, %v1626
      %v1653 = vpack.c.b16 %v1629, %v1628
      %v1654 = vpack.c.b16 %v1631, %v1630
      %v1655 = vpack.c.b16 %v1633, %v1632
      %v1656 = vpack.c.b16 %v1635, %v1634
      %v1657 = vpack.c.b16 %v1637, %v1636
      %v1658 = vpack.c.b16 %v1639, %v1638
      %v1659 = vpack.c.b16 %v1641, %v1640
      %v1660 = vpack.c.b16 %v1643, %v1642
      %v1661 = vpack.c.b16 %v1645, %v1644
      %1678 = vmatprep.subr.bf16.mxu0 0
      %1679 = vmatpush1.bf16.msra.mxu0 %v1646
      %1680 = vmatprep.subr.bf16.mxu0 0
      %1681 = vmatpush1.bf16.msra.mxu0 %v1647
      %1682 = vmatprep.subr.bf16.mxu0 0
      %1683 = vmatpush1.bf16.msra.mxu0 %v1648
      %1684 = vmatprep.subr.bf16.mxu0 0
      %1685 = vmatpush1.bf16.msra.mxu0 %v1649
      %1686 = vmatprep.subr.bf16.mxu0 0
      %1687 = vmatpush1.bf16.msra.mxu0 %v1650
      %1688 = vmatprep.subr.bf16.mxu0 0
      %1689 = vmatpush1.bf16.msra.mxu0 %v1651
      %1690 = vmatprep.subr.bf16.mxu0 0
      %1691 = vmatpush1.bf16.msra.mxu0 %v1652
      %1692 = vmatprep.subr.bf16.mxu0 0
      %1693 = vmatpush1.bf16.msra.mxu0 %v1653
      %1694 = vmatprep.subr.bf16.mxu0 0
      %1695 = vmatpush1.bf16.msra.mxu0 %v1654
      %1696 = vmatprep.subr.bf16.mxu0 0
      %1697 = vmatpush1.bf16.msra.mxu0 %v1655
      %1698 = vmatprep.subr.bf16.mxu0 0
      %1699 = vmatpush1.bf16.msra.mxu0 %v1656
      %1700 = vmatprep.subr.bf16.mxu0 0
      %1701 = vmatpush1.bf16.msra.mxu0 %v1657
      %1702 = vmatprep.subr.bf16.mxu0 0
      %1703 = vmatpush1.bf16.msra.mxu0 %v1658
      %1704 = vmatprep.subr.bf16.mxu0 0
      %1705 = vmatpush1.bf16.msra.mxu0 %v1659
      %1706 = vmatprep.subr.bf16.mxu0 0
      %1707 = vmatpush1.bf16.msra.mxu0 %v1660
      %1708 = vmatprep.subr.bf16.mxu0 0
      %1709 = vmatpush1.bf16.msra.mxu0 %v1661
      %1710 = vmatprep.mubr.bf16.mxu0 %v1569
      %1711 = vmatmul.mubr.bf16.gmra.mrb[0].mxu0 %v1562
      %v1712 = vpop.f32.mrb[0].mxu0
      %v1713 = vadd.f32 0.0, %v1712
      %v1714 = vpop.f32.mrb[0].mxu0
      %v1715 = vpop.f32.mrb[0].mxu0
      %v1716 = vadd.f32 0.0, %v1715
      %v1717 = vpop.f32.mrb[0].mxu0
      %1718 = vmatprep.mubr.bf16.mxu0 %v1577
      %1719 = vmatmul.mubr.bf16.gmra.mrb[0].mxu0 %v1573
      %v1720 = vpop.f32.mrb[0].mxu0
      %v1721 = vadd.f32 0.0, %v1720
      %v1722 = vpop.f32.mrb[0].mxu0
      %v1723 = vpop.f32.mrb[0].mxu0
      %v1724 = vadd.f32 0.0, %v1723
      %v1725 = vpop.f32.mrb[0].mxu0
      %1726 = vdwg.mxu0
      %v1727 = vadd.f32 %v1518, %v1713
      %v1728 = vadd.f32 %v1519, %v1716
      %v1729 = vadd.f32 %v1520, %v1721
      %v1730 = vadd.f32 %v1521, %v1724
      %s1731 = scalar_lea.vmem %s2, 896
      %v1732 = vld [vmem:[%s1731] sm:$0xf]
      %v1733 = vld [vmem:[%s1731 + $0x4] sm:$0xf]
      %v1734 = vld [vmem:[%s1731 + $0x8] sm:$0xf]
      %v1735 = vld [vmem:[%s1731 + $0xc] sm:$0xf]
      %v1736 = vld [vmem:[%s1731 + $0x10] sm:$0xf]
      %v1737 = vld [vmem:[%s1731 + $0x14] sm:$0xf]
      %v1738 = vld [vmem:[%s1731 + $0x18] sm:$0xf]
      %v1739 = vld [vmem:[%s1731 + $0x1c] sm:$0xf]
      %v1740 = vld [vmem:[%s1731 + $0x20] sm:$0xf]
      %v1741 = vld [vmem:[%s1731 + $0x24] sm:$0xf]
      %v1742 = vld [vmem:[%s1731 + $0x28] sm:$0xf]
      %v1743 = vld [vmem:[%s1731 + $0x2c] sm:$0xf]
      %v1744 = vld [vmem:[%s1731 + $0x30] sm:$0xf]
      %v1745 = vld [vmem:[%s1731 + $0x34] sm:$0xf]
      %v1746 = vld [vmem:[%s1731 + $0x38] sm:$0xf]
      %v1747 = vld [vmem:[%s1731 + $0x3c] sm:$0xf]
      %v1748 = vld [vmem:[%s1731 + $0x40] sm:$0xf]
      %v1749 = vld [vmem:[%s1731 + $0x44] sm:$0xf]
      %v1750 = vld [vmem:[%s1731 + $0x48] sm:$0xf]
      %v1751 = vld [vmem:[%s1731 + $0x4c] sm:$0xf]
      %v1752 = vld [vmem:[%s1731 + $0x50] sm:$0xf]
      %v1753 = vld [vmem:[%s1731 + $0x54] sm:$0xf]
      %v1754 = vld [vmem:[%s1731 + $0x58] sm:$0xf]
      %v1755 = vld [vmem:[%s1731 + $0x5c] sm:$0xf]
      %v1756 = vld [vmem:[%s1731 + $0x60] sm:$0xf]
      %v1757 = vld [vmem:[%s1731 + $0x64] sm:$0xf]
      %v1758 = vld [vmem:[%s1731 + $0x68] sm:$0xf]
      %v1759 = vld [vmem:[%s1731 + $0x6c] sm:$0xf]
      %v1760 = vld [vmem:[%s1731 + $0x70] sm:$0xf]
      %v1761 = vld [vmem:[%s1731 + $0x74] sm:$0xf]
      %v1762 = vld [vmem:[%s1731 + $0x78] sm:$0xf]
      %v1763 = vld [vmem:[%s1731 + $0x7c] sm:$0xf]
      %vm1764 = vcmask 1043456
      %v1765 = vrot.slane %v280, 4
      %v1766 = vrot.slane %v282, 4
      %v1767 = vsel %vm1764, %v1765, %v1766
      %v1768 = vrot.slane %v281, 4
      %v1769 = vrot.slane %v283, 4
      %v1770 = vsel %vm1764, %v1768, %v1769
      %v1771 = vrot.slane %v300, 4
      %v1772 = vsel %vm1764, %v1766, %v1771
      %v1773 = vrot.slane %v301, 4
      %v1774 = vsel %vm1764, %v1769, %v1773
      %v1811 = vunpack.c.l.b16 %v1732
      %v1812 = vunpack.c.l.b16 %v1733
      %v1813 = vunpack.c.l.b16 %v1734
      %v1814 = vunpack.c.l.b16 %v1735
      %v1815 = vunpack.c.l.b16 %v1736
      %v1816 = vunpack.c.l.b16 %v1737
      %v1817 = vunpack.c.l.b16 %v1738
      %v1818 = vunpack.c.l.b16 %v1739
      %v1819 = vunpack.c.l.b16 %v1740
      %v1820 = vunpack.c.l.b16 %v1741
      %v1821 = vunpack.c.l.b16 %v1742
      %v1822 = vunpack.c.l.b16 %v1743
      %v1823 = vunpack.c.l.b16 %v1744
      %v1824 = vunpack.c.l.b16 %v1745
      %v1825 = vunpack.c.l.b16 %v1746
      %v1826 = vunpack.c.l.b16 %v1747
      %v1827 = vunpack.c.l.b16 %v1748
      %v1828 = vunpack.c.l.b16 %v1749
      %v1829 = vunpack.c.l.b16 %v1750
      %v1830 = vunpack.c.l.b16 %v1751
      %v1831 = vunpack.c.l.b16 %v1752
      %v1832 = vunpack.c.l.b16 %v1753
      %v1833 = vunpack.c.l.b16 %v1754
      %v1834 = vunpack.c.l.b16 %v1755
      %v1835 = vunpack.c.l.b16 %v1756
      %v1836 = vunpack.c.l.b16 %v1757
      %v1837 = vunpack.c.l.b16 %v1758
      %v1838 = vunpack.c.l.b16 %v1759
      %v1839 = vunpack.c.l.b16 %v1760
      %v1840 = vunpack.c.l.b16 %v1761
      %v1841 = vunpack.c.l.b16 %v1762
      %v1842 = vunpack.c.l.b16 %v1763
      %v1843 = vpack.c.b16 %v1812, %v1811
      %v1844 = vpack.c.b16 %v1814, %v1813
      %v1845 = vpack.c.b16 %v1816, %v1815
      %v1846 = vpack.c.b16 %v1818, %v1817
      %v1847 = vpack.c.b16 %v1820, %v1819
      %v1848 = vpack.c.b16 %v1822, %v1821
      %v1849 = vpack.c.b16 %v1824, %v1823
      %v1850 = vpack.c.b16 %v1826, %v1825
      %v1851 = vpack.c.b16 %v1828, %v1827
      %v1852 = vpack.c.b16 %v1830, %v1829
      %v1853 = vpack.c.b16 %v1832, %v1831
      %v1854 = vpack.c.b16 %v1834, %v1833
      %v1855 = vpack.c.b16 %v1836, %v1835
      %v1856 = vpack.c.b16 %v1838, %v1837
      %v1857 = vpack.c.b16 %v1840, %v1839
      %v1858 = vpack.c.b16 %v1842, %v1841
      %1875 = vmatprep.subr.bf16.mxu0 0
      %1876 = vmatpush1.bf16.msra.mxu0 %v1843
      %1877 = vmatprep.subr.bf16.mxu0 0
      %1878 = vmatpush1.bf16.msra.mxu0 %v1844
      %1879 = vmatprep.subr.bf16.mxu0 0
      %1880 = vmatpush1.bf16.msra.mxu0 %v1845
      %1881 = vmatprep.subr.bf16.mxu0 0
      %1882 = vmatpush1.bf16.msra.mxu0 %v1846
      %1883 = vmatprep.subr.bf16.mxu0 0
      %1884 = vmatpush1.bf16.msra.mxu0 %v1847
      %1885 = vmatprep.subr.bf16.mxu0 0
      %1886 = vmatpush1.bf16.msra.mxu0 %v1848
      %1887 = vmatprep.subr.bf16.mxu0 0
      %1888 = vmatpush1.bf16.msra.mxu0 %v1849
      %1889 = vmatprep.subr.bf16.mxu0 0
      %1890 = vmatpush1.bf16.msra.mxu0 %v1850
      %1891 = vmatprep.subr.bf16.mxu0 0
      %1892 = vmatpush1.bf16.msra.mxu0 %v1851
      %1893 = vmatprep.subr.bf16.mxu0 0
      %1894 = vmatpush1.bf16.msra.mxu0 %v1852
      %1895 = vmatprep.subr.bf16.mxu0 0
      %1896 = vmatpush1.bf16.msra.mxu0 %v1853
      %1897 = vmatprep.subr.bf16.mxu0 0
      %1898 = vmatpush1.bf16.msra.mxu0 %v1854
      %1899 = vmatprep.subr.bf16.mxu0 0
      %1900 = vmatpush1.bf16.msra.mxu0 %v1855
      %1901 = vmatprep.subr.bf16.mxu0 0
      %1902 = vmatpush1.bf16.msra.mxu0 %v1856
      %1903 = vmatprep.subr.bf16.mxu0 0
      %1904 = vmatpush1.bf16.msra.mxu0 %v1857
      %1905 = vmatprep.subr.bf16.mxu0 0
      %1906 = vmatpush1.bf16.msra.mxu0 %v1858
      %1907 = vmatprep.mubr.bf16.mxu0 %v1770
      %1908 = vmatmul.mubr.bf16.gmra.mrb[0].mxu0 %v1767
      %v1909 = vpop.f32.mrb[0].mxu0
      %v1910 = vadd.f32 0.0, %v1909
      %v1911 = vpop.f32.mrb[0].mxu0
      %v1912 = vpop.f32.mrb[0].mxu0
      %v1913 = vadd.f32 0.0, %v1912
      %v1914 = vpop.f32.mrb[0].mxu0
      %1915 = vmatprep.mubr.bf16.mxu0 %v1774
      %1916 = vmatmul.mubr.bf16.gmra.mrb[0].mxu0 %v1772
      %v1917 = vpop.f32.mrb[0].mxu0
      %v1918 = vadd.f32 0.0, %v1917
      %v1919 = vpop.f32.mrb[0].mxu0
      %v1920 = vpop.f32.mrb[0].mxu0
      %v1921 = vadd.f32 0.0, %v1920
      %v1922 = vpop.f32.mrb[0].mxu0
      %1923 = vdwg.mxu0
      %v1924 = vadd.f32 %v1727, %v1910
      %v1925 = vadd.f32 %v1728, %v1913
      %v1926 = vadd.f32 %v1729, %v1918
      %v1927 = vadd.f32 %v1730, %v1921
      %s1928 = scalar_lea.vmem %s2, 1024
      %v1929 = vld [vmem:[%s1928] sm:$0xf]
      %v1930 = vld [vmem:[%s1928 + $0x4] sm:$0xf]
      %v1931 = vld [vmem:[%s1928 + $0x8] sm:$0xf]
      %v1932 = vld [vmem:[%s1928 + $0xc] sm:$0xf]
      %v1933 = vld [vmem:[%s1928 + $0x10] sm:$0xf]
      %v1934 = vld [vmem:[%s1928 + $0x14] sm:$0xf]
      %v1935 = vld [vmem:[%s1928 + $0x18] sm:$0xf]
      %v1936 = vld [vmem:[%s1928 + $0x1c] sm:$0xf]
      %v1937 = vld [vmem:[%s1928 + $0x20] sm:$0xf]
      %v1938 = vld [vmem:[%s1928 + $0x24] sm:$0xf]
      %v1939 = vld [vmem:[%s1928 + $0x28] sm:$0xf]
      %v1940 = vld [vmem:[%s1928 + $0x2c] sm:$0xf]
      %v1941 = vld [vmem:[%s1928 + $0x30] sm:$0xf]
      %v1942 = vld [vmem:[%s1928 + $0x34] sm:$0xf]
      %v1943 = vld [vmem:[%s1928 + $0x38] sm:$0xf]
      %v1944 = vld [vmem:[%s1928 + $0x3c] sm:$0xf]
      %v1945 = vld [vmem:[%s1928 + $0x40] sm:$0xf]
      %v1946 = vld [vmem:[%s1928 + $0x44] sm:$0xf]
      %v1947 = vld [vmem:[%s1928 + $0x48] sm:$0xf]
      %v1948 = vld [vmem:[%s1928 + $0x4c] sm:$0xf]
      %v1949 = vld [vmem:[%s1928 + $0x50] sm:$0xf]
      %v1950 = vld [vmem:[%s1928 + $0x54] sm:$0xf]
      %v1951 = vld [vmem:[%s1928 + $0x58] sm:$0xf]
      %v1952 = vld [vmem:[%s1928 + $0x5c] sm:$0xf]
      %v1953 = vld [vmem:[%s1928 + $0x60] sm:$0xf]
      %v1954 = vld [vmem:[%s1928 + $0x64] sm:$0xf]
      %v1955 = vld [vmem:[%s1928 + $0x68] sm:$0xf]
      %v1956 = vld [vmem:[%s1928 + $0x6c] sm:$0xf]
      %v1957 = vld [vmem:[%s1928 + $0x70] sm:$0xf]
      %v1958 = vld [vmem:[%s1928 + $0x74] sm:$0xf]
      %v1959 = vld [vmem:[%s1928 + $0x78] sm:$0xf]
      %v1960 = vld [vmem:[%s1928 + $0x7c] sm:$0xf]
      %vm1961 = vcmask 1042432
      %v1962 = vrot.slane %v280, 5
      %v1963 = vrot.slane %v282, 5
      %v1964 = vsel %vm1961, %v1962, %v1963
      %v1965 = vrot.slane %v281, 5
      %v1966 = vrot.slane %v283, 5
      %v1967 = vsel %vm1961, %v1965, %v1966
      %v1968 = vrot.slane %v300, 5
      %v1969 = vsel %vm1961, %v1963, %v1968
      %v1970 = vrot.slane %v301, 5
      %v1971 = vsel %vm1961, %v1966, %v1970
      %v2008 = vunpack.c.l.b16 %v1929
      %v2009 = vunpack.c.l.b16 %v1930
      %v2010 = vunpack.c.l.b16 %v1931
      %v2011 = vunpack.c.l.b16 %v1932
      %v2012 = vunpack.c.l.b16 %v1933
      %v2013 = vunpack.c.l.b16 %v1934
      %v2014 = vunpack.c.l.b16 %v1935
      %v2015 = vunpack.c.l.b16 %v1936
      %v2016 = vunpack.c.l.b16 %v1937
      %v2017 = vunpack.c.l.b16 %v1938
      %v2018 = vunpack.c.l.b16 %v1939
      %v2019 = vunpack.c.l.b16 %v1940
      %v2020 = vunpack.c.l.b16 %v1941
      %v2021 = vunpack.c.l.b16 %v1942
      %v2022 = vunpack.c.l.b16 %v1943
      %v2023 = vunpack.c.l.b16 %v1944
      %v2024 = vunpack.c.l.b16 %v1945
      %v2025 = vunpack.c.l.b16 %v1946
      %v2026 = vunpack.c.l.b16 %v1947
      %v2027 = vunpack.c.l.b16 %v1948
      %v2028 = vunpack.c.l.b16 %v1949
      %v2029 = vunpack.c.l.b16 %v1950
      %v2030 = vunpack.c.l.b16 %v1951
      %v2031 = vunpack.c.l.b16 %v1952
      %v2032 = vunpack.c.l.b16 %v1953
      %v2033 = vunpack.c.l.b16 %v1954
      %v2034 = vunpack.c.l.b16 %v1955
      %v2035 = vunpack.c.l.b16 %v1956
      %v2036 = vunpack.c.l.b16 %v1957
      %v2037 = vunpack.c.l.b16 %v1958
      %v2038 = vunpack.c.l.b16 %v1959
      %v2039 = vunpack.c.l.b16 %v1960
      %v2040 = vpack.c.b16 %v2009, %v2008
      %v2041 = vpack.c.b16 %v2011, %v2010
      %v2042 = vpack.c.b16 %v2013, %v2012
      %v2043 = vpack.c.b16 %v2015, %v2014
      %v2044 = vpack.c.b16 %v2017, %v2016
      %v2045 = vpack.c.b16 %v2019, %v2018
      %v2046 = vpack.c.b16 %v2021, %v2020
      %v2047 = vpack.c.b16 %v2023, %v2022
      %v2048 = vpack.c.b16 %v2025, %v2024
      %v2049 = vpack.c.b16 %v2027, %v2026
      %v2050 = vpack.c.b16 %v2029, %v2028
      %v2051 = vpack.c.b16 %v2031, %v2030
      %v2052 = vpack.c.b16 %v2033, %v2032
      %v2053 = vpack.c.b16 %v2035, %v2034
      %v2054 = vpack.c.b16 %v2037, %v2036
      %v2055 = vpack.c.b16 %v2039, %v2038
      %2072 = vmatprep.subr.bf16.mxu0 0
      %2073 = vmatpush1.bf16.msra.mxu0 %v2040
      %2074 = vmatprep.subr.bf16.mxu0 0
      %2075 = vmatpush1.bf16.msra.mxu0 %v2041
      %2076 = vmatprep.subr.bf16.mxu0 0
      %2077 = vmatpush1.bf16.msra.mxu0 %v2042
      %2078 = vmatprep.subr.bf16.mxu0 0
      %2079 = vmatpush1.bf16.msra.mxu0 %v2043
      %2080 = vmatprep.subr.bf16.mxu0 0
      %2081 = vmatpush1.bf16.msra.mxu0 %v2044
      %2082 = vmatprep.subr.bf16.mxu0 0
      %2083 = vmatpush1.bf16.msra.mxu0 %v2045
      %2084 = vmatprep.subr.bf16.mxu0 0
      %2085 = vmatpush1.bf16.msra.mxu0 %v2046
      %2086 = vmatprep.subr.bf16.mxu0 0
      %2087 = vmatpush1.bf16.msra.mxu0 %v2047
      %2088 = vmatprep.subr.bf16.mxu0 0
      %2089 = vmatpush1.bf16.msra.mxu0 %v2048
      %2090 = vmatprep.subr.bf16.mxu0 0
      %2091 = vmatpush1.bf16.msra.mxu0 %v2049
      %2092 = vmatprep.subr.bf16.mxu0 0
      %2093 = vmatpush1.bf16.msra.mxu0 %v2050
      %2094 = vmatprep.subr.bf16.mxu0 0
      %2095 = vmatpush1.bf16.msra.mxu0 %v2051
      %2096 = vmatprep.subr.bf16.mxu0 0
      %2097 = vmatpush1.bf16.msra.mxu0 %v2052
      %2098 = vmatprep.subr.bf16.mxu0 0
      %2099 = vmatpush1.bf16.msra.mxu0 %v2053
      %2100 = vmatprep.subr.bf16.mxu0 0
      %2101 = vmatpush1.bf16.msra.mxu0 %v2054
      %2102 = vmatprep.subr.bf16.mxu0 0
      %2103 = vmatpush1.bf16.msra.mxu0 %v2055
      %2104 = vmatprep.mubr.bf16.mxu0 %v1967
      %2105 = vmatmul.mubr.bf16.gmra.mrb[0].mxu0 %v1964
      %v2106 = vpop.f32.mrb[0].mxu0
      %v2107 = vadd.f32 0.0, %v2106
      %v2108 = vpop.f32.mrb[0].mxu0
      %v2109 = vpop.f32.mrb[0].mxu0
      %v2110 = vadd.f32 0.0, %v2109
      %v2111 = vpop.f32.mrb[0].mxu0
      %2112 = vmatprep.mubr.bf16.mxu0 %v1971
      %2113 = vmatmul.mubr.bf16.gmra.mrb[0].mxu0 %v1969
      %v2114 = vpop.f32.mrb[0].mxu0
      %v2115 = vadd.f32 0.0, %v2114
      %v2116 = vpop.f32.mrb[0].mxu0
      %v2117 = vpop.f32.mrb[0].mxu0
      %v2118 = vadd.f32 0.0, %v2117
      %v2119 = vpop.f32.mrb[0].mxu0
      %2120 = vdwg.mxu0
      %v2121 = vadd.f32 %v1924, %v2107
      %v2122 = vadd.f32 %v1925, %v2110
      %v2123 = vadd.f32 %v1926, %v2115
      %v2124 = vadd.f32 %v1927, %v2118
      %s2125 = scalar_lea.vmem %s2, 1152
      %v2126 = vld [vmem:[%s2125] sm:$0xf]
      %v2127 = vld [vmem:[%s2125 + $0x4] sm:$0xf]
      %v2128 = vld [vmem:[%s2125 + $0x8] sm:$0xf]
      %v2129 = vld [vmem:[%s2125 + $0xc] sm:$0xf]
      %v2130 = vld [vmem:[%s2125 + $0x10] sm:$0xf]
      %v2131 = vld [vmem:[%s2125 + $0x14] sm:$0xf]
      %v2132 = vld [vmem:[%s2125 + $0x18] sm:$0xf]
      %v2133 = vld [vmem:[%s2125 + $0x1c] sm:$0xf]
      %v2134 = vld [vmem:[%s2125 + $0x20] sm:$0xf]
      %v2135 = vld [vmem:[%s2125 + $0x24] sm:$0xf]
      %v2136 = vld [vmem:[%s2125 + $0x28] sm:$0xf]
      %v2137 = vld [vmem:[%s2125 + $0x2c] sm:$0xf]
      %v2138 = vld [vmem:[%s2125 + $0x30] sm:$0xf]
      %v2139 = vld [vmem:[%s2125 + $0x34] sm:$0xf]
      %v2140 = vld [vmem:[%s2125 + $0x38] sm:$0xf]
      %v2141 = vld [vmem:[%s2125 + $0x3c] sm:$0xf]
      %v2142 = vld [vmem:[%s2125 + $0x40] sm:$0xf]
      %v2143 = vld [vmem:[%s2125 + $0x44] sm:$0xf]
      %v2144 = vld [vmem:[%s2125 + $0x48] sm:$0xf]
      %v2145 = vld [vmem:[%s2125 + $0x4c] sm:$0xf]
      %v2146 = vld [vmem:[%s2125 + $0x50] sm:$0xf]
      %v2147 = vld [vmem:[%s2125 + $0x54] sm:$0xf]
      %v2148 = vld [vmem:[%s2125 + $0x58] sm:$0xf]
      %v2149 = vld [vmem:[%s2125 + $0x5c] sm:$0xf]
      %v2150 = vld [vmem:[%s2125 + $0x60] sm:$0xf]
      %v2151 = vld [vmem:[%s2125 + $0x64] sm:$0xf]
      %v2152 = vld [vmem:[%s2125 + $0x68] sm:$0xf]
      %v2153 = vld [vmem:[%s2125 + $0x6c] sm:$0xf]
      %v2154 = vld [vmem:[%s2125 + $0x70] sm:$0xf]
      %v2155 = vld [vmem:[%s2125 + $0x74] sm:$0xf]
      %v2156 = vld [vmem:[%s2125 + $0x78] sm:$0xf]
      %v2157 = vld [vmem:[%s2125 + $0x7c] sm:$0xf]
      %vm2158 = vsmask.f32 2304
      %v2159 = vrot.slane %v373, 5
      %v2160 = vrot.slane %v375, 6
      %v2161 = vor.u32 %v2159, %v2160
      %v2162 = vrot.slane %v396, 5
      %v2163 = vrot.slane %v380, 6
      %v2164 = vor.u32 %v2162, %v2163
      %v2165 = vsel %vm2158, %v2161, %v2164
      %v2166 = vrot.slane %v385, 5
      %v2167 = vrot.slane %v387, 6
      %v2168 = vor.u32 %v2166, %v2167
      %v2169 = vrot.slane %v404, 5
      %v2170 = vrot.slane %v392, 6
      %v2171 = vor.u32 %v2169, %v2170
      %v2172 = vsel %vm2158, %v2168, %v2171
      %v2173 = vrot.slane %v951, 5
      %v2174 = vrot.slane %v400, 6
      %v2175 = vor.u32 %v2173, %v2174
      %v2176 = vsel %vm2158, %v2164, %v2175
      %v2177 = vrot.slane %v957, 5
      %v2178 = vrot.slane %v408, 6
      %v2179 = vor.u32 %v2177, %v2178
      %v2180 = vsel %vm2158, %v2171, %v2179
      %v2217 = vunpack.c.l.b16 %v2126
      %v2218 = vunpack.c.l.b16 %v2127
      %v2219 = vunpack.c.l.b16 %v2128
      %v2220 = vunpack.c.l.b16 %v2129
      %v2221 = vunpack.c.l.b16 %v2130
      %v2222 = vunpack.c.l.b16 %v2131
      %v2223 = vunpack.c.l.b16 %v2132
      %v2224 = vunpack.c.l.b16 %v2133
      %v2225 = vunpack.c.l.b16 %v2134
      %v2226 = vunpack.c.l.b16 %v2135
      %v2227 = vunpack.c.l.b16 %v2136
      %v2228 = vunpack.c.l.b16 %v2137
      %v2229 = vunpack.c.l.b16 %v2138
      %v2230 = vunpack.c.l.b16 %v2139
      %v2231 = vunpack.c.l.b16 %v2140
      %v2232 = vunpack.c.l.b16 %v2141
      %v2233 = vunpack.c.l.b16 %v2142
      %v2234 = vunpack.c.l.b16 %v2143
      %v2235 = vunpack.c.l.b16 %v2144
      %v2236 = vunpack.c.l.b16 %v2145
      %v2237 = vunpack.c.l.b16 %v2146
      %v2238 = vunpack.c.l.b16 %v2147
      %v2239 = vunpack.c.l.b16 %v2148
      %v2240 = vunpack.c.l.b16 %v2149
      %v2241 = vunpack.c.l.b16 %v2150
      %v2242 = vunpack.c.l.b16 %v2151
      %v2243 = vunpack.c.l.b16 %v2152
      %v2244 = vunpack.c.l.b16 %v2153
      %v2245 = vunpack.c.l.b16 %v2154
      %v2246 = vunpack.c.l.b16 %v2155
      %v2247 = vunpack.c.l.b16 %v2156
      %v2248 = vunpack.c.l.b16 %v2157
      %v2249 = vpack.c.b16 %v2218, %v2217
      %v2250 = vpack.c.b16 %v2220, %v2219
      %v2251 = vpack.c.b16 %v2222, %v2221
      %v2252 = vpack.c.b16 %v2224, %v2223
      %v2253 = vpack.c.b16 %v2226, %v2225
      %v2254 = vpack.c.b16 %v2228, %v2227
      %v2255 = vpack.c.b16 %v2230, %v2229
      %v2256 = vpack.c.b16 %v2232, %v2231
      %v2257 = vpack.c.b16 %v2234, %v2233
      %v2258 = vpack.c.b16 %v2236, %v2235
      %v2259 = vpack.c.b16 %v2238, %v2237
      %v2260 = vpack.c.b16 %v2240, %v2239
      %v2261 = vpack.c.b16 %v2242, %v2241
      %v2262 = vpack.c.b16 %v2244, %v2243
      %v2263 = vpack.c.b16 %v2246, %v2245
      %v2264 = vpack.c.b16 %v2248, %v2247
      %2281 = vmatprep.subr.bf16.mxu0 0
      %2282 = vmatpush1.bf16.msra.mxu0 %v2249
      %2283 = vmatprep.subr.bf16.mxu0 0
      %2284 = vmatpush1.bf16.msra.mxu0 %v2250
      %2285 = vmatprep.subr.bf16.mxu0 0
      %2286 = vmatpush1.bf16.msra.mxu0 %v2251
      %2287 = vmatprep.subr.bf16.mxu0 0
      %2288 = vmatpush1.bf16.msra.mxu0 %v2252
      %2289 = vmatprep.subr.bf16.mxu0 0
      %2290 = vmatpush1.bf16.msra.mxu0 %v2253
      %2291 = vmatprep.subr.bf16.mxu0 0
      %2292 = vmatpush1.bf16.msra.mxu0 %v2254
      %2293 = vmatprep.subr.bf16.mxu0 0
      %2294 = vmatpush1.bf16.msra.mxu0 %v2255
      %2295 = vmatprep.subr.bf16.mxu0 0
      %2296 = vmatpush1.bf16.msra.mxu0 %v2256
      %2297 = vmatprep.subr.bf16.mxu0 0
      %2298 = vmatpush1.bf16.msra.mxu0 %v2257
      %2299 = vmatprep.subr.bf16.mxu0 0
      %2300 = vmatpush1.bf16.msra.mxu0 %v2258
      %2301 = vmatprep.subr.bf16.mxu0 0
      %2302 = vmatpush1.bf16.msra.mxu0 %v2259
      %2303 = vmatprep.subr.bf16.mxu0 0
      %2304 = vmatpush1.bf16.msra.mxu0 %v2260
      %2305 = vmatprep.subr.bf16.mxu0 0
      %2306 = vmatpush1.bf16.msra.mxu0 %v2261
      %2307 = vmatprep.subr.bf16.mxu0 0
      %2308 = vmatpush1.bf16.msra.mxu0 %v2262
      %2309 = vmatprep.subr.bf16.mxu0 0
      %2310 = vmatpush1.bf16.msra.mxu0 %v2263
      %2311 = vmatprep.subr.bf16.mxu0 0
      %2312 = vmatpush1.bf16.msra.mxu0 %v2264
      %2313 = vmatprep.mubr.bf16.mxu0 %v2172
      %2314 = vmatmul.mubr.bf16.gmra.mrb[0].mxu0 %v2165
      %v2315 = vpop.f32.mrb[0].mxu0
      %v2316 = vadd.f32 0.0, %v2315
      %v2317 = vpop.f32.mrb[0].mxu0
      %v2318 = vpop.f32.mrb[0].mxu0
      %v2319 = vadd.f32 0.0, %v2318
      %v2320 = vpop.f32.mrb[0].mxu0
      %2321 = vmatprep.mubr.bf16.mxu0 %v2180
      %2322 = vmatmul.mubr.bf16.gmra.mrb[0].mxu0 %v2176
      %v2323 = vpop.f32.mrb[0].mxu0
      %v2324 = vadd.f32 0.0, %v2323
      %v2325 = vpop.f32.mrb[0].mxu0
      %v2326 = vpop.f32.mrb[0].mxu0
      %v2327 = vadd.f32 0.0, %v2326
      %v2328 = vpop.f32.mrb[0].mxu0
      %2329 = vdwg.mxu0
      %v2330 = vadd.f32 %v2121, %v2316
      %v2331 = vadd.f32 %v2122, %v2319
      %v2332 = vadd.f32 %v2123, %v2324
      %v2333 = vadd.f32 %v2124, %v2327
      %s2334 = scalar_lea.vmem %s2, 1280
      %v2335 = vld [vmem:[%s2334] sm:$0xf]
      %v2336 = vld [vmem:[%s2334 + $0x4] sm:$0xf]
      %v2337 = vld [vmem:[%s2334 + $0x8] sm:$0xf]
      %v2338 = vld [vmem:[%s2334 + $0xc] sm:$0xf]
      %v2339 = vld [vmem:[%s2334 + $0x10] sm:$0xf]
      %v2340 = vld [vmem:[%s2334 + $0x14] sm:$0xf]
      %v2341 = vld [vmem:[%s2334 + $0x18] sm:$0xf]
      %v2342 = vld [vmem:[%s2334 + $0x1c] sm:$0xf]
      %v2343 = vld [vmem:[%s2334 + $0x20] sm:$0xf]
      %v2344 = vld [vmem:[%s2334 + $0x24] sm:$0xf]
      %v2345 = vld [vmem:[%s2334 + $0x28] sm:$0xf]
      %v2346 = vld [vmem:[%s2334 + $0x2c] sm:$0xf]
      %v2347 = vld [vmem:[%s2334 + $0x30] sm:$0xf]
      %v2348 = vld [vmem:[%s2334 + $0x34] sm:$0xf]
      %v2349 = vld [vmem:[%s2334 + $0x38] sm:$0xf]
      %v2350 = vld [vmem:[%s2334 + $0x3c] sm:$0xf]
      %v2351 = vld [vmem:[%s2334 + $0x40] sm:$0xf]
      %v2352 = vld [vmem:[%s2334 + $0x44] sm:$0xf]
      %v2353 = vld [vmem:[%s2334 + $0x48] sm:$0xf]
      %v2354 = vld [vmem:[%s2334 + $0x4c] sm:$0xf]
      %v2355 = vld [vmem:[%s2334 + $0x50] sm:$0xf]
      %v2356 = vld [vmem:[%s2334 + $0x54] sm:$0xf]
      %v2357 = vld [vmem:[%s2334 + $0x58] sm:$0xf]
      %v2358 = vld [vmem:[%s2334 + $0x5c] sm:$0xf]
      %v2359 = vld [vmem:[%s2334 + $0x60] sm:$0xf]
      %v2360 = vld [vmem:[%s2334 + $0x64] sm:$0xf]
      %v2361 = vld [vmem:[%s2334 + $0x68] sm:$0xf]
      %v2362 = vld [vmem:[%s2334 + $0x6c] sm:$0xf]
      %v2363 = vld [vmem:[%s2334 + $0x70] sm:$0xf]
      %v2364 = vld [vmem:[%s2334 + $0x74] sm:$0xf]
      %v2365 = vld [vmem:[%s2334 + $0x78] sm:$0xf]
      %v2366 = vld [vmem:[%s2334 + $0x7c] sm:$0xf]
      %vm2367 = vcmask 1041408
      %v2368 = vrot.slane %v280, 6
      %v2369 = vrot.slane %v282, 6
      %v2370 = vsel %vm2367, %v2368, %v2369
      %v2371 = vrot.slane %v281, 6
      %v2372 = vrot.slane %v283, 6
      %v2373 = vsel %vm2367, %v2371, %v2372
      %v2374 = vrot.slane %v300, 6
      %v2375 = vsel %vm2367, %v2369, %v2374
      %v2376 = vrot.slane %v301, 6
      %v2377 = vsel %vm2367, %v2372, %v2376
      %v2414 = vunpack.c.l.b16 %v2335
      %v2415 = vunpack.c.l.b16 %v2336
      %v2416 = vunpack.c.l.b16 %v2337
      %v2417 = vunpack.c.l.b16 %v2338
      %v2418 = vunpack.c.l.b16 %v2339
      %v2419 = vunpack.c.l.b16 %v2340
      %v2420 = vunpack.c.l.b16 %v2341
      %v2421 = vunpack.c.l.b16 %v2342
      %v2422 = vunpack.c.l.b16 %v2343
      %v2423 = vunpack.c.l.b16 %v2344
      %v2424 = vunpack.c.l.b16 %v2345
      %v2425 = vunpack.c.l.b16 %v2346
      %v2426 = vunpack.c.l.b16 %v2347
      %v2427 = vunpack.c.l.b16 %v2348
      %v2428 = vunpack.c.l.b16 %v2349
      %v2429 = vunpack.c.l.b16 %v2350
      %v2430 = vunpack.c.l.b16 %v2351
      %v2431 = vunpack.c.l.b16 %v2352
      %v2432 = vunpack.c.l.b16 %v2353
      %v2433 = vunpack.c.l.b16 %v2354
      %v2434 = vunpack.c.l.b16 %v2355
      %v2435 = vunpack.c.l.b16 %v2356
      %v2436 = vunpack.c.l.b16 %v2357
      %v2437 = vunpack.c.l.b16 %v2358
      %v2438 = vunpack.c.l.b16 %v2359
      %v2439 = vunpack.c.l.b16 %v2360
      %v2440 = vunpack.c.l.b16 %v2361
      %v2441 = vunpack.c.l.b16 %v2362
      %v2442 = vunpack.c.l.b16 %v2363
      %v2443 = vunpack.c.l.b16 %v2364
      %v2444 = vunpack.c.l.b16 %v2365
      %v2445 = vunpack.c.l.b16 %v2366
      %v2446 = vpack.c.b16 %v2415, %v2414
      %v2447 = vpack.c.b16 %v2417, %v2416
      %v2448 = vpack.c.b16 %v2419, %v2418
      %v2449 = vpack.c.b16 %v2421, %v2420
      %v2450 = vpack.c.b16 %v2423, %v2422
      %v2451 = vpack.c.b16 %v2425, %v2424
      %v2452 = vpack.c.b16 %v2427, %v2426
      %v2453 = vpack.c.b16 %v2429, %v2428
      %v2454 = vpack.c.b16 %v2431, %v2430
      %v2455 = vpack.c.b16 %v2433, %v2432
      %v2456 = vpack.c.b16 %v2435, %v2434
      %v2457 = vpack.c.b16 %v2437, %v2436
      %v2458 = vpack.c.b16 %v2439, %v2438
      %v2459 = vpack.c.b16 %v2441, %v2440
      %v2460 = vpack.c.b16 %v2443, %v2442
      %v2461 = vpack.c.b16 %v2445, %v2444
      %2478 = vmatprep.subr.bf16.mxu0 0
      %2479 = vmatpush1.bf16.msra.mxu0 %v2446
      %2480 = vmatprep.subr.bf16.mxu0 0
      %2481 = vmatpush1.bf16.msra.mxu0 %v2447
      %2482 = vmatprep.subr.bf16.mxu0 0
      %2483 = vmatpush1.bf16.msra.mxu0 %v2448
      %2484 = vmatprep.subr.bf16.mxu0 0
      %2485 = vmatpush1.bf16.msra.mxu0 %v2449
      %2486 = vmatprep.subr.bf16.mxu0 0
      %2487 = vmatpush1.bf16.msra.mxu0 %v2450
      %2488 = vmatprep.subr.bf16.mxu0 0
      %2489 = vmatpush1.bf16.msra.mxu0 %v2451
      %2490 = vmatprep.subr.bf16.mxu0 0
      %2491 = vmatpush1.bf16.msra.mxu0 %v2452
      %2492 = vmatprep.subr.bf16.mxu0 0
      %2493 = vmatpush1.bf16.msra.mxu0 %v2453
      %2494 = vmatprep.subr.bf16.mxu0 0
      %2495 = vmatpush1.bf16.msra.mxu0 %v2454
      %2496 = vmatprep.subr.bf16.mxu0 0
      %2497 = vmatpush1.bf16.msra.mxu0 %v2455
      %2498 = vmatprep.subr.bf16.mxu0 0
      %2499 = vmatpush1.bf16.msra.mxu0 %v2456
      %2500 = vmatprep.subr.bf16.mxu0 0
      %2501 = vmatpush1.bf16.msra.mxu0 %v2457
      %2502 = vmatprep.subr.bf16.mxu0 0
      %2503 = vmatpush1.bf16.msra.mxu0 %v2458
      %2504 = vmatprep.subr.bf16.mxu0 0
      %2505 = vmatpush1.bf16.msra.mxu0 %v2459
      %2506 = vmatprep.subr.bf16.mxu0 0
      %2507 = vmatpush1.bf16.msra.mxu0 %v2460
      %2508 = vmatprep.subr.bf16.mxu0 0
      %2509 = vmatpush1.bf16.msra.mxu0 %v2461
      %2510 = vmatprep.mubr.bf16.mxu0 %v2373
      %2511 = vmatmul.mubr.bf16.gmra.mrb[0].mxu0 %v2370
      %v2512 = vpop.f32.mrb[0].mxu0
      %v2513 = vadd.f32 0.0, %v2512
      %v2514 = vpop.f32.mrb[0].mxu0
      %v2515 = vpop.f32.mrb[0].mxu0
      %v2516 = vadd.f32 0.0, %v2515
      %v2517 = vpop.f32.mrb[0].mxu0
      %2518 = vmatprep.mubr.bf16.mxu0 %v2377
      %2519 = vmatmul.mubr.bf16.gmra.mrb[0].mxu0 %v2375
      %v2520 = vpop.f32.mrb[0].mxu0
      %v2521 = vadd.f32 0.0, %v2520
      %v2522 = vpop.f32.mrb[0].mxu0
      %v2523 = vpop.f32.mrb[0].mxu0
      %v2524 = vadd.f32 0.0, %v2523
      %v2525 = vpop.f32.mrb[0].mxu0
      %2526 = vdwg.mxu0
      %v2527 = vadd.f32 %v2330, %v2513
      %v2528 = vadd.f32 %v2331, %v2516
      %v2529 = vadd.f32 %v2332, %v2521
      %v2530 = vadd.f32 %v2333, %v2524
      %s2531 = scalar_lea.vmem %s2, 1408
      %v2532 = vld [vmem:[%s2531] sm:$0xf]
      %v2533 = vld [vmem:[%s2531 + $0x4] sm:$0xf]
      %v2534 = vld [vmem:[%s2531 + $0x8] sm:$0xf]
      %v2535 = vld [vmem:[%s2531 + $0xc] sm:$0xf]
      %v2536 = vld [vmem:[%s2531 + $0x10] sm:$0xf]
      %v2537 = vld [vmem:[%s2531 + $0x14] sm:$0xf]
      %v2538 = vld [vmem:[%s2531 + $0x18] sm:$0xf]
      %v2539 = vld [vmem:[%s2531 + $0x1c] sm:$0xf]
      %v2540 = vld [vmem:[%s2531 + $0x20] sm:$0xf]
      %v2541 = vld [vmem:[%s2531 + $0x24] sm:$0xf]
      %v2542 = vld [vmem:[%s2531 + $0x28] sm:$0xf]
      %v2543 = vld [vmem:[%s2531 + $0x2c] sm:$0xf]
      %v2544 = vld [vmem:[%s2531 + $0x30] sm:$0xf]
      %v2545 = vld [vmem:[%s2531 + $0x34] sm:$0xf]
      %v2546 = vld [vmem:[%s2531 + $0x38] sm:$0xf]
      %v2547 = vld [vmem:[%s2531 + $0x3c] sm:$0xf]
      %v2548 = vld [vmem:[%s2531 + $0x40] sm:$0xf]
      %v2549 = vld [vmem:[%s2531 + $0x44] sm:$0xf]
      %v2550 = vld [vmem:[%s2531 + $0x48] sm:$0xf]
      %v2551 = vld [vmem:[%s2531 + $0x4c] sm:$0xf]
      %v2552 = vld [vmem:[%s2531 + $0x50] sm:$0xf]
      %v2553 = vld [vmem:[%s2531 + $0x54] sm:$0xf]
      %v2554 = vld [vmem:[%s2531 + $0x58] sm:$0xf]
      %v2555 = vld [vmem:[%s2531 + $0x5c] sm:$0xf]
      %v2556 = vld [vmem:[%s2531 + $0x60] sm:$0xf]
      %v2557 = vld [vmem:[%s2531 + $0x64] sm:$0xf]
      %v2558 = vld [vmem:[%s2531 + $0x68] sm:$0xf]
      %v2559 = vld [vmem:[%s2531 + $0x6c] sm:$0xf]
      %v2560 = vld [vmem:[%s2531 + $0x70] sm:$0xf]
      %v2561 = vld [vmem:[%s2531 + $0x74] sm:$0xf]
      %v2562 = vld [vmem:[%s2531 + $0x78] sm:$0xf]
      %v2563 = vld [vmem:[%s2531 + $0x7c] sm:$0xf]
      %vm2564 = vsmask.f32 1280
      %v2565 = vrot.slane %v373, 6
      %v2566 = vrot.slane %v375, 7
      %v2567 = vor.u32 %v2565, %v2566
      %v2568 = vrot.slane %v396, 6
      %v2569 = vrot.slane %v380, 7
      %v2570 = vor.u32 %v2568, %v2569
      %v2571 = vsel %vm2564, %v2567, %v2570
      %v2572 = vrot.slane %v385, 6
      %v2573 = vrot.slane %v387, 7
      %v2574 = vor.u32 %v2572, %v2573
      %v2575 = vrot.slane %v404, 6
      %v2576 = vrot.slane %v392, 7
      %v2577 = vor.u32 %v2575, %v2576
      %v2578 = vsel %vm2564, %v2574, %v2577
      %v2579 = vrot.slane %v951, 6
      %v2580 = vrot.slane %v400, 7
      %v2581 = vor.u32 %v2579, %v2580
      %v2582 = vsel %vm2564, %v2570, %v2581
      %v2583 = vrot.slane %v957, 6
      %v2584 = vrot.slane %v408, 7
      %v2585 = vor.u32 %v2583, %v2584
      %v2586 = vsel %vm2564, %v2577, %v2585
      %v2623 = vunpack.c.l.b16 %v2532
      %v2624 = vunpack.c.l.b16 %v2533
      %v2625 = vunpack.c.l.b16 %v2534
      %v2626 = vunpack.c.l.b16 %v2535
      %v2627 = vunpack.c.l.b16 %v2536
      %v2628 = vunpack.c.l.b16 %v2537
      %v2629 = vunpack.c.l.b16 %v2538
      %v2630 = vunpack.c.l.b16 %v2539
      %v2631 = vunpack.c.l.b16 %v2540
      %v2632 = vunpack.c.l.b16 %v2541
      %v2633 = vunpack.c.l.b16 %v2542
      %v2634 = vunpack.c.l.b16 %v2543
      %v2635 = vunpack.c.l.b16 %v2544
      %v2636 = vunpack.c.l.b16 %v2545
      %v2637 = vunpack.c.l.b16 %v2546
      %v2638 = vunpack.c.l.b16 %v2547
      %v2639 = vunpack.c.l.b16 %v2548
      %v2640 = vunpack.c.l.b16 %v2549
      %v2641 = vunpack.c.l.b16 %v2550
      %v2642 = vunpack.c.l.b16 %v2551
      %v2643 = vunpack.c.l.b16 %v2552
      %v2644 = vunpack.c.l.b16 %v2553
      %v2645 = vunpack.c.l.b16 %v2554
      %v2646 = vunpack.c.l.b16 %v2555
      %v2647 = vunpack.c.l.b16 %v2556
      %v2648 = vunpack.c.l.b16 %v2557
      %v2649 = vunpack.c.l.b16 %v2558
      %v2650 = vunpack.c.l.b16 %v2559
      %v2651 = vunpack.c.l.b16 %v2560
      %v2652 = vunpack.c.l.b16 %v2561
      %v2653 = vunpack.c.l.b16 %v2562
      %v2654 = vunpack.c.l.b16 %v2563
      %v2655 = vpack.c.b16 %v2624, %v2623
      %v2656 = vpack.c.b16 %v2626, %v2625
      %v2657 = vpack.c.b16 %v2628, %v2627
      %v2658 = vpack.c.b16 %v2630, %v2629
      %v2659 = vpack.c.b16 %v2632, %v2631
      %v2660 = vpack.c.b16 %v2634, %v2633
      %v2661 = vpack.c.b16 %v2636, %v2635
      %v2662 = vpack.c.b16 %v2638, %v2637
      %v2663 = vpack.c.b16 %v2640, %v2639
      %v2664 = vpack.c.b16 %v2642, %v2641
      %v2665 = vpack.c.b16 %v2644, %v2643
      %v2666 = vpack.c.b16 %v2646, %v2645
      %v2667 = vpack.c.b16 %v2648, %v2647
      %v2668 = vpack.c.b16 %v2650, %v2649
      %v2669 = vpack.c.b16 %v2652, %v2651
      %v2670 = vpack.c.b16 %v2654, %v2653
      %2687 = vmatprep.subr.bf16.mxu0 0
      %2688 = vmatpush1.bf16.msra.mxu0 %v2655
      %2689 = vmatprep.subr.bf16.mxu0 0
      %2690 = vmatpush1.bf16.msra.mxu0 %v2656
      %2691 = vmatprep.subr.bf16.mxu0 0
      %2692 = vmatpush1.bf16.msra.mxu0 %v2657
      %2693 = vmatprep.subr.bf16.mxu0 0
      %2694 = vmatpush1.bf16.msra.mxu0 %v2658
      %2695 = vmatprep.subr.bf16.mxu0 0
      %2696 = vmatpush1.bf16.msra.mxu0 %v2659
      %2697 = vmatprep.subr.bf16.mxu0 0
      %2698 = vmatpush1.bf16.msra.mxu0 %v2660
      %2699 = vmatprep.subr.bf16.mxu0 0
      %2700 = vmatpush1.bf16.msra.mxu0 %v2661
      %2701 = vmatprep.subr.bf16.mxu0 0
      %2702 = vmatpush1.bf16.msra.mxu0 %v2662
      %2703 = vmatprep.subr.bf16.mxu0 0
      %2704 = vmatpush1.bf16.msra.mxu0 %v2663
      %2705 = vmatprep.subr.bf16.mxu0 0
      %2706 = vmatpush1.bf16.msra.mxu0 %v2664
      %2707 = vmatprep.subr.bf16.mxu0 0
      %2708 = vmatpush1.bf16.msra.mxu0 %v2665
      %2709 = vmatprep.subr.bf16.mxu0 0
      %2710 = vmatpush1.bf16.msra.mxu0 %v2666
      %2711 = vmatprep.subr.bf16.mxu0 0
      %2712 = vmatpush1.bf16.msra.mxu0 %v2667
      %2713 = vmatprep.subr.bf16.mxu0 0
      %2714 = vmatpush1.bf16.msra.mxu0 %v2668
      %2715 = vmatprep.subr.bf16.mxu0 0
      %2716 = vmatpush1.bf16.msra.mxu0 %v2669
      %2717 = vmatprep.subr.bf16.mxu0 0
      %2718 = vmatpush1.bf16.msra.mxu0 %v2670
      %2719 = vmatprep.mubr.bf16.mxu0 %v2578
      %2720 = vmatmul.mubr.bf16.gmra.mrb[0].mxu0 %v2571
      %v2721 = vpop.f32.mrb[0].mxu0
      %v2722 = vadd.f32 0.0, %v2721
      %v2723 = vpop.f32.mrb[0].mxu0
      %v2724 = vpop.f32.mrb[0].mxu0
      %v2725 = vadd.f32 0.0, %v2724
      %v2726 = vpop.f32.mrb[0].mxu0
      %2727 = vmatprep.mubr.bf16.mxu0 %v2586
      %2728 = vmatmul.mubr.bf16.gmra.mrb[0].mxu0 %v2582
      %v2729 = vpop.f32.mrb[0].mxu0
      %v2730 = vadd.f32 0.0, %v2729
      %v2731 = vpop.f32.mrb[0].mxu0
      %v2732 = vpop.f32.mrb[0].mxu0
      %v2733 = vadd.f32 0.0, %v2732
      %v2734 = vpop.f32.mrb[0].mxu0
      %2735 = vdwg.mxu0
      %v2736 = vadd.f32 %v2527, %v2722
      %v2737 = vadd.f32 %v2528, %v2725
      %v2738 = vadd.f32 %v2529, %v2730
      %v2739 = vadd.f32 %v2530, %v2733
      %s2740 = scalar_lea.vmem %s2, 1536
      %v2741 = vld [vmem:[%s2740] sm:$0xf]
      %v2742 = vld [vmem:[%s2740 + $0x4] sm:$0xf]
      %v2743 = vld [vmem:[%s2740 + $0x8] sm:$0xf]
      %v2744 = vld [vmem:[%s2740 + $0xc] sm:$0xf]
      %v2745 = vld [vmem:[%s2740 + $0x10] sm:$0xf]
      %v2746 = vld [vmem:[%s2740 + $0x14] sm:$0xf]
      %v2747 = vld [vmem:[%s2740 + $0x18] sm:$0xf]
      %v2748 = vld [vmem:[%s2740 + $0x1c] sm:$0xf]
      %v2749 = vld [vmem:[%s2740 + $0x20] sm:$0xf]
      %v2750 = vld [vmem:[%s2740 + $0x24] sm:$0xf]
      %v2751 = vld [vmem:[%s2740 + $0x28] sm:$0xf]
      %v2752 = vld [vmem:[%s2740 + $0x2c] sm:$0xf]
      %v2753 = vld [vmem:[%s2740 + $0x30] sm:$0xf]
      %v2754 = vld [vmem:[%s2740 + $0x34] sm:$0xf]
      %v2755 = vld [vmem:[%s2740 + $0x38] sm:$0xf]
      %v2756 = vld [vmem:[%s2740 + $0x3c] sm:$0xf]
      %v2757 = vld [vmem:[%s2740 + $0x40] sm:$0xf]
      %v2758 = vld [vmem:[%s2740 + $0x44] sm:$0xf]
      %v2759 = vld [vmem:[%s2740 + $0x48] sm:$0xf]
      %v2760 = vld [vmem:[%s2740 + $0x4c] sm:$0xf]
      %v2761 = vld [vmem:[%s2740 + $0x50] sm:$0xf]
      %v2762 = vld [vmem:[%s2740 + $0x54] sm:$0xf]
      %v2763 = vld [vmem:[%s2740 + $0x58] sm:$0xf]
      %v2764 = vld [vmem:[%s2740 + $0x5c] sm:$0xf]
      %v2765 = vld [vmem:[%s2740 + $0x60] sm:$0xf]
      %v2766 = vld [vmem:[%s2740 + $0x64] sm:$0xf]
      %v2767 = vld [vmem:[%s2740 + $0x68] sm:$0xf]
      %v2768 = vld [vmem:[%s2740 + $0x6c] sm:$0xf]
      %v2769 = vld [vmem:[%s2740 + $0x70] sm:$0xf]
      %v2770 = vld [vmem:[%s2740 + $0x74] sm:$0xf]
      %v2771 = vld [vmem:[%s2740 + $0x78] sm:$0xf]
      %v2772 = vld [vmem:[%s2740 + $0x7c] sm:$0xf]
      %vm2773 = vsmask.f32 256
      %v2774 = vrot.slane %v373, 7
      %v2775 = vrot.slane %v396, 7
      %v2776 = vor.u32 %v2775, %v380
      %v2777 = vsel %vm2773, %v2774, %v2776
      %v2778 = vrot.slane %v385, 7
      %v2779 = vrot.slane %v404, 7
      %v2780 = vor.u32 %v2779, %v392
      %v2781 = vsel %vm2773, %v2778, %v2780
      %v2782 = vrot.slane %v951, 7
      %v2783 = vor.u32 %v2782, %v400
      %v2784 = vsel %vm2773, %v2775, %v2783
      %v2785 = vrot.slane %v957, 7
      %v2786 = vor.u32 %v2785, %v408
      %v2787 = vsel %vm2773, %v2779, %v2786
      %v2824 = vunpack.c.l.b16 %v2741
      %v2825 = vunpack.c.l.b16 %v2742
      %v2826 = vunpack.c.l.b16 %v2743
      %v2827 = vunpack.c.l.b16 %v2744
      %v2828 = vunpack.c.l.b16 %v2745
      %v2829 = vunpack.c.l.b16 %v2746
      %v2830 = vunpack.c.l.b16 %v2747
      %v2831 = vunpack.c.l.b16 %v2748
      %v2832 = vunpack.c.l.b16 %v2749
      %v2833 = vunpack.c.l.b16 %v2750
      %v2834 = vunpack.c.l.b16 %v2751
      %v2835 = vunpack.c.l.b16 %v2752
      %v2836 = vunpack.c.l.b16 %v2753
      %v2837 = vunpack.c.l.b16 %v2754
      %v2838 = vunpack.c.l.b16 %v2755
      %v2839 = vunpack.c.l.b16 %v2756
      %v2840 = vunpack.c.l.b16 %v2757
      %v2841 = vunpack.c.l.b16 %v2758
      %v2842 = vunpack.c.l.b16 %v2759
      %v2843 = vunpack.c.l.b16 %v2760
      %v2844 = vunpack.c.l.b16 %v2761
      %v2845 = vunpack.c.l.b16 %v2762
      %v2846 = vunpack.c.l.b16 %v2763
      %v2847 = vunpack.c.l.b16 %v2764
      %v2848 = vunpack.c.l.b16 %v2765
      %v2849 = vunpack.c.l.b16 %v2766
      %v2850 = vunpack.c.l.b16 %v2767
      %v2851 = vunpack.c.l.b16 %v2768
      %v2852 = vunpack.c.l.b16 %v2769
      %v2853 = vunpack.c.l.b16 %v2770
      %v2854 = vunpack.c.l.b16 %v2771
      %v2855 = vunpack.c.l.b16 %v2772
      %v2856 = vpack.c.b16 %v2825, %v2824
      %v2857 = vpack.c.b16 %v2827, %v2826
      %v2858 = vpack.c.b16 %v2829, %v2828
      %v2859 = vpack.c.b16 %v2831, %v2830
      %v2860 = vpack.c.b16 %v2833, %v2832
      %v2861 = vpack.c.b16 %v2835, %v2834
      %v2862 = vpack.c.b16 %v2837, %v2836
      %v2863 = vpack.c.b16 %v2839, %v2838
      %v2864 = vpack.c.b16 %v2841, %v2840
      %v2865 = vpack.c.b16 %v2843, %v2842
      %v2866 = vpack.c.b16 %v2845, %v2844
      %v2867 = vpack.c.b16 %v2847, %v2846
      %v2868 = vpack.c.b16 %v2849, %v2848
      %v2869 = vpack.c.b16 %v2851, %v2850
      %v2870 = vpack.c.b16 %v2853, %v2852
      %v2871 = vpack.c.b16 %v2855, %v2854
      %2888 = vmatprep.subr.bf16.mxu0 0
      %2889 = vmatpush1.bf16.msra.mxu0 %v2856
      %2890 = vmatprep.subr.bf16.mxu0 0
      %2891 = vmatpush1.bf16.msra.mxu0 %v2857
      %2892 = vmatprep.subr.bf16.mxu0 0
      %2893 = vmatpush1.bf16.msra.mxu0 %v2858
      %2894 = vmatprep.subr.bf16.mxu0 0
      %2895 = vmatpush1.bf16.msra.mxu0 %v2859
      %2896 = vmatprep.subr.bf16.mxu0 0
      %2897 = vmatpush1.bf16.msra.mxu0 %v2860
      %2898 = vmatprep.subr.bf16.mxu0 0
      %2899 = vmatpush1.bf16.msra.mxu0 %v2861
      %2900 = vmatprep.subr.bf16.mxu0 0
      %2901 = vmatpush1.bf16.msra.mxu0 %v2862
      %2902 = vmatprep.subr.bf16.mxu0 0
      %2903 = vmatpush1.bf16.msra.mxu0 %v2863
      %2904 = vmatprep.subr.bf16.mxu0 0
      %2905 = vmatpush1.bf16.msra.mxu0 %v2864
      %2906 = vmatprep.subr.bf16.mxu0 0
      %2907 = vmatpush1.bf16.msra.mxu0 %v2865
      %2908 = vmatprep.subr.bf16.mxu0 0
      %2909 = vmatpush1.bf16.msra.mxu0 %v2866
      %2910 = vmatprep.subr.bf16.mxu0 0
      %2911 = vmatpush1.bf16.msra.mxu0 %v2867
      %2912 = vmatprep.subr.bf16.mxu0 0
      %2913 = vmatpush1.bf16.msra.mxu0 %v2868
      %2914 = vmatprep.subr.bf16.mxu0 0
      %2915 = vmatpush1.bf16.msra.mxu0 %v2869
      %2916 = vmatprep.subr.bf16.mxu0 0
      %2917 = vmatpush1.bf16.msra.mxu0 %v2870
      %2918 = vmatprep.subr.bf16.mxu0 0
      %2919 = vmatpush1.bf16.msra.mxu0 %v2871
      %2920 = vmatprep.mubr.bf16.mxu0 %v2781
      %2921 = vmatmul.mubr.bf16.gmra.mrb[0].mxu0 %v2777
      %v2922 = vpop.f32.mrb[0].mxu0
      %v2923 = vadd.f32 0.0, %v2922
      %v2924 = vpop.f32.mrb[0].mxu0
      %v2925 = vpop.f32.mrb[0].mxu0
      %v2926 = vadd.f32 0.0, %v2925
      %v2927 = vpop.f32.mrb[0].mxu0
      %2928 = vmatprep.mubr.bf16.mxu0 %v2787
      %2929 = vmatmul.mubr.bf16.gmra.mrb[0].mxu0 %v2784
      %v2930 = vpop.f32.mrb[0].mxu0
      %v2931 = vadd.f32 0.0, %v2930
      %v2932 = vpop.f32.mrb[0].mxu0
      %v2933 = vpop.f32.mrb[0].mxu0
      %v2934 = vadd.f32 0.0, %v2933
      %v2935 = vpop.f32.mrb[0].mxu0
      %2936 = vdwg.mxu0
      %v2937 = vadd.f32 %v2736, %v2923
      %v2938 = vadd.f32 %v2737, %v2926
      %v2939 = vadd.f32 %v2738, %v2931
      %v2940 = vadd.f32 %v2739, %v2934
      %s2941 = scalar_lea.vmem %s2, 1664
      %v2942 = vld [vmem:[%s2941] sm:$0xf]
      %v2943 = vld [vmem:[%s2941 + $0x4] sm:$0xf]
      %v2944 = vld [vmem:[%s2941 + $0x8] sm:$0xf]
      %v2945 = vld [vmem:[%s2941 + $0xc] sm:$0xf]
      %v2946 = vld [vmem:[%s2941 + $0x10] sm:$0xf]
      %v2947 = vld [vmem:[%s2941 + $0x14] sm:$0xf]
      %v2948 = vld [vmem:[%s2941 + $0x18] sm:$0xf]
      %v2949 = vld [vmem:[%s2941 + $0x1c] sm:$0xf]
      %v2950 = vld [vmem:[%s2941 + $0x20] sm:$0xf]
      %v2951 = vld [vmem:[%s2941 + $0x24] sm:$0xf]
      %v2952 = vld [vmem:[%s2941 + $0x28] sm:$0xf]
      %v2953 = vld [vmem:[%s2941 + $0x2c] sm:$0xf]
      %v2954 = vld [vmem:[%s2941 + $0x30] sm:$0xf]
      %v2955 = vld [vmem:[%s2941 + $0x34] sm:$0xf]
      %v2956 = vld [vmem:[%s2941 + $0x38] sm:$0xf]
      %v2957 = vld [vmem:[%s2941 + $0x3c] sm:$0xf]
      %v2958 = vld [vmem:[%s2941 + $0x40] sm:$0xf]
      %v2959 = vld [vmem:[%s2941 + $0x44] sm:$0xf]
      %v2960 = vld [vmem:[%s2941 + $0x48] sm:$0xf]
      %v2961 = vld [vmem:[%s2941 + $0x4c] sm:$0xf]
      %v2962 = vld [vmem:[%s2941 + $0x50] sm:$0xf]
      %v2963 = vld [vmem:[%s2941 + $0x54] sm:$0xf]
      %v2964 = vld [vmem:[%s2941 + $0x58] sm:$0xf]
      %v2965 = vld [vmem:[%s2941 + $0x5c] sm:$0xf]
      %v2966 = vld [vmem:[%s2941 + $0x60] sm:$0xf]
      %v2967 = vld [vmem:[%s2941 + $0x64] sm:$0xf]
      %v2968 = vld [vmem:[%s2941 + $0x68] sm:$0xf]
      %v2969 = vld [vmem:[%s2941 + $0x6c] sm:$0xf]
      %v2970 = vld [vmem:[%s2941 + $0x70] sm:$0xf]
      %v2971 = vld [vmem:[%s2941 + $0x74] sm:$0xf]
      %v2972 = vld [vmem:[%s2941 + $0x78] sm:$0xf]
      %v2973 = vld [vmem:[%s2941 + $0x7c] sm:$0xf]
      %v3006 = vunpack.c.l.b16 %v2942
      %v3007 = vunpack.c.l.b16 %v2943
      %v3008 = vunpack.c.l.b16 %v2944
      %v3009 = vunpack.c.l.b16 %v2945
      %v3010 = vunpack.c.l.b16 %v2946
      %v3011 = vunpack.c.l.b16 %v2947
      %v3012 = vunpack.c.l.b16 %v2948
      %v3013 = vunpack.c.l.b16 %v2949
      %v3014 = vunpack.c.l.b16 %v2950
      %v3015 = vunpack.c.l.b16 %v2951
      %v3016 = vunpack.c.l.b16 %v2952
      %v3017 = vunpack.c.l.b16 %v2953
      %v3018 = vunpack.c.l.b16 %v2954
      %v3019 = vunpack.c.l.b16 %v2955
      %v3020 = vunpack.c.l.b16 %v2956
      %v3021 = vunpack.c.l.b16 %v2957
      %v3022 = vunpack.c.l.b16 %v2958
      %v3023 = vunpack.c.l.b16 %v2959
      %v3024 = vunpack.c.l.b16 %v2960
      %v3025 = vunpack.c.l.b16 %v2961
      %v3026 = vunpack.c.l.b16 %v2962
      %v3027 = vunpack.c.l.b16 %v2963
      %v3028 = vunpack.c.l.b16 %v2964
      %v3029 = vunpack.c.l.b16 %v2965
      %v3030 = vunpack.c.l.b16 %v2966
      %v3031 = vunpack.c.l.b16 %v2967
      %v3032 = vunpack.c.l.b16 %v2968
      %v3033 = vunpack.c.l.b16 %v2969
      %v3034 = vunpack.c.l.b16 %v2970
      %v3035 = vunpack.c.l.b16 %v2971
      %v3036 = vunpack.c.l.b16 %v2972
      %v3037 = vunpack.c.l.b16 %v2973
      %v3038 = vpack.c.b16 %v3007, %v3006
      %v3039 = vpack.c.b16 %v3009, %v3008
      %v3040 = vpack.c.b16 %v3011, %v3010
      %v3041 = vpack.c.b16 %v3013, %v3012
      %v3042 = vpack.c.b16 %v3015, %v3014
      %v3043 = vpack.c.b16 %v3017, %v3016
      %v3044 = vpack.c.b16 %v3019, %v3018
      %v3045 = vpack.c.b16 %v3021, %v3020
      %v3046 = vpack.c.b16 %v3023, %v3022
      %v3047 = vpack.c.b16 %v3025, %v3024
      %v3048 = vpack.c.b16 %v3027, %v3026
      %v3049 = vpack.c.b16 %v3029, %v3028
      %v3050 = vpack.c.b16 %v3031, %v3030
      %v3051 = vpack.c.b16 %v3033, %v3032
      %v3052 = vpack.c.b16 %v3035, %v3034
      %v3053 = vpack.c.b16 %v3037, %v3036
      %3070 = vmatprep.subr.bf16.mxu0 0
      %3071 = vmatpush1.bf16.msra.mxu0 %v3038
      %3072 = vmatprep.subr.bf16.mxu0 0
      %3073 = vmatpush1.bf16.msra.mxu0 %v3039
      %3074 = vmatprep.subr.bf16.mxu0 0
      %3075 = vmatpush1.bf16.msra.mxu0 %v3040
      %3076 = vmatprep.subr.bf16.mxu0 0
      %3077 = vmatpush1.bf16.msra.mxu0 %v3041
      %3078 = vmatprep.subr.bf16.mxu0 0
      %3079 = vmatpush1.bf16.msra.mxu0 %v3042
      %3080 = vmatprep.subr.bf16.mxu0 0
      %3081 = vmatpush1.bf16.msra.mxu0 %v3043
      %3082 = vmatprep.subr.bf16.mxu0 0
      %3083 = vmatpush1.bf16.msra.mxu0 %v3044
      %3084 = vmatprep.subr.bf16.mxu0 0
      %3085 = vmatpush1.bf16.msra.mxu0 %v3045
      %3086 = vmatprep.subr.bf16.mxu0 0
      %3087 = vmatpush1.bf16.msra.mxu0 %v3046
      %3088 = vmatprep.subr.bf16.mxu0 0
      %3089 = vmatpush1.bf16.msra.mxu0 %v3047
      %3090 = vmatprep.subr.bf16.mxu0 0
      %3091 = vmatpush1.bf16.msra.mxu0 %v3048
      %3092 = vmatprep.subr.bf16.mxu0 0
      %3093 = vmatpush1.bf16.msra.mxu0 %v3049
      %3094 = vmatprep.subr.bf16.mxu0 0
      %3095 = vmatpush1.bf16.msra.mxu0 %v3050
      %3096 = vmatprep.subr.bf16.mxu0 0
      %3097 = vmatpush1.bf16.msra.mxu0 %v3051
      %3098 = vmatprep.subr.bf16.mxu0 0
      %3099 = vmatpush1.bf16.msra.mxu0 %v3052
      %3100 = vmatprep.subr.bf16.mxu0 0
      %3101 = vmatpush1.bf16.msra.mxu0 %v3053
      %3102 = vmatprep.mubr.bf16.mxu0 %v283
      %3103 = vmatmul.mubr.bf16.gmra.mrb[0].mxu0 %v282
      %v3104 = vpop.f32.mrb[0].mxu0
      %v3105 = vadd.f32 0.0, %v3104
      %v3106 = vpop.f32.mrb[0].mxu0
      %v3107 = vpop.f32.mrb[0].mxu0
      %v3108 = vadd.f32 0.0, %v3107
      %v3109 = vpop.f32.mrb[0].mxu0
      %3110 = vmatprep.mubr.bf16.mxu0 %v301
      %3111 = vmatmul.mubr.bf16.gmra.mrb[0].mxu0 %v300
      %v3112 = vpop.f32.mrb[0].mxu0
      %v3113 = vadd.f32 0.0, %v3112
      %v3114 = vpop.f32.mrb[0].mxu0
      %v3115 = vpop.f32.mrb[0].mxu0
      %v3116 = vadd.f32 0.0, %v3115
      %v3117 = vpop.f32.mrb[0].mxu0
      %3118 = vdwg.mxu0
      %v3119 = vadd.f32 %v2937, %v3105
      %v3120 = vadd.f32 %v2938, %v3108
      %v3121 = vadd.f32 %v2939, %v3113
      %v3122 = vadd.f32 %v2940, %v3116
      %s3123 = scalar_lea.vmem %s2, 1792
      %v3124 = vld [vmem:[%s3123] sm:$0xf]
      %v3125 = vld [vmem:[%s3123 + $0x4] sm:$0xf]
      %v3126 = vld [vmem:[%s3123 + $0x8] sm:$0xf]
      %v3127 = vld [vmem:[%s3123 + $0xc] sm:$0xf]
      %v3128 = vld [vmem:[%s3123 + $0x10] sm:$0xf]
      %v3129 = vld [vmem:[%s3123 + $0x14] sm:$0xf]
      %v3130 = vld [vmem:[%s3123 + $0x18] sm:$0xf]
      %v3131 = vld [vmem:[%s3123 + $0x1c] sm:$0xf]
      %v3132 = vld [vmem:[%s3123 + $0x20] sm:$0xf]
      %v3133 = vld [vmem:[%s3123 + $0x24] sm:$0xf]
      %v3134 = vld [vmem:[%s3123 + $0x28] sm:$0xf]
      %v3135 = vld [vmem:[%s3123 + $0x2c] sm:$0xf]
      %v3136 = vld [vmem:[%s3123 + $0x30] sm:$0xf]
      %v3137 = vld [vmem:[%s3123 + $0x34] sm:$0xf]
      %v3138 = vld [vmem:[%s3123 + $0x38] sm:$0xf]
      %v3139 = vld [vmem:[%s3123 + $0x3c] sm:$0xf]
      %v3140 = vld [vmem:[%s3123 + $0x40] sm:$0xf]
      %v3141 = vld [vmem:[%s3123 + $0x44] sm:$0xf]
      %v3142 = vld [vmem:[%s3123 + $0x48] sm:$0xf]
      %v3143 = vld [vmem:[%s3123 + $0x4c] sm:$0xf]
      %v3144 = vld [vmem:[%s3123 + $0x50] sm:$0xf]
      %v3145 = vld [vmem:[%s3123 + $0x54] sm:$0xf]
      %v3146 = vld [vmem:[%s3123 + $0x58] sm:$0xf]
      %v3147 = vld [vmem:[%s3123 + $0x5c] sm:$0xf]
      %v3148 = vld [vmem:[%s3123 + $0x60] sm:$0xf]
      %v3149 = vld [vmem:[%s3123 + $0x64] sm:$0xf]
      %v3150 = vld [vmem:[%s3123 + $0x68] sm:$0xf]
      %v3151 = vld [vmem:[%s3123 + $0x6c] sm:$0xf]
      %v3152 = vld [vmem:[%s3123 + $0x70] sm:$0xf]
      %v3153 = vld [vmem:[%s3123 + $0x74] sm:$0xf]
      %v3154 = vld [vmem:[%s3123 + $0x78] sm:$0xf]
      %v3155 = vld [vmem:[%s3123 + $0x7c] sm:$0xf]
      %v3156 = vor.u32 %v951, %v402
      %v3158 = vshll.u32 %v302, 16
      %v3160 = vrot.slane %v3158, 1
      %v3161 = vsel %vm371, %v3156, %v3160
      %v3162 = vor.u32 %v957, %v410
      %v3164 = vshll.u32 %v303, 16
      %v3166 = vrot.slane %v3164, 1
      %v3167 = vsel %vm371, %v3162, %v3166
      %v3202 = vunpack.c.l.b16 %v3124
      %v3203 = vunpack.c.l.b16 %v3125
      %v3204 = vunpack.c.l.b16 %v3126
      %v3205 = vunpack.c.l.b16 %v3127
      %v3206 = vunpack.c.l.b16 %v3128
      %v3207 = vunpack.c.l.b16 %v3129
      %v3208 = vunpack.c.l.b16 %v3130
      %v3209 = vunpack.c.l.b16 %v3131
      %v3210 = vunpack.c.l.b16 %v3132
      %v3211 = vunpack.c.l.b16 %v3133
      %v3212 = vunpack.c.l.b16 %v3134
      %v3213 = vunpack.c.l.b16 %v3135
      %v3214 = vunpack.c.l.b16 %v3136
      %v3215 = vunpack.c.l.b16 %v3137
      %v3216 = vunpack.c.l.b16 %v3138
      %v3217 = vunpack.c.l.b16 %v3139
      %v3218 = vunpack.c.l.b16 %v3140
      %v3219 = vunpack.c.l.b16 %v3141
      %v3220 = vunpack.c.l.b16 %v3142
      %v3221 = vunpack.c.l.b16 %v3143
      %v3222 = vunpack.c.l.b16 %v3144
      %v3223 = vunpack.c.l.b16 %v3145
      %v3224 = vunpack.c.l.b16 %v3146
      %v3225 = vunpack.c.l.b16 %v3147
      %v3226 = vunpack.c.l.b16 %v3148
      %v3227 = vunpack.c.l.b16 %v3149
      %v3228 = vunpack.c.l.b16 %v3150
      %v3229 = vunpack.c.l.b16 %v3151
      %v3230 = vunpack.c.l.b16 %v3152
      %v3231 = vunpack.c.l.b16 %v3153
      %v3232 = vunpack.c.l.b16 %v3154
      %v3233 = vunpack.c.l.b16 %v3155
      %v3234 = vpack.c.b16 %v3203, %v3202
      %v3235 = vpack.c.b16 %v3205, %v3204
      %v3236 = vpack.c.b16 %v3207, %v3206
      %v3237 = vpack.c.b16 %v3209, %v3208
      %v3238 = vpack.c.b16 %v3211, %v3210
      %v3239 = vpack.c.b16 %v3213, %v3212
      %v3240 = vpack.c.b16 %v3215, %v3214
      %v3241 = vpack.c.b16 %v3217, %v3216
      %v3242 = vpack.c.b16 %v3219, %v3218
      %v3243 = vpack.c.b16 %v3221, %v3220
      %v3244 = vpack.c.b16 %v3223, %v3222
      %v3245 = vpack.c.b16 %v3225, %v3224
      %v3246 = vpack.c.b16 %v3227, %v3226
      %v3247 = vpack.c.b16 %v3229, %v3228
      %v3248 = vpack.c.b16 %v3231, %v3230
      %v3249 = vpack.c.b16 %v3233, %v3232
      %3266 = vmatprep.subr.bf16.mxu0 0
      %3267 = vmatpush1.bf16.msra.mxu0 %v3234
      %3268 = vmatprep.subr.bf16.mxu0 0
      %3269 = vmatpush1.bf16.msra.mxu0 %v3235
      %3270 = vmatprep.subr.bf16.mxu0 0
      %3271 = vmatpush1.bf16.msra.mxu0 %v3236
      %3272 = vmatprep.subr.bf16.mxu0 0
      %3273 = vmatpush1.bf16.msra.mxu0 %v3237
      %3274 = vmatprep.subr.bf16.mxu0 0
      %3275 = vmatpush1.bf16.msra.mxu0 %v3238
      %3276 = vmatprep.subr.bf16.mxu0 0
      %3277 = vmatpush1.bf16.msra.mxu0 %v3239
      %3278 = vmatprep.subr.bf16.mxu0 0
      %3279 = vmatpush1.bf16.msra.mxu0 %v3240
      %3280 = vmatprep.subr.bf16.mxu0 0
      %3281 = vmatpush1.bf16.msra.mxu0 %v3241
      %3282 = vmatprep.subr.bf16.mxu0 0
      %3283 = vmatpush1.bf16.msra.mxu0 %v3242
      %3284 = vmatprep.subr.bf16.mxu0 0
      %3285 = vmatpush1.bf16.msra.mxu0 %v3243
      %3286 = vmatprep.subr.bf16.mxu0 0
      %3287 = vmatpush1.bf16.msra.mxu0 %v3244
      %3288 = vmatprep.subr.bf16.mxu0 0
      %3289 = vmatpush1.bf16.msra.mxu0 %v3245
      %3290 = vmatprep.subr.bf16.mxu0 0
      %3291 = vmatpush1.bf16.msra.mxu0 %v3246
      %3292 = vmatprep.subr.bf16.mxu0 0
      %3293 = vmatpush1.bf16.msra.mxu0 %v3247
      %3294 = vmatprep.subr.bf16.mxu0 0
      %3295 = vmatpush1.bf16.msra.mxu0 %v3248
      %3296 = vmatprep.subr.bf16.mxu0 0
      %3297 = vmatpush1.bf16.msra.mxu0 %v3249
      %3298 = vmatprep.mubr.bf16.mxu0 %v411
      %3299 = vmatmul.mubr.bf16.gmra.mrb[0].mxu0 %v403
      %v3300 = vpop.f32.mrb[0].mxu0
      %v3301 = vadd.f32 0.0, %v3300
      %v3302 = vpop.f32.mrb[0].mxu0
      %v3303 = vpop.f32.mrb[0].mxu0
      %v3304 = vadd.f32 0.0, %v3303
      %v3305 = vpop.f32.mrb[0].mxu0
      %3306 = vmatprep.mubr.bf16.mxu0 %v3167
      %3307 = vmatmul.mubr.bf16.gmra.mrb[0].mxu0 %v3161
      %v3308 = vpop.f32.mrb[0].mxu0
      %v3309 = vadd.f32 0.0, %v3308
      %v3310 = vpop.f32.mrb[0].mxu0
      %v3311 = vpop.f32.mrb[0].mxu0
      %v3312 = vadd.f32 0.0, %v3311
      %v3313 = vpop.f32.mrb[0].mxu0
      %3314 = vdwg.mxu0
      %v3315 = vadd.f32 %v3119, %v3301
      %v3316 = vadd.f32 %v3120, %v3304
      %v3317 = vadd.f32 %v3121, %v3309
      %v3318 = vadd.f32 %v3122, %v3312
      %s3319 = scalar_lea.vmem %s2, 1920
      %v3320 = vld [vmem:[%s3319] sm:$0xf]
      %v3321 = vld [vmem:[%s3319 + $0x4] sm:$0xf]
      %v3322 = vld [vmem:[%s3319 + $0x8] sm:$0xf]
      %v3323 = vld [vmem:[%s3319 + $0xc] sm:$0xf]
      %v3324 = vld [vmem:[%s3319 + $0x10] sm:$0xf]
      %v3325 = vld [vmem:[%s3319 + $0x14] sm:$0xf]
      %v3326 = vld [vmem:[%s3319 + $0x18] sm:$0xf]
      %v3327 = vld [vmem:[%s3319 + $0x1c] sm:$0xf]
      %v3328 = vld [vmem:[%s3319 + $0x20] sm:$0xf]
      %v3329 = vld [vmem:[%s3319 + $0x24] sm:$0xf]
      %v3330 = vld [vmem:[%s3319 + $0x28] sm:$0xf]
      %v3331 = vld [vmem:[%s3319 + $0x2c] sm:$0xf]
      %v3332 = vld [vmem:[%s3319 + $0x30] sm:$0xf]
      %v3333 = vld [vmem:[%s3319 + $0x34] sm:$0xf]
      %v3334 = vld [vmem:[%s3319 + $0x38] sm:$0xf]
      %v3335 = vld [vmem:[%s3319 + $0x3c] sm:$0xf]
      %v3336 = vld [vmem:[%s3319 + $0x40] sm:$0xf]
      %v3337 = vld [vmem:[%s3319 + $0x44] sm:$0xf]
      %v3338 = vld [vmem:[%s3319 + $0x48] sm:$0xf]
      %v3339 = vld [vmem:[%s3319 + $0x4c] sm:$0xf]
      %v3340 = vld [vmem:[%s3319 + $0x50] sm:$0xf]
      %v3341 = vld [vmem:[%s3319 + $0x54] sm:$0xf]
      %v3342 = vld [vmem:[%s3319 + $0x58] sm:$0xf]
      %v3343 = vld [vmem:[%s3319 + $0x5c] sm:$0xf]
      %v3344 = vld [vmem:[%s3319 + $0x60] sm:$0xf]
      %v3345 = vld [vmem:[%s3319 + $0x64] sm:$0xf]
      %v3346 = vld [vmem:[%s3319 + $0x68] sm:$0xf]
      %v3347 = vld [vmem:[%s3319 + $0x6c] sm:$0xf]
      %v3348 = vld [vmem:[%s3319 + $0x70] sm:$0xf]
      %v3349 = vld [vmem:[%s3319 + $0x74] sm:$0xf]
      %v3350 = vld [vmem:[%s3319 + $0x78] sm:$0xf]
      %v3351 = vld [vmem:[%s3319 + $0x7c] sm:$0xf]
      %v3352 = vrot.slane %v302, 1
      %v3353 = vsel %vm739, %v746, %v3352
      %v3354 = vrot.slane %v303, 1
      %v3355 = vsel %vm739, %v748, %v3354
      %v3390 = vunpack.c.l.b16 %v3320
      %v3391 = vunpack.c.l.b16 %v3321
      %v3392 = vunpack.c.l.b16 %v3322
      %v3393 = vunpack.c.l.b16 %v3323
      %v3394 = vunpack.c.l.b16 %v3324
      %v3395 = vunpack.c.l.b16 %v3325
      %v3396 = vunpack.c.l.b16 %v3326
      %v3397 = vunpack.c.l.b16 %v3327
      %v3398 = vunpack.c.l.b16 %v3328
      %v3399 = vunpack.c.l.b16 %v3329
      %v3400 = vunpack.c.l.b16 %v3330
      %v3401 = vunpack.c.l.b16 %v3331
      %v3402 = vunpack.c.l.b16 %v3332
      %v3403 = vunpack.c.l.b16 %v3333
      %v3404 = vunpack.c.l.b16 %v3334
      %v3405 = vunpack.c.l.b16 %v3335
      %v3406 = vunpack.c.l.b16 %v3336
      %v3407 = vunpack.c.l.b16 %v3337
      %v3408 = vunpack.c.l.b16 %v3338
      %v3409 = vunpack.c.l.b16 %v3339
      %v3410 = vunpack.c.l.b16 %v3340
      %v3411 = vunpack.c.l.b16 %v3341
      %v3412 = vunpack.c.l.b16 %v3342
      %v3413 = vunpack.c.l.b16 %v3343
      %v3414 = vunpack.c.l.b16 %v3344
      %v3415 = vunpack.c.l.b16 %v3345
      %v3416 = vunpack.c.l.b16 %v3346
      %v3417 = vunpack.c.l.b16 %v3347
      %v3418 = vunpack.c.l.b16 %v3348
      %v3419 = vunpack.c.l.b16 %v3349
      %v3420 = vunpack.c.l.b16 %v3350
      %v3421 = vunpack.c.l.b16 %v3351
      %v3422 = vpack.c.b16 %v3391, %v3390
      %v3423 = vpack.c.b16 %v3393, %v3392
      %v3424 = vpack.c.b16 %v3395, %v3394
      %v3425 = vpack.c.b16 %v3397, %v3396
      %v3426 = vpack.c.b16 %v3399, %v3398
      %v3427 = vpack.c.b16 %v3401, %v3400
      %v3428 = vpack.c.b16 %v3403, %v3402
      %v3429 = vpack.c.b16 %v3405, %v3404
      %v3430 = vpack.c.b16 %v3407, %v3406
      %v3431 = vpack.c.b16 %v3409, %v3408
      %v3432 = vpack.c.b16 %v3411, %v3410
      %v3433 = vpack.c.b16 %v3413, %v3412
      %v3434 = vpack.c.b16 %v3415, %v3414
      %v3435 = vpack.c.b16 %v3417, %v3416
      %v3436 = vpack.c.b16 %v3419, %v3418
      %v3437 = vpack.c.b16 %v3421, %v3420
      %3454 = vmatprep.subr.bf16.mxu0 0
      %3455 = vmatpush1.bf16.msra.mxu0 %v3422
      %3456 = vmatprep.subr.bf16.mxu0 0
      %3457 = vmatpush1.bf16.msra.mxu0 %v3423
      %3458 = vmatprep.subr.bf16.mxu0 0
      %3459 = vmatpush1.bf16.msra.mxu0 %v3424
      %3460 = vmatprep.subr.bf16.mxu0 0
      %3461 = vmatpush1.bf16.msra.mxu0 %v3425
      %3462 = vmatprep.subr.bf16.mxu0 0
      %3463 = vmatpush1.bf16.msra.mxu0 %v3426
      %3464 = vmatprep.subr.bf16.mxu0 0
      %3465 = vmatpush1.bf16.msra.mxu0 %v3427
      %3466 = vmatprep.subr.bf16.mxu0 0
      %3467 = vmatpush1.bf16.msra.mxu0 %v3428
      %3468 = vmatprep.subr.bf16.mxu0 0
      %3469 = vmatpush1.bf16.msra.mxu0 %v3429
      %3470 = vmatprep.subr.bf16.mxu0 0
      %3471 = vmatpush1.bf16.msra.mxu0 %v3430
      %3472 = vmatprep.subr.bf16.mxu0 0
      %3473 = vmatpush1.bf16.msra.mxu0 %v3431
      %3474 = vmatprep.subr.bf16.mxu0 0
      %3475 = vmatpush1.bf16.msra.mxu0 %v3432
      %3476 = vmatprep.subr.bf16.mxu0 0
      %3477 = vmatpush1.bf16.msra.mxu0 %v3433
      %3478 = vmatprep.subr.bf16.mxu0 0
      %3479 = vmatpush1.bf16.msra.mxu0 %v3434
      %3480 = vmatprep.subr.bf16.mxu0 0
      %3481 = vmatpush1.bf16.msra.mxu0 %v3435
      %3482 = vmatprep.subr.bf16.mxu0 0
      %3483 = vmatpush1.bf16.msra.mxu0 %v3436
      %3484 = vmatprep.subr.bf16.mxu0 0
      %3485 = vmatpush1.bf16.msra.mxu0 %v3437
      %3486 = vmatprep.mubr.bf16.mxu0 %v749
      %3487 = vmatmul.mubr.bf16.gmra.mrb[0].mxu0 %v747
      %v3488 = vpop.f32.mrb[0].mxu0
      %v3489 = vadd.f32 0.0, %v3488
      %v3490 = vpop.f32.mrb[0].mxu0
      %v3491 = vpop.f32.mrb[0].mxu0
      %v3492 = vadd.f32 0.0, %v3491
      %v3493 = vpop.f32.mrb[0].mxu0
      %3494 = vmatprep.mubr.bf16.mxu0 %v3355
      %3495 = vmatmul.mubr.bf16.gmra.mrb[0].mxu0 %v3353
      %v3496 = vpop.f32.mrb[0].mxu0
      %v3497 = vadd.f32 0.0, %v3496
      %v3498 = vpop.f32.mrb[0].mxu0
      %v3499 = vpop.f32.mrb[0].mxu0
      %v3500 = vadd.f32 0.0, %v3499
      %v3501 = vpop.f32.mrb[0].mxu0
      %3502 = vdwg.mxu0
      %v3503 = vadd.f32 %v3315, %v3489
      %v3504 = vadd.f32 %v3316, %v3492
      %v3505 = vadd.f32 %v3317, %v3497
      %v3506 = vadd.f32 %v3318, %v3500
      %3507 = vst [vmem:[%s257] sm:$0xff] %v3503
      %3508 = vst [vmem:[%s257 + $0x8] sm:$0xff] %v3504
      %3509 = vst [vmem:[%s257 + $0x10] sm:$0xff] %v3505
      %3510 = vst [vmem:[%s257 + $0x18] sm:$0xff] %v3506
      %s3511 = smul.u32 4, %s19
      %p3512 = scmp.lt.s32.totalorder %s18, 1
      %s3513 = scalar_select %p3512, %s18, 1
      %p3514 = scmp.lt.s32.totalorder %s3511, 3
      %s3515 = scalar_select %p3514, %s3511, 3
      %s3516 = smul.addr %s3513, 4
      %s3517 = sadd.s32 %s3515, %s3516
      %s3518 = smul.addr %s3517, 8
      %s3519 = scalar_lea.vmem %s3, %s3518
      // Predicated region
      $region33: #{discriminator_forward.7} parent=31 // pred_check
        %p3520 = pneg %p125
      $region34: #{discriminator_forward.7} parent=31 // pred_check_branch
        %3522 = sbr.rel (%p3520) target = $region36
      $region35: #{discriminator_forward.7} parent=31 // pred_region
        %s3523 = smul.u32 4, %s19
      $region36: #{discriminator_forward.7} parent=31 // pred_fallthru
        _
    $region32: #{discriminator_forward.7} parent=5 // pred_fallthru
      _
    %p3524 = scmp.le.s32.totalorder 2, %s9
    // Predicated region
    $region37: #{discriminator_forward.7} parent=5 // pred_check
      %p3525 = pneg %p3524
    $region38: #{discriminator_forward.7} parent=5 // pred_check_branch
      %3527 = sbr.rel (%p3525) target = $region40
    $region39: #{discriminator_forward.7} parent=5 // pred_region
      %s3528 = ssub.s32 %s9, 2
      // Predicated region
      $region41: #{discriminator_forward.7} parent=39 // pred_check
        %p3529 = pneg %p131
      $region42: #{discriminator_forward.7} parent=39 // pred_check_branch
        %3531 = sbr.rel (%p3529) target = $region44
      $region43: #{discriminator_forward.7} parent=39 // pred_region
        %s3532 = smul.u32 4, %s21
        %p3533 = scmp.lt.s32.totalorder %s20, 1
        %s3534 = scalar_select %p3533, %s20, 1
        %p3535 = scmp.lt.s32.totalorder %s3532, 3
        %s3536 = scalar_select %p3535, %s3532, 3
        %s3537 = smul.addr %s3534, 4
        %s3538 = sadd.s32 %s3536, %s3537
        %s3539 = smul.addr %s3538, 8
        %s3540 = scalar_lea.vmem %s3, %s3539
      $region44: #{discriminator_forward.7} parent=39 // pred_fallthru
        _
    $region40: #{discriminator_forward.7} parent=5 // pred_fallthru
      _
  $region6: #{discriminator_forward.7} parent=0 // loop_footer
    %s13 = sadd.s32 1, %s9
  $region7: #{discriminator_forward.7} parent=0 // loop_footer_branch
    %8 = sbr.rel target = $region3
  $region8: #{discriminator_forward.7} parent=0 // loop_exit
    _

</llo_original>
